<compile_context>
chip_gen: v6e
topology: v6e:2x2x1
jax: 0.10.0
libtpu: 0.0.40
codegen_flags: <defaults>
</compile_context>

<pallas_src>
import functools

import jax
import jax.numpy as jnp
from jax.experimental import pallas as pl
from jax.experimental.pallas import tpu as pltpu

# ------------- module-consistent configuration (R(2+1)D ResNet, BasicBlock) ------------
BLOCK_INPLANES = [8, 16, 32, 64]   # block_inplanes
LAYERS = [1, 1, 1, 1]              # one BasicBlock per stage (ResNet-10 style)
N_INPUT_CHANNELS = 3
CONV1_T_SIZE = 3
CONV1_T_STRIDE = 1
NO_MAX_POOL = False
WIDEN_FACTOR = 1.0
N_CLASSES = 5
BLOCK_EXPANSION = 1                # BasicBlock.expansion
BN_EPS = 1e-5

TM_MAX = 2048                       # rows (N*T*H*W) per M-tile (perf: 512 -> 2048)
SINGLE_TILE_MAX = 256               # above this, force >=2 M-tiles (v7x has 2 TCs)
VMEM_LIMIT = 48 * 1024 * 1024       # <=48 MiB: safe on v7x (64 MiB phys), raises the
                                    # default scoped cap on v5e/v6e
ACT_DTYPE = jnp.bfloat16            # activations + inter-pass intermediates in bf16

_VMEM = pl.BlockSpec(memory_space=pltpu.MemorySpace.VMEM)


def _round_up(x, m):
    return ((x + m - 1) // m) * m


def _cdiv(a, b):
    return -(-a // b)


def _cparams(n_axes):
    return pltpu.CompilerParams(
        dimension_semantics=("parallel",) * n_axes,
        vmem_limit_bytes=VMEM_LIMIT)


# ----------------------------------- Pallas kernels ------------------------------------
def _fused_conv_bn_kernel(*refs, m, apply_relu, has_residual):
    # Small-M fused path: bf16 MXU matmul (f32 accum) + BN(batch stats) +
    # optional residual add + ReLU.  Output channels padded to 128 lanes, bf16 out.
    if has_residual:
        p_ref, w_ref, g_ref, b_ref, r_ref, o_ref = refs
    else:
        p_ref, w_ref, g_ref, b_ref, o_ref = refs
    y = jnp.dot(p_ref[...], w_ref[...], preferred_element_type=jnp.float32)
    inv_m = 1.0 / m                                   # m = real (unpadded) row count
    mean = jnp.sum(y, axis=0, keepdims=True) * inv_m  # padded rows are zero -> exact
    var = jnp.maximum(jnp.sum(y * y, axis=0, keepdims=True) * inv_m - mean * mean, 0.0)
    rstd = jax.lax.rsqrt(var + BN_EPS)
    out = (y - mean) * (rstd * g_ref[...]) + b_ref[...]
    if has_residual:
        out = out + r_ref[...].astype(jnp.float32)
    if apply_relu:
        out = jnp.maximum(out, 0.0)
    o_ref[...] = out.astype(o_ref.dtype)


def _matmul_stats_kernel(p_ref, w_ref, y_ref, s_ref, ss_ref):
    # Tiled path, pass 1: per-tile matmul (f32 accum, bf16 store) + per-tile f32 partial
    # sum / sum-of-squares so BN statistics can be reduced globally afterwards.
    y = jnp.dot(p_ref[...], w_ref[...], preferred_element_type=jnp.float32)
    y_ref[...] = y.astype(y_ref.dtype)
    s = jnp.sum(y, axis=0, keepdims=True)
    ss = jnp.sum(y * y, axis=0, keepdims=True)
    s_ref[...] = jnp.broadcast_to(s, s_ref.shape)
    ss_ref[...] = jnp.broadcast_to(ss, ss_ref.shape)


def _bn_act_kernel(*refs, apply_relu, has_residual):
    # Tiled path, pass 2: y*scale + shift (+residual) (+ReLU), lane-dense bf16 tiles.
    if has_residual:
        y_ref, sc_ref, sh_ref, r_ref, o_ref = refs
    else:
        y_ref, sc_ref, sh_ref, o_ref = refs
    out = y_ref[...].astype(jnp.float32) * sc_ref[...] + sh_ref[...]
    if has_residual:
        out = out + r_ref[...].astype(jnp.float32)
    if apply_relu:
        out = jnp.maximum(out, 0.0)
    o_ref[...] = out.astype(o_ref.dtype)


def _avgpool_fc_kernel(x_ref, w_ref, b_ref, o_ref):
    # AdaptiveAvgPool3d((1,1,1)) + flatten + Linear (tiny, single call).
    feat = jnp.mean(x_ref[...].astype(jnp.float32), axis=1)          # [N, C]
    o_ref[...] = jnp.dot(feat, w_ref[...],
                         preferred_element_type=jnp.float32) + b_ref[...]


# -------------------------------- Pallas-call wrappers ---------------------------------
def _conv_bn_act(patches, arrs, cmeta, apply_relu, residual2d=None):
    """patches: [M, K] (taps,Cin K-order).  Returns [M, Cout] bf16 conv+BN(+res)(+ReLU)."""
    m, k = patches.shape
    cp, cout = cmeta['cp'], cmeta['cout']
    patches = patches.astype(ACT_DTYPE)

    if m <= SINGLE_TILE_MAX:
        tm, ntiles = _round_up(m, 16), 1
    else:
        # always >=2 tiles so the "parallel" grid shards across both v7x TensorCores
        ntiles = max(2, _cdiv(m, TM_MAX))
        tm = _round_up(_cdiv(m, ntiles), 16)
        ntiles = _cdiv(m, tm)
    mp = tm * ntiles
    if mp != m:
        patches = jnp.pad(patches, ((0, mp - m), (0, 0)))

    res_p = None
    if residual2d is not None:
        res_p = jnp.pad(residual2d.astype(ACT_DTYPE),
                        ((0, mp - m), (0, cp - residual2d.shape[1])))

    if ntiles == 1:
        # Fully fused single-tile kernel (stats over the whole M in one invocation).
        kern = functools.partial(_fused_conv_bn_kernel, m=m,
                                 apply_relu=apply_relu,
                                 has_residual=res_p is not None)
        args = [patches, arrs['wm'], arrs['g'], arrs['b']]
        if res_p is not None:
            args.append(res_p)
        out = pl.pallas_call(
            kern,
            out_shape=jax.ShapeDtypeStruct((mp, cp), ACT_DTYPE),
            in_specs=[_VMEM] * len(args),
            out_specs=_VMEM,
            compiler_params=pltpu.CompilerParams(vmem_limit_bytes=VMEM_LIMIT),
        )(*args)
        return out[:m, :cout]

    # ---- tiled path: pass 1 (matmul + per-tile partial BN sums) ----
    y, ps, pss = pl.pallas_call(
        _matmul_stats_kernel,
        grid=(ntiles,),
        in_specs=[pl.BlockSpec((tm, k), lambda i: (i, 0)),
                  pl.BlockSpec((k, cp), lambda i: (0, 0))],
        out_specs=[pl.BlockSpec((tm, cp), lambda i: (i, 0)),
                   pl.BlockSpec((8, cp), lambda i: (i, 0)),
                   pl.BlockSpec((8, cp), lambda i: (i, 0))],
        out_shape=[jax.ShapeDtypeStruct((mp, cp), ACT_DTYPE),
                   jax.ShapeDtypeStruct((ntiles * 8, cp), jnp.float32),
                   jax.ShapeDtypeStruct((ntiles * 8, cp), jnp.float32)],
        compiler_params=_cparams(1),
    )(patches, arrs['wm'])

    # tiny cross-tile reduction + affine fold in XLA (f32)
    total = jnp.sum(ps.reshape(ntiles, 8, cp)[:, 0, :], axis=0)
    total_sq = jnp.sum(pss.reshape(ntiles, 8, cp)[:, 0, :], axis=0)
    mean = total / m
    var = jnp.maximum(total_sq / m - mean * mean, 0.0)
    rstd = jax.lax.rsqrt(var + BN_EPS)
    scale = arrs['g'] * rstd                    # (1, cp)
    shift = arrs['b'] - mean * scale            # (1, cp)

    # ---- pass 2 (normalize + residual + relu), lane-dense, parallel grid ----
    kern = functools.partial(_bn_act_kernel, apply_relu=apply_relu,
                             has_residual=res_p is not None)
    in_specs = [pl.BlockSpec((tm, cp), lambda i: (i, 0)),
                pl.BlockSpec((1, cp), lambda i: (0, 0)),
                pl.BlockSpec((1, cp), lambda i: (0, 0))]
    args = [y, scale, shift]
    if res_p is not None:
        in_specs.append(pl.BlockSpec((tm, cp), lambda i: (i, 0)))
        args.append(res_p)
    out = pl.pallas_call(
        kern,
        grid=(ntiles,),
        in_specs=in_specs,
        out_specs=pl.BlockSpec((tm, cp), lambda i: (i, 0)),
        out_shape=jax.ShapeDtypeStruct((mp, cp), ACT_DTYPE),
        compiler_params=_cparams(1),
    )(*args)
    return out[:m, :cout]


def conv_spatial(x, arrs, cmeta, stride, apply_relu):
    # Conv3d kernel (1, kh, kw), stride (1, s, s), padding (0, kh//2, kw//2), bias=False
    n, t, h, wd, cin = x.shape
    kh, kw = cmeta['kh'], cmeta['kw']
    ph, pw = kh // 2, kw // 2
    ho = (h + 2 * ph - kh) // stride + 1
    wo = (wd + 2 * pw - kw) // stride + 1
    xp = jnp.pad(x, ((0, 0), (0, 0), (ph, ph), (pw, pw), (0, 0)))
    cols = []
    for dh in range(kh):
        for dw in range(kw):
            cols.append(xp[:, :, dh:dh + stride * ho:stride,
                           dw:dw + stride * wo:stride, :])
    # stack gives [N,T,Ho,Wo,taps,Cin]; the weight is pre-permuted to matching K-order
    # (taps, Cin), so NO runtime transpose of the im2col-expanded tensor is needed.
    patches = jnp.stack(cols, axis=4).reshape(n * t * ho * wo, kh * kw * cin)
    y = _conv_bn_act(patches, arrs, cmeta, apply_relu)
    return y.reshape(n, t, ho, wo, cmeta['cout'])


def conv_temporal(x, arrs, cmeta, stride, apply_relu, residual=None):
    # Conv3d kernel (kt, 1, 1), stride (s, 1, 1), padding (kt//2, 0, 0), bias=False
    n, t, h, wd, cin = x.shape
    kt = cmeta['kt']
    pt = kt // 2
    to = (t + 2 * pt - kt) // stride + 1
    xp = jnp.pad(x, ((0, 0), (pt, pt), (0, 0), (0, 0), (0, 0)))
    cols = [xp[:, dt:dt + stride * to:stride, :, :, :] for dt in range(kt)]
    patches = jnp.stack(cols, axis=4).reshape(n * to * h * wd, kt * cin)
    res2d = None
    if residual is not None:
        res2d = residual.reshape(n * to * h * wd, residual.shape[-1])
    y = _conv_bn_act(patches, arrs, cmeta, apply_relu, res2d)
    return y.reshape(n, to, h, wd, cmeta['cout'])


def _pool1d(x, axis):
    # 1-D max pool, kernel 3, stride 2, padding 1 along `axis` (separable piece of the
    # 3x3x3 MaxPool3d; no 27x stacked buffer, three fused elementwise maxima on bf16).
    size = x.shape[axis]
    out_size = (size + 2 - 3) // 2 + 1
    pad_cfg = [(0, 0)] * x.ndim
    pad_cfg[axis] = (1, 1)
    xp = jnp.pad(x, pad_cfg, constant_values=-jnp.inf)

    def sl(off):
        idx = [slice(None)] * x.ndim
        idx[axis] = slice(off, off + 2 * out_size, 2)
        return xp[tuple(idx)]

    return jnp.maximum(jnp.maximum(sl(0), sl(1)), sl(2))


def maxpool3d(x):
    # MaxPool3d(kernel_size=3, stride=2, padding=1) as three separable 1-D pools.
    x = _pool1d(x, 3)   # W
    x = _pool1d(x, 2)   # H
    x = _pool1d(x, 1)   # T
    return x


def avgpool_fc(x, fc_w, fc_b):
    n, t, h, wd, c = x.shape
    feats = x.reshape(n, t * h * wd, c)
    return pl.pallas_call(
        _avgpool_fc_kernel,
        out_shape=jax.ShapeDtypeStruct((n, fc_w.shape[1]), jnp.float32),
        in_specs=[_VMEM, _VMEM, _VMEM],
        out_specs=_VMEM,
        compiler_params=pltpu.CompilerParams(vmem_limit_bytes=VMEM_LIMIT),
    )(feats, fc_w, fc_b.reshape(1, -1))


def downsample_basic_block(x, planes, stride):
    # F.avg_pool3d(kernel_size=1, stride=stride) == strided subsample; zero-pad channels.
    out = x[:, ::stride, ::stride, ::stride, :]
    pad_c = planes - out.shape[-1]
    if pad_c > 0:
        out = jnp.pad(out, ((0, 0), (0, 0), (0, 0), (0, 0), (0, pad_c)))
    return out


# --------------------------------- model construction ----------------------------------
def _kaiming_conv(key, shape):
    # kaiming_normal_(mode='fan_out', nonlinearity='relu'); shape = (Cout, Cin, kt, kh, kw)
    fan_out = shape[0] * shape[2] * shape[3] * shape[4]
    std = (2.0 / fan_out) ** 0.5
    return std * jax.random.normal(key, shape, dtype=jnp.float32)


def _prep_conv(w, kt=1, kh=1, kw=1):
    # Pre-permute the weight so its K rows are in the same (taps, Cin) order the im2col
    # gather produces (removes the runtime patches transpose), pad Cout to a lane-dense
    # multiple of 128, cast to bf16 once.  Static metadata goes in a separate dict so it
    # is never traced by jit.
    cout, cin = int(w.shape[0]), int(w.shape[1])
    k = cin * kt * kh * kw
    cp = _round_up(cout, 128)
    wm = jnp.transpose(w, (2, 3, 4, 1, 0)).reshape(k, cout)      # K-order (kt,kh,kw,Cin)
    wm = jnp.pad(wm, ((0, 0), (0, cp - cout))).astype(jnp.bfloat16)
    g = jnp.pad(jnp.ones((cout,), jnp.float32), (0, cp - cout)).reshape(1, cp)  # gamma=1
    b = jnp.zeros((1, cp), jnp.float32)                                          # beta=0
    arrs = {'wm': wm, 'g': g, 'b': b}
    meta = {'kt': kt, 'kh': kh, 'kw': kw, 'cout': cout, 'cp': cp}
    return arrs, meta


def build_model(key):
    keys = iter(jax.random.split(key, 64))
    params, meta = {}, {}
    block_inplanes = [int(x * WIDEN_FACTOR) for x in BLOCK_INPLANES]
    in_planes = block_inplanes[0]

    n_3d = 3 * in_planes * CONV1_T_SIZE * 7 * 7
    n_2p1d = 3 * 7 * 7 + CONV1_T_SIZE * in_planes
    mid_planes = n_3d // n_2p1d

    a, m = _prep_conv(_kaiming_conv(next(keys), (mid_planes, N_INPUT_CHANNELS, 1, 7, 7)),
                      kh=7, kw=7)
    params['conv1_s'], meta['conv1_s'] = a, m
    a, m = _prep_conv(_kaiming_conv(next(keys),
                                    (in_planes, mid_planes, CONV1_T_SIZE, 1, 1)),
                      kt=CONV1_T_SIZE)
    params['conv1_t'], meta['conv1_t'] = a, m

    layer_params, layer_meta = [], []
    cur = in_planes
    for li, planes in enumerate(block_inplanes):
        layer_stride = 1 if li == 0 else 2
        blocks_p, blocks_m = [], []
        for bi in range(LAYERS[li]):
            s = layer_stride if bi == 0 else 1
            downsample = (s != 1) or (cur != planes * BLOCK_EXPANSION)
            mid1 = (cur * planes * 27) // (cur * 9 + 3 * planes)
            mid2 = (planes * planes * 27) // (planes * 9 + 3 * planes)
            bp, bm = {}, {}
            bp['c1s'], bm['c1s'] = _prep_conv(
                _kaiming_conv(next(keys), (mid1, cur, 1, 3, 3)), kh=3, kw=3)
            bp['c1t'], bm['c1t'] = _prep_conv(
                _kaiming_conv(next(keys), (planes, mid1, 3, 1, 1)), kt=3)
            bp['c2s'], bm['c2s'] = _prep_conv(
                _kaiming_conv(next(keys), (mid2, planes, 1, 3, 3)), kh=3, kw=3)
            bp['c2t'], bm['c2t'] = _prep_conv(
                _kaiming_conv(next(keys), (planes, mid2, 3, 1, 1)), kt=3)
            bm['stride'] = s
            bm['downsample'] = downsample
            bm['planes'] = planes * BLOCK_EXPANSION
            blocks_p.append(bp)
            blocks_m.append(bm)
            cur = planes * BLOCK_EXPANSION
        layer_params.append(blocks_p)
        layer_meta.append(blocks_m)
    params['layers'] = layer_params
    meta['layers'] = layer_meta

    c_final = block_inplanes[3] * BLOCK_EXPANSION
    bound = 1.0 / (c_final ** 0.5)
    params['fc_w'] = jax.random.uniform(next(keys), (c_final, N_CLASSES),
                                        jnp.float32, -bound, bound)
    params['fc_b'] = jax.random.uniform(next(keys), (N_CLASSES,),
                                        jnp.float32, -bound, bound)
    return params, meta


# -------------------------------------- forward ----------------------------------------
def basic_block_forward(x, bp, bm):
    stride = bm['stride']
    out = conv_spatial(x, bp['c1s'], bm['c1s'], stride, True)
    out = conv_temporal(out, bp['c1t'], bm['c1t'], stride, True)
    out = conv_spatial(out, bp['c2s'], bm['c2s'], 1, True)
    residual = x
    if bm['downsample']:
        residual = downsample_basic_block(x, bm['planes'], stride)
    # residual add + ReLU fused into the final conv's BN epilogue
    return conv_temporal(out, bp['c2t'], bm['c2t'], 1, True, residual=residual)


def resnet_forward(params, x_ncdhw, meta):
    # PyTorch NCDHW -> NDHWC; activations carried in bf16 (f32 MXU accumulation inside).
    x = jnp.transpose(x_ncdhw, (0, 2, 3, 4, 1)).astype(ACT_DTYPE)
    x = conv_spatial(x, params['conv1_s'], meta['conv1_s'], 2, True)
    x = conv_temporal(x, params['conv1_t'], meta['conv1_t'], CONV1_T_STRIDE, True)
    if not NO_MAX_POOL:
        x = maxpool3d(x)
    for lp, lm in zip(params['layers'], meta['layers']):
        for bp, bm in zip(lp, lm):
            x = basic_block_forward(x, bp, bm)
    return avgpool_fc(x, params['fc_w'], params['fc_b'])


if __name__ == "__main__":
    key = jax.random.PRNGKey(0)
    pkey, xkey = jax.random.split(key)
    params, meta = build_model(pkey)

    # PyTorch-style input: NCDHW = (N, C, T, H, W)
    x = jax.random.normal(xkey, (2, N_INPUT_CHANNELS, 4, 16, 16), dtype=jnp.float32)

    # `meta` (static Python ints/bools) is closed over, NOT passed as a traced argument.
    fwd = jax.jit(lambda p, xx: resnet_forward(p, xx, meta))
    out = fwd(params, x)
    out = jax.block_until_ready(out)
    assert out.shape == (2, N_CLASSES), out.shape
    assert bool(jnp.all(jnp.isfinite(out)))
    print("KERNEL_OK")
</pallas_src>

<mosaic_0001>
module attributes {stable_mosaic.version = 11 : i64} {
  func.func @_matmul_stats_kernel(%arg0: i32, %arg1: memref<256x147xbf16, #tpu.memory_space<vmem>>, %arg2: memref<147x128xbf16, #tpu.memory_space<vmem>>, %arg3: memref<256x128xbf16, #tpu.memory_space<vmem>>, %arg4: memref<8x128xf32, #tpu.memory_space<vmem>>, %arg5: memref<8x128xf32, #tpu.memory_space<vmem>>) attributes {dimension_semantics = [#tpu.dimension_semantics<parallel>], iteration_bounds = array<i64: 2>, scalar_prefetch = 0 : i64, scratch_operands = 0 : i64, tpu.core_type = #tpu.core_type<tc>, window_params = [{transform_indices = @transform_0, window_bounds = array<i64: 256, 147>}, {pipeline_mode = #tpu.pipeline_mode<synchronous>, transform_indices = @transform_1, window_bounds = array<i64: 147, 128>}, {transform_indices = @transform_2, window_bounds = array<i64: 256, 128>}, {transform_indices = @transform_3, window_bounds = array<i64: 8, 128>}, {transform_indices = @transform_4, window_bounds = array<i64: 8, 128>}]} {
    %c0 = arith.constant 0 : index
    %c0_0 = arith.constant 0 : index
    %0 = vector.load %arg1[%c0, %c0_0] : memref<256x147xbf16, #tpu.memory_space<vmem>>, vector<256x147xbf16>
    %c0_1 = arith.constant 0 : index
    %c0_2 = arith.constant 0 : index
    %1 = vector.load %arg2[%c0_1, %c0_2] : memref<147x128xbf16, #tpu.memory_space<vmem>>, vector<147x128xbf16>
    %cst = arith.constant dense<0.000000e+00> : vector<256x128xf32>
    %2 = tpu.matmul %0, %1, %cst {dimension_numbers = #tpu.dot_dimension_numbers<[1], [0], [0], [1], [0, 0, 1, 1], [], []>} : vector<256x147xbf16>, vector<147x128xbf16>, vector<256x128xf32> -> vector<256x128xf32>
    %3 = arith.truncf %2 : vector<256x128xf32> to vector<256x128xbf16>
    %c0_3 = arith.constant 0 : index
    %c0_4 = arith.constant 0 : index
    %4 = vector.load %arg3[%c0_3, %c0_4] : memref<256x128xbf16, #tpu.memory_space<vmem>>, vector<256x128xbf16>
    tpu.vector_store %arg3[%c0_3, %c0_4], %3 {strides = array<i32>} : memref<256x128xbf16, #tpu.memory_space<vmem>>, vector<256x128xbf16>,
    %cst_5 = arith.constant dense<0.000000e+00> : vector<128xf32>
    %5 = vector.multi_reduction <add>, %2, %cst_5 [0] : vector<256x128xf32> to vector<128xf32>
    %6 = vector.shape_cast %5 : vector<128xf32> to vector<1x128xf32>
    %7 = arith.mulf %2, %2 : vector<256x128xf32>
    %cst_6 = arith.constant dense<0.000000e+00> : vector<128xf32>
    %8 = vector.multi_reduction <add>, %7, %cst_6 [0] : vector<256x128xf32> to vector<128xf32>
    %9 = vector.shape_cast %8 : vector<128xf32> to vector<1x128xf32>
    %10 = vector.shape_cast %6 : vector<1x128xf32> to vector<1x128xf32>
    %11 = vector.broadcast %10 : vector<1x128xf32> to vector<8x128xf32>
    %c0_7 = arith.constant 0 : index
    %c0_8 = arith.constant 0 : index
    %12 = vector.load %arg4[%c0_7, %c0_8] : memref<8x128xf32, #tpu.memory_space<vmem>>, vector<8x128xf32>
    tpu.vector_store %arg4[%c0_7, %c0_8], %11 {strides = array<i32>} : memref<8x128xf32, #tpu.memory_space<vmem>>, vector<8x128xf32>,
    %13 = vector.shape_cast %9 : vector<1x128xf32> to vector<1x128xf32>
    %14 = vector.broadcast %13 : vector<1x128xf32> to vector<8x128xf32>
    %c0_9 = arith.constant 0 : index
    %c0_10 = arith.constant 0 : index
    %15 = vector.load %arg5[%c0_9, %c0_10] : memref<8x128xf32, #tpu.memory_space<vmem>>, vector<8x128xf32>
    tpu.vector_store %arg5[%c0_9, %c0_10], %14 {strides = array<i32>} : memref<8x128xf32, #tpu.memory_space<vmem>>, vector<8x128xf32>,
    return
  }
  func.func @transform_0(%arg0: i32) -> (i32, i32) {
    %c0_i32 = arith.constant 0 : i32
    %c0_i32_0 = arith.constant 0 : i32
    return %arg0, %c0_i32 : i32, i32
  }
  func.func @transform_1(%arg0: i32) -> (i32, i32) {
    %c0_i32 = arith.constant 0 : i32
    %c0_i32_0 = arith.constant 0 : i32
    %c0_i32_1 = arith.constant 0 : i32
    return %c0_i32, %c0_i32_0 : i32, i32
  }
  func.func @transform_2(%arg0: i32) -> (i32, i32) {
    %c0_i32 = arith.constant 0 : i32
    %c0_i32_0 = arith.constant 0 : i32
    return %arg0, %c0_i32 : i32, i32
  }
  func.func @transform_3(%arg0: i32) -> (i32, i32) {
    %c0_i32 = arith.constant 0 : i32
    %c0_i32_0 = arith.constant 0 : i32
    return %arg0, %c0_i32 : i32, i32
  }
  func.func @transform_4(%arg0: i32) -> (i32, i32) {
    %c0_i32 = arith.constant 0 : i32
    %c0_i32_0 = arith.constant 0 : i32
    return %arg0, %c0_i32 : i32, i32
  }
}

module attributes {stable_mosaic.version = 11 : i64} {
  func.func @_bn_act_kernel(%arg0: i32, %arg1: memref<256x128xbf16, #tpu.memory_space<vmem>>, %arg2: memref<1x128xf32, #tpu.memory_space<vmem>>, %arg3: memref<1x128xf32, #tpu.memory_space<vmem>>, %arg4: memref<256x128xbf16, #tpu.memory_space<vmem>>) attributes {dimension_semantics = [#tpu.dimension_semantics<parallel>], iteration_bounds = array<i64: 2>, scalar_prefetch = 0 : i64, scratch_operands = 0 : i64, tpu.core_type = #tpu.core_type<tc>, window_params = [{transform_indices = @transform_0, window_bounds = array<i64: 256, 128>}, {pipeline_mode = #tpu.pipeline_mode<synchronous>, transform_indices = @transform_1, window_bounds = array<i64: 1, 128>}, {pipeline_mode = #tpu.pipeline_mode<synchronous>, transform_indices = @transform_2, window_bounds = array<i64: 1, 128>}, {transform_indices = @transform_3, window_bounds = array<i64: 256, 128>}]} {
    %c0 = arith.constant 0 : index
    %c0_0 = arith.constant 0 : index
    %0 = vector.load %arg1[%c0, %c0_0] : memref<256x128xbf16, #tpu.memory_space<vmem>>, vector<256x128xbf16>
    %1 = arith.extf %0 : vector<256x128xbf16> to vector<256x128xf32>
    %c0_1 = arith.constant 0 : index
    %c0_2 = arith.constant 0 : index
    %2 = vector.load %arg2[%c0_1, %c0_2] : memref<1x128xf32, #tpu.memory_space<vmem>>, vector<1x128xf32>
    %3 = vector.broadcast %2 : vector<1x128xf32> to vector<256x128xf32>
    %4 = arith.mulf %1, %3 : vector<256x128xf32>
    %c0_3 = arith.constant 0 : index
    %c0_4 = arith.constant 0 : index
    %5 = vector.load %arg3[%c0_3, %c0_4] : memref<1x128xf32, #tpu.memory_space<vmem>>, vector<1x128xf32>
    %6 = vector.broadcast %5 : vector<1x128xf32> to vector<256x128xf32>
    %7 = arith.addf %4, %6 : vector<256x128xf32>
    %cst = arith.constant 0.000000e+00 : f32
    %8 = vector.broadcast %cst : f32 to vector<256x128xf32>
    %9 = arith.maximumf %7, %8 : vector<256x128xf32>
    %10 = arith.truncf %9 : vector<256x128xf32> to vector<256x128xbf16>
    %c0_5 = arith.constant 0 : index
    %c0_6 = arith.constant 0 : index
    %11 = vector.load %arg4[%c0_5, %c0_6] : memref<256x128xbf16, #tpu.memory_space<vmem>>, vector<256x128xbf16>
    tpu.vector_store %arg4[%c0_5, %c0_6], %10 {strides = array<i32>} : memref<256x128xbf16, #tpu.memory_space<vmem>>, vector<256x128xbf16>,
    return
  }
  func.func @transform_0(%arg0: i32) -> (i32, i32) {
    %c0_i32 = arith.constant 0 : i32
    %c0_i32_0 = arith.constant 0 : i32
    return %arg0, %c0_i32 : i32, i32
  }
  func.func @transform_1(%arg0: i32) -> (i32, i32) {
    %c0_i32 = arith.constant 0 : i32
    %c0_i32_0 = arith.constant 0 : i32
    %c0_i32_1 = arith.constant 0 : i32
    return %c0_i32, %c0_i32_0 : i32, i32
  }
  func.func @transform_2(%arg0: i32) -> (i32, i32) {
    %c0_i32 = arith.constant 0 : i32
    %c0_i32_0 = arith.constant 0 : i32
    %c0_i32_1 = arith.constant 0 : i32
    return %c0_i32, %c0_i32_0 : i32, i32
  }
  func.func @transform_3(%arg0: i32) -> (i32, i32) {
    %c0_i32 = arith.constant 0 : i32
    %c0_i32_0 = arith.constant 0 : i32
    return %arg0, %c0_i32 : i32, i32
  }
}

module attributes {stable_mosaic.version = 11 : i64} {
  func.func @_matmul_stats_kernel(%arg0: i32, %arg1: memref<256x60xbf16, #tpu.memory_space<vmem>>, %arg2: memref<60x128xbf16, #tpu.memory_space<vmem>>, %arg3: memref<256x128xbf16, #tpu.memory_space<vmem>>, %arg4: memref<8x128xf32, #tpu.memory_space<vmem>>, %arg5: memref<8x128xf32, #tpu.memory_space<vmem>>) attributes {dimension_semantics = [#tpu.dimension_semantics<parallel>], iteration_bounds = array<i64: 2>, scalar_prefetch = 0 : i64, scratch_operands = 0 : i64, tpu.core_type = #tpu.core_type<tc>, window_params = [{transform_indices = @transform_0, window_bounds = array<i64: 256, 60>}, {pipeline_mode = #tpu.pipeline_mode<synchronous>, transform_indices = @transform_1, window_bounds = array<i64: 60, 128>}, {transform_indices = @transform_2, window_bounds = array<i64: 256, 128>}, {transform_indices = @transform_3, window_bounds = array<i64: 8, 128>}, {transform_indices = @transform_4, window_bounds = array<i64: 8, 128>}]} {
    %c0 = arith.constant 0 : index
    %c0_0 = arith.constant 0 : index
    %0 = vector.load %arg1[%c0, %c0_0] : memref<256x60xbf16, #tpu.memory_space<vmem>>, vector<256x60xbf16>
    %c0_1 = arith.constant 0 : index
    %c0_2 = arith.constant 0 : index
    %1 = vector.load %arg2[%c0_1, %c0_2] : memref<60x128xbf16, #tpu.memory_space<vmem>>, vector<60x128xbf16>
    %cst = arith.constant dense<0.000000e+00> : vector<256x128xf32>
    %2 = tpu.matmul %0, %1, %cst {dimension_numbers = #tpu.dot_dimension_numbers<[1], [0], [0], [1], [0, 0, 1, 1], [], []>} : vector<256x60xbf16>, vector<60x128xbf16>, vector<256x128xf32> -> vector<256x128xf32>
    %3 = arith.truncf %2 : vector<256x128xf32> to vector<256x128xbf16>
    %c0_3 = arith.constant 0 : index
    %c0_4 = arith.constant 0 : index
    %4 = vector.load %arg3[%c0_3, %c0_4] : memref<256x128xbf16, #tpu.memory_space<vmem>>, vector<256x128xbf16>
    tpu.vector_store %arg3[%c0_3, %c0_4], %3 {strides = array<i32>} : memref<256x128xbf16, #tpu.memory_space<vmem>>, vector<256x128xbf16>,
    %cst_5 = arith.constant dense<0.000000e+00> : vector<128xf32>
    %5 = vector.multi_reduction <add>, %2, %cst_5 [0] : vector<256x128xf32> to vector<128xf32>
    %6 = vector.shape_cast %5 : vector<128xf32> to vector<1x128xf32>
    %7 = arith.mulf %2, %2 : vector<256x128xf32>
    %cst_6 = arith.constant dense<0.000000e+00> : vector<128xf32>
    %8 = vector.multi_reduction <add>, %7, %cst_6 [0] : vector<256x128xf32> to vector<128xf32>
    %9 = vector.shape_cast %8 : vector<128xf32> to vector<1x128xf32>
    %10 = vector.shape_cast %6 : vector<1x128xf32> to vector<1x128xf32>
    %11 = vector.broadcast %10 : vector<1x128xf32> to vector<8x128xf32>
    %c0_7 = arith.constant 0 : index
    %c0_8 = arith.constant 0 : index
    %12 = vector.load %arg4[%c0_7, %c0_8] : memref<8x128xf32, #tpu.memory_space<vmem>>, vector<8x128xf32>
    tpu.vector_store %arg4[%c0_7, %c0_8], %11 {strides = array<i32>} : memref<8x128xf32, #tpu.memory_space<vmem>>, vector<8x128xf32>,
    %13 = vector.shape_cast %9 : vector<1x128xf32> to vector<1x128xf32>
    %14 = vector.broadcast %13 : vector<1x128xf32> to vector<8x128xf32>
    %c0_9 = arith.constant 0 : index
    %c0_10 = arith.constant 0 : index
    %15 = vector.load %arg5[%c0_9, %c0_10] : memref<8x128xf32, #tpu.memory_space<vmem>>, vector<8x128xf32>
    tpu.vector_store %arg5[%c0_9, %c0_10], %14 {strides = array<i32>} : memref<8x128xf32, #tpu.memory_space<vmem>>, vector<8x128xf32>,
    return
  }
  func.func @transform_0(%arg0: i32) -> (i32, i32) {
    %c0_i32 = arith.constant 0 : i32
    %c0_i32_0 = arith.constant 0 : i32
    return %arg0, %c0_i32 : i32, i32
  }
  func.func @transform_1(%arg0: i32) -> (i32, i32) {
    %c0_i32 = arith.constant 0 : i32
    %c0_i32_0 = arith.constant 0 : i32
    %c0_i32_1 = arith.constant 0 : i32
    return %c0_i32, %c0_i32_0 : i32, i32
  }
  func.func @transform_2(%arg0: i32) -> (i32, i32) {
    %c0_i32 = arith.constant 0 : i32
    %c0_i32_0 = arith.constant 0 : i32
    return %arg0, %c0_i32 : i32, i32
  }
  func.func @transform_3(%arg0: i32) -> (i32, i32) {
    %c0_i32 = arith.constant 0 : i32
    %c0_i32_0 = arith.constant 0 : i32
    return %arg0, %c0_i32 : i32, i32
  }
  func.func @transform_4(%arg0: i32) -> (i32, i32) {
    %c0_i32 = arith.constant 0 : i32
    %c0_i32_0 = arith.constant 0 : i32
    return %arg0, %c0_i32 : i32, i32
  }
}

module attributes {stable_mosaic.version = 11 : i64} {
  func.func @_fused_conv_bn_kernel(%arg0: memref<64x72xbf16, #tpu.memory_space<vmem>>, %arg1: memref<72x128xbf16, #tpu.memory_space<vmem>>, %arg2: memref<1x128xf32, #tpu.memory_space<vmem>>, %arg3: memref<1x128xf32, #tpu.memory_space<vmem>>, %arg4: memref<64x128xbf16, #tpu.memory_space<vmem>>) attributes {dimension_semantics = [], scalar_prefetch = 0 : i64, scratch_operands = 0 : i64, tpu.core_type = #tpu.core_type<tc>} {
    %c0 = arith.constant 0 : index
    %c0_0 = arith.constant 0 : index
    %0 = vector.load %arg0[%c0, %c0_0] : memref<64x72xbf16, #tpu.memory_space<vmem>>, vector<64x72xbf16>
    %c0_1 = arith.constant 0 : index
    %c0_2 = arith.constant 0 : index
    %1 = vector.load %arg1[%c0_1, %c0_2] : memref<72x128xbf16, #tpu.memory_space<vmem>>, vector<72x128xbf16>
    %cst = arith.constant dense<0.000000e+00> : vector<64x128xf32>
    %2 = tpu.matmul %0, %1, %cst {dimension_numbers = #tpu.dot_dimension_numbers<[1], [0], [0], [1], [0, 0, 1, 1], [], []>} : vector<64x72xbf16>, vector<72x128xbf16>, vector<64x128xf32> -> vector<64x128xf32>
    %cst_3 = arith.constant dense<0.000000e+00> : vector<128xf32>
    %3 = vector.multi_reduction <add>, %2, %cst_3 [0] : vector<64x128xf32> to vector<128xf32>
    %4 = vector.shape_cast %3 : vector<128xf32> to vector<1x128xf32>
    %cst_4 = arith.constant 1.562500e-02 : f32
    %5 = vector.broadcast %cst_4 : f32 to vector<1x128xf32>
    %6 = arith.mulf %4, %5 : vector<1x128xf32>
    %7 = arith.mulf %2, %2 : vector<64x128xf32>
    %cst_5 = arith.constant dense<0.000000e+00> : vector<128xf32>
    %8 = vector.multi_reduction <add>, %7, %cst_5 [0] : vector<64x128xf32> to vector<128xf32>
    %9 = vector.shape_cast %8 : vector<128xf32> to vector<1x128xf32>
    %cst_6 = arith.constant 1.562500e-02 : f32
    %10 = vector.broadcast %cst_6 : f32 to vector<1x128xf32>
    %11 = arith.mulf %9, %10 : vector<1x128xf32>
    %12 = arith.mulf %6, %6 : vector<1x128xf32>
    %13 = arith.subf %11, %12 : vector<1x128xf32>
    %cst_7 = arith.constant 0.000000e+00 : f32
    %14 = vector.broadcast %cst_7 : f32 to vector<1x128xf32>
    %15 = arith.maximumf %13, %14 : vector<1x128xf32>
    %cst_8 = arith.constant 9.99999974E-6 : f32
    %16 = vector.broadcast %cst_8 : f32 to vector<1x128xf32>
    %17 = arith.addf %15, %16 : vector<1x128xf32>
    %18 = math.rsqrt %17 : vector<1x128xf32>
    %19 = vector.broadcast %6 : vector<1x128xf32> to vector<64x128xf32>
    %20 = arith.subf %2, %19 : vector<64x128xf32>
    %c0_9 = arith.constant 0 : index
    %c0_10 = arith.constant 0 : index
    %21 = vector.load %arg2[%c0_9, %c0_10] : memref<1x128xf32, #tpu.memory_space<vmem>>, vector<1x128xf32>
    %22 = arith.mulf %18, %21 : vector<1x128xf32>
    %23 = vector.broadcast %22 : vector<1x128xf32> to vector<64x128xf32>
    %24 = arith.mulf %20, %23 : vector<64x128xf32>
    %c0_11 = arith.constant 0 : index
    %c0_12 = arith.constant 0 : index
    %25 = vector.load %arg3[%c0_11, %c0_12] : memref<1x128xf32, #tpu.memory_space<vmem>>, vector<1x128xf32>
    %26 = vector.broadcast %25 : vector<1x128xf32> to vector<64x128xf32>
    %27 = arith.addf %24, %26 : vector<64x128xf32>
    %cst_13 = arith.constant 0.000000e+00 : f32
    %28 = vector.broadcast %cst_13 : f32 to vector<64x128xf32>
    %29 = arith.maximumf %27, %28 : vector<64x128xf32>
    %30 = arith.truncf %29 : vector<64x128xf32> to vector<64x128xbf16>
    %c0_14 = arith.constant 0 : index
    %c0_15 = arith.constant 0 : index
    %31 = vector.load %arg4[%c0_14, %c0_15] : memref<64x128xbf16, #tpu.memory_space<vmem>>, vector<64x128xbf16>
    tpu.vector_store %arg4[%c0_14, %c0_15], %30 {strides = array<i32>} : memref<64x128xbf16, #tpu.memory_space<vmem>>, vector<64x128xbf16>,
    return
  }
}

module attributes {stable_mosaic.version = 11 : i64} {
  func.func @_fused_conv_bn_kernel(%arg0: memref<64x54xbf16, #tpu.memory_space<vmem>>, %arg1: memref<54x128xbf16, #tpu.memory_space<vmem>>, %arg2: memref<1x128xf32, #tpu.memory_space<vmem>>, %arg3: memref<1x128xf32, #tpu.memory_space<vmem>>, %arg4: memref<64x128xbf16, #tpu.memory_space<vmem>>) attributes {dimension_semantics = [], scalar_prefetch = 0 : i64, scratch_operands = 0 : i64, tpu.core_type = #tpu.core_type<tc>} {
    %c0 = arith.constant 0 : index
    %c0_0 = arith.constant 0 : index
    %0 = vector.load %arg0[%c0, %c0_0] : memref<64x54xbf16, #tpu.memory_space<vmem>>, vector<64x54xbf16>
    %c0_1 = arith.constant 0 : index
    %c0_2 = arith.constant 0 : index
    %1 = vector.load %arg1[%c0_1, %c0_2] : memref<54x128xbf16, #tpu.memory_space<vmem>>, vector<54x128xbf16>
    %cst = arith.constant dense<0.000000e+00> : vector<64x128xf32>
    %2 = tpu.matmul %0, %1, %cst {dimension_numbers = #tpu.dot_dimension_numbers<[1], [0], [0], [1], [0, 0, 1, 1], [], []>} : vector<64x54xbf16>, vector<54x128xbf16>, vector<64x128xf32> -> vector<64x128xf32>
    %cst_3 = arith.constant dense<0.000000e+00> : vector<128xf32>
    %3 = vector.multi_reduction <add>, %2, %cst_3 [0] : vector<64x128xf32> to vector<128xf32>
    %4 = vector.shape_cast %3 : vector<128xf32> to vector<1x128xf32>
    %cst_4 = arith.constant 1.562500e-02 : f32
    %5 = vector.broadcast %cst_4 : f32 to vector<1x128xf32>
    %6 = arith.mulf %4, %5 : vector<1x128xf32>
    %7 = arith.mulf %2, %2 : vector<64x128xf32>
    %cst_5 = arith.constant dense<0.000000e+00> : vector<128xf32>
    %8 = vector.multi_reduction <add>, %7, %cst_5 [0] : vector<64x128xf32> to vector<128xf32>
    %9 = vector.shape_cast %8 : vector<128xf32> to vector<1x128xf32>
    %cst_6 = arith.constant 1.562500e-02 : f32
    %10 = vector.broadcast %cst_6 : f32 to vector<1x128xf32>
    %11 = arith.mulf %9, %10 : vector<1x128xf32>
    %12 = arith.mulf %6, %6 : vector<1x128xf32>
    %13 = arith.subf %11, %12 : vector<1x128xf32>
    %cst_7 = arith.constant 0.000000e+00 : f32
    %14 = vector.broadcast %cst_7 : f32 to vector<1x128xf32>
    %15 = arith.maximumf %13, %14 : vector<1x128xf32>
    %cst_8 = arith.constant 9.99999974E-6 : f32
    %16 = vector.broadcast %cst_8 : f32 to vector<1x128xf32>
    %17 = arith.addf %15, %16 : vector<1x128xf32>
    %18 = math.rsqrt %17 : vector<1x128xf32>
    %19 = vector.broadcast %6 : vector<1x128xf32> to vector<64x128xf32>
    %20 = arith.subf %2, %19 : vector<64x128xf32>
    %c0_9 = arith.constant 0 : index
    %c0_10 = arith.constant 0 : index
    %21 = vector.load %arg2[%c0_9, %c0_10] : memref<1x128xf32, #tpu.memory_space<vmem>>, vector<1x128xf32>
    %22 = arith.mulf %18, %21 : vector<1x128xf32>
    %23 = vector.broadcast %22 : vector<1x128xf32> to vector<64x128xf32>
    %24 = arith.mulf %20, %23 : vector<64x128xf32>
    %c0_11 = arith.constant 0 : index
    %c0_12 = arith.constant 0 : index
    %25 = vector.load %arg3[%c0_11, %c0_12] : memref<1x128xf32, #tpu.memory_space<vmem>>, vector<1x128xf32>
    %26 = vector.broadcast %25 : vector<1x128xf32> to vector<64x128xf32>
    %27 = arith.addf %24, %26 : vector<64x128xf32>
    %cst_13 = arith.constant 0.000000e+00 : f32
    %28 = vector.broadcast %cst_13 : f32 to vector<64x128xf32>
    %29 = arith.maximumf %27, %28 : vector<64x128xf32>
    %30 = arith.truncf %29 : vector<64x128xf32> to vector<64x128xbf16>
    %c0_14 = arith.constant 0 : index
    %c0_15 = arith.constant 0 : index
    %31 = vector.load %arg4[%c0_14, %c0_15] : memref<64x128xbf16, #tpu.memory_space<vmem>>, vector<64x128xbf16>
    tpu.vector_store %arg4[%c0_14, %c0_15], %30 {strides = array<i32>} : memref<64x128xbf16, #tpu.memory_space<vmem>>, vector<64x128xbf16>,
    return
  }
}

module attributes {stable_mosaic.version = 11 : i64} {
  func.func @_fused_conv_bn_kernel(%arg0: memref<64x54xbf16, #tpu.memory_space<vmem>>, %arg1: memref<54x128xbf16, #tpu.memory_space<vmem>>, %arg2: memref<1x128xf32, #tpu.memory_space<vmem>>, %arg3: memref<1x128xf32, #tpu.memory_space<vmem>>, %arg4: memref<64x128xbf16, #tpu.memory_space<vmem>>, %arg5: memref<64x128xbf16, #tpu.memory_space<vmem>>) attributes {dimension_semantics = [], scalar_prefetch = 0 : i64, scratch_operands = 0 : i64, tpu.core_type = #tpu.core_type<tc>} {
    %c0 = arith.constant 0 : index
    %c0_0 = arith.constant 0 : index
    %0 = vector.load %arg0[%c0, %c0_0] : memref<64x54xbf16, #tpu.memory_space<vmem>>, vector<64x54xbf16>
    %c0_1 = arith.constant 0 : index
    %c0_2 = arith.constant 0 : index
    %1 = vector.load %arg1[%c0_1, %c0_2] : memref<54x128xbf16, #tpu.memory_space<vmem>>, vector<54x128xbf16>
    %cst = arith.constant dense<0.000000e+00> : vector<64x128xf32>
    %2 = tpu.matmul %0, %1, %cst {dimension_numbers = #tpu.dot_dimension_numbers<[1], [0], [0], [1], [0, 0, 1, 1], [], []>} : vector<64x54xbf16>, vector<54x128xbf16>, vector<64x128xf32> -> vector<64x128xf32>
    %cst_3 = arith.constant dense<0.000000e+00> : vector<128xf32>
    %3 = vector.multi_reduction <add>, %2, %cst_3 [0] : vector<64x128xf32> to vector<128xf32>
    %4 = vector.shape_cast %3 : vector<128xf32> to vector<1x128xf32>
    %cst_4 = arith.constant 1.562500e-02 : f32
    %5 = vector.broadcast %cst_4 : f32 to vector<1x128xf32>
    %6 = arith.mulf %4, %5 : vector<1x128xf32>
    %7 = arith.mulf %2, %2 : vector<64x128xf32>
    %cst_5 = arith.constant dense<0.000000e+00> : vector<128xf32>
    %8 = vector.multi_reduction <add>, %7, %cst_5 [0] : vector<64x128xf32> to vector<128xf32>
    %9 = vector.shape_cast %8 : vector<128xf32> to vector<1x128xf32>
    %cst_6 = arith.constant 1.562500e-02 : f32
    %10 = vector.broadcast %cst_6 : f32 to vector<1x128xf32>
    %11 = arith.mulf %9, %10 : vector<1x128xf32>
    %12 = arith.mulf %6, %6 : vector<1x128xf32>
    %13 = arith.subf %11, %12 : vector<1x128xf32>
    %cst_7 = arith.constant 0.000000e+00 : f32
    %14 = vector.broadcast %cst_7 : f32 to vector<1x128xf32>
    %15 = arith.maximumf %13, %14 : vector<1x128xf32>
    %cst_8 = arith.constant 9.99999974E-6 : f32
    %16 = vector.broadcast %cst_8 : f32 to vector<1x128xf32>
    %17 = arith.addf %15, %16 : vector<1x128xf32>
    %18 = math.rsqrt %17 : vector<1x128xf32>
    %19 = vector.broadcast %6 : vector<1x128xf32> to vector<64x128xf32>
    %20 = arith.subf %2, %19 : vector<64x128xf32>
    %c0_9 = arith.constant 0 : index
    %c0_10 = arith.constant 0 : index
    %21 = vector.load %arg2[%c0_9, %c0_10] : memref<1x128xf32, #tpu.memory_space<vmem>>, vector<1x128xf32>
    %22 = arith.mulf %18, %21 : vector<1x128xf32>
    %23 = vector.broadcast %22 : vector<1x128xf32> to vector<64x128xf32>
    %24 = arith.mulf %20, %23 : vector<64x128xf32>
    %c0_11 = arith.constant 0 : index
    %c0_12 = arith.constant 0 : index
    %25 = vector.load %arg3[%c0_11, %c0_12] : memref<1x128xf32, #tpu.memory_space<vmem>>, vector<1x128xf32>
    %26 = vector.broadcast %25 : vector<1x128xf32> to vector<64x128xf32>
    %27 = arith.addf %24, %26 : vector<64x128xf32>
    %c0_13 = arith.constant 0 : index
    %c0_14 = arith.constant 0 : index
    %28 = vector.load %arg4[%c0_13, %c0_14] : memref<64x128xbf16, #tpu.memory_space<vmem>>, vector<64x128xbf16>
    %29 = arith.extf %28 : vector<64x128xbf16> to vector<64x128xf32>
    %30 = arith.addf %27, %29 : vector<64x128xf32>
    %cst_15 = arith.constant 0.000000e+00 : f32
    %31 = vector.broadcast %cst_15 : f32 to vector<64x128xf32>
    %32 = arith.maximumf %30, %31 : vector<64x128xf32>
    %33 = arith.truncf %32 : vector<64x128xf32> to vector<64x128xbf16>
    %c0_16 = arith.constant 0 : index
    %c0_17 = arith.constant 0 : index
    %34 = vector.load %arg5[%c0_16, %c0_17] : memref<64x128xbf16, #tpu.memory_space<vmem>>, vector<64x128xbf16>
    tpu.vector_store %arg5[%c0_16, %c0_17], %33 {strides = array<i32>} : memref<64x128xbf16, #tpu.memory_space<vmem>>, vector<64x128xbf16>,
    return
  }
}

module attributes {stable_mosaic.version = 11 : i64} {
  func.func @_fused_conv_bn_kernel(%arg0: memref<16x72xbf16, #tpu.memory_space<vmem>>, %arg1: memref<72x128xbf16, #tpu.memory_space<vmem>>, %arg2: memref<1x128xf32, #tpu.memory_space<vmem>>, %arg3: memref<1x128xf32, #tpu.memory_space<vmem>>, %arg4: memref<16x128xbf16, #tpu.memory_space<vmem>>) attributes {dimension_semantics = [], scalar_prefetch = 0 : i64, scratch_operands = 0 : i64, tpu.core_type = #tpu.core_type<tc>} {
    %c0 = arith.constant 0 : index
    %c0_0 = arith.constant 0 : index
    %0 = vector.load %arg0[%c0, %c0_0] : memref<16x72xbf16, #tpu.memory_space<vmem>>, vector<16x72xbf16>
    %c0_1 = arith.constant 0 : index
    %c0_2 = arith.constant 0 : index
    %1 = vector.load %arg1[%c0_1, %c0_2] : memref<72x128xbf16, #tpu.memory_space<vmem>>, vector<72x128xbf16>
    %cst = arith.constant dense<0.000000e+00> : vector<16x128xf32>
    %2 = tpu.matmul %0, %1, %cst {dimension_numbers = #tpu.dot_dimension_numbers<[1], [0], [0], [1], [0, 0, 1, 1], [], []>} : vector<16x72xbf16>, vector<72x128xbf16>, vector<16x128xf32> -> vector<16x128xf32>
    %cst_3 = arith.constant dense<0.000000e+00> : vector<128xf32>
    %3 = vector.multi_reduction <add>, %2, %cst_3 [0] : vector<16x128xf32> to vector<128xf32>
    %4 = vector.shape_cast %3 : vector<128xf32> to vector<1x128xf32>
    %cst_4 = arith.constant 6.250000e-02 : f32
    %5 = vector.broadcast %cst_4 : f32 to vector<1x128xf32>
    %6 = arith.mulf %4, %5 : vector<1x128xf32>
    %7 = arith.mulf %2, %2 : vector<16x128xf32>
    %cst_5 = arith.constant dense<0.000000e+00> : vector<128xf32>
    %8 = vector.multi_reduction <add>, %7, %cst_5 [0] : vector<16x128xf32> to vector<128xf32>
    %9 = vector.shape_cast %8 : vector<128xf32> to vector<1x128xf32>
    %cst_6 = arith.constant 6.250000e-02 : f32
    %10 = vector.broadcast %cst_6 : f32 to vector<1x128xf32>
    %11 = arith.mulf %9, %10 : vector<1x128xf32>
    %12 = arith.mulf %6, %6 : vector<1x128xf32>
    %13 = arith.subf %11, %12 : vector<1x128xf32>
    %cst_7 = arith.constant 0.000000e+00 : f32
    %14 = vector.broadcast %cst_7 : f32 to vector<1x128xf32>
    %15 = arith.maximumf %13, %14 : vector<1x128xf32>
    %cst_8 = arith.constant 9.99999974E-6 : f32
    %16 = vector.broadcast %cst_8 : f32 to vector<1x128xf32>
    %17 = arith.addf %15, %16 : vector<1x128xf32>
    %18 = math.rsqrt %17 : vector<1x128xf32>
    %19 = vector.broadcast %6 : vector<1x128xf32> to vector<16x128xf32>
    %20 = arith.subf %2, %19 : vector<16x128xf32>
    %c0_9 = arith.constant 0 : index
    %c0_10 = arith.constant 0 : index
    %21 = vector.load %arg2[%c0_9, %c0_10] : memref<1x128xf32, #tpu.memory_space<vmem>>, vector<1x128xf32>
    %22 = arith.mulf %18, %21 : vector<1x128xf32>
    %23 = vector.broadcast %22 : vector<1x128xf32> to vector<16x128xf32>
    %24 = arith.mulf %20, %23 : vector<16x128xf32>
    %c0_11 = arith.constant 0 : index
    %c0_12 = arith.constant 0 : index
    %25 = vector.load %arg3[%c0_11, %c0_12] : memref<1x128xf32, #tpu.memory_space<vmem>>, vector<1x128xf32>
    %26 = vector.broadcast %25 : vector<1x128xf32> to vector<16x128xf32>
    %27 = arith.addf %24, %26 : vector<16x128xf32>
    %cst_13 = arith.constant 0.000000e+00 : f32
    %28 = vector.broadcast %cst_13 : f32 to vector<16x128xf32>
    %29 = arith.maximumf %27, %28 : vector<16x128xf32>
    %30 = arith.truncf %29 : vector<16x128xf32> to vector<16x128xbf16>
    %c0_14 = arith.constant 0 : index
    %c0_15 = arith.constant 0 : index
    %31 = vector.load %arg4[%c0_14, %c0_15] : memref<16x128xbf16, #tpu.memory_space<vmem>>, vector<16x128xbf16>
    tpu.vector_store %arg4[%c0_14, %c0_15], %30 {strides = array<i32>} : memref<16x128xbf16, #tpu.memory_space<vmem>>, vector<16x128xbf16>,
    return
  }
}

module attributes {stable_mosaic.version = 11 : i64} {
  func.func @_fused_conv_bn_kernel(%arg0: memref<16x84xbf16, #tpu.memory_space<vmem>>, %arg1: memref<84x128xbf16, #tpu.memory_space<vmem>>, %arg2: memref<1x128xf32, #tpu.memory_space<vmem>>, %arg3: memref<1x128xf32, #tpu.memory_space<vmem>>, %arg4: memref<16x128xbf16, #tpu.memory_space<vmem>>) attributes {dimension_semantics = [], scalar_prefetch = 0 : i64, scratch_operands = 0 : i64, tpu.core_type = #tpu.core_type<tc>} {
    %c0 = arith.constant 0 : index
    %c0_0 = arith.constant 0 : index
    %0 = vector.load %arg0[%c0, %c0_0] : memref<16x84xbf16, #tpu.memory_space<vmem>>, vector<16x84xbf16>
    %c0_1 = arith.constant 0 : index
    %c0_2 = arith.constant 0 : index
    %1 = vector.load %arg1[%c0_1, %c0_2] : memref<84x128xbf16, #tpu.memory_space<vmem>>, vector<84x128xbf16>
    %cst = arith.constant dense<0.000000e+00> : vector<16x128xf32>
    %2 = tpu.matmul %0, %1, %cst {dimension_numbers = #tpu.dot_dimension_numbers<[1], [0], [0], [1], [0, 0, 1, 1], [], []>} : vector<16x84xbf16>, vector<84x128xbf16>, vector<16x128xf32> -> vector<16x128xf32>
    %cst_3 = arith.constant dense<0.000000e+00> : vector<128xf32>
    %3 = vector.multi_reduction <add>, %2, %cst_3 [0] : vector<16x128xf32> to vector<128xf32>
    %4 = vector.shape_cast %3 : vector<128xf32> to vector<1x128xf32>
    %cst_4 = arith.constant 1.250000e-01 : f32
    %5 = vector.broadcast %cst_4 : f32 to vector<1x128xf32>
    %6 = arith.mulf %4, %5 : vector<1x128xf32>
    %7 = arith.mulf %2, %2 : vector<16x128xf32>
    %cst_5 = arith.constant dense<0.000000e+00> : vector<128xf32>
    %8 = vector.multi_reduction <add>, %7, %cst_5 [0] : vector<16x128xf32> to vector<128xf32>
    %9 = vector.shape_cast %8 : vector<128xf32> to vector<1x128xf32>
    %cst_6 = arith.constant 1.250000e-01 : f32
    %10 = vector.broadcast %cst_6 : f32 to vector<1x128xf32>
    %11 = arith.mulf %9, %10 : vector<1x128xf32>
    %12 = arith.mulf %6, %6 : vector<1x128xf32>
    %13 = arith.subf %11, %12 : vector<1x128xf32>
    %cst_7 = arith.constant 0.000000e+00 : f32
    %14 = vector.broadcast %cst_7 : f32 to vector<1x128xf32>
    %15 = arith.maximumf %13, %14 : vector<1x128xf32>
    %cst_8 = arith.constant 9.99999974E-6 : f32
    %16 = vector.broadcast %cst_8 : f32 to vector<1x128xf32>
    %17 = arith.addf %15, %16 : vector<1x128xf32>
    %18 = math.rsqrt %17 : vector<1x128xf32>
    %19 = vector.broadcast %6 : vector<1x128xf32> to vector<16x128xf32>
    %20 = arith.subf %2, %19 : vector<16x128xf32>
    %c0_9 = arith.constant 0 : index
    %c0_10 = arith.constant 0 : index
    %21 = vector.load %arg2[%c0_9, %c0_10] : memref<1x128xf32, #tpu.memory_space<vmem>>, vector<1x128xf32>
    %22 = arith.mulf %18, %21 : vector<1x128xf32>
    %23 = vector.broadcast %22 : vector<1x128xf32> to vector<16x128xf32>
    %24 = arith.mulf %20, %23 : vector<16x128xf32>
    %c0_11 = arith.constant 0 : index
    %c0_12 = arith.constant 0 : index
    %25 = vector.load %arg3[%c0_11, %c0_12] : memref<1x128xf32, #tpu.memory_space<vmem>>, vector<1x128xf32>
    %26 = vector.broadcast %25 : vector<1x128xf32> to vector<16x128xf32>
    %27 = arith.addf %24, %26 : vector<16x128xf32>
    %cst_13 = arith.constant 0.000000e+00 : f32
    %28 = vector.broadcast %cst_13 : f32 to vector<16x128xf32>
    %29 = arith.maximumf %27, %28 : vector<16x128xf32>
    %30 = arith.truncf %29 : vector<16x128xf32> to vector<16x128xbf16>
    %c0_14 = arith.constant 0 : index
    %c0_15 = arith.constant 0 : index
    %31 = vector.load %arg4[%c0_14, %c0_15] : memref<16x128xbf16, #tpu.memory_space<vmem>>, vector<16x128xbf16>
    tpu.vector_store %arg4[%c0_14, %c0_15], %30 {strides = array<i32>} : memref<16x128xbf16, #tpu.memory_space<vmem>>, vector<16x128xbf16>,
    return
  }
}

module attributes {stable_mosaic.version = 11 : i64} {
  func.func @_fused_conv_bn_kernel(%arg0: memref<16x144xbf16, #tpu.memory_space<vmem>>, %arg1: memref<144x128xbf16, #tpu.memory_space<vmem>>, %arg2: memref<1x128xf32, #tpu.memory_space<vmem>>, %arg3: memref<1x128xf32, #tpu.memory_space<vmem>>, %arg4: memref<16x128xbf16, #tpu.memory_space<vmem>>) attributes {dimension_semantics = [], scalar_prefetch = 0 : i64, scratch_operands = 0 : i64, tpu.core_type = #tpu.core_type<tc>} {
    %c0 = arith.constant 0 : index
    %c0_0 = arith.constant 0 : index
    %0 = vector.load %arg0[%c0, %c0_0] : memref<16x144xbf16, #tpu.memory_space<vmem>>, vector<16x144xbf16>
    %c0_1 = arith.constant 0 : index
    %c0_2 = arith.constant 0 : index
    %1 = vector.load %arg1[%c0_1, %c0_2] : memref<144x128xbf16, #tpu.memory_space<vmem>>, vector<144x128xbf16>
    %cst = arith.constant dense<0.000000e+00> : vector<16x128xf32>
    %2 = tpu.matmul %0, %1, %cst {dimension_numbers = #tpu.dot_dimension_numbers<[1], [0], [0], [1], [0, 0, 1, 1], [], []>} : vector<16x144xbf16>, vector<144x128xbf16>, vector<16x128xf32> -> vector<16x128xf32>
    %cst_3 = arith.constant dense<0.000000e+00> : vector<128xf32>
    %3 = vector.multi_reduction <add>, %2, %cst_3 [0] : vector<16x128xf32> to vector<128xf32>
    %4 = vector.shape_cast %3 : vector<128xf32> to vector<1x128xf32>
    %cst_4 = arith.constant 1.250000e-01 : f32
    %5 = vector.broadcast %cst_4 : f32 to vector<1x128xf32>
    %6 = arith.mulf %4, %5 : vector<1x128xf32>
    %7 = arith.mulf %2, %2 : vector<16x128xf32>
    %cst_5 = arith.constant dense<0.000000e+00> : vector<128xf32>
    %8 = vector.multi_reduction <add>, %7, %cst_5 [0] : vector<16x128xf32> to vector<128xf32>
    %9 = vector.shape_cast %8 : vector<128xf32> to vector<1x128xf32>
    %cst_6 = arith.constant 1.250000e-01 : f32
    %10 = vector.broadcast %cst_6 : f32 to vector<1x128xf32>
    %11 = arith.mulf %9, %10 : vector<1x128xf32>
    %12 = arith.mulf %6, %6 : vector<1x128xf32>
    %13 = arith.subf %11, %12 : vector<1x128xf32>
    %cst_7 = arith.constant 0.000000e+00 : f32
    %14 = vector.broadcast %cst_7 : f32 to vector<1x128xf32>
    %15 = arith.maximumf %13, %14 : vector<1x128xf32>
    %cst_8 = arith.constant 9.99999974E-6 : f32
    %16 = vector.broadcast %cst_8 : f32 to vector<1x128xf32>
    %17 = arith.addf %15, %16 : vector<1x128xf32>
    %18 = math.rsqrt %17 : vector<1x128xf32>
    %19 = vector.broadcast %6 : vector<1x128xf32> to vector<16x128xf32>
    %20 = arith.subf %2, %19 : vector<16x128xf32>
    %c0_9 = arith.constant 0 : index
    %c0_10 = arith.constant 0 : index
    %21 = vector.load %arg2[%c0_9, %c0_10] : memref<1x128xf32, #tpu.memory_space<vmem>>, vector<1x128xf32>
    %22 = arith.mulf %18, %21 : vector<1x128xf32>
    %23 = vector.broadcast %22 : vector<1x128xf32> to vector<16x128xf32>
    %24 = arith.mulf %20, %23 : vector<16x128xf32>
    %c0_11 = arith.constant 0 : index
    %c0_12 = arith.constant 0 : index
    %25 = vector.load %arg3[%c0_11, %c0_12] : memref<1x128xf32, #tpu.memory_space<vmem>>, vector<1x128xf32>
    %26 = vector.broadcast %25 : vector<1x128xf32> to vector<16x128xf32>
    %27 = arith.addf %24, %26 : vector<16x128xf32>
    %cst_13 = arith.constant 0.000000e+00 : f32
    %28 = vector.broadcast %cst_13 : f32 to vector<16x128xf32>
    %29 = arith.maximumf %27, %28 : vector<16x128xf32>
    %30 = arith.truncf %29 : vector<16x128xf32> to vector<16x128xbf16>
    %c0_14 = arith.constant 0 : index
    %c0_15 = arith.constant 0 : index
    %31 = vector.load %arg4[%c0_14, %c0_15] : memref<16x128xbf16, #tpu.memory_space<vmem>>, vector<16x128xbf16>
    tpu.vector_store %arg4[%c0_14, %c0_15], %30 {strides = array<i32>} : memref<16x128xbf16, #tpu.memory_space<vmem>>, vector<16x128xbf16>,
    return
  }
}

module attributes {stable_mosaic.version = 11 : i64} {
  func.func @_fused_conv_bn_kernel(%arg0: memref<16x108xbf16, #tpu.memory_space<vmem>>, %arg1: memref<108x128xbf16, #tpu.memory_space<vmem>>, %arg2: memref<1x128xf32, #tpu.memory_space<vmem>>, %arg3: memref<1x128xf32, #tpu.memory_space<vmem>>, %arg4: memref<16x128xbf16, #tpu.memory_space<vmem>>, %arg5: memref<16x128xbf16, #tpu.memory_space<vmem>>) attributes {dimension_semantics = [], scalar_prefetch = 0 : i64, scratch_operands = 0 : i64, tpu.core_type = #tpu.core_type<tc>} {
    %c0 = arith.constant 0 : index
    %c0_0 = arith.constant 0 : index
    %0 = vector.load %arg0[%c0, %c0_0] : memref<16x108xbf16, #tpu.memory_space<vmem>>, vector<16x108xbf16>
    %c0_1 = arith.constant 0 : index
    %c0_2 = arith.constant 0 : index
    %1 = vector.load %arg1[%c0_1, %c0_2] : memref<108x128xbf16, #tpu.memory_space<vmem>>, vector<108x128xbf16>
    %cst = arith.constant dense<0.000000e+00> : vector<16x128xf32>
    %2 = tpu.matmul %0, %1, %cst {dimension_numbers = #tpu.dot_dimension_numbers<[1], [0], [0], [1], [0, 0, 1, 1], [], []>} : vector<16x108xbf16>, vector<108x128xbf16>, vector<16x128xf32> -> vector<16x128xf32>
    %cst_3 = arith.constant dense<0.000000e+00> : vector<128xf32>
    %3 = vector.multi_reduction <add>, %2, %cst_3 [0] : vector<16x128xf32> to vector<128xf32>
    %4 = vector.shape_cast %3 : vector<128xf32> to vector<1x128xf32>
    %cst_4 = arith.constant 1.250000e-01 : f32
    %5 = vector.broadcast %cst_4 : f32 to vector<1x128xf32>
    %6 = arith.mulf %4, %5 : vector<1x128xf32>
    %7 = arith.mulf %2, %2 : vector<16x128xf32>
    %cst_5 = arith.constant dense<0.000000e+00> : vector<128xf32>
    %8 = vector.multi_reduction <add>, %7, %cst_5 [0] : vector<16x128xf32> to vector<128xf32>
    %9 = vector.shape_cast %8 : vector<128xf32> to vector<1x128xf32>
    %cst_6 = arith.constant 1.250000e-01 : f32
    %10 = vector.broadcast %cst_6 : f32 to vector<1x128xf32>
    %11 = arith.mulf %9, %10 : vector<1x128xf32>
    %12 = arith.mulf %6, %6 : vector<1x128xf32>
    %13 = arith.subf %11, %12 : vector<1x128xf32>
    %cst_7 = arith.constant 0.000000e+00 : f32
    %14 = vector.broadcast %cst_7 : f32 to vector<1x128xf32>
    %15 = arith.maximumf %13, %14 : vector<1x128xf32>
    %cst_8 = arith.constant 9.99999974E-6 : f32
    %16 = vector.broadcast %cst_8 : f32 to vector<1x128xf32>
    %17 = arith.addf %15, %16 : vector<1x128xf32>
    %18 = math.rsqrt %17 : vector<1x128xf32>
    %19 = vector.broadcast %6 : vector<1x128xf32> to vector<16x128xf32>
    %20 = arith.subf %2, %19 : vector<16x128xf32>
    %c0_9 = arith.constant 0 : index
    %c0_10 = arith.constant 0 : index
    %21 = vector.load %arg2[%c0_9, %c0_10] : memref<1x128xf32, #tpu.memory_space<vmem>>, vector<1x128xf32>
    %22 = arith.mulf %18, %21 : vector<1x128xf32>
    %23 = vector.broadcast %22 : vector<1x128xf32> to vector<16x128xf32>
    %24 = arith.mulf %20, %23 : vector<16x128xf32>
    %c0_11 = arith.constant 0 : index
    %c0_12 = arith.constant 0 : index
    %25 = vector.load %arg3[%c0_11, %c0_12] : memref<1x128xf32, #tpu.memory_space<vmem>>, vector<1x128xf32>
    %26 = vector.broadcast %25 : vector<1x128xf32> to vector<16x128xf32>
    %27 = arith.addf %24, %26 : vector<16x128xf32>
    %c0_13 = arith.constant 0 : index
    %c0_14 = arith.constant 0 : index
    %28 = vector.load %arg4[%c0_13, %c0_14] : memref<16x128xbf16, #tpu.memory_space<vmem>>, vector<16x128xbf16>
    %29 = arith.extf %28 : vector<16x128xbf16> to vector<16x128xf32>
    %30 = arith.addf %27, %29 : vector<16x128xf32>
    %cst_15 = arith.constant 0.000000e+00 : f32
    %31 = vector.broadcast %cst_15 : f32 to vector<16x128xf32>
    %32 = arith.maximumf %30, %31 : vector<16x128xf32>
    %33 = arith.truncf %32 : vector<16x128xf32> to vector<16x128xbf16>
    %c0_16 = arith.constant 0 : index
    %c0_17 = arith.constant 0 : index
    %34 = vector.load %arg5[%c0_16, %c0_17] : memref<16x128xbf16, #tpu.memory_space<vmem>>, vector<16x128xbf16>
    tpu.vector_store %arg5[%c0_16, %c0_17], %33 {strides = array<i32>} : memref<16x128xbf16, #tpu.memory_space<vmem>>, vector<16x128xbf16>,
    return
  }
}

module attributes {stable_mosaic.version = 11 : i64} {
  func.func @_fused_conv_bn_kernel(%arg0: memref<16x144xbf16, #tpu.memory_space<vmem>>, %arg1: memref<144x128xbf16, #tpu.memory_space<vmem>>, %arg2: memref<1x128xf32, #tpu.memory_space<vmem>>, %arg3: memref<1x128xf32, #tpu.memory_space<vmem>>, %arg4: memref<16x128xbf16, #tpu.memory_space<vmem>>) attributes {dimension_semantics = [], scalar_prefetch = 0 : i64, scratch_operands = 0 : i64, tpu.core_type = #tpu.core_type<tc>} {
    %c0 = arith.constant 0 : index
    %c0_0 = arith.constant 0 : index
    %0 = vector.load %arg0[%c0, %c0_0] : memref<16x144xbf16, #tpu.memory_space<vmem>>, vector<16x144xbf16>
    %c0_1 = arith.constant 0 : index
    %c0_2 = arith.constant 0 : index
    %1 = vector.load %arg1[%c0_1, %c0_2] : memref<144x128xbf16, #tpu.memory_space<vmem>>, vector<144x128xbf16>
    %cst = arith.constant dense<0.000000e+00> : vector<16x128xf32>
    %2 = tpu.matmul %0, %1, %cst {dimension_numbers = #tpu.dot_dimension_numbers<[1], [0], [0], [1], [0, 0, 1, 1], [], []>} : vector<16x144xbf16>, vector<144x128xbf16>, vector<16x128xf32> -> vector<16x128xf32>
    %cst_3 = arith.constant dense<0.000000e+00> : vector<128xf32>
    %3 = vector.multi_reduction <add>, %2, %cst_3 [0] : vector<16x128xf32> to vector<128xf32>
    %4 = vector.shape_cast %3 : vector<128xf32> to vector<1x128xf32>
    %cst_4 = arith.constant 5.000000e-01 : f32
    %5 = vector.broadcast %cst_4 : f32 to vector<1x128xf32>
    %6 = arith.mulf %4, %5 : vector<1x128xf32>
    %7 = arith.mulf %2, %2 : vector<16x128xf32>
    %cst_5 = arith.constant dense<0.000000e+00> : vector<128xf32>
    %8 = vector.multi_reduction <add>, %7, %cst_5 [0] : vector<16x128xf32> to vector<128xf32>
    %9 = vector.shape_cast %8 : vector<128xf32> to vector<1x128xf32>
    %cst_6 = arith.constant 5.000000e-01 : f32
    %10 = vector.broadcast %cst_6 : f32 to vector<1x128xf32>
    %11 = arith.mulf %9, %10 : vector<1x128xf32>
    %12 = arith.mulf %6, %6 : vector<1x128xf32>
    %13 = arith.subf %11, %12 : vector<1x128xf32>
    %cst_7 = arith.constant 0.000000e+00 : f32
    %14 = vector.broadcast %cst_7 : f32 to vector<1x128xf32>
    %15 = arith.maximumf %13, %14 : vector<1x128xf32>
    %cst_8 = arith.constant 9.99999974E-6 : f32
    %16 = vector.broadcast %cst_8 : f32 to vector<1x128xf32>
    %17 = arith.addf %15, %16 : vector<1x128xf32>
    %18 = math.rsqrt %17 : vector<1x128xf32>
    %19 = vector.broadcast %6 : vector<1x128xf32> to vector<16x128xf32>
    %20 = arith.subf %2, %19 : vector<16x128xf32>
    %c0_9 = arith.constant 0 : index
    %c0_10 = arith.constant 0 : index
    %21 = vector.load %arg2[%c0_9, %c0_10] : memref<1x128xf32, #tpu.memory_space<vmem>>, vector<1x128xf32>
    %22 = arith.mulf %18, %21 : vector<1x128xf32>
    %23 = vector.broadcast %22 : vector<1x128xf32> to vector<16x128xf32>
    %24 = arith.mulf %20, %23 : vector<16x128xf32>
    %c0_11 = arith.constant 0 : index
    %c0_12 = arith.constant 0 : index
    %25 = vector.load %arg3[%c0_11, %c0_12] : memref<1x128xf32, #tpu.memory_space<vmem>>, vector<1x128xf32>
    %26 = vector.broadcast %25 : vector<1x128xf32> to vector<16x128xf32>
    %27 = arith.addf %24, %26 : vector<16x128xf32>
    %cst_13 = arith.constant 0.000000e+00 : f32
    %28 = vector.broadcast %cst_13 : f32 to vector<16x128xf32>
    %29 = arith.maximumf %27, %28 : vector<16x128xf32>
    %30 = arith.truncf %29 : vector<16x128xf32> to vector<16x128xbf16>
    %c0_14 = arith.constant 0 : index
    %c0_15 = arith.constant 0 : index
    %31 = vector.load %arg4[%c0_14, %c0_15] : memref<16x128xbf16, #tpu.memory_space<vmem>>, vector<16x128xbf16>
    tpu.vector_store %arg4[%c0_14, %c0_15], %30 {strides = array<i32>} : memref<16x128xbf16, #tpu.memory_space<vmem>>, vector<16x128xbf16>,
    return
  }
}

module attributes {stable_mosaic.version = 11 : i64} {
  func.func @_fused_conv_bn_kernel(%arg0: memref<16x171xbf16, #tpu.memory_space<vmem>>, %arg1: memref<171x128xbf16, #tpu.memory_space<vmem>>, %arg2: memref<1x128xf32, #tpu.memory_space<vmem>>, %arg3: memref<1x128xf32, #tpu.memory_space<vmem>>, %arg4: memref<16x128xbf16, #tpu.memory_space<vmem>>) attributes {dimension_semantics = [], scalar_prefetch = 0 : i64, scratch_operands = 0 : i64, tpu.core_type = #tpu.core_type<tc>} {
    %c0 = arith.constant 0 : index
    %c0_0 = arith.constant 0 : index
    %0 = vector.load %arg0[%c0, %c0_0] : memref<16x171xbf16, #tpu.memory_space<vmem>>, vector<16x171xbf16>
    %c0_1 = arith.constant 0 : index
    %c0_2 = arith.constant 0 : index
    %1 = vector.load %arg1[%c0_1, %c0_2] : memref<171x128xbf16, #tpu.memory_space<vmem>>, vector<171x128xbf16>
    %cst = arith.constant dense<0.000000e+00> : vector<16x128xf32>
    %2 = tpu.matmul %0, %1, %cst {dimension_numbers = #tpu.dot_dimension_numbers<[1], [0], [0], [1], [0, 0, 1, 1], [], []>} : vector<16x171xbf16>, vector<171x128xbf16>, vector<16x128xf32> -> vector<16x128xf32>
    %cst_3 = arith.constant dense<0.000000e+00> : vector<128xf32>
    %3 = vector.multi_reduction <add>, %2, %cst_3 [0] : vector<16x128xf32> to vector<128xf32>
    %4 = vector.shape_cast %3 : vector<128xf32> to vector<1x128xf32>
    %cst_4 = arith.constant 5.000000e-01 : f32
    %5 = vector.broadcast %cst_4 : f32 to vector<1x128xf32>
    %6 = arith.mulf %4, %5 : vector<1x128xf32>
    %7 = arith.mulf %2, %2 : vector<16x128xf32>
    %cst_5 = arith.constant dense<0.000000e+00> : vector<128xf32>
    %8 = vector.multi_reduction <add>, %7, %cst_5 [0] : vector<16x128xf32> to vector<128xf32>
    %9 = vector.shape_cast %8 : vector<128xf32> to vector<1x128xf32>
    %cst_6 = arith.constant 5.000000e-01 : f32
    %10 = vector.broadcast %cst_6 : f32 to vector<1x128xf32>
    %11 = arith.mulf %9, %10 : vector<1x128xf32>
    %12 = arith.mulf %6, %6 : vector<1x128xf32>
    %13 = arith.subf %11, %12 : vector<1x128xf32>
    %cst_7 = arith.constant 0.000000e+00 : f32
    %14 = vector.broadcast %cst_7 : f32 to vector<1x128xf32>
    %15 = arith.maximumf %13, %14 : vector<1x128xf32>
    %cst_8 = arith.constant 9.99999974E-6 : f32
    %16 = vector.broadcast %cst_8 : f32 to vector<1x128xf32>
    %17 = arith.addf %15, %16 : vector<1x128xf32>
    %18 = math.rsqrt %17 : vector<1x128xf32>
    %19 = vector.broadcast %6 : vector<1x128xf32> to vector<16x128xf32>
    %20 = arith.subf %2, %19 : vector<16x128xf32>
    %c0_9 = arith.constant 0 : index
    %c0_10 = arith.constant 0 : index
    %21 = vector.load %arg2[%c0_9, %c0_10] : memref<1x128xf32, #tpu.memory_space<vmem>>, vector<1x128xf32>
    %22 = arith.mulf %18, %21 : vector<1x128xf32>
    %23 = vector.broadcast %22 : vector<1x128xf32> to vector<16x128xf32>
    %24 = arith.mulf %20, %23 : vector<16x128xf32>
    %c0_11 = arith.constant 0 : index
    %c0_12 = arith.constant 0 : index
    %25 = vector.load %arg3[%c0_11, %c0_12] : memref<1x128xf32, #tpu.memory_space<vmem>>, vector<1x128xf32>
    %26 = vector.broadcast %25 : vector<1x128xf32> to vector<16x128xf32>
    %27 = arith.addf %24, %26 : vector<16x128xf32>
    %cst_13 = arith.constant 0.000000e+00 : f32
    %28 = vector.broadcast %cst_13 : f32 to vector<16x128xf32>
    %29 = arith.maximumf %27, %28 : vector<16x128xf32>
    %30 = arith.truncf %29 : vector<16x128xf32> to vector<16x128xbf16>
    %c0_14 = arith.constant 0 : index
    %c0_15 = arith.constant 0 : index
    %31 = vector.load %arg4[%c0_14, %c0_15] : memref<16x128xbf16, #tpu.memory_space<vmem>>, vector<16x128xbf16>
    tpu.vector_store %arg4[%c0_14, %c0_15], %30 {strides = array<i32>} : memref<16x128xbf16, #tpu.memory_space<vmem>>, vector<16x128xbf16>,
    return
  }
}

module attributes {stable_mosaic.version = 11 : i64} {
  func.func @_fused_conv_bn_kernel(%arg0: memref<16x288xbf16, #tpu.memory_space<vmem>>, %arg1: memref<288x128xbf16, #tpu.memory_space<vmem>>, %arg2: memref<1x128xf32, #tpu.memory_space<vmem>>, %arg3: memref<1x128xf32, #tpu.memory_space<vmem>>, %arg4: memref<16x128xbf16, #tpu.memory_space<vmem>>) attributes {dimension_semantics = [], scalar_prefetch = 0 : i64, scratch_operands = 0 : i64, tpu.core_type = #tpu.core_type<tc>} {
    %c0 = arith.constant 0 : index
    %c0_0 = arith.constant 0 : index
    %0 = vector.load %arg0[%c0, %c0_0] : memref<16x288xbf16, #tpu.memory_space<vmem>>, vector<16x288xbf16>
    %c0_1 = arith.constant 0 : index
    %c0_2 = arith.constant 0 : index
    %1 = vector.load %arg1[%c0_1, %c0_2] : memref<288x128xbf16, #tpu.memory_space<vmem>>, vector<288x128xbf16>
    %cst = arith.constant dense<0.000000e+00> : vector<16x128xf32>
    %2 = tpu.matmul %0, %1, %cst {dimension_numbers = #tpu.dot_dimension_numbers<[1], [0], [0], [1], [0, 0, 1, 1], [], []>} : vector<16x288xbf16>, vector<288x128xbf16>, vector<16x128xf32> -> vector<16x128xf32>
    %cst_3 = arith.constant dense<0.000000e+00> : vector<128xf32>
    %3 = vector.multi_reduction <add>, %2, %cst_3 [0] : vector<16x128xf32> to vector<128xf32>
    %4 = vector.shape_cast %3 : vector<128xf32> to vector<1x128xf32>
    %cst_4 = arith.constant 5.000000e-01 : f32
    %5 = vector.broadcast %cst_4 : f32 to vector<1x128xf32>
    %6 = arith.mulf %4, %5 : vector<1x128xf32>
    %7 = arith.mulf %2, %2 : vector<16x128xf32>
    %cst_5 = arith.constant dense<0.000000e+00> : vector<128xf32>
    %8 = vector.multi_reduction <add>, %7, %cst_5 [0] : vector<16x128xf32> to vector<128xf32>
    %9 = vector.shape_cast %8 : vector<128xf32> to vector<1x128xf32>
    %cst_6 = arith.constant 5.000000e-01 : f32
    %10 = vector.broadcast %cst_6 : f32 to vector<1x128xf32>
    %11 = arith.mulf %9, %10 : vector<1x128xf32>
    %12 = arith.mulf %6, %6 : vector<1x128xf32>
    %13 = arith.subf %11, %12 : vector<1x128xf32>
    %cst_7 = arith.constant 0.000000e+00 : f32
    %14 = vector.broadcast %cst_7 : f32 to vector<1x128xf32>
    %15 = arith.maximumf %13, %14 : vector<1x128xf32>
    %cst_8 = arith.constant 9.99999974E-6 : f32
    %16 = vector.broadcast %cst_8 : f32 to vector<1x128xf32>
    %17 = arith.addf %15, %16 : vector<1x128xf32>
    %18 = math.rsqrt %17 : vector<1x128xf32>
    %19 = vector.broadcast %6 : vector<1x128xf32> to vector<16x128xf32>
    %20 = arith.subf %2, %19 : vector<16x128xf32>
    %c0_9 = arith.constant 0 : index
    %c0_10 = arith.constant 0 : index
    %21 = vector.load %arg2[%c0_9, %c0_10] : memref<1x128xf32, #tpu.memory_space<vmem>>, vector<1x128xf32>
    %22 = arith.mulf %18, %21 : vector<1x128xf32>
    %23 = vector.broadcast %22 : vector<1x128xf32> to vector<16x128xf32>
    %24 = arith.mulf %20, %23 : vector<16x128xf32>
    %c0_11 = arith.constant 0 : index
    %c0_12 = arith.constant 0 : index
    %25 = vector.load %arg3[%c0_11, %c0_12] : memref<1x128xf32, #tpu.memory_space<vmem>>, vector<1x128xf32>
    %26 = vector.broadcast %25 : vector<1x128xf32> to vector<16x128xf32>
    %27 = arith.addf %24, %26 : vector<16x128xf32>
    %cst_13 = arith.constant 0.000000e+00 : f32
    %28 = vector.broadcast %cst_13 : f32 to vector<16x128xf32>
    %29 = arith.maximumf %27, %28 : vector<16x128xf32>
    %30 = arith.truncf %29 : vector<16x128xf32> to vector<16x128xbf16>
    %c0_14 = arith.constant 0 : index
    %c0_15 = arith.constant 0 : index
    %31 = vector.load %arg4[%c0_14, %c0_15] : memref<16x128xbf16, #tpu.memory_space<vmem>>, vector<16x128xbf16>
    tpu.vector_store %arg4[%c0_14, %c0_15], %30 {strides = array<i32>} : memref<16x128xbf16, #tpu.memory_space<vmem>>, vector<16x128xbf16>,
    return
  }
}

module attributes {stable_mosaic.version = 11 : i64} {
  func.func @_fused_conv_bn_kernel(%arg0: memref<16x216xbf16, #tpu.memory_space<vmem>>, %arg1: memref<216x128xbf16, #tpu.memory_space<vmem>>, %arg2: memref<1x128xf32, #tpu.memory_space<vmem>>, %arg3: memref<1x128xf32, #tpu.memory_space<vmem>>, %arg4: memref<16x128xbf16, #tpu.memory_space<vmem>>, %arg5: memref<16x128xbf16, #tpu.memory_space<vmem>>) attributes {dimension_semantics = [], scalar_prefetch = 0 : i64, scratch_operands = 0 : i64, tpu.core_type = #tpu.core_type<tc>} {
    %c0 = arith.constant 0 : index
    %c0_0 = arith.constant 0 : index
    %0 = vector.load %arg0[%c0, %c0_0] : memref<16x216xbf16, #tpu.memory_space<vmem>>, vector<16x216xbf16>
    %c0_1 = arith.constant 0 : index
    %c0_2 = arith.constant 0 : index
    %1 = vector.load %arg1[%c0_1, %c0_2] : memref<216x128xbf16, #tpu.memory_space<vmem>>, vector<216x128xbf16>
    %cst = arith.constant dense<0.000000e+00> : vector<16x128xf32>
    %2 = tpu.matmul %0, %1, %cst {dimension_numbers = #tpu.dot_dimension_numbers<[1], [0], [0], [1], [0, 0, 1, 1], [], []>} : vector<16x216xbf16>, vector<216x128xbf16>, vector<16x128xf32> -> vector<16x128xf32>
    %cst_3 = arith.constant dense<0.000000e+00> : vector<128xf32>
    %3 = vector.multi_reduction <add>, %2, %cst_3 [0] : vector<16x128xf32> to vector<128xf32>
    %4 = vector.shape_cast %3 : vector<128xf32> to vector<1x128xf32>
    %cst_4 = arith.constant 5.000000e-01 : f32
    %5 = vector.broadcast %cst_4 : f32 to vector<1x128xf32>
    %6 = arith.mulf %4, %5 : vector<1x128xf32>
    %7 = arith.mulf %2, %2 : vector<16x128xf32>
    %cst_5 = arith.constant dense<0.000000e+00> : vector<128xf32>
    %8 = vector.multi_reduction <add>, %7, %cst_5 [0] : vector<16x128xf32> to vector<128xf32>
    %9 = vector.shape_cast %8 : vector<128xf32> to vector<1x128xf32>
    %cst_6 = arith.constant 5.000000e-01 : f32
    %10 = vector.broadcast %cst_6 : f32 to vector<1x128xf32>
    %11 = arith.mulf %9, %10 : vector<1x128xf32>
    %12 = arith.mulf %6, %6 : vector<1x128xf32>
    %13 = arith.subf %11, %12 : vector<1x128xf32>
    %cst_7 = arith.constant 0.000000e+00 : f32
    %14 = vector.broadcast %cst_7 : f32 to vector<1x128xf32>
    %15 = arith.maximumf %13, %14 : vector<1x128xf32>
    %cst_8 = arith.constant 9.99999974E-6 : f32
    %16 = vector.broadcast %cst_8 : f32 to vector<1x128xf32>
    %17 = arith.addf %15, %16 : vector<1x128xf32>
    %18 = math.rsqrt %17 : vector<1x128xf32>
    %19 = vector.broadcast %6 : vector<1x128xf32> to vector<16x128xf32>
    %20 = arith.subf %2, %19 : vector<16x128xf32>
    %c0_9 = arith.constant 0 : index
    %c0_10 = arith.constant 0 : index
    %21 = vector.load %arg2[%c0_9, %c0_10] : memref<1x128xf32, #tpu.memory_space<vmem>>, vector<1x128xf32>
    %22 = arith.mulf %18, %21 : vector<1x128xf32>
    %23 = vector.broadcast %22 : vector<1x128xf32> to vector<16x128xf32>
    %24 = arith.mulf %20, %23 : vector<16x128xf32>
    %c0_11 = arith.constant 0 : index
    %c0_12 = arith.constant 0 : index
    %25 = vector.load %arg3[%c0_11, %c0_12] : memref<1x128xf32, #tpu.memory_space<vmem>>, vector<1x128xf32>
    %26 = vector.broadcast %25 : vector<1x128xf32> to vector<16x128xf32>
    %27 = arith.addf %24, %26 : vector<16x128xf32>
    %c0_13 = arith.constant 0 : index
    %c0_14 = arith.constant 0 : index
    %28 = vector.load %arg4[%c0_13, %c0_14] : memref<16x128xbf16, #tpu.memory_space<vmem>>, vector<16x128xbf16>
    %29 = arith.extf %28 : vector<16x128xbf16> to vector<16x128xf32>
    %30 = arith.addf %27, %29 : vector<16x128xf32>
    %cst_15 = arith.constant 0.000000e+00 : f32
    %31 = vector.broadcast %cst_15 : f32 to vector<16x128xf32>
    %32 = arith.maximumf %30, %31 : vector<16x128xf32>
    %33 = arith.truncf %32 : vector<16x128xf32> to vector<16x128xbf16>
    %c0_16 = arith.constant 0 : index
    %c0_17 = arith.constant 0 : index
    %34 = vector.load %arg5[%c0_16, %c0_17] : memref<16x128xbf16, #tpu.memory_space<vmem>>, vector<16x128xbf16>
    tpu.vector_store %arg5[%c0_16, %c0_17], %33 {strides = array<i32>} : memref<16x128xbf16, #tpu.memory_space<vmem>>, vector<16x128xbf16>,
    return
  }
}

module attributes {stable_mosaic.version = 11 : i64} {
  func.func @_fused_conv_bn_kernel(%arg0: memref<16x288xbf16, #tpu.memory_space<vmem>>, %arg1: memref<288x128xbf16, #tpu.memory_space<vmem>>, %arg2: memref<1x128xf32, #tpu.memory_space<vmem>>, %arg3: memref<1x128xf32, #tpu.memory_space<vmem>>, %arg4: memref<16x128xbf16, #tpu.memory_space<vmem>>) attributes {dimension_semantics = [], scalar_prefetch = 0 : i64, scratch_operands = 0 : i64, tpu.core_type = #tpu.core_type<tc>} {
    %c0 = arith.constant 0 : index
    %c0_0 = arith.constant 0 : index
    %0 = vector.load %arg0[%c0, %c0_0] : memref<16x288xbf16, #tpu.memory_space<vmem>>, vector<16x288xbf16>
    %c0_1 = arith.constant 0 : index
    %c0_2 = arith.constant 0 : index
    %1 = vector.load %arg1[%c0_1, %c0_2] : memref<288x128xbf16, #tpu.memory_space<vmem>>, vector<288x128xbf16>
    %cst = arith.constant dense<0.000000e+00> : vector<16x128xf32>
    %2 = tpu.matmul %0, %1, %cst {dimension_numbers = #tpu.dot_dimension_numbers<[1], [0], [0], [1], [0, 0, 1, 1], [], []>} : vector<16x288xbf16>, vector<288x128xbf16>, vector<16x128xf32> -> vector<16x128xf32>
    %cst_3 = arith.constant dense<0.000000e+00> : vector<128xf32>
    %3 = vector.multi_reduction <add>, %2, %cst_3 [0] : vector<16x128xf32> to vector<128xf32>
    %4 = vector.shape_cast %3 : vector<128xf32> to vector<1x128xf32>
    %cst_4 = arith.constant 5.000000e-01 : f32
    %5 = vector.broadcast %cst_4 : f32 to vector<1x128xf32>
    %6 = arith.mulf %4, %5 : vector<1x128xf32>
    %7 = arith.mulf %2, %2 : vector<16x128xf32>
    %cst_5 = arith.constant dense<0.000000e+00> : vector<128xf32>
    %8 = vector.multi_reduction <add>, %7, %cst_5 [0] : vector<16x128xf32> to vector<128xf32>
    %9 = vector.shape_cast %8 : vector<128xf32> to vector<1x128xf32>
    %cst_6 = arith.constant 5.000000e-01 : f32
    %10 = vector.broadcast %cst_6 : f32 to vector<1x128xf32>
    %11 = arith.mulf %9, %10 : vector<1x128xf32>
    %12 = arith.mulf %6, %6 : vector<1x128xf32>
    %13 = arith.subf %11, %12 : vector<1x128xf32>
    %cst_7 = arith.constant 0.000000e+00 : f32
    %14 = vector.broadcast %cst_7 : f32 to vector<1x128xf32>
    %15 = arith.maximumf %13, %14 : vector<1x128xf32>
    %cst_8 = arith.constant 9.99999974E-6 : f32
    %16 = vector.broadcast %cst_8 : f32 to vector<1x128xf32>
    %17 = arith.addf %15, %16 : vector<1x128xf32>
    %18 = math.rsqrt %17 : vector<1x128xf32>
    %19 = vector.broadcast %6 : vector<1x128xf32> to vector<16x128xf32>
    %20 = arith.subf %2, %19 : vector<16x128xf32>
    %c0_9 = arith.constant 0 : index
    %c0_10 = arith.constant 0 : index
    %21 = vector.load %arg2[%c0_9, %c0_10] : memref<1x128xf32, #tpu.memory_space<vmem>>, vector<1x128xf32>
    %22 = arith.mulf %18, %21 : vector<1x128xf32>
    %23 = vector.broadcast %22 : vector<1x128xf32> to vector<16x128xf32>
    %24 = arith.mulf %20, %23 : vector<16x128xf32>
    %c0_11 = arith.constant 0 : index
    %c0_12 = arith.constant 0 : index
    %25 = vector.load %arg3[%c0_11, %c0_12] : memref<1x128xf32, #tpu.memory_space<vmem>>, vector<1x128xf32>
    %26 = vector.broadcast %25 : vector<1x128xf32> to vector<16x128xf32>
    %27 = arith.addf %24, %26 : vector<16x128xf32>
    %cst_13 = arith.constant 0.000000e+00 : f32
    %28 = vector.broadcast %cst_13 : f32 to vector<16x128xf32>
    %29 = arith.maximumf %27, %28 : vector<16x128xf32>
    %30 = arith.truncf %29 : vector<16x128xf32> to vector<16x128xbf16>
    %c0_14 = arith.constant 0 : index
    %c0_15 = arith.constant 0 : index
    %31 = vector.load %arg4[%c0_14, %c0_15] : memref<16x128xbf16, #tpu.memory_space<vmem>>, vector<16x128xbf16>
    tpu.vector_store %arg4[%c0_14, %c0_15], %30 {strides = array<i32>} : memref<16x128xbf16, #tpu.memory_space<vmem>>, vector<16x128xbf16>,
    return
  }
}

module attributes {stable_mosaic.version = 11 : i64} {
  func.func @_fused_conv_bn_kernel(%arg0: memref<16x345xbf16, #tpu.memory_space<vmem>>, %arg1: memref<345x128xbf16, #tpu.memory_space<vmem>>, %arg2: memref<1x128xf32, #tpu.memory_space<vmem>>, %arg3: memref<1x128xf32, #tpu.memory_space<vmem>>, %arg4: memref<16x128xbf16, #tpu.memory_space<vmem>>) attributes {dimension_semantics = [], scalar_prefetch = 0 : i64, scratch_operands = 0 : i64, tpu.core_type = #tpu.core_type<tc>} {
    %c0 = arith.constant 0 : index
    %c0_0 = arith.constant 0 : index
    %0 = vector.load %arg0[%c0, %c0_0] : memref<16x345xbf16, #tpu.memory_space<vmem>>, vector<16x345xbf16>
    %c0_1 = arith.constant 0 : index
    %c0_2 = arith.constant 0 : index
    %1 = vector.load %arg1[%c0_1, %c0_2] : memref<345x128xbf16, #tpu.memory_space<vmem>>, vector<345x128xbf16>
    %cst = arith.constant dense<0.000000e+00> : vector<16x128xf32>
    %2 = tpu.matmul %0, %1, %cst {dimension_numbers = #tpu.dot_dimension_numbers<[1], [0], [0], [1], [0, 0, 1, 1], [], []>} : vector<16x345xbf16>, vector<345x128xbf16>, vector<16x128xf32> -> vector<16x128xf32>
    %cst_3 = arith.constant dense<0.000000e+00> : vector<128xf32>
    %3 = vector.multi_reduction <add>, %2, %cst_3 [0] : vector<16x128xf32> to vector<128xf32>
    %4 = vector.shape_cast %3 : vector<128xf32> to vector<1x128xf32>
    %cst_4 = arith.constant 5.000000e-01 : f32
    %5 = vector.broadcast %cst_4 : f32 to vector<1x128xf32>
    %6 = arith.mulf %4, %5 : vector<1x128xf32>
    %7 = arith.mulf %2, %2 : vector<16x128xf32>
    %cst_5 = arith.constant dense<0.000000e+00> : vector<128xf32>
    %8 = vector.multi_reduction <add>, %7, %cst_5 [0] : vector<16x128xf32> to vector<128xf32>
    %9 = vector.shape_cast %8 : vector<128xf32> to vector<1x128xf32>
    %cst_6 = arith.constant 5.000000e-01 : f32
    %10 = vector.broadcast %cst_6 : f32 to vector<1x128xf32>
    %11 = arith.mulf %9, %10 : vector<1x128xf32>
    %12 = arith.mulf %6, %6 : vector<1x128xf32>
    %13 = arith.subf %11, %12 : vector<1x128xf32>
    %cst_7 = arith.constant 0.000000e+00 : f32
    %14 = vector.broadcast %cst_7 : f32 to vector<1x128xf32>
    %15 = arith.maximumf %13, %14 : vector<1x128xf32>
    %cst_8 = arith.constant 9.99999974E-6 : f32
    %16 = vector.broadcast %cst_8 : f32 to vector<1x128xf32>
    %17 = arith.addf %15, %16 : vector<1x128xf32>
    %18 = math.rsqrt %17 : vector<1x128xf32>
    %19 = vector.broadcast %6 : vector<1x128xf32> to vector<16x128xf32>
    %20 = arith.subf %2, %19 : vector<16x128xf32>
    %c0_9 = arith.constant 0 : index
    %c0_10 = arith.constant 0 : index
    %21 = vector.load %arg2[%c0_9, %c0_10] : memref<1x128xf32, #tpu.memory_space<vmem>>, vector<1x128xf32>
    %22 = arith.mulf %18, %21 : vector<1x128xf32>
    %23 = vector.broadcast %22 : vector<1x128xf32> to vector<16x128xf32>
    %24 = arith.mulf %20, %23 : vector<16x128xf32>
    %c0_11 = arith.constant 0 : index
    %c0_12 = arith.constant 0 : index
    %25 = vector.load %arg3[%c0_11, %c0_12] : memref<1x128xf32, #tpu.memory_space<vmem>>, vector<1x128xf32>
    %26 = vector.broadcast %25 : vector<1x128xf32> to vector<16x128xf32>
    %27 = arith.addf %24, %26 : vector<16x128xf32>
    %cst_13 = arith.constant 0.000000e+00 : f32
    %28 = vector.broadcast %cst_13 : f32 to vector<16x128xf32>
    %29 = arith.maximumf %27, %28 : vector<16x128xf32>
    %30 = arith.truncf %29 : vector<16x128xf32> to vector<16x128xbf16>
    %c0_14 = arith.constant 0 : index
    %c0_15 = arith.constant 0 : index
    %31 = vector.load %arg4[%c0_14, %c0_15] : memref<16x128xbf16, #tpu.memory_space<vmem>>, vector<16x128xbf16>
    tpu.vector_store %arg4[%c0_14, %c0_15], %30 {strides = array<i32>} : memref<16x128xbf16, #tpu.memory_space<vmem>>, vector<16x128xbf16>,
    return
  }
}

module attributes {stable_mosaic.version = 11 : i64} {
  func.func @_fused_conv_bn_kernel(%arg0: memref<16x576xbf16, #tpu.memory_space<vmem>>, %arg1: memref<576x256xbf16, #tpu.memory_space<vmem>>, %arg2: memref<1x256xf32, #tpu.memory_space<vmem>>, %arg3: memref<1x256xf32, #tpu.memory_space<vmem>>, %arg4: memref<16x256xbf16, #tpu.memory_space<vmem>>) attributes {dimension_semantics = [], scalar_prefetch = 0 : i64, scratch_operands = 0 : i64, tpu.core_type = #tpu.core_type<tc>} {
    %c0 = arith.constant 0 : index
    %c0_0 = arith.constant 0 : index
    %0 = vector.load %arg0[%c0, %c0_0] : memref<16x576xbf16, #tpu.memory_space<vmem>>, vector<16x576xbf16>
    %c0_1 = arith.constant 0 : index
    %c0_2 = arith.constant 0 : index
    %1 = vector.load %arg1[%c0_1, %c0_2] : memref<576x256xbf16, #tpu.memory_space<vmem>>, vector<576x256xbf16>
    %cst = arith.constant dense<0.000000e+00> : vector<16x256xf32>
    %2 = tpu.matmul %0, %1, %cst {dimension_numbers = #tpu.dot_dimension_numbers<[1], [0], [0], [1], [0, 0, 1, 1], [], []>} : vector<16x576xbf16>, vector<576x256xbf16>, vector<16x256xf32> -> vector<16x256xf32>
    %cst_3 = arith.constant dense<0.000000e+00> : vector<256xf32>
    %3 = vector.multi_reduction <add>, %2, %cst_3 [0] : vector<16x256xf32> to vector<256xf32>
    %4 = vector.shape_cast %3 : vector<256xf32> to vector<1x256xf32>
    %cst_4 = arith.constant 5.000000e-01 : f32
    %5 = vector.broadcast %cst_4 : f32 to vector<1x256xf32>
    %6 = arith.mulf %4, %5 : vector<1x256xf32>
    %7 = arith.mulf %2, %2 : vector<16x256xf32>
    %cst_5 = arith.constant dense<0.000000e+00> : vector<256xf32>
    %8 = vector.multi_reduction <add>, %7, %cst_5 [0] : vector<16x256xf32> to vector<256xf32>
    %9 = vector.shape_cast %8 : vector<256xf32> to vector<1x256xf32>
    %cst_6 = arith.constant 5.000000e-01 : f32
    %10 = vector.broadcast %cst_6 : f32 to vector<1x256xf32>
    %11 = arith.mulf %9, %10 : vector<1x256xf32>
    %12 = arith.mulf %6, %6 : vector<1x256xf32>
    %13 = arith.subf %11, %12 : vector<1x256xf32>
    %cst_7 = arith.constant 0.000000e+00 : f32
    %14 = vector.broadcast %cst_7 : f32 to vector<1x256xf32>
    %15 = arith.maximumf %13, %14 : vector<1x256xf32>
    %cst_8 = arith.constant 9.99999974E-6 : f32
    %16 = vector.broadcast %cst_8 : f32 to vector<1x256xf32>
    %17 = arith.addf %15, %16 : vector<1x256xf32>
    %18 = math.rsqrt %17 : vector<1x256xf32>
    %19 = vector.broadcast %6 : vector<1x256xf32> to vector<16x256xf32>
    %20 = arith.subf %2, %19 : vector<16x256xf32>
    %c0_9 = arith.constant 0 : index
    %c0_10 = arith.constant 0 : index
    %21 = vector.load %arg2[%c0_9, %c0_10] : memref<1x256xf32, #tpu.memory_space<vmem>>, vector<1x256xf32>
    %22 = arith.mulf %18, %21 : vector<1x256xf32>
    %23 = vector.broadcast %22 : vector<1x256xf32> to vector<16x256xf32>
    %24 = arith.mulf %20, %23 : vector<16x256xf32>
    %c0_11 = arith.constant 0 : index
    %c0_12 = arith.constant 0 : index
    %25 = vector.load %arg3[%c0_11, %c0_12] : memref<1x256xf32, #tpu.memory_space<vmem>>, vector<1x256xf32>
    %26 = vector.broadcast %25 : vector<1x256xf32> to vector<16x256xf32>
    %27 = arith.addf %24, %26 : vector<16x256xf32>
    %cst_13 = arith.constant 0.000000e+00 : f32
    %28 = vector.broadcast %cst_13 : f32 to vector<16x256xf32>
    %29 = arith.maximumf %27, %28 : vector<16x256xf32>
    %30 = arith.truncf %29 : vector<16x256xf32> to vector<16x256xbf16>
    %c0_14 = arith.constant 0 : index
    %c0_15 = arith.constant 0 : index
    %31 = vector.load %arg4[%c0_14, %c0_15] : memref<16x256xbf16, #tpu.memory_space<vmem>>, vector<16x256xbf16>
    tpu.vector_store %arg4[%c0_14, %c0_15], %30 {strides = array<i32>} : memref<16x256xbf16, #tpu.memory_space<vmem>>, vector<16x256xbf16>,
    return
  }
}

module attributes {stable_mosaic.version = 11 : i64} {
  func.func @_fused_conv_bn_kernel(%arg0: memref<16x432xbf16, #tpu.memory_space<vmem>>, %arg1: memref<432x128xbf16, #tpu.memory_space<vmem>>, %arg2: memref<1x128xf32, #tpu.memory_space<vmem>>, %arg3: memref<1x128xf32, #tpu.memory_space<vmem>>, %arg4: memref<16x128xbf16, #tpu.memory_space<vmem>>, %arg5: memref<16x128xbf16, #tpu.memory_space<vmem>>) attributes {dimension_semantics = [], scalar_prefetch = 0 : i64, scratch_operands = 0 : i64, tpu.core_type = #tpu.core_type<tc>} {
    %c0 = arith.constant 0 : index
    %c0_0 = arith.constant 0 : index
    %0 = vector.load %arg0[%c0, %c0_0] : memref<16x432xbf16, #tpu.memory_space<vmem>>, vector<16x432xbf16>
    %c0_1 = arith.constant 0 : index
    %c0_2 = arith.constant 0 : index
    %1 = vector.load %arg1[%c0_1, %c0_2] : memref<432x128xbf16, #tpu.memory_space<vmem>>, vector<432x128xbf16>
    %cst = arith.constant dense<0.000000e+00> : vector<16x128xf32>
    %2 = tpu.matmul %0, %1, %cst {dimension_numbers = #tpu.dot_dimension_numbers<[1], [0], [0], [1], [0, 0, 1, 1], [], []>} : vector<16x432xbf16>, vector<432x128xbf16>, vector<16x128xf32> -> vector<16x128xf32>
    %cst_3 = arith.constant dense<0.000000e+00> : vector<128xf32>
    %3 = vector.multi_reduction <add>, %2, %cst_3 [0] : vector<16x128xf32> to vector<128xf32>
    %4 = vector.shape_cast %3 : vector<128xf32> to vector<1x128xf32>
    %cst_4 = arith.constant 5.000000e-01 : f32
    %5 = vector.broadcast %cst_4 : f32 to vector<1x128xf32>
    %6 = arith.mulf %4, %5 : vector<1x128xf32>
    %7 = arith.mulf %2, %2 : vector<16x128xf32>
    %cst_5 = arith.constant dense<0.000000e+00> : vector<128xf32>
    %8 = vector.multi_reduction <add>, %7, %cst_5 [0] : vector<16x128xf32> to vector<128xf32>
    %9 = vector.shape_cast %8 : vector<128xf32> to vector<1x128xf32>
    %cst_6 = arith.constant 5.000000e-01 : f32
    %10 = vector.broadcast %cst_6 : f32 to vector<1x128xf32>
    %11 = arith.mulf %9, %10 : vector<1x128xf32>
    %12 = arith.mulf %6, %6 : vector<1x128xf32>
    %13 = arith.subf %11, %12 : vector<1x128xf32>
    %cst_7 = arith.constant 0.000000e+00 : f32
    %14 = vector.broadcast %cst_7 : f32 to vector<1x128xf32>
    %15 = arith.maximumf %13, %14 : vector<1x128xf32>
    %cst_8 = arith.constant 9.99999974E-6 : f32
    %16 = vector.broadcast %cst_8 : f32 to vector<1x128xf32>
    %17 = arith.addf %15, %16 : vector<1x128xf32>
    %18 = math.rsqrt %17 : vector<1x128xf32>
    %19 = vector.broadcast %6 : vector<1x128xf32> to vector<16x128xf32>
    %20 = arith.subf %2, %19 : vector<16x128xf32>
    %c0_9 = arith.constant 0 : index
    %c0_10 = arith.constant 0 : index
    %21 = vector.load %arg2[%c0_9, %c0_10] : memref<1x128xf32, #tpu.memory_space<vmem>>, vector<1x128xf32>
    %22 = arith.mulf %18, %21 : vector<1x128xf32>
    %23 = vector.broadcast %22 : vector<1x128xf32> to vector<16x128xf32>
    %24 = arith.mulf %20, %23 : vector<16x128xf32>
    %c0_11 = arith.constant 0 : index
    %c0_12 = arith.constant 0 : index
    %25 = vector.load %arg3[%c0_11, %c0_12] : memref<1x128xf32, #tpu.memory_space<vmem>>, vector<1x128xf32>
    %26 = vector.broadcast %25 : vector<1x128xf32> to vector<16x128xf32>
    %27 = arith.addf %24, %26 : vector<16x128xf32>
    %c0_13 = arith.constant 0 : index
    %c0_14 = arith.constant 0 : index
    %28 = vector.load %arg4[%c0_13, %c0_14] : memref<16x128xbf16, #tpu.memory_space<vmem>>, vector<16x128xbf16>
    %29 = arith.extf %28 : vector<16x128xbf16> to vector<16x128xf32>
    %30 = arith.addf %27, %29 : vector<16x128xf32>
    %cst_15 = arith.constant 0.000000e+00 : f32
    %31 = vector.broadcast %cst_15 : f32 to vector<16x128xf32>
    %32 = arith.maximumf %30, %31 : vector<16x128xf32>
    %33 = arith.truncf %32 : vector<16x128xf32> to vector<16x128xbf16>
    %c0_16 = arith.constant 0 : index
    %c0_17 = arith.constant 0 : index
    %34 = vector.load %arg5[%c0_16, %c0_17] : memref<16x128xbf16, #tpu.memory_space<vmem>>, vector<16x128xbf16>
    tpu.vector_store %arg5[%c0_16, %c0_17], %33 {strides = array<i32>} : memref<16x128xbf16, #tpu.memory_space<vmem>>, vector<16x128xbf16>,
    return
  }
}

module attributes {stable_mosaic.version = 11 : i64} {
  func.func @_avgpool_fc_kernel(%arg0: memref<2x1x64xbf16, #tpu.memory_space<vmem>>, %arg1: memref<64x5xf32, #tpu.memory_space<vmem>>, %arg2: memref<1x5xf32, #tpu.memory_space<vmem>>, %arg3: memref<2x5xf32, #tpu.memory_space<vmem>>) attributes {dimension_semantics = [], scalar_prefetch = 0 : i64, scratch_operands = 0 : i64, tpu.core_type = #tpu.core_type<tc>} {
    %c0 = arith.constant 0 : index
    %c0_0 = arith.constant 0 : index
    %c0_1 = arith.constant 0 : index
    %0 = vector.load %arg0[%c0, %c0_0, %c0_1] : memref<2x1x64xbf16, #tpu.memory_space<vmem>>, vector<2x1x64xbf16>
    %1 = arith.extf %0 : vector<2x1x64xbf16> to vector<2x1x64xf32>
    %cst = arith.constant dense<0.000000e+00> : vector<2x64xf32>
    %2 = vector.multi_reduction <add>, %1, %cst [1] : vector<2x1x64xf32> to vector<2x64xf32>
    %cst_2 = arith.constant 1.000000e+00 : f32
    %3 = vector.broadcast %cst_2 : f32 to vector<2x64xf32>
    %4 = arith.divf %2, %3 : vector<2x64xf32>
    %c0_3 = arith.constant 0 : index
    %c0_4 = arith.constant 0 : index
    %5 = vector.load %arg1[%c0_3, %c0_4] : memref<64x5xf32, #tpu.memory_space<vmem>>, vector<64x5xf32>
    %cst_5 = arith.constant dense<0.000000e+00> : vector<2x5xf32>
    %6 = tpu.matmul %4, %5, %cst_5 {dimension_numbers = #tpu.dot_dimension_numbers<[1], [0], [0], [1], [0, 0, 1, 1], [], []>} : vector<2x64xf32>, vector<64x5xf32>, vector<2x5xf32> -> vector<2x5xf32>
    %c0_6 = arith.constant 0 : index
    %c0_7 = arith.constant 0 : index
    %7 = vector.load %arg2[%c0_6, %c0_7] : memref<1x5xf32, #tpu.memory_space<vmem>>, vector<1x5xf32>
    %8 = vector.broadcast %7 : vector<1x5xf32> to vector<2x5xf32>
    %9 = arith.addf %6, %8 : vector<2x5xf32>
    %c0_8 = arith.constant 0 : index
    %c0_9 = arith.constant 0 : index
    %10 = vector.load %arg3[%c0_8, %c0_9] : memref<2x5xf32, #tpu.memory_space<vmem>>, vector<2x5xf32>
    tpu.vector_store %arg3[%c0_8, %c0_9], %9 {strides = array<i32>} : memref<2x5xf32, #tpu.memory_space<vmem>>, vector<2x5xf32>,
    return
  }
}

</mosaic_0001>

<llo_original>
// kernel: _lambda_.22
$region0: #{_lambda_.22}
  #allocation0 [shape = 'u32[]', space=smem, size = 0x4, offset = 0x4, fixed_abs, tag = 'smem constant byte address 0x4 - core index']
  #allocation1 [shape = 'u32[144,128]{1,0:T(1,128)}', space=vmem, size = 0x12000, scoped, tag = 'internal scratch']
  %s0 = inlined_call_operand.vmem [shape: bf16[512,128], index: 0, kind: input, shape index: {}]
  %s1 = inlined_call_operand.vmem [shape: f32[1,128], index: 1, kind: input, shape index: {}]
  %s2 = inlined_call_operand.vmem [shape: f32[1,128], index: 2, kind: input, shape index: {}]
  %s3 = inlined_call_operand.vmem [shape: bf16[512,128], index: 3, kind: output, shape index: {}]
  %s4 = sld [smem:[#allocation0]]
  $region45: #{_lambda_.22} parent=0
    _
  %s6 = ssub.s32 1, %s4
  %s7 = scalar_select 0, %s6, %s4
  loop: start=0, step=1, limit=4
  $region2: #{_lambda_.22} parent=0 // loop_pre_header
    _
  $region3: #{_lambda_.22} parent=0 // loop_header
    %s9 = sphi 0, %s13
    %p10 = scmp.ge.s32.totalorder %s9, 4
    %s19 = sphi 0, %s21
    %s22 = sphi 0, %s19
    %s23 = sphi 0, %s22
    %s39 = sphi 0, %s23
    %s43 = sphi 0, %s43
    %s45 = sphi 0, %s43
    %s46 = sphi 0, %s45
    %s60 = sphi 0, %s46
    %s64 = sphi 0, %s64
    %s66 = sphi 0, %s64
    %s67 = sphi 0, %s66
    %s81 = sphi 0, %s67
    %s87 = sphi 0, %s89
    %s90 = sphi 0, %s87
    %s91 = sphi 0, %s90
    %s107 = sphi 0, %s91
  $region4: #{_lambda_.22} parent=0 // loop_header_branch
    %12 = sbr.rel (%p10) target = $region8
  $region5: #{_lambda_.22} parent=0 // loop_body
    %s14 = ssub.s32 %s9, 1
    %s15 = ssub.s32 %s9, 2
    %s16 = sadd.s32 %s9, 1
    %s17 = ssub.s32 %s9, %s16
    %p18 = scmp.eq.s32.totalorder %s17, 0
    %s20 = sadd.s32 %s19, 1
    %s21 = scalar_select %p18, %s19, %s20
    %p24 = pneg %p18
    %p25 = scmp.eq.s32.totalorder %s9, 1
    %p26 = por %p24, %p25
    %p27 = scmp.ne.s32.totalorder %s19, %s22
    %p28 = scmp.eq.s32.totalorder %s9, 0
    %p29 = por %p27, %p28
    %p30 = scmp.ne.s32.totalorder %s19, %s22
    %p31 = scmp.eq.s32.totalorder %s14, 1
    %p32 = por %p30, %p31
    %p33 = scmp.ne.s32.totalorder %s22, %s23
    %p34 = scmp.eq.s32.totalorder %s14, 0
    %p35 = por %p33, %p34
    %p36 = scmp.ne.s32.totalorder %s22, %s23
    %p37 = scmp.eq.s32.totalorder %s15, 1
    %p38 = por %p36, %p37
    %p40 = scmp.ne.s32.totalorder %s23, %s39
    %p41 = scmp.eq.s32.totalorder %s15, 0
    %p42 = por %p40, %p41
    %s44 = sadd.s32 %s43, 1
    %p47 = scmp.eq.s32.totalorder %s9, 1
    %p48 = scmp.ne.s32.totalorder %s43, %s45
    %p49 = scmp.eq.s32.totalorder %s9, 0
    %p50 = por %p48, %p49
    %p51 = scmp.ne.s32.totalorder %s43, %s45
    %p52 = scmp.eq.s32.totalorder %s14, 1
    %p53 = por %p51, %p52
    %p54 = scmp.ne.s32.totalorder %s45, %s46
    %p55 = scmp.eq.s32.totalorder %s14, 0
    %p56 = por %p54, %p55
    %p57 = scmp.ne.s32.totalorder %s45, %s46
    %p58 = scmp.eq.s32.totalorder %s15, 1
    %p59 = por %p57, %p58
    %p61 = scmp.ne.s32.totalorder %s46, %s60
    %p62 = scmp.eq.s32.totalorder %s15, 0
    %p63 = por %p61, %p62
    %s65 = sadd.s32 %s64, 1
    %p68 = scmp.eq.s32.totalorder %s9, 1
    %p69 = scmp.ne.s32.totalorder %s64, %s66
    %p70 = scmp.eq.s32.totalorder %s9, 0
    %p71 = por %p69, %p70
    %p72 = scmp.ne.s32.totalorder %s64, %s66
    %p73 = scmp.eq.s32.totalorder %s14, 1
    %p74 = por %p72, %p73
    %p75 = scmp.ne.s32.totalorder %s66, %s67
    %p76 = scmp.eq.s32.totalorder %s14, 0
    %p77 = por %p75, %p76
    %p78 = scmp.ne.s32.totalorder %s66, %s67
    %p79 = scmp.eq.s32.totalorder %s15, 1
    %p80 = por %p78, %p79
    %p82 = scmp.ne.s32.totalorder %s67, %s81
    %p83 = scmp.eq.s32.totalorder %s15, 0
    %p84 = por %p82, %p83
    %s85 = ssub.s32 %s9, %s16
    %p86 = scmp.eq.s32.totalorder %s85, 0
    %s88 = sadd.s32 %s87, 1
    %s89 = scalar_select %p86, %s87, %s88
    %p92 = pneg %p86
    %p93 = scmp.eq.s32.totalorder %s9, 1
    %p94 = por %p92, %p93
    %p95 = scmp.ne.s32.totalorder %s87, %s90
    %p96 = scmp.eq.s32.totalorder %s9, 0
    %p97 = por %p95, %p96
    %p98 = scmp.ne.s32.totalorder %s87, %s90
    %p99 = scmp.eq.s32.totalorder %s14, 1
    %p100 = por %p98, %p99
    %p101 = scmp.ne.s32.totalorder %s90, %s91
    %p102 = scmp.eq.s32.totalorder %s14, 0
    %p103 = por %p101, %p102
    %p104 = scmp.ne.s32.totalorder %s90, %s91
    %p105 = scmp.eq.s32.totalorder %s15, 1
    %p106 = por %p104, %p105
    %p108 = scmp.ne.s32.totalorder %s91, %s107
    %p109 = scmp.eq.s32.totalorder %s15, 0
    %p110 = por %p108, %p109
    %p111 = scmp.le.s32.totalorder 1, %s9
    %p112 = scmp.lt.s32.totalorder %s9, 3
    %p113 = pnand %p111, %p112
    %p114 = pneg %p113
    // Predicated region
    $region9: #{_lambda_.22} parent=5 // pred_check
      _
    $region10: #{_lambda_.22} parent=5 // pred_check_branch
      %116 = sbr.rel (%p113) target = $region12
    $region11: #{_lambda_.22} parent=5 // pred_region
      %s117 = ssub.s32 %s9, 1
      // Predicated region
      $region13: #{_lambda_.22} parent=11 // pred_check
        %p118 = pneg %p56
      $region14: #{_lambda_.22} parent=11 // pred_check_branch
        %120 = sbr.rel (%p118) target = $region16
      $region15: #{_lambda_.22} parent=11 // pred_region
        _
      $region16: #{_lambda_.22} parent=11 // pred_fallthru
        _
      // Predicated region
      $region17: #{_lambda_.22} parent=11 // pred_check
        %p121 = pneg %p77
      $region18: #{_lambda_.22} parent=11 // pred_check_branch
        %123 = sbr.rel (%p121) target = $region20
      $region19: #{_lambda_.22} parent=11 // pred_region
        _
      $region20: #{_lambda_.22} parent=11 // pred_fallthru
        _
    $region12: #{_lambda_.22} parent=5 // pred_fallthru
      _
    %p124 = scmp.lt.s32.totalorder %s9, 2
    // Predicated region
    $region21: #{_lambda_.22} parent=5 // pred_check
      %p125 = pneg %p124
    $region22: #{_lambda_.22} parent=5 // pred_check_branch
      %127 = sbr.rel (%p125) target = $region24
    $region23: #{_lambda_.22} parent=5 // pred_region
      // Predicated region
      $region25: #{_lambda_.22} parent=23 // pred_check
        %p128 = pneg %p29
      $region26: #{_lambda_.22} parent=23 // pred_check_branch
        %130 = sbr.rel (%p128) target = $region28
      $region27: #{_lambda_.22} parent=23 // pred_region
        %s131 = smul.u32 32, %s9
        %p132 = scmp.lt.s32.totalorder %s131, 63
        %s133 = scalar_select %p132, %s131, 63
        %s134 = smul.addr %s133, 4
        %s135 = scalar_lea.vmem %s0, %s134
        %s136 = smul.u32 32, %s9
      $region28: #{_lambda_.22} parent=23 // pred_fallthru
        _
    $region24: #{_lambda_.22} parent=5 // pred_fallthru
      _
    %p137 = scmp.le.s32.totalorder 1, %s9
    %p138 = scmp.lt.s32.totalorder %s9, 3
    %p139 = pnand %p137, %p138
    %p140 = pneg %p139
    // Predicated region
    $region29: #{_lambda_.22} parent=5 // pred_check
      _
    $region30: #{_lambda_.22} parent=5 // pred_check_branch
      %142 = sbr.rel (%p139) target = $region32
    $region31: #{_lambda_.22} parent=5 // pred_region
      %s143 = ssub.s32 %s9, 1
      %s144 = smul.u32 32, %s14
      %p145 = scmp.lt.s32.totalorder %s144, 63
      %s146 = scalar_select %p145, %s144, 63
      %s147 = smul.addr %s146, 4
      %s148 = scalar_lea.vmem %s0, %s147
      %p149 = pneg %p35
      %p150 = pneg %p32
      %p151 = pneg %p56
      %p152 = pneg %p53
      %p153 = pneg %p77
      %p154 = pneg %p74
      %p155 = pneg %p103
      %p156 = pneg %p100
      %s157 = smul.u32 32, %s14
      %p158 = scmp.lt.s32.totalorder %s157, 63
      %s159 = scalar_select %p158, %s157, 63
      %s160 = smul.addr %s159, 4
      %s161 = scalar_lea.vmem %s3, %s160
      %s162 = smul.u32 32, %s14
      %p163 = scmp.lt.s32.totalorder %s162, 63
      %s164 = scalar_select %p163, %s162, 63
      %s165 = smul.addr %s164, 4
      %s166 = scalar_lea.vmem %s0, %s165
      %s167 = smul.u32 32, %s14
      %s168 = smul.u32 32, %s14
      %p169 = scmp.lt.s32.totalorder %s168, 63
      %s170 = scalar_select %p169, %s168, 63
      %s171 = smul.addr %s170, 4
      %s172 = scalar_lea.vmem %s3, %s171
      %s173 = smul.u32 32, %s14
      %v174 = vld [vmem:[%s166] sm:$0xf]
      %v175 = vld [vmem:[%s166 + $0x4] sm:$0xf]
      %v176 = vld [vmem:[%s166 + $0x8] sm:$0xf]
      %v177 = vld [vmem:[%s166 + $0xc] sm:$0xf]
      %v178 = vld [vmem:[%s166 + $0x10] sm:$0xf]
      %v179 = vld [vmem:[%s166 + $0x14] sm:$0xf]
      %v180 = vld [vmem:[%s166 + $0x18] sm:$0xf]
      %v181 = vld [vmem:[%s166 + $0x1c] sm:$0xf]
      %v182 = vld [vmem:[%s166 + $0x20] sm:$0xf]
      %v183 = vld [vmem:[%s166 + $0x24] sm:$0xf]
      %v184 = vld [vmem:[%s166 + $0x28] sm:$0xf]
      %v185 = vld [vmem:[%s166 + $0x2c] sm:$0xf]
      %v186 = vld [vmem:[%s166 + $0x30] sm:$0xf]
      %v187 = vld [vmem:[%s166 + $0x34] sm:$0xf]
      %v188 = vld [vmem:[%s166 + $0x38] sm:$0xf]
      %v189 = vld [vmem:[%s166 + $0x3c] sm:$0xf]
      %v190 = vld [vmem:[%s166 + $0x40] sm:$0xf]
      %v191 = vld [vmem:[%s166 + $0x44] sm:$0xf]
      %v192 = vld [vmem:[%s166 + $0x48] sm:$0xf]
      %v193 = vld [vmem:[%s166 + $0x4c] sm:$0xf]
      %v194 = vld [vmem:[%s166 + $0x50] sm:$0xf]
      %v195 = vld [vmem:[%s166 + $0x54] sm:$0xf]
      %v196 = vld [vmem:[%s166 + $0x58] sm:$0xf]
      %v197 = vld [vmem:[%s166 + $0x5c] sm:$0xf]
      %v198 = vld [vmem:[%s166 + $0x60] sm:$0xf]
      %v199 = vld [vmem:[%s166 + $0x64] sm:$0xf]
      %v200 = vld [vmem:[%s166 + $0x68] sm:$0xf]
      %v201 = vld [vmem:[%s166 + $0x6c] sm:$0xf]
      %v202 = vld [vmem:[%s166 + $0x70] sm:$0xf]
      %v203 = vld [vmem:[%s166 + $0x74] sm:$0xf]
      %v204 = vld [vmem:[%s166 + $0x78] sm:$0xf]
      %v205 = vld [vmem:[%s166 + $0x7c] sm:$0xf]
      %v206 = vunpack.c.l.bf16 %v174
      %v207 = vunpack.c.l.bf16 %v175
      %v208 = vunpack.c.l.bf16 %v176
      %v209 = vunpack.c.l.bf16 %v177
      %v210 = vunpack.c.l.bf16 %v178
      %v211 = vunpack.c.l.bf16 %v179
      %v212 = vunpack.c.l.bf16 %v180
      %v213 = vunpack.c.l.bf16 %v181
      %v214 = vunpack.c.l.bf16 %v182
      %v215 = vunpack.c.l.bf16 %v183
      %v216 = vunpack.c.l.bf16 %v184
      %v217 = vunpack.c.l.bf16 %v185
      %v218 = vunpack.c.l.bf16 %v186
      %v219 = vunpack.c.l.bf16 %v187
      %v220 = vunpack.c.l.bf16 %v188
      %v221 = vunpack.c.l.bf16 %v189
      %v222 = vunpack.c.l.bf16 %v190
      %v223 = vunpack.c.l.bf16 %v191
      %v224 = vunpack.c.l.bf16 %v192
      %v225 = vunpack.c.l.bf16 %v193
      %v226 = vunpack.c.l.bf16 %v194
      %v227 = vunpack.c.l.bf16 %v195
      %v228 = vunpack.c.l.bf16 %v196
      %v229 = vunpack.c.l.bf16 %v197
      %v230 = vunpack.c.l.bf16 %v198
      %v231 = vunpack.c.l.bf16 %v199
      %v232 = vunpack.c.l.bf16 %v200
      %v233 = vunpack.c.l.bf16 %v201
      %v234 = vunpack.c.l.bf16 %v202
      %v235 = vunpack.c.l.bf16 %v203
      %v236 = vunpack.c.l.bf16 %v204
      %v237 = vunpack.c.l.bf16 %v205
      %v238 = vld [vmem:[%s1] sm:$0x1]
      %v240 = vlaneseq
      %v241 = vshrl.u32 %v240, 7
      %v242 = vsub.s32 0, %v241
      %v243 = vrot.slane %v238, %v242
      %v245 = vmul.f32 %v206, %v243
      %v246 = vmul.f32 %v207, %v243
      %v247 = vmul.f32 %v208, %v243
      %v248 = vmul.f32 %v209, %v243
      %v249 = vmul.f32 %v210, %v243
      %v250 = vmul.f32 %v211, %v243
      %v251 = vmul.f32 %v212, %v243
      %v252 = vmul.f32 %v213, %v243
      %v253 = vmul.f32 %v214, %v243
      %v254 = vmul.f32 %v215, %v243
      %v255 = vmul.f32 %v216, %v243
      %v256 = vmul.f32 %v217, %v243
      %v257 = vmul.f32 %v218, %v243
      %v258 = vmul.f32 %v219, %v243
      %v259 = vmul.f32 %v220, %v243
      %v260 = vmul.f32 %v221, %v243
      %v261 = vmul.f32 %v222, %v243
      %v262 = vmul.f32 %v223, %v243
      %v263 = vmul.f32 %v224, %v243
      %v264 = vmul.f32 %v225, %v243
      %v265 = vmul.f32 %v226, %v243
      %v266 = vmul.f32 %v227, %v243
      %v267 = vmul.f32 %v228, %v243
      %v268 = vmul.f32 %v229, %v243
      %v269 = vmul.f32 %v230, %v243
      %v270 = vmul.f32 %v231, %v243
      %v271 = vmul.f32 %v232, %v243
      %v272 = vmul.f32 %v233, %v243
      %v273 = vmul.f32 %v234, %v243
      %v274 = vmul.f32 %v235, %v243
      %v275 = vmul.f32 %v236, %v243
      %v276 = vmul.f32 %v237, %v243
      %v277 = vld [vmem:[%s2] sm:$0x1]
      %v279 = vlaneseq
      %v280 = vshrl.u32 %v279, 7
      %v281 = vsub.s32 0, %v280
      %v282 = vrot.slane %v277, %v281
      %v284 = vadd.f32 %v245, %v282
      %v285 = vadd.f32 %v246, %v282
      %v286 = vadd.f32 %v247, %v282
      %v287 = vadd.f32 %v248, %v282
      %v288 = vadd.f32 %v249, %v282
      %v289 = vadd.f32 %v250, %v282
      %v290 = vadd.f32 %v251, %v282
      %v291 = vadd.f32 %v252, %v282
      %v292 = vadd.f32 %v253, %v282
      %v293 = vadd.f32 %v254, %v282
      %v294 = vadd.f32 %v255, %v282
      %v295 = vadd.f32 %v256, %v282
      %v296 = vadd.f32 %v257, %v282
      %v297 = vadd.f32 %v258, %v282
      %v298 = vadd.f32 %v259, %v282
      %v299 = vadd.f32 %v260, %v282
      %v300 = vadd.f32 %v261, %v282
      %v301 = vadd.f32 %v262, %v282
      %v302 = vadd.f32 %v263, %v282
      %v303 = vadd.f32 %v264, %v282
      %v304 = vadd.f32 %v265, %v282
      %v305 = vadd.f32 %v266, %v282
      %v306 = vadd.f32 %v267, %v282
      %v307 = vadd.f32 %v268, %v282
      %v308 = vadd.f32 %v269, %v282
      %v309 = vadd.f32 %v270, %v282
      %v310 = vadd.f32 %v271, %v282
      %v311 = vadd.f32 %v272, %v282
      %v312 = vadd.f32 %v273, %v282
      %v313 = vadd.f32 %v274, %v282
      %v314 = vadd.f32 %v275, %v282
      %v315 = vadd.f32 %v276, %v282
      %v316 = vmax.f32 %v284, 0.0
      %v317 = vmax.f32 %v285, 0.0
      %v318 = vmax.f32 %v286, 0.0
      %v319 = vmax.f32 %v287, 0.0
      %v320 = vmax.f32 %v288, 0.0
      %v321 = vmax.f32 %v289, 0.0
      %v322 = vmax.f32 %v290, 0.0
      %v323 = vmax.f32 %v291, 0.0
      %v324 = vmax.f32 %v292, 0.0
      %v325 = vmax.f32 %v293, 0.0
      %v326 = vmax.f32 %v294, 0.0
      %v327 = vmax.f32 %v295, 0.0
      %v328 = vmax.f32 %v296, 0.0
      %v329 = vmax.f32 %v297, 0.0
      %v330 = vmax.f32 %v298, 0.0
      %v331 = vmax.f32 %v299, 0.0
      %v332 = vmax.f32 %v300, 0.0
      %v333 = vmax.f32 %v301, 0.0
      %v334 = vmax.f32 %v302, 0.0
      %v335 = vmax.f32 %v303, 0.0
      %v336 = vmax.f32 %v304, 0.0
      %v337 = vmax.f32 %v305, 0.0
      %v338 = vmax.f32 %v306, 0.0
      %v339 = vmax.f32 %v307, 0.0
      %v340 = vmax.f32 %v308, 0.0
      %v341 = vmax.f32 %v309, 0.0
      %v342 = vmax.f32 %v310, 0.0
      %v343 = vmax.f32 %v311, 0.0
      %v344 = vmax.f32 %v312, 0.0
      %v345 = vmax.f32 %v313, 0.0
      %v346 = vmax.f32 %v314, 0.0
      %v347 = vmax.f32 %v315, 0.0
      %v348 = vpack.c.bf16 %v317, %v316
      %v349 = vpack.c.bf16 %v319, %v318
      %v350 = vpack.c.bf16 %v321, %v320
      %v351 = vpack.c.bf16 %v323, %v322
      %v352 = vpack.c.bf16 %v325, %v324
      %v353 = vpack.c.bf16 %v327, %v326
      %v354 = vpack.c.bf16 %v329, %v328
      %v355 = vpack.c.bf16 %v331, %v330
      %v356 = vpack.c.bf16 %v333, %v332
      %v357 = vpack.c.bf16 %v335, %v334
      %v358 = vpack.c.bf16 %v337, %v336
      %v359 = vpack.c.bf16 %v339, %v338
      %v360 = vpack.c.bf16 %v341, %v340
      %v361 = vpack.c.bf16 %v343, %v342
      %v362 = vpack.c.bf16 %v345, %v344
      %v363 = vpack.c.bf16 %v347, %v346
      %v380 = vunpack.c.l.b16 %v348
      %v381 = vunpack.c.h.b16 %v348
      %v382 = vunpack.c.l.b16 %v349
      %v383 = vunpack.c.h.b16 %v349
      %v384 = vunpack.c.l.b16 %v350
      %v385 = vunpack.c.h.b16 %v350
      %v386 = vunpack.c.l.b16 %v351
      %v387 = vunpack.c.h.b16 %v351
      %v388 = vunpack.c.l.b16 %v352
      %v389 = vunpack.c.h.b16 %v352
      %v390 = vunpack.c.l.b16 %v353
      %v391 = vunpack.c.h.b16 %v353
      %v392 = vunpack.c.l.b16 %v354
      %v393 = vunpack.c.h.b16 %v354
      %v394 = vunpack.c.l.b16 %v355
      %v395 = vunpack.c.h.b16 %v355
      %v396 = vunpack.c.l.b16 %v356
      %v397 = vunpack.c.h.b16 %v356
      %v398 = vunpack.c.l.b16 %v357
      %v399 = vunpack.c.h.b16 %v357
      %v400 = vunpack.c.l.b16 %v358
      %v401 = vunpack.c.h.b16 %v358
      %v402 = vunpack.c.l.b16 %v359
      %v403 = vunpack.c.h.b16 %v359
      %v404 = vunpack.c.l.b16 %v360
      %v405 = vunpack.c.h.b16 %v360
      %v406 = vunpack.c.l.b16 %v361
      %v407 = vunpack.c.h.b16 %v361
      %v408 = vunpack.c.l.b16 %v362
      %v409 = vunpack.c.h.b16 %v362
      %v410 = vunpack.c.l.b16 %v363
      %v411 = vunpack.c.h.b16 %v363
      %v412 = vpack.c.b16 %v380, %v380
      %v413 = vpack.c.b16 %v381, %v381
      %v414 = vpack.c.b16 %v382, %v382
      %v415 = vpack.c.b16 %v383, %v383
      %v416 = vpack.c.b16 %v384, %v384
      %v417 = vpack.c.b16 %v385, %v385
      %v418 = vpack.c.b16 %v386, %v386
      %v419 = vpack.c.b16 %v387, %v387
      %v420 = vpack.c.b16 %v388, %v388
      %v421 = vpack.c.b16 %v389, %v389
      %v422 = vpack.c.b16 %v390, %v390
      %v423 = vpack.c.b16 %v391, %v391
      %v424 = vpack.c.b16 %v392, %v392
      %v425 = vpack.c.b16 %v393, %v393
      %v426 = vpack.c.b16 %v394, %v394
      %v427 = vpack.c.b16 %v395, %v395
      %v428 = vpack.c.b16 %v396, %v396
      %v429 = vpack.c.b16 %v397, %v397
      %v430 = vpack.c.b16 %v398, %v398
      %v431 = vpack.c.b16 %v399, %v399
      %v432 = vpack.c.b16 %v400, %v400
      %v433 = vpack.c.b16 %v401, %v401
      %v434 = vpack.c.b16 %v402, %v402
      %v435 = vpack.c.b16 %v403, %v403
      %v436 = vpack.c.b16 %v404, %v404
      %v437 = vpack.c.b16 %v405, %v405
      %v438 = vpack.c.b16 %v406, %v406
      %v439 = vpack.c.b16 %v407, %v407
      %v440 = vpack.c.b16 %v408, %v408
      %v441 = vpack.c.b16 %v409, %v409
      %v442 = vpack.c.b16 %v410, %v410
      %v443 = vpack.c.b16 %v411, %v411
      %476 = vst [vmem:[%s172] sm:$0xf] %v412
      %477 = vst [vmem:[%s172 + $0x4] sm:$0xf] %v413
      %478 = vst [vmem:[%s172 + $0x8] sm:$0xf] %v414
      %479 = vst [vmem:[%s172 + $0xc] sm:$0xf] %v415
      %480 = vst [vmem:[%s172 + $0x10] sm:$0xf] %v416
      %481 = vst [vmem:[%s172 + $0x14] sm:$0xf] %v417
      %482 = vst [vmem:[%s172 + $0x18] sm:$0xf] %v418
      %483 = vst [vmem:[%s172 + $0x1c] sm:$0xf] %v419
      %484 = vst [vmem:[%s172 + $0x20] sm:$0xf] %v420
      %485 = vst [vmem:[%s172 + $0x24] sm:$0xf] %v421
      %486 = vst [vmem:[%s172 + $0x28] sm:$0xf] %v422
      %487 = vst [vmem:[%s172 + $0x2c] sm:$0xf] %v423
      %488 = vst [vmem:[%s172 + $0x30] sm:$0xf] %v424
      %489 = vst [vmem:[%s172 + $0x34] sm:$0xf] %v425
      %490 = vst [vmem:[%s172 + $0x38] sm:$0xf] %v426
      %491 = vst [vmem:[%s172 + $0x3c] sm:$0xf] %v427
      %492 = vst [vmem:[%s172 + $0x40] sm:$0xf] %v428
      %493 = vst [vmem:[%s172 + $0x44] sm:$0xf] %v429
      %494 = vst [vmem:[%s172 + $0x48] sm:$0xf] %v430
      %495 = vst [vmem:[%s172 + $0x4c] sm:$0xf] %v431
      %496 = vst [vmem:[%s172 + $0x50] sm:$0xf] %v432
      %497 = vst [vmem:[%s172 + $0x54] sm:$0xf] %v433
      %498 = vst [vmem:[%s172 + $0x58] sm:$0xf] %v434
      %499 = vst [vmem:[%s172 + $0x5c] sm:$0xf] %v435
      %500 = vst [vmem:[%s172 + $0x60] sm:$0xf] %v436
      %501 = vst [vmem:[%s172 + $0x64] sm:$0xf] %v437
      %502 = vst [vmem:[%s172 + $0x68] sm:$0xf] %v438
      %503 = vst [vmem:[%s172 + $0x6c] sm:$0xf] %v439
      %504 = vst [vmem:[%s172 + $0x70] sm:$0xf] %v440
      %505 = vst [vmem:[%s172 + $0x74] sm:$0xf] %v441
      %506 = vst [vmem:[%s172 + $0x78] sm:$0xf] %v442
      %507 = vst [vmem:[%s172 + $0x7c] sm:$0xf] %v443
      %s508 = smul.u32 32, %s14
      %p509 = scmp.lt.s32.totalorder %s508, 63
      %s510 = scalar_select %p509, %s508, 63
      %s511 = smul.addr %s510, 4
      %s512 = scalar_lea.vmem %s3, %s511
      // Predicated region
      $region33: #{_lambda_.22} parent=31 // pred_check
        %p513 = pneg %p100
      $region34: #{_lambda_.22} parent=31 // pred_check_branch
        %515 = sbr.rel (%p513) target = $region36
      $region35: #{_lambda_.22} parent=31 // pred_region
        %s516 = smul.u32 32, %s14
      $region36: #{_lambda_.22} parent=31 // pred_fallthru
        _
    $region32: #{_lambda_.22} parent=5 // pred_fallthru
      _
    %p517 = scmp.le.s32.totalorder 2, %s9
    // Predicated region
    $region37: #{_lambda_.22} parent=5 // pred_check
      %p518 = pneg %p517
    $region38: #{_lambda_.22} parent=5 // pred_check_branch
      %520 = sbr.rel (%p518) target = $region40
    $region39: #{_lambda_.22} parent=5 // pred_region
      %s521 = ssub.s32 %s9, 2
      // Predicated region
      $region41: #{_lambda_.22} parent=39 // pred_check
        %p522 = pneg %p106
      $region42: #{_lambda_.22} parent=39 // pred_check_branch
        %524 = sbr.rel (%p522) target = $region44
      $region43: #{_lambda_.22} parent=39 // pred_region
        %s525 = smul.u32 32, %s15
        %p526 = scmp.lt.s32.totalorder %s525, 63
        %s527 = scalar_select %p526, %s525, 63
        %s528 = smul.addr %s527, 4
        %s529 = scalar_lea.vmem %s3, %s528
      $region44: #{_lambda_.22} parent=39 // pred_fallthru
        _
    $region40: #{_lambda_.22} parent=5 // pred_fallthru
      _
  $region6: #{_lambda_.22} parent=0 // loop_footer
    %s13 = sadd.s32 1, %s9
  $region7: #{_lambda_.22} parent=0 // loop_footer_branch
    %8 = sbr.rel target = $region3
  $region8: #{_lambda_.22} parent=0 // loop_exit
    _

// kernel: _lambda_.21
$region0: #{_lambda_.21}
  #allocation0 [shape = 'u32[]', space=smem, size = 0x4, offset = 0x4, fixed_abs, tag = 'smem constant byte address 0x4 - core index']
  #allocation1 [shape = 'u32[144,128]{1,0:T(1,128)}', space=vmem, size = 0x12000, scoped, tag = 'internal scratch']
  %s0 = inlined_call_operand.vmem [shape: bf16[512,147], index: 0, kind: input, shape index: {}]
  %s1 = inlined_call_operand.vmem [shape: bf16[147,128], index: 1, kind: input, shape index: {}]
  %s2 = inlined_call_operand.vmem [shape: bf16[512,128], index: 2, kind: output, shape index: {0}]
  %s3 = inlined_call_operand.vmem [shape: f32[16,128], index: 3, kind: output, shape index: {1}]
  %s4 = inlined_call_operand.vmem [shape: f32[16,128], index: 4, kind: output, shape index: {2}]
  %5 = xla_tuple %s2, %s3, %s4
  %s6 = sld [smem:[#allocation0]]
  $region57: #{_lambda_.21} parent=0
    _
  %s8 = ssub.s32 1, %s6
  %s9 = scalar_select 0, %s8, %s6
  loop: start=0, step=1, limit=4
  $region2: #{_lambda_.21} parent=0 // loop_pre_header
    _
  $region3: #{_lambda_.21} parent=0 // loop_header
    %s11 = sphi 0, %s15
    %p12 = scmp.ge.s32.totalorder %s11, 4
    %s21 = sphi 0, %s23
    %s24 = sphi 0, %s21
    %s25 = sphi 0, %s24
    %s41 = sphi 0, %s25
    %s45 = sphi 0, %s45
    %s47 = sphi 0, %s45
    %s48 = sphi 0, %s47
    %s62 = sphi 0, %s48
    %s68 = sphi 0, %s70
    %s71 = sphi 0, %s68
    %s72 = sphi 0, %s71
    %s88 = sphi 0, %s72
    %s94 = sphi 0, %s96
    %s97 = sphi 0, %s94
    %s98 = sphi 0, %s97
    %s114 = sphi 0, %s98
    %s120 = sphi 0, %s122
    %s123 = sphi 0, %s120
    %s124 = sphi 0, %s123
    %s140 = sphi 0, %s124
  $region4: #{_lambda_.21} parent=0 // loop_header_branch
    %14 = sbr.rel (%p12) target = $region8
  $region5: #{_lambda_.21} parent=0 // loop_body
    %s16 = ssub.s32 %s11, 1
    %s17 = ssub.s32 %s11, 2
    %s18 = sadd.s32 %s11, 1
    %s19 = ssub.s32 %s11, %s18
    %p20 = scmp.eq.s32.totalorder %s19, 0
    %s22 = sadd.s32 %s21, 1
    %s23 = scalar_select %p20, %s21, %s22
    %p26 = pneg %p20
    %p27 = scmp.eq.s32.totalorder %s11, 1
    %p28 = por %p26, %p27
    %p29 = scmp.ne.s32.totalorder %s21, %s24
    %p30 = scmp.eq.s32.totalorder %s11, 0
    %p31 = por %p29, %p30
    %p32 = scmp.ne.s32.totalorder %s21, %s24
    %p33 = scmp.eq.s32.totalorder %s16, 1
    %p34 = por %p32, %p33
    %p35 = scmp.ne.s32.totalorder %s24, %s25
    %p36 = scmp.eq.s32.totalorder %s16, 0
    %p37 = por %p35, %p36
    %p38 = scmp.ne.s32.totalorder %s24, %s25
    %p39 = scmp.eq.s32.totalorder %s17, 1
    %p40 = por %p38, %p39
    %p42 = scmp.ne.s32.totalorder %s25, %s41
    %p43 = scmp.eq.s32.totalorder %s17, 0
    %p44 = por %p42, %p43
    %s46 = sadd.s32 %s45, 1
    %p49 = scmp.eq.s32.totalorder %s11, 1
    %p50 = scmp.ne.s32.totalorder %s45, %s47
    %p51 = scmp.eq.s32.totalorder %s11, 0
    %p52 = por %p50, %p51
    %p53 = scmp.ne.s32.totalorder %s45, %s47
    %p54 = scmp.eq.s32.totalorder %s16, 1
    %p55 = por %p53, %p54
    %p56 = scmp.ne.s32.totalorder %s47, %s48
    %p57 = scmp.eq.s32.totalorder %s16, 0
    %p58 = por %p56, %p57
    %p59 = scmp.ne.s32.totalorder %s47, %s48
    %p60 = scmp.eq.s32.totalorder %s17, 1
    %p61 = por %p59, %p60
    %p63 = scmp.ne.s32.totalorder %s48, %s62
    %p64 = scmp.eq.s32.totalorder %s17, 0
    %p65 = por %p63, %p64
    %s66 = ssub.s32 %s11, %s18
    %p67 = scmp.eq.s32.totalorder %s66, 0
    %s69 = sadd.s32 %s68, 1
    %s70 = scalar_select %p67, %s68, %s69
    %p73 = pneg %p67
    %p74 = scmp.eq.s32.totalorder %s11, 1
    %p75 = por %p73, %p74
    %p76 = scmp.ne.s32.totalorder %s68, %s71
    %p77 = scmp.eq.s32.totalorder %s11, 0
    %p78 = por %p76, %p77
    %p79 = scmp.ne.s32.totalorder %s68, %s71
    %p80 = scmp.eq.s32.totalorder %s16, 1
    %p81 = por %p79, %p80
    %p82 = scmp.ne.s32.totalorder %s71, %s72
    %p83 = scmp.eq.s32.totalorder %s16, 0
    %p84 = por %p82, %p83
    %p85 = scmp.ne.s32.totalorder %s71, %s72
    %p86 = scmp.eq.s32.totalorder %s17, 1
    %p87 = por %p85, %p86
    %p89 = scmp.ne.s32.totalorder %s72, %s88
    %p90 = scmp.eq.s32.totalorder %s17, 0
    %p91 = por %p89, %p90
    %s92 = ssub.s32 %s11, %s18
    %p93 = scmp.eq.s32.totalorder %s92, 0
    %s95 = sadd.s32 %s94, 1
    %s96 = scalar_select %p93, %s94, %s95
    %p99 = pneg %p93
    %p100 = scmp.eq.s32.totalorder %s11, 1
    %p101 = por %p99, %p100
    %p102 = scmp.ne.s32.totalorder %s94, %s97
    %p103 = scmp.eq.s32.totalorder %s11, 0
    %p104 = por %p102, %p103
    %p105 = scmp.ne.s32.totalorder %s94, %s97
    %p106 = scmp.eq.s32.totalorder %s16, 1
    %p107 = por %p105, %p106
    %p108 = scmp.ne.s32.totalorder %s97, %s98
    %p109 = scmp.eq.s32.totalorder %s16, 0
    %p110 = por %p108, %p109
    %p111 = scmp.ne.s32.totalorder %s97, %s98
    %p112 = scmp.eq.s32.totalorder %s17, 1
    %p113 = por %p111, %p112
    %p115 = scmp.ne.s32.totalorder %s98, %s114
    %p116 = scmp.eq.s32.totalorder %s17, 0
    %p117 = por %p115, %p116
    %s118 = ssub.s32 %s11, %s18
    %p119 = scmp.eq.s32.totalorder %s118, 0
    %s121 = sadd.s32 %s120, 1
    %s122 = scalar_select %p119, %s120, %s121
    %p125 = pneg %p119
    %p126 = scmp.eq.s32.totalorder %s11, 1
    %p127 = por %p125, %p126
    %p128 = scmp.ne.s32.totalorder %s120, %s123
    %p129 = scmp.eq.s32.totalorder %s11, 0
    %p130 = por %p128, %p129
    %p131 = scmp.ne.s32.totalorder %s120, %s123
    %p132 = scmp.eq.s32.totalorder %s16, 1
    %p133 = por %p131, %p132
    %p134 = scmp.ne.s32.totalorder %s123, %s124
    %p135 = scmp.eq.s32.totalorder %s16, 0
    %p136 = por %p134, %p135
    %p137 = scmp.ne.s32.totalorder %s123, %s124
    %p138 = scmp.eq.s32.totalorder %s17, 1
    %p139 = por %p137, %p138
    %p141 = scmp.ne.s32.totalorder %s124, %s140
    %p142 = scmp.eq.s32.totalorder %s17, 0
    %p143 = por %p141, %p142
    %p144 = scmp.le.s32.totalorder 1, %s11
    %p145 = scmp.lt.s32.totalorder %s11, 3
    %p146 = pnand %p144, %p145
    %p147 = pneg %p146
    // Predicated region
    $region9: #{_lambda_.21} parent=5 // pred_check
      _
    $region10: #{_lambda_.21} parent=5 // pred_check_branch
      %149 = sbr.rel (%p146) target = $region12
    $region11: #{_lambda_.21} parent=5 // pred_region
      %s150 = ssub.s32 %s11, 1
      // Predicated region
      $region13: #{_lambda_.21} parent=11 // pred_check
        %p151 = pneg %p58
      $region14: #{_lambda_.21} parent=11 // pred_check_branch
        %153 = sbr.rel (%p151) target = $region16
      $region15: #{_lambda_.21} parent=11 // pred_region
        _
      $region16: #{_lambda_.21} parent=11 // pred_fallthru
        _
    $region12: #{_lambda_.21} parent=5 // pred_fallthru
      _
    %p154 = scmp.lt.s32.totalorder %s11, 2
    // Predicated region
    $region17: #{_lambda_.21} parent=5 // pred_check
      %p155 = pneg %p154
    $region18: #{_lambda_.21} parent=5 // pred_check_branch
      %157 = sbr.rel (%p155) target = $region20
    $region19: #{_lambda_.21} parent=5 // pred_region
      // Predicated region
      $region21: #{_lambda_.21} parent=19 // pred_check
        %p158 = pneg %p31
      $region22: #{_lambda_.21} parent=19 // pred_check_branch
        %160 = sbr.rel (%p158) target = $region24
      $region23: #{_lambda_.21} parent=19 // pred_region
        %s161 = smul.u32 32, %s11
        %p162 = scmp.lt.s32.totalorder %s161, 63
        %s163 = scalar_select %p162, %s161, 63
        %s164 = smul.addr %s163, 2
        %s165 = smul.addr %s164, 4
        %s166 = scalar_lea.vmem %s0, %s165
        %s167 = smul.u32 32, %s11
      $region24: #{_lambda_.21} parent=19 // pred_fallthru
        _
    $region20: #{_lambda_.21} parent=5 // pred_fallthru
      _
    %p168 = scmp.le.s32.totalorder 1, %s11
    %p169 = scmp.lt.s32.totalorder %s11, 3
    %p170 = pnand %p168, %p169
    %p171 = pneg %p170
    // Predicated region
    $region25: #{_lambda_.21} parent=5 // pred_check
      _
    $region26: #{_lambda_.21} parent=5 // pred_check_branch
      %173 = sbr.rel (%p170) target = $region28
    $region27: #{_lambda_.21} parent=5 // pred_region
      %s174 = ssub.s32 %s11, 1
      %s175 = smul.u32 32, %s16
      %p176 = scmp.lt.s32.totalorder %s175, 63
      %s177 = scalar_select %p176, %s175, 63
      %s178 = smul.addr %s177, 2
      %s179 = smul.addr %s178, 4
      %s180 = scalar_lea.vmem %s0, %s179
      %p181 = pneg %p37
      %p182 = pneg %p34
      %p183 = pneg %p58
      %p184 = pneg %p55
      %p185 = pneg %p84
      %p186 = pneg %p81
      %s187 = smul.u32 32, %s16
      %p188 = scmp.lt.s32.totalorder %s187, 63
      %s189 = scalar_select %p188, %s187, 63
      %s190 = smul.addr %s189, 4
      %s191 = scalar_lea.vmem %s2, %s190
      %p192 = pneg %p110
      %p193 = pneg %p107
      %p194 = scmp.lt.s32.totalorder %s16, 1
      %s195 = scalar_select %p194, %s16, 1
      %s196 = smul.addr %s195, 8
      %s197 = scalar_lea.vmem %s3, %s196
      %p198 = pneg %p136
      %p199 = pneg %p133
      %p200 = scmp.lt.s32.totalorder %s16, 1
      %s201 = scalar_select %p200, %s16, 1
      %s202 = smul.addr %s201, 8
      %s203 = scalar_lea.vmem %s4, %s202
      %s204 = smul.u32 32, %s16
      %p205 = scmp.lt.s32.totalorder %s204, 63
      %s206 = scalar_select %p205, %s204, 63
      %s207 = smul.addr %s206, 2
      %s208 = smul.addr %s207, 4
      %s209 = scalar_lea.vmem %s0, %s208
      %s210 = smul.u32 32, %s16
      %s211 = smul.u32 32, %s16
      %p212 = scmp.lt.s32.totalorder %s211, 63
      %s213 = scalar_select %p212, %s211, 63
      %s214 = smul.addr %s213, 4
      %s215 = scalar_lea.vmem %s2, %s214
      %s216 = smul.u32 32, %s16
      %p217 = scmp.lt.s32.totalorder %s16, 1
      %s218 = scalar_select %p217, %s16, 1
      %s219 = smul.addr %s218, 8
      %s220 = scalar_lea.vmem %s3, %s219
      %p221 = scmp.lt.s32.totalorder %s16, 1
      %s222 = scalar_select %p221, %s16, 1
      %s223 = smul.addr %s222, 8
      %s224 = scalar_lea.vmem %s4, %s223
      %v226 = vld [vmem:[%s209] sm:$0xff]
      %v227 = vld [vmem:[%s209 + $0x8] sm:$0xff]
      %v228 = vld [vmem:[%s209 + $0x10] sm:$0xff]
      %v229 = vld [vmem:[%s209 + $0x18] sm:$0xff]
      %v230 = vld [vmem:[%s209 + $0x20] sm:$0xff]
      %v231 = vld [vmem:[%s209 + $0x28] sm:$0xff]
      %v232 = vld [vmem:[%s209 + $0x30] sm:$0xff]
      %v233 = vld [vmem:[%s209 + $0x38] sm:$0xff]
      %v234 = vld [vmem:[%s209 + $0x40] sm:$0xff]
      %v235 = vld [vmem:[%s209 + $0x48] sm:$0xff]
      %v236 = vld [vmem:[%s209 + $0x50] sm:$0xff]
      %v237 = vld [vmem:[%s209 + $0x58] sm:$0xff]
      %v238 = vld [vmem:[%s209 + $0x60] sm:$0xff]
      %v239 = vld [vmem:[%s209 + $0x68] sm:$0xff]
      %v240 = vld [vmem:[%s209 + $0x70] sm:$0xff]
      %v241 = vld [vmem:[%s209 + $0x78] sm:$0xff]
      %v242 = vld [vmem:[%s209 + $0x80] sm:$0xff]
      %v243 = vld [vmem:[%s209 + $0x88] sm:$0xff]
      %v244 = vld [vmem:[%s209 + $0x90] sm:$0xff]
      %v245 = vld [vmem:[%s209 + $0x98] sm:$0xff]
      %v246 = vld [vmem:[%s209 + $0xa0] sm:$0xff]
      %v247 = vld [vmem:[%s209 + $0xa8] sm:$0xff]
      %v248 = vld [vmem:[%s209 + $0xb0] sm:$0xff]
      %v249 = vld [vmem:[%s209 + $0xb8] sm:$0xff]
      %v250 = vld [vmem:[%s209 + $0xc0] sm:$0xff]
      %v251 = vld [vmem:[%s209 + $0xc8] sm:$0xff]
      %v252 = vld [vmem:[%s209 + $0xd0] sm:$0xff]
      %v253 = vld [vmem:[%s209 + $0xd8] sm:$0xff]
      %v254 = vld [vmem:[%s209 + $0xe0] sm:$0xff]
      %v255 = vld [vmem:[%s209 + $0xe8] sm:$0xff]
      %v256 = vld [vmem:[%s209 + $0xf0] sm:$0xff]
      %v257 = vld [vmem:[%s209 + $0xf8] sm:$0xff]
      %v258 = vld [vmem:[%s1] sm:$0xf]
      %v259 = vld [vmem:[%s1 + $0x4] sm:$0xf]
      %v260 = vld [vmem:[%s1 + $0x8] sm:$0xf]
      %v261 = vld [vmem:[%s1 + $0xc] sm:$0xf]
      %v262 = vld [vmem:[%s1 + $0x10] sm:$0xf]
      %v263 = vld [vmem:[%s1 + $0x14] sm:$0xf]
      %v264 = vld [vmem:[%s1 + $0x18] sm:$0xf]
      %v265 = vld [vmem:[%s1 + $0x1c] sm:$0xf]
      %v266 = vld [vmem:[%s1 + $0x20] sm:$0xf]
      %v267 = vld [vmem:[%s1 + $0x24] sm:$0xf]
      %v268 = vld [vmem:[%s1 + $0x28] sm:$0xf]
      %v269 = vld [vmem:[%s1 + $0x2c] sm:$0xf]
      %v270 = vld [vmem:[%s1 + $0x30] sm:$0xf]
      %v271 = vld [vmem:[%s1 + $0x34] sm:$0xf]
      %v272 = vld [vmem:[%s1 + $0x38] sm:$0xf]
      %v273 = vld [vmem:[%s1 + $0x3c] sm:$0xf]
      %v274 = vld [vmem:[%s1 + $0x40] sm:$0xf]
      %v275 = vld [vmem:[%s1 + $0x44] sm:$0xf]
      %v276 = vld [vmem:[%s1 + $0x48] sm:$0x3]
      %v309 = vunpack.c.l.b16 %v226
      %v310 = vunpack.c.h.b16 %v226
      %v311 = vunpack.c.l.b16 %v227
      %v312 = vunpack.c.h.b16 %v227
      %v313 = vunpack.c.l.b16 %v228
      %v314 = vunpack.c.h.b16 %v228
      %v315 = vunpack.c.l.b16 %v229
      %v316 = vunpack.c.h.b16 %v229
      %v317 = vunpack.c.l.b16 %v230
      %v318 = vunpack.c.h.b16 %v230
      %v319 = vunpack.c.l.b16 %v231
      %v320 = vunpack.c.h.b16 %v231
      %v321 = vunpack.c.l.b16 %v232
      %v322 = vunpack.c.h.b16 %v232
      %v323 = vunpack.c.l.b16 %v233
      %v324 = vunpack.c.h.b16 %v233
      %v325 = vunpack.c.l.b16 %v234
      %v326 = vunpack.c.h.b16 %v234
      %v327 = vunpack.c.l.b16 %v235
      %v328 = vunpack.c.h.b16 %v235
      %v329 = vunpack.c.l.b16 %v236
      %v330 = vunpack.c.h.b16 %v236
      %v331 = vunpack.c.l.b16 %v237
      %v332 = vunpack.c.h.b16 %v237
      %v333 = vunpack.c.l.b16 %v238
      %v334 = vunpack.c.h.b16 %v238
      %v335 = vunpack.c.l.b16 %v239
      %v336 = vunpack.c.h.b16 %v239
      %v337 = vunpack.c.l.b16 %v240
      %v338 = vunpack.c.h.b16 %v240
      %v339 = vunpack.c.l.b16 %v241
      %v340 = vunpack.c.h.b16 %v241
      %v341 = vunpack.c.l.b16 %v242
      %v342 = vunpack.c.h.b16 %v242
      %v343 = vunpack.c.l.b16 %v243
      %v344 = vunpack.c.h.b16 %v243
      %v345 = vunpack.c.l.b16 %v244
      %v346 = vunpack.c.h.b16 %v244
      %v347 = vunpack.c.l.b16 %v245
      %v348 = vunpack.c.h.b16 %v245
      %v349 = vunpack.c.l.b16 %v246
      %v350 = vunpack.c.h.b16 %v246
      %v351 = vunpack.c.l.b16 %v247
      %v352 = vunpack.c.h.b16 %v247
      %v353 = vunpack.c.l.b16 %v248
      %v354 = vunpack.c.h.b16 %v248
      %v355 = vunpack.c.l.b16 %v249
      %v356 = vunpack.c.h.b16 %v249
      %v357 = vunpack.c.l.b16 %v250
      %v358 = vunpack.c.h.b16 %v250
      %v359 = vunpack.c.l.b16 %v251
      %v360 = vunpack.c.h.b16 %v251
      %v361 = vunpack.c.l.b16 %v252
      %v362 = vunpack.c.h.b16 %v252
      %v363 = vunpack.c.l.b16 %v253
      %v364 = vunpack.c.h.b16 %v253
      %v365 = vunpack.c.l.b16 %v254
      %v366 = vunpack.c.h.b16 %v254
      %v367 = vunpack.c.l.b16 %v255
      %v368 = vunpack.c.h.b16 %v255
      %v369 = vunpack.c.l.b16 %v256
      %v370 = vunpack.c.h.b16 %v256
      %v371 = vunpack.c.l.b16 %v257
      %v372 = vunpack.c.h.b16 %v257
      %v373 = vpack.c.b16 %v311, %v309
      %v374 = vpack.c.b16 %v312, %v310
      %v375 = vpack.c.b16 %v315, %v313
      %v376 = vpack.c.b16 %v316, %v314
      %v377 = vpack.c.b16 %v319, %v317
      %v378 = vpack.c.b16 %v320, %v318
      %v379 = vpack.c.b16 %v323, %v321
      %v380 = vpack.c.b16 %v324, %v322
      %v381 = vpack.c.b16 %v327, %v325
      %v382 = vpack.c.b16 %v328, %v326
      %v383 = vpack.c.b16 %v331, %v329
      %v384 = vpack.c.b16 %v332, %v330
      %v385 = vpack.c.b16 %v335, %v333
      %v386 = vpack.c.b16 %v336, %v334
      %v387 = vpack.c.b16 %v339, %v337
      %v388 = vpack.c.b16 %v340, %v338
      %v389 = vpack.c.b16 %v343, %v341
      %v390 = vpack.c.b16 %v344, %v342
      %v391 = vpack.c.b16 %v347, %v345
      %v392 = vpack.c.b16 %v348, %v346
      %v393 = vpack.c.b16 %v351, %v349
      %v394 = vpack.c.b16 %v352, %v350
      %v395 = vpack.c.b16 %v355, %v353
      %v396 = vpack.c.b16 %v356, %v354
      %v397 = vpack.c.b16 %v359, %v357
      %v398 = vpack.c.b16 %v360, %v358
      %v399 = vpack.c.b16 %v363, %v361
      %v400 = vpack.c.b16 %v364, %v362
      %v401 = vpack.c.b16 %v367, %v365
      %v402 = vpack.c.b16 %v368, %v366
      %v403 = vpack.c.b16 %v371, %v369
      %v404 = vpack.c.b16 %v372, %v370
      %v440 = vunpack.c.l.b16 %v258
      %v441 = vunpack.c.l.b16 %v259
      %v442 = vunpack.c.l.b16 %v260
      %v443 = vunpack.c.l.b16 %v261
      %v444 = vunpack.c.l.b16 %v262
      %v445 = vunpack.c.l.b16 %v263
      %v446 = vunpack.c.l.b16 %v264
      %v447 = vunpack.c.l.b16 %v265
      %v448 = vunpack.c.l.b16 %v266
      %v449 = vunpack.c.l.b16 %v267
      %v450 = vunpack.c.l.b16 %v268
      %v451 = vunpack.c.l.b16 %v269
      %v452 = vunpack.c.l.b16 %v270
      %v453 = vunpack.c.l.b16 %v271
      %v454 = vunpack.c.l.b16 %v272
      %v455 = vunpack.c.l.b16 %v273
      %v456 = vunpack.c.l.b16 %v274
      %v457 = vunpack.c.l.b16 %v275
      %v458 = vunpack.c.l.b16 %v276
      %v459 = vpack.c.b16 %v441, %v440
      %v460 = vpack.c.b16 %v443, %v442
      %v461 = vpack.c.b16 %v445, %v444
      %v462 = vpack.c.b16 %v447, %v446
      %v463 = vpack.c.b16 %v449, %v448
      %v464 = vpack.c.b16 %v451, %v450
      %v465 = vpack.c.b16 %v453, %v452
      %v466 = vpack.c.b16 %v455, %v454
      %v467 = vpack.c.b16 %v457, %v456
      %v468 = vpack.c.b16 %v458, %v458
      %vm478 = vcmask 154624
      %v480 = vsel %vm478, %v374, 0
      %v483 = vsel %vm478, %v376, 0
      %v486 = vsel %vm478, %v378, 0
      %v489 = vsel %vm478, %v380, 0
      %v492 = vsel %vm478, %v382, 0
      %v495 = vsel %vm478, %v384, 0
      %v498 = vsel %vm478, %v386, 0
      %v501 = vsel %vm478, %v388, 0
      %v504 = vsel %vm478, %v390, 0
      %v507 = vsel %vm478, %v392, 0
      %v510 = vsel %vm478, %v394, 0
      %v513 = vsel %vm478, %v396, 0
      %v516 = vsel %vm478, %v398, 0
      %v519 = vsel %vm478, %v400, 0
      %v522 = vsel %vm478, %v402, 0
      %v525 = vsel %vm478, %v404, 0
      %vm527 = vcmask 1040384
      %vm528 = vcmask 1041408
      %v529 = vsel %vm527, 4294967295, 65535
      %v530 = vsel %vm528, %v529, 0
      %v532 = vand.u32 %v468, %v530
      %534 = vmatprep.subr.bf16.mxu0 0
      %535 = vmatpush1.bf16.msra.mxu0 %v466
      %536 = vmatprep.subr.bf16.mxu0 0
      %537 = vmatpush1.bf16.msra.mxu0 %v465
      %538 = vmatprep.subr.bf16.mxu0 0
      %539 = vmatpush1.bf16.msra.mxu0 %v464
      %540 = vmatprep.subr.bf16.mxu0 0
      %541 = vmatpush1.bf16.msra.mxu0 %v463
      %542 = vmatprep.subr.bf16.mxu0 0
      %543 = vmatpush1.bf16.msra.mxu0 %v462
      %544 = vmatprep.subr.bf16.mxu0 0
      %545 = vmatpush1.bf16.msra.mxu0 %v461
      %546 = vmatprep.subr.bf16.mxu0 0
      %547 = vmatpush1.bf16.msra.mxu0 %v460
      %548 = vmatprep.subr.bf16.mxu0 0
      %549 = vmatpush1.bf16.msra.mxu0 %v459
      %550 = vmatprep.subr.bf16.mxu0 0
      %551 = vmatpush2.bf16.msra.mxu0 0
      %552 = vmatprep.subr.bf16.mxu0 0
      %553 = vmatpush2.bf16.msra.mxu0 0
      %554 = vmatprep.subr.bf16.mxu0 0
      %555 = vmatpush2.bf16.msra.mxu0 0
      %556 = vmatprep.subr.bf16.mxu0 0
      %557 = vmatpush2.bf16.msra.mxu0 0
      %558 = vmatprep.subr.bf16.mxu0 0
      %559 = vmatpush2.bf16.msra.mxu0 0
      %560 = vmatprep.subr.bf16.mxu0 0
      %561 = vmatpush2.bf16.msra.mxu0 0
      %562 = vmatprep.subr.bf16.mxu0 0
      %563 = vmatpush2.bf16.msra.mxu0 %v532
      %564 = vmatprep.subr.bf16.mxu0 0
      %565 = vmatpush2.bf16.msra.mxu0 %v467
      %566 = vmatprep.mubr.bf16.mxu0 %v480
      %567 = vmatmul.mubr.bf16.gmra.mxu0 %v373
      %v568 = vpop.f32.mrf.mxu0
      %v569 = vadd.f32 0.0, %v568
      %v570 = vpop.f32.mrf.mxu0
      %v571 = vpop.f32.mrf.mxu0
      %v572 = vadd.f32 0.0, %v571
      %v573 = vpop.f32.mrf.mxu0
      %574 = vmatprep.mubr.bf16.mxu0 %v483
      %575 = vmatmul.mubr.bf16.gmra.mxu0 %v375
      %v576 = vpop.f32.mrf.mxu0
      %v577 = vadd.f32 0.0, %v576
      %v578 = vpop.f32.mrf.mxu0
      %v579 = vpop.f32.mrf.mxu0
      %v580 = vadd.f32 0.0, %v579
      %v581 = vpop.f32.mrf.mxu0
      %582 = vmatprep.mubr.bf16.mxu0 %v486
      %583 = vmatmul.mubr.bf16.gmra.mxu0 %v377
      %v584 = vpop.f32.mrf.mxu0
      %v585 = vadd.f32 0.0, %v584
      %v586 = vpop.f32.mrf.mxu0
      %v587 = vpop.f32.mrf.mxu0
      %v588 = vadd.f32 0.0, %v587
      %v589 = vpop.f32.mrf.mxu0
      %590 = vmatprep.mubr.bf16.mxu0 %v489
      %591 = vmatmul.mubr.bf16.gmra.mxu0 %v379
      %v592 = vpop.f32.mrf.mxu0
      %v593 = vadd.f32 0.0, %v592
      %v594 = vpop.f32.mrf.mxu0
      %v595 = vpop.f32.mrf.mxu0
      %v596 = vadd.f32 0.0, %v595
      %v597 = vpop.f32.mrf.mxu0
      %598 = vmatprep.mubr.bf16.mxu0 %v492
      %599 = vmatmul.mubr.bf16.gmra.mxu0 %v381
      %v600 = vpop.f32.mrf.mxu0
      %v601 = vadd.f32 0.0, %v600
      %v602 = vpop.f32.mrf.mxu0
      %v603 = vpop.f32.mrf.mxu0
      %v604 = vadd.f32 0.0, %v603
      %v605 = vpop.f32.mrf.mxu0
      %606 = vmatprep.mubr.bf16.mxu0 %v495
      %607 = vmatmul.mubr.bf16.gmra.mxu0 %v383
      %v608 = vpop.f32.mrf.mxu0
      %v609 = vadd.f32 0.0, %v608
      %v610 = vpop.f32.mrf.mxu0
      %v611 = vpop.f32.mrf.mxu0
      %v612 = vadd.f32 0.0, %v611
      %v613 = vpop.f32.mrf.mxu0
      %614 = vmatprep.mubr.bf16.mxu0 %v498
      %615 = vmatmul.mubr.bf16.gmra.mxu0 %v385
      %v616 = vpop.f32.mrf.mxu0
      %v617 = vadd.f32 0.0, %v616
      %v618 = vpop.f32.mrf.mxu0
      %v619 = vpop.f32.mrf.mxu0
      %v620 = vadd.f32 0.0, %v619
      %v621 = vpop.f32.mrf.mxu0
      %622 = vmatprep.mubr.bf16.mxu0 %v501
      %623 = vmatmul.mubr.bf16.gmra.mxu0 %v387
      %v624 = vpop.f32.mrf.mxu0
      %v625 = vadd.f32 0.0, %v624
      %v626 = vpop.f32.mrf.mxu0
      %v627 = vpop.f32.mrf.mxu0
      %v628 = vadd.f32 0.0, %v627
      %v629 = vpop.f32.mrf.mxu0
      %630 = vmatprep.mubr.bf16.mxu0 %v504
      %631 = vmatmul.mubr.bf16.gmra.mxu0 %v389
      %v632 = vpop.f32.mrf.mxu0
      %v633 = vadd.f32 0.0, %v632
      %v634 = vpop.f32.mrf.mxu0
      %v635 = vpop.f32.mrf.mxu0
      %v636 = vadd.f32 0.0, %v635
      %v637 = vpop.f32.mrf.mxu0
      %638 = vmatprep.mubr.bf16.mxu0 %v507
      %639 = vmatmul.mubr.bf16.gmra.mxu0 %v391
      %v640 = vpop.f32.mrf.mxu0
      %v641 = vadd.f32 0.0, %v640
      %v642 = vpop.f32.mrf.mxu0
      %v643 = vpop.f32.mrf.mxu0
      %v644 = vadd.f32 0.0, %v643
      %v645 = vpop.f32.mrf.mxu0
      %646 = vmatprep.mubr.bf16.mxu0 %v510
      %647 = vmatmul.mubr.bf16.gmra.mxu0 %v393
      %v648 = vpop.f32.mrf.mxu0
      %v649 = vadd.f32 0.0, %v648
      %v650 = vpop.f32.mrf.mxu0
      %v651 = vpop.f32.mrf.mxu0
      %v652 = vadd.f32 0.0, %v651
      %v653 = vpop.f32.mrf.mxu0
      %654 = vmatprep.mubr.bf16.mxu0 %v513
      %655 = vmatmul.mubr.bf16.gmra.mxu0 %v395
      %v656 = vpop.f32.mrf.mxu0
      %v657 = vadd.f32 0.0, %v656
      %v658 = vpop.f32.mrf.mxu0
      %v659 = vpop.f32.mrf.mxu0
      %v660 = vadd.f32 0.0, %v659
      %v661 = vpop.f32.mrf.mxu0
      %662 = vmatprep.mubr.bf16.mxu0 %v516
      %663 = vmatmul.mubr.bf16.gmra.mxu0 %v397
      %v664 = vpop.f32.mrf.mxu0
      %v665 = vadd.f32 0.0, %v664
      %v666 = vpop.f32.mrf.mxu0
      %v667 = vpop.f32.mrf.mxu0
      %v668 = vadd.f32 0.0, %v667
      %v669 = vpop.f32.mrf.mxu0
      %670 = vmatprep.mubr.bf16.mxu0 %v519
      %671 = vmatmul.mubr.bf16.gmra.mxu0 %v399
      %v672 = vpop.f32.mrf.mxu0
      %v673 = vadd.f32 0.0, %v672
      %v674 = vpop.f32.mrf.mxu0
      %v675 = vpop.f32.mrf.mxu0
      %v676 = vadd.f32 0.0, %v675
      %v677 = vpop.f32.mrf.mxu0
      %678 = vmatprep.mubr.bf16.mxu0 %v522
      %679 = vmatmul.mubr.bf16.gmra.mxu0 %v401
      %v680 = vpop.f32.mrf.mxu0
      %v681 = vadd.f32 0.0, %v680
      %v682 = vpop.f32.mrf.mxu0
      %v683 = vpop.f32.mrf.mxu0
      %v684 = vadd.f32 0.0, %v683
      %v685 = vpop.f32.mrf.mxu0
      %686 = vmatprep.mubr.bf16.mxu0 %v525
      %687 = vmatmul.mubr.bf16.gmra.mxu0 %v403
      %v688 = vpop.f32.mrf.mxu0
      %v689 = vadd.f32 0.0, %v688
      %v690 = vpop.f32.mrf.mxu0
      %v691 = vpop.f32.mrf.mxu0
      %v692 = vadd.f32 0.0, %v691
      %v693 = vpop.f32.mrf.mxu0
      %694 = vdwg.mxu0
      %v695 = vpack.c.bf16 %v572, %v569
      %v696 = vpack.c.bf16 %v580, %v577
      %v697 = vpack.c.bf16 %v588, %v585
      %v698 = vpack.c.bf16 %v596, %v593
      %v699 = vpack.c.bf16 %v604, %v601
      %v700 = vpack.c.bf16 %v612, %v609
      %v701 = vpack.c.bf16 %v620, %v617
      %v702 = vpack.c.bf16 %v628, %v625
      %v703 = vpack.c.bf16 %v636, %v633
      %v704 = vpack.c.bf16 %v644, %v641
      %v705 = vpack.c.bf16 %v652, %v649
      %v706 = vpack.c.bf16 %v660, %v657
      %v707 = vpack.c.bf16 %v668, %v665
      %v708 = vpack.c.bf16 %v676, %v673
      %v709 = vpack.c.bf16 %v684, %v681
      %v710 = vpack.c.bf16 %v692, %v689
      %v727 = vunpack.c.l.b16 %v695
      %v728 = vunpack.c.h.b16 %v695
      %v729 = vunpack.c.l.b16 %v696
      %v730 = vunpack.c.h.b16 %v696
      %v731 = vunpack.c.l.b16 %v697
      %v732 = vunpack.c.h.b16 %v697
      %v733 = vunpack.c.l.b16 %v698
      %v734 = vunpack.c.h.b16 %v698
      %v735 = vunpack.c.l.b16 %v699
      %v736 = vunpack.c.h.b16 %v699
      %v737 = vunpack.c.l.b16 %v700
      %v738 = vunpack.c.h.b16 %v700
      %v739 = vunpack.c.l.b16 %v701
      %v740 = vunpack.c.h.b16 %v701
      %v741 = vunpack.c.l.b16 %v702
      %v742 = vunpack.c.h.b16 %v702
      %v743 = vunpack.c.l.b16 %v703
      %v744 = vunpack.c.h.b16 %v703
      %v745 = vunpack.c.l.b16 %v704
      %v746 = vunpack.c.h.b16 %v704
      %v747 = vunpack.c.l.b16 %v705
      %v748 = vunpack.c.h.b16 %v705
      %v749 = vunpack.c.l.b16 %v706
      %v750 = vunpack.c.h.b16 %v706
      %v751 = vunpack.c.l.b16 %v707
      %v752 = vunpack.c.h.b16 %v707
      %v753 = vunpack.c.l.b16 %v708
      %v754 = vunpack.c.h.b16 %v708
      %v755 = vunpack.c.l.b16 %v709
      %v756 = vunpack.c.h.b16 %v709
      %v757 = vunpack.c.l.b16 %v710
      %v758 = vunpack.c.h.b16 %v710
      %v759 = vpack.c.b16 %v727, %v727
      %v760 = vpack.c.b16 %v728, %v728
      %v761 = vpack.c.b16 %v729, %v729
      %v762 = vpack.c.b16 %v730, %v730
      %v763 = vpack.c.b16 %v731, %v731
      %v764 = vpack.c.b16 %v732, %v732
      %v765 = vpack.c.b16 %v733, %v733
      %v766 = vpack.c.b16 %v734, %v734
      %v767 = vpack.c.b16 %v735, %v735
      %v768 = vpack.c.b16 %v736, %v736
      %v769 = vpack.c.b16 %v737, %v737
      %v770 = vpack.c.b16 %v738, %v738
      %v771 = vpack.c.b16 %v739, %v739
      %v772 = vpack.c.b16 %v740, %v740
      %v773 = vpack.c.b16 %v741, %v741
      %v774 = vpack.c.b16 %v742, %v742
      %v775 = vpack.c.b16 %v743, %v743
      %v776 = vpack.c.b16 %v744, %v744
      %v777 = vpack.c.b16 %v745, %v745
      %v778 = vpack.c.b16 %v746, %v746
      %v779 = vpack.c.b16 %v747, %v747
      %v780 = vpack.c.b16 %v748, %v748
      %v781 = vpack.c.b16 %v749, %v749
      %v782 = vpack.c.b16 %v750, %v750
      %v783 = vpack.c.b16 %v751, %v751
      %v784 = vpack.c.b16 %v752, %v752
      %v785 = vpack.c.b16 %v753, %v753
      %v786 = vpack.c.b16 %v754, %v754
      %v787 = vpack.c.b16 %v755, %v755
      %v788 = vpack.c.b16 %v756, %v756
      %v789 = vpack.c.b16 %v757, %v757
      %v790 = vpack.c.b16 %v758, %v758
      %823 = vst [vmem:[%s215] sm:$0xf] %v759
      %824 = vst [vmem:[%s215 + $0x4] sm:$0xf] %v760
      %825 = vst [vmem:[%s215 + $0x8] sm:$0xf] %v761
      %826 = vst [vmem:[%s215 + $0xc] sm:$0xf] %v762
      %827 = vst [vmem:[%s215 + $0x10] sm:$0xf] %v763
      %828 = vst [vmem:[%s215 + $0x14] sm:$0xf] %v764
      %829 = vst [vmem:[%s215 + $0x18] sm:$0xf] %v765
      %830 = vst [vmem:[%s215 + $0x1c] sm:$0xf] %v766
      %831 = vst [vmem:[%s215 + $0x20] sm:$0xf] %v767
      %832 = vst [vmem:[%s215 + $0x24] sm:$0xf] %v768
      %833 = vst [vmem:[%s215 + $0x28] sm:$0xf] %v769
      %834 = vst [vmem:[%s215 + $0x2c] sm:$0xf] %v770
      %835 = vst [vmem:[%s215 + $0x30] sm:$0xf] %v771
      %836 = vst [vmem:[%s215 + $0x34] sm:$0xf] %v772
      %837 = vst [vmem:[%s215 + $0x38] sm:$0xf] %v773
      %838 = vst [vmem:[%s215 + $0x3c] sm:$0xf] %v774
      %839 = vst [vmem:[%s215 + $0x40] sm:$0xf] %v775
      %840 = vst [vmem:[%s215 + $0x44] sm:$0xf] %v776
      %841 = vst [vmem:[%s215 + $0x48] sm:$0xf] %v777
      %842 = vst [vmem:[%s215 + $0x4c] sm:$0xf] %v778
      %843 = vst [vmem:[%s215 + $0x50] sm:$0xf] %v779
      %844 = vst [vmem:[%s215 + $0x54] sm:$0xf] %v780
      %845 = vst [vmem:[%s215 + $0x58] sm:$0xf] %v781
      %846 = vst [vmem:[%s215 + $0x5c] sm:$0xf] %v782
      %847 = vst [vmem:[%s215 + $0x60] sm:$0xf] %v783
      %848 = vst [vmem:[%s215 + $0x64] sm:$0xf] %v784
      %849 = vst [vmem:[%s215 + $0x68] sm:$0xf] %v785
      %850 = vst [vmem:[%s215 + $0x6c] sm:$0xf] %v786
      %851 = vst [vmem:[%s215 + $0x70] sm:$0xf] %v787
      %852 = vst [vmem:[%s215 + $0x74] sm:$0xf] %v788
      %853 = vst [vmem:[%s215 + $0x78] sm:$0xf] %v789
      %854 = vst [vmem:[%s215 + $0x7c] sm:$0xf] %v790
      %v855 = vadd.f32 %v569, %v572
      %v856 = vadd.f32 %v855, %v577
      %v857 = vadd.f32 %v856, %v580
      %v858 = vadd.f32 %v857, %v585
      %v859 = vadd.f32 %v858, %v588
      %v860 = vadd.f32 %v859, %v593
      %v861 = vadd.f32 %v860, %v596
      %v862 = vadd.f32 %v861, %v601
      %v863 = vadd.f32 %v862, %v604
      %v864 = vadd.f32 %v863, %v609
      %v865 = vadd.f32 %v864, %v612
      %v866 = vadd.f32 %v865, %v617
      %v867 = vadd.f32 %v866, %v620
      %v868 = vadd.f32 %v867, %v625
      %v869 = vadd.f32 %v868, %v628
      %v870 = vadd.f32 %v869, %v633
      %v871 = vadd.f32 %v870, %v636
      %v872 = vadd.f32 %v871, %v641
      %v873 = vadd.f32 %v872, %v644
      %v874 = vadd.f32 %v873, %v649
      %v875 = vadd.f32 %v874, %v652
      %v876 = vadd.f32 %v875, %v657
      %v877 = vadd.f32 %v876, %v660
      %v878 = vadd.f32 %v877, %v665
      %v879 = vadd.f32 %v878, %v668
      %v880 = vadd.f32 %v879, %v673
      %v881 = vadd.f32 %v880, %v676
      %v882 = vadd.f32 %v881, %v681
      %v883 = vadd.f32 %v882, %v684
      %v884 = vadd.f32 %v883, %v689
      %v885 = vadd.f32 %v884, %v692
      %v886 = vrot.slane %v885, 4
      %v887 = vadd.f32 %v885, %v886
      %v888 = vrot.slane %v887, 2
      %v889 = vadd.f32 %v887, %v888
      %v890 = vrot.slane %v889, 1
      %v891 = vadd.f32 %v889, %v890
      %v892 = vmul.f32 %v569, %v569
      %v893 = vmul.f32 %v572, %v572
      %v894 = vmul.f32 %v577, %v577
      %v895 = vmul.f32 %v580, %v580
      %v896 = vmul.f32 %v585, %v585
      %v897 = vmul.f32 %v588, %v588
      %v898 = vmul.f32 %v593, %v593
      %v899 = vmul.f32 %v596, %v596
      %v900 = vmul.f32 %v601, %v601
      %v901 = vmul.f32 %v604, %v604
      %v902 = vmul.f32 %v609, %v609
      %v903 = vmul.f32 %v612, %v612
      %v904 = vmul.f32 %v617, %v617
      %v905 = vmul.f32 %v620, %v620
      %v906 = vmul.f32 %v625, %v625
      %v907 = vmul.f32 %v628, %v628
      %v908 = vmul.f32 %v633, %v633
      %v909 = vmul.f32 %v636, %v636
      %v910 = vmul.f32 %v641, %v641
      %v911 = vmul.f32 %v644, %v644
      %v912 = vmul.f32 %v649, %v649
      %v913 = vmul.f32 %v652, %v652
      %v914 = vmul.f32 %v657, %v657
      %v915 = vmul.f32 %v660, %v660
      %v916 = vmul.f32 %v665, %v665
      %v917 = vmul.f32 %v668, %v668
      %v918 = vmul.f32 %v673, %v673
      %v919 = vmul.f32 %v676, %v676
      %v920 = vmul.f32 %v681, %v681
      %v921 = vmul.f32 %v684, %v684
      %v922 = vmul.f32 %v689, %v689
      %v923 = vmul.f32 %v692, %v692
      %v924 = vadd.f32 %v892, %v893
      %v925 = vadd.f32 %v924, %v894
      %v926 = vadd.f32 %v925, %v895
      %v927 = vadd.f32 %v926, %v896
      %v928 = vadd.f32 %v927, %v897
      %v929 = vadd.f32 %v928, %v898
      %v930 = vadd.f32 %v929, %v899
      %v931 = vadd.f32 %v930, %v900
      %v932 = vadd.f32 %v931, %v901
      %v933 = vadd.f32 %v932, %v902
      %v934 = vadd.f32 %v933, %v903
      %v935 = vadd.f32 %v934, %v904
      %v936 = vadd.f32 %v935, %v905
      %v937 = vadd.f32 %v936, %v906
      %v938 = vadd.f32 %v937, %v907
      %v939 = vadd.f32 %v938, %v908
      %v940 = vadd.f32 %v939, %v909
      %v941 = vadd.f32 %v940, %v910
      %v942 = vadd.f32 %v941, %v911
      %v943 = vadd.f32 %v942, %v912
      %v944 = vadd.f32 %v943, %v913
      %v945 = vadd.f32 %v944, %v914
      %v946 = vadd.f32 %v945, %v915
      %v947 = vadd.f32 %v946, %v916
      %v948 = vadd.f32 %v947, %v917
      %v949 = vadd.f32 %v948, %v918
      %v950 = vadd.f32 %v949, %v919
      %v951 = vadd.f32 %v950, %v920
      %v952 = vadd.f32 %v951, %v921
      %v953 = vadd.f32 %v952, %v922
      %v954 = vadd.f32 %v953, %v923
      %v955 = vrot.slane %v954, 4
      %v956 = vadd.f32 %v954, %v955
      %v957 = vrot.slane %v956, 2
      %v958 = vadd.f32 %v956, %v957
      %v959 = vrot.slane %v958, 1
      %v960 = vadd.f32 %v958, %v959
      %961 = vst [vmem:[%s220] sm:$0xff] %v891
      %962 = vst [vmem:[%s224] sm:$0xff] %v960
      %s963 = smul.u32 32, %s16
      %p964 = scmp.lt.s32.totalorder %s963, 63
      %s965 = scalar_select %p964, %s963, 63
      %s966 = smul.addr %s965, 4
      %s967 = scalar_lea.vmem %s2, %s966
      %p968 = scmp.lt.s32.totalorder %s16, 1
      %s969 = scalar_select %p968, %s16, 1
      %s970 = smul.addr %s969, 8
      %s971 = scalar_lea.vmem %s3, %s970
      %p972 = scmp.lt.s32.totalorder %s16, 1
      %s973 = scalar_select %p972, %s16, 1
      %s974 = smul.addr %s973, 8
      %s975 = scalar_lea.vmem %s4, %s974
      // Predicated region
      $region29: #{_lambda_.21} parent=27 // pred_check
        %p976 = pneg %p81
      $region30: #{_lambda_.21} parent=27 // pred_check_branch
        %978 = sbr.rel (%p976) target = $region32
      $region31: #{_lambda_.21} parent=27 // pred_region
        %s979 = smul.u32 32, %s16
      $region32: #{_lambda_.21} parent=27 // pred_fallthru
        _
      // Predicated region
      $region33: #{_lambda_.21} parent=27 // pred_check
        %p980 = pneg %p107
      $region34: #{_lambda_.21} parent=27 // pred_check_branch
        %982 = sbr.rel (%p980) target = $region36
      $region35: #{_lambda_.21} parent=27 // pred_region
        _
      $region36: #{_lambda_.21} parent=27 // pred_fallthru
        _
      // Predicated region
      $region37: #{_lambda_.21} parent=27 // pred_check
        %p983 = pneg %p133
      $region38: #{_lambda_.21} parent=27 // pred_check_branch
        %985 = sbr.rel (%p983) target = $region40
      $region39: #{_lambda_.21} parent=27 // pred_region
        _
      $region40: #{_lambda_.21} parent=27 // pred_fallthru
        _
    $region28: #{_lambda_.21} parent=5 // pred_fallthru
      _
    %p986 = scmp.le.s32.totalorder 2, %s11
    // Predicated region
    $region41: #{_lambda_.21} parent=5 // pred_check
      %p987 = pneg %p986
    $region42: #{_lambda_.21} parent=5 // pred_check_branch
      %989 = sbr.rel (%p987) target = $region44
    $region43: #{_lambda_.21} parent=5 // pred_region
      %s990 = ssub.s32 %s11, 2
      // Predicated region
      $region45: #{_lambda_.21} parent=43 // pred_check
        %p991 = pneg %p87
      $region46: #{_lambda_.21} parent=43 // pred_check_branch
        %993 = sbr.rel (%p991) target = $region48
      $region47: #{_lambda_.21} parent=43 // pred_region
        %s994 = smul.u32 32, %s17
        %p995 = scmp.lt.s32.totalorder %s994, 63
        %s996 = scalar_select %p995, %s994, 63
        %s997 = smul.addr %s996, 4
        %s998 = scalar_lea.vmem %s2, %s997
      $region48: #{_lambda_.21} parent=43 // pred_fallthru
        _
      // Predicated region
      $region49: #{_lambda_.21} parent=43 // pred_check
        %p999 = pneg %p113
      $region50: #{_lambda_.21} parent=43 // pred_check_branch
        %1001 = sbr.rel (%p999) target = $region52
      $region51: #{_lambda_.21} parent=43 // pred_region
        %p1002 = scmp.lt.s32.totalorder %s17, 1
        %s1003 = scalar_select %p1002, %s17, 1
        %s1004 = smul.addr %s1003, 8
        %s1005 = scalar_lea.vmem %s3, %s1004
      $region52: #{_lambda_.21} parent=43 // pred_fallthru
        _
      // Predicated region
      $region53: #{_lambda_.21} parent=43 // pred_check
        %p1006 = pneg %p139
      $region54: #{_lambda_.21} parent=43 // pred_check_branch
        %1008 = sbr.rel (%p1006) target = $region56
      $region55: #{_lambda_.21} parent=43 // pred_region
        %p1009 = scmp.lt.s32.totalorder %s17, 1
        %s1010 = scalar_select %p1009, %s17, 1
        %s1011 = smul.addr %s1010, 8
        %s1012 = scalar_lea.vmem %s4, %s1011
      $region56: #{_lambda_.21} parent=43 // pred_fallthru
        _
    $region44: #{_lambda_.21} parent=5 // pred_fallthru
      _
  $region6: #{_lambda_.21} parent=0 // loop_footer
    %s15 = sadd.s32 1, %s11
  $region7: #{_lambda_.21} parent=0 // loop_footer_branch
    %10 = sbr.rel target = $region3
  $region8: #{_lambda_.21} parent=0 // loop_exit
    _

// kernel: _lambda_.23
$region0: #{_lambda_.23}
  #allocation0 [shape = 'u32[]', space=smem, size = 0x4, offset = 0x4, fixed_abs, tag = 'smem constant byte address 0x4 - core index']
  #allocation1 [shape = 'u32[144,128]{1,0:T(1,128)}', space=vmem, size = 0x12000, scoped, tag = 'internal scratch']
  %s0 = inlined_call_operand.vmem [shape: bf16[512,60], index: 0, kind: input, shape index: {}]
  %s1 = inlined_call_operand.vmem [shape: bf16[60,128], index: 1, kind: input, shape index: {}]
  %s2 = inlined_call_operand.vmem [shape: bf16[512,128], index: 2, kind: output, shape index: {0}]
  %s3 = inlined_call_operand.vmem [shape: f32[16,128], index: 3, kind: output, shape index: {1}]
  %s4 = inlined_call_operand.vmem [shape: f32[16,128], index: 4, kind: output, shape index: {2}]
  %5 = xla_tuple %s2, %s3, %s4
  %s6 = sld [smem:[#allocation0]]
  $region57: #{_lambda_.23} parent=0
    _
  %s8 = ssub.s32 1, %s6
  %s9 = scalar_select 0, %s8, %s6
  loop: start=0, step=1, limit=4
  $region2: #{_lambda_.23} parent=0 // loop_pre_header
    _
  $region3: #{_lambda_.23} parent=0 // loop_header
    %s11 = sphi 0, %s15
    %p12 = scmp.ge.s32.totalorder %s11, 4
    %s21 = sphi 0, %s23
    %s24 = sphi 0, %s21
    %s25 = sphi 0, %s24
    %s41 = sphi 0, %s25
    %s45 = sphi 0, %s45
    %s47 = sphi 0, %s45
    %s48 = sphi 0, %s47
    %s62 = sphi 0, %s48
    %s68 = sphi 0, %s70
    %s71 = sphi 0, %s68
    %s72 = sphi 0, %s71
    %s88 = sphi 0, %s72
    %s94 = sphi 0, %s96
    %s97 = sphi 0, %s94
    %s98 = sphi 0, %s97
    %s114 = sphi 0, %s98
    %s120 = sphi 0, %s122
    %s123 = sphi 0, %s120
    %s124 = sphi 0, %s123
    %s140 = sphi 0, %s124
  $region4: #{_lambda_.23} parent=0 // loop_header_branch
    %14 = sbr.rel (%p12) target = $region8
  $region5: #{_lambda_.23} parent=0 // loop_body
    %s16 = ssub.s32 %s11, 1
    %s17 = ssub.s32 %s11, 2
    %s18 = sadd.s32 %s11, 1
    %s19 = ssub.s32 %s11, %s18
    %p20 = scmp.eq.s32.totalorder %s19, 0
    %s22 = sadd.s32 %s21, 1
    %s23 = scalar_select %p20, %s21, %s22
    %p26 = pneg %p20
    %p27 = scmp.eq.s32.totalorder %s11, 1
    %p28 = por %p26, %p27
    %p29 = scmp.ne.s32.totalorder %s21, %s24
    %p30 = scmp.eq.s32.totalorder %s11, 0
    %p31 = por %p29, %p30
    %p32 = scmp.ne.s32.totalorder %s21, %s24
    %p33 = scmp.eq.s32.totalorder %s16, 1
    %p34 = por %p32, %p33
    %p35 = scmp.ne.s32.totalorder %s24, %s25
    %p36 = scmp.eq.s32.totalorder %s16, 0
    %p37 = por %p35, %p36
    %p38 = scmp.ne.s32.totalorder %s24, %s25
    %p39 = scmp.eq.s32.totalorder %s17, 1
    %p40 = por %p38, %p39
    %p42 = scmp.ne.s32.totalorder %s25, %s41
    %p43 = scmp.eq.s32.totalorder %s17, 0
    %p44 = por %p42, %p43
    %s46 = sadd.s32 %s45, 1
    %p49 = scmp.eq.s32.totalorder %s11, 1
    %p50 = scmp.ne.s32.totalorder %s45, %s47
    %p51 = scmp.eq.s32.totalorder %s11, 0
    %p52 = por %p50, %p51
    %p53 = scmp.ne.s32.totalorder %s45, %s47
    %p54 = scmp.eq.s32.totalorder %s16, 1
    %p55 = por %p53, %p54
    %p56 = scmp.ne.s32.totalorder %s47, %s48
    %p57 = scmp.eq.s32.totalorder %s16, 0
    %p58 = por %p56, %p57
    %p59 = scmp.ne.s32.totalorder %s47, %s48
    %p60 = scmp.eq.s32.totalorder %s17, 1
    %p61 = por %p59, %p60
    %p63 = scmp.ne.s32.totalorder %s48, %s62
    %p64 = scmp.eq.s32.totalorder %s17, 0
    %p65 = por %p63, %p64
    %s66 = ssub.s32 %s11, %s18
    %p67 = scmp.eq.s32.totalorder %s66, 0
    %s69 = sadd.s32 %s68, 1
    %s70 = scalar_select %p67, %s68, %s69
    %p73 = pneg %p67
    %p74 = scmp.eq.s32.totalorder %s11, 1
    %p75 = por %p73, %p74
    %p76 = scmp.ne.s32.totalorder %s68, %s71
    %p77 = scmp.eq.s32.totalorder %s11, 0
    %p78 = por %p76, %p77
    %p79 = scmp.ne.s32.totalorder %s68, %s71
    %p80 = scmp.eq.s32.totalorder %s16, 1
    %p81 = por %p79, %p80
    %p82 = scmp.ne.s32.totalorder %s71, %s72
    %p83 = scmp.eq.s32.totalorder %s16, 0
    %p84 = por %p82, %p83
    %p85 = scmp.ne.s32.totalorder %s71, %s72
    %p86 = scmp.eq.s32.totalorder %s17, 1
    %p87 = por %p85, %p86
    %p89 = scmp.ne.s32.totalorder %s72, %s88
    %p90 = scmp.eq.s32.totalorder %s17, 0
    %p91 = por %p89, %p90
    %s92 = ssub.s32 %s11, %s18
    %p93 = scmp.eq.s32.totalorder %s92, 0
    %s95 = sadd.s32 %s94, 1
    %s96 = scalar_select %p93, %s94, %s95
    %p99 = pneg %p93
    %p100 = scmp.eq.s32.totalorder %s11, 1
    %p101 = por %p99, %p100
    %p102 = scmp.ne.s32.totalorder %s94, %s97
    %p103 = scmp.eq.s32.totalorder %s11, 0
    %p104 = por %p102, %p103
    %p105 = scmp.ne.s32.totalorder %s94, %s97
    %p106 = scmp.eq.s32.totalorder %s16, 1
    %p107 = por %p105, %p106
    %p108 = scmp.ne.s32.totalorder %s97, %s98
    %p109 = scmp.eq.s32.totalorder %s16, 0
    %p110 = por %p108, %p109
    %p111 = scmp.ne.s32.totalorder %s97, %s98
    %p112 = scmp.eq.s32.totalorder %s17, 1
    %p113 = por %p111, %p112
    %p115 = scmp.ne.s32.totalorder %s98, %s114
    %p116 = scmp.eq.s32.totalorder %s17, 0
    %p117 = por %p115, %p116
    %s118 = ssub.s32 %s11, %s18
    %p119 = scmp.eq.s32.totalorder %s118, 0
    %s121 = sadd.s32 %s120, 1
    %s122 = scalar_select %p119, %s120, %s121
    %p125 = pneg %p119
    %p126 = scmp.eq.s32.totalorder %s11, 1
    %p127 = por %p125, %p126
    %p128 = scmp.ne.s32.totalorder %s120, %s123
    %p129 = scmp.eq.s32.totalorder %s11, 0
    %p130 = por %p128, %p129
    %p131 = scmp.ne.s32.totalorder %s120, %s123
    %p132 = scmp.eq.s32.totalorder %s16, 1
    %p133 = por %p131, %p132
    %p134 = scmp.ne.s32.totalorder %s123, %s124
    %p135 = scmp.eq.s32.totalorder %s16, 0
    %p136 = por %p134, %p135
    %p137 = scmp.ne.s32.totalorder %s123, %s124
    %p138 = scmp.eq.s32.totalorder %s17, 1
    %p139 = por %p137, %p138
    %p141 = scmp.ne.s32.totalorder %s124, %s140
    %p142 = scmp.eq.s32.totalorder %s17, 0
    %p143 = por %p141, %p142
    %p144 = scmp.le.s32.totalorder 1, %s11
    %p145 = scmp.lt.s32.totalorder %s11, 3
    %p146 = pnand %p144, %p145
    %p147 = pneg %p146
    // Predicated region
    $region9: #{_lambda_.23} parent=5 // pred_check
      _
    $region10: #{_lambda_.23} parent=5 // pred_check_branch
      %149 = sbr.rel (%p146) target = $region12
    $region11: #{_lambda_.23} parent=5 // pred_region
      %s150 = ssub.s32 %s11, 1
      // Predicated region
      $region13: #{_lambda_.23} parent=11 // pred_check
        %p151 = pneg %p58
      $region14: #{_lambda_.23} parent=11 // pred_check_branch
        %153 = sbr.rel (%p151) target = $region16
      $region15: #{_lambda_.23} parent=11 // pred_region
        _
      $region16: #{_lambda_.23} parent=11 // pred_fallthru
        _
    $region12: #{_lambda_.23} parent=5 // pred_fallthru
      _
    %p154 = scmp.lt.s32.totalorder %s11, 2
    // Predicated region
    $region17: #{_lambda_.23} parent=5 // pred_check
      %p155 = pneg %p154
    $region18: #{_lambda_.23} parent=5 // pred_check_branch
      %157 = sbr.rel (%p155) target = $region20
    $region19: #{_lambda_.23} parent=5 // pred_region
      // Predicated region
      $region21: #{_lambda_.23} parent=19 // pred_check
        %p158 = pneg %p31
      $region22: #{_lambda_.23} parent=19 // pred_check_branch
        %160 = sbr.rel (%p158) target = $region24
      $region23: #{_lambda_.23} parent=19 // pred_region
        %s161 = smul.u32 32, %s11
        %p162 = scmp.lt.s32.totalorder %s161, 63
        %s163 = scalar_select %p162, %s161, 63
        %s164 = smul.addr %s163, 4
        %s165 = scalar_lea.vmem %s0, %s164
        %s166 = smul.u32 32, %s11
      $region24: #{_lambda_.23} parent=19 // pred_fallthru
        _
    $region20: #{_lambda_.23} parent=5 // pred_fallthru
      _
    %p167 = scmp.le.s32.totalorder 1, %s11
    %p168 = scmp.lt.s32.totalorder %s11, 3
    %p169 = pnand %p167, %p168
    %p170 = pneg %p169
    // Predicated region
    $region25: #{_lambda_.23} parent=5 // pred_check
      _
    $region26: #{_lambda_.23} parent=5 // pred_check_branch
      %172 = sbr.rel (%p169) target = $region28
    $region27: #{_lambda_.23} parent=5 // pred_region
      %s173 = ssub.s32 %s11, 1
      %s174 = smul.u32 32, %s16
      %p175 = scmp.lt.s32.totalorder %s174, 63
      %s176 = scalar_select %p175, %s174, 63
      %s177 = smul.addr %s176, 4
      %s178 = scalar_lea.vmem %s0, %s177
      %p179 = pneg %p37
      %p180 = pneg %p34
      %p181 = pneg %p58
      %p182 = pneg %p55
      %p183 = pneg %p84
      %p184 = pneg %p81
      %s185 = smul.u32 32, %s16
      %p186 = scmp.lt.s32.totalorder %s185, 63
      %s187 = scalar_select %p186, %s185, 63
      %s188 = smul.addr %s187, 4
      %s189 = scalar_lea.vmem %s2, %s188
      %p190 = pneg %p110
      %p191 = pneg %p107
      %p192 = scmp.lt.s32.totalorder %s16, 1
      %s193 = scalar_select %p192, %s16, 1
      %s194 = smul.addr %s193, 8
      %s195 = scalar_lea.vmem %s3, %s194
      %p196 = pneg %p136
      %p197 = pneg %p133
      %p198 = scmp.lt.s32.totalorder %s16, 1
      %s199 = scalar_select %p198, %s16, 1
      %s200 = smul.addr %s199, 8
      %s201 = scalar_lea.vmem %s4, %s200
      %s202 = smul.u32 32, %s16
      %p203 = scmp.lt.s32.totalorder %s202, 63
      %s204 = scalar_select %p203, %s202, 63
      %s205 = smul.addr %s204, 4
      %s206 = scalar_lea.vmem %s0, %s205
      %s207 = smul.u32 32, %s16
      %s208 = smul.u32 32, %s16
      %p209 = scmp.lt.s32.totalorder %s208, 63
      %s210 = scalar_select %p209, %s208, 63
      %s211 = smul.addr %s210, 4
      %s212 = scalar_lea.vmem %s2, %s211
      %s213 = smul.u32 32, %s16
      %p214 = scmp.lt.s32.totalorder %s16, 1
      %s215 = scalar_select %p214, %s16, 1
      %s216 = smul.addr %s215, 8
      %s217 = scalar_lea.vmem %s3, %s216
      %p218 = scmp.lt.s32.totalorder %s16, 1
      %s219 = scalar_select %p218, %s16, 1
      %s220 = smul.addr %s219, 8
      %s221 = scalar_lea.vmem %s4, %s220
      %v223 = vld [vmem:[%s206] sm:$0xf]
      %v224 = vld [vmem:[%s206 + $0x4] sm:$0xf]
      %v225 = vld [vmem:[%s206 + $0x8] sm:$0xf]
      %v226 = vld [vmem:[%s206 + $0xc] sm:$0xf]
      %v227 = vld [vmem:[%s206 + $0x10] sm:$0xf]
      %v228 = vld [vmem:[%s206 + $0x14] sm:$0xf]
      %v229 = vld [vmem:[%s206 + $0x18] sm:$0xf]
      %v230 = vld [vmem:[%s206 + $0x1c] sm:$0xf]
      %v231 = vld [vmem:[%s206 + $0x20] sm:$0xf]
      %v232 = vld [vmem:[%s206 + $0x24] sm:$0xf]
      %v233 = vld [vmem:[%s206 + $0x28] sm:$0xf]
      %v234 = vld [vmem:[%s206 + $0x2c] sm:$0xf]
      %v235 = vld [vmem:[%s206 + $0x30] sm:$0xf]
      %v236 = vld [vmem:[%s206 + $0x34] sm:$0xf]
      %v237 = vld [vmem:[%s206 + $0x38] sm:$0xf]
      %v238 = vld [vmem:[%s206 + $0x3c] sm:$0xf]
      %v239 = vld [vmem:[%s206 + $0x40] sm:$0xf]
      %v240 = vld [vmem:[%s206 + $0x44] sm:$0xf]
      %v241 = vld [vmem:[%s206 + $0x48] sm:$0xf]
      %v242 = vld [vmem:[%s206 + $0x4c] sm:$0xf]
      %v243 = vld [vmem:[%s206 + $0x50] sm:$0xf]
      %v244 = vld [vmem:[%s206 + $0x54] sm:$0xf]
      %v245 = vld [vmem:[%s206 + $0x58] sm:$0xf]
      %v246 = vld [vmem:[%s206 + $0x5c] sm:$0xf]
      %v247 = vld [vmem:[%s206 + $0x60] sm:$0xf]
      %v248 = vld [vmem:[%s206 + $0x64] sm:$0xf]
      %v249 = vld [vmem:[%s206 + $0x68] sm:$0xf]
      %v250 = vld [vmem:[%s206 + $0x6c] sm:$0xf]
      %v251 = vld [vmem:[%s206 + $0x70] sm:$0xf]
      %v252 = vld [vmem:[%s206 + $0x74] sm:$0xf]
      %v253 = vld [vmem:[%s206 + $0x78] sm:$0xf]
      %v254 = vld [vmem:[%s206 + $0x7c] sm:$0xf]
      %v255 = vld [vmem:[%s1] sm:$0xf]
      %v256 = vld [vmem:[%s1 + $0x4] sm:$0xf]
      %v257 = vld [vmem:[%s1 + $0x8] sm:$0xf]
      %v258 = vld [vmem:[%s1 + $0xc] sm:$0xf]
      %v259 = vld [vmem:[%s1 + $0x10] sm:$0xf]
      %v260 = vld [vmem:[%s1 + $0x14] sm:$0xf]
      %v261 = vld [vmem:[%s1 + $0x18] sm:$0xf]
      %v262 = vld [vmem:[%s1 + $0x1c] sm:$0x3]
      %v295 = vunpack.c.l.b16 %v223
      %v296 = vunpack.c.l.b16 %v224
      %v297 = vunpack.c.l.b16 %v225
      %v298 = vunpack.c.l.b16 %v226
      %v299 = vunpack.c.l.b16 %v227
      %v300 = vunpack.c.l.b16 %v228
      %v301 = vunpack.c.l.b16 %v229
      %v302 = vunpack.c.l.b16 %v230
      %v303 = vunpack.c.l.b16 %v231
      %v304 = vunpack.c.l.b16 %v232
      %v305 = vunpack.c.l.b16 %v233
      %v306 = vunpack.c.l.b16 %v234
      %v307 = vunpack.c.l.b16 %v235
      %v308 = vunpack.c.l.b16 %v236
      %v309 = vunpack.c.l.b16 %v237
      %v310 = vunpack.c.l.b16 %v238
      %v311 = vunpack.c.l.b16 %v239
      %v312 = vunpack.c.l.b16 %v240
      %v313 = vunpack.c.l.b16 %v241
      %v314 = vunpack.c.l.b16 %v242
      %v315 = vunpack.c.l.b16 %v243
      %v316 = vunpack.c.l.b16 %v244
      %v317 = vunpack.c.l.b16 %v245
      %v318 = vunpack.c.l.b16 %v246
      %v319 = vunpack.c.l.b16 %v247
      %v320 = vunpack.c.l.b16 %v248
      %v321 = vunpack.c.l.b16 %v249
      %v322 = vunpack.c.l.b16 %v250
      %v323 = vunpack.c.l.b16 %v251
      %v324 = vunpack.c.l.b16 %v252
      %v325 = vunpack.c.l.b16 %v253
      %v326 = vunpack.c.l.b16 %v254
      %v327 = vpack.c.b16 %v296, %v295
      %v328 = vpack.c.b16 %v298, %v297
      %v329 = vpack.c.b16 %v300, %v299
      %v330 = vpack.c.b16 %v302, %v301
      %v331 = vpack.c.b16 %v304, %v303
      %v332 = vpack.c.b16 %v306, %v305
      %v333 = vpack.c.b16 %v308, %v307
      %v334 = vpack.c.b16 %v310, %v309
      %v335 = vpack.c.b16 %v312, %v311
      %v336 = vpack.c.b16 %v314, %v313
      %v337 = vpack.c.b16 %v316, %v315
      %v338 = vpack.c.b16 %v318, %v317
      %v339 = vpack.c.b16 %v320, %v319
      %v340 = vpack.c.b16 %v322, %v321
      %v341 = vpack.c.b16 %v324, %v323
      %v342 = vpack.c.b16 %v326, %v325
      %v351 = vunpack.c.l.b16 %v255
      %v352 = vunpack.c.l.b16 %v256
      %v353 = vunpack.c.l.b16 %v257
      %v354 = vunpack.c.l.b16 %v258
      %v355 = vunpack.c.l.b16 %v259
      %v356 = vunpack.c.l.b16 %v260
      %v357 = vunpack.c.l.b16 %v261
      %v358 = vunpack.c.l.b16 %v262
      %v359 = vpack.c.b16 %v352, %v351
      %v360 = vpack.c.b16 %v354, %v353
      %v361 = vpack.c.b16 %v356, %v355
      %v362 = vpack.c.b16 %v358, %v357
      %vm366 = vcmask 490496
      %v368 = vsel %vm366, %v327, 0
      %v371 = vsel %vm366, %v328, 0
      %v374 = vsel %vm366, %v329, 0
      %v377 = vsel %vm366, %v330, 0
      %v380 = vsel %vm366, %v331, 0
      %v383 = vsel %vm366, %v332, 0
      %v386 = vsel %vm366, %v333, 0
      %v389 = vsel %vm366, %v334, 0
      %v392 = vsel %vm366, %v335, 0
      %v395 = vsel %vm366, %v336, 0
      %v398 = vsel %vm366, %v337, 0
      %v401 = vsel %vm366, %v338, 0
      %v404 = vsel %vm366, %v339, 0
      %v407 = vsel %vm366, %v340, 0
      %v410 = vsel %vm366, %v341, 0
      %v413 = vsel %vm366, %v342, 0
      %vm415 = vcmask 1045504
      %v417 = vsel %vm415, %v362, 0
      %419 = vmatprep.subr.bf16.mxu0 0
      %420 = vmatpush1.bf16.msra.mxu0 0
      %421 = vmatprep.subr.bf16.mxu0 0
      %422 = vmatpush1.bf16.msra.mxu0 0
      %423 = vmatprep.subr.bf16.mxu0 0
      %424 = vmatpush1.bf16.msra.mxu0 0
      %425 = vmatprep.subr.bf16.mxu0 0
      %426 = vmatpush1.bf16.msra.mxu0 0
      %427 = vmatprep.subr.bf16.mxu0 0
      %428 = vmatpush1.bf16.msra.mxu0 %v417
      %429 = vmatprep.subr.bf16.mxu0 0
      %430 = vmatpush1.bf16.msra.mxu0 %v361
      %431 = vmatprep.subr.bf16.mxu0 0
      %432 = vmatpush1.bf16.msra.mxu0 %v360
      %433 = vmatprep.subr.bf16.mxu0 0
      %434 = vmatpush1.bf16.msra.mxu0 %v359
      %435 = vmatprep.subr.bf16.mxu0 0
      %436 = vmatpush2.bf16.msra.mxu0 0
      %437 = vmatprep.subr.bf16.mxu0 0
      %438 = vmatpush2.bf16.msra.mxu0 0
      %439 = vmatprep.subr.bf16.mxu0 0
      %440 = vmatpush2.bf16.msra.mxu0 0
      %441 = vmatprep.subr.bf16.mxu0 0
      %442 = vmatpush2.bf16.msra.mxu0 0
      %443 = vmatprep.subr.bf16.mxu0 0
      %444 = vmatpush2.bf16.msra.mxu0 0
      %445 = vmatprep.subr.bf16.mxu0 0
      %446 = vmatpush2.bf16.msra.mxu0 0
      %447 = vmatprep.subr.bf16.mxu0 0
      %448 = vmatpush2.bf16.msra.mxu0 0
      %449 = vmatprep.subr.bf16.mxu0 0
      %450 = vmatpush2.bf16.msra.mxu0 0
      %451 = vmatprep.mubr.bf16.mxu0 0
      %452 = vmatmul.mubr.bf16.gmra.mxu0 %v368
      %v453 = vpop.f32.mrf.mxu0
      %v454 = vadd.f32 0.0, %v453
      %v455 = vpop.f32.mrf.mxu0
      %v456 = vpop.f32.mrf.mxu0
      %v457 = vadd.f32 0.0, %v456
      %v458 = vpop.f32.mrf.mxu0
      %459 = vmatprep.mubr.bf16.mxu0 0
      %460 = vmatmul.mubr.bf16.gmra.mxu0 %v371
      %v461 = vpop.f32.mrf.mxu0
      %v462 = vadd.f32 0.0, %v461
      %v463 = vpop.f32.mrf.mxu0
      %v464 = vpop.f32.mrf.mxu0
      %v465 = vadd.f32 0.0, %v464
      %v466 = vpop.f32.mrf.mxu0
      %467 = vmatprep.mubr.bf16.mxu0 0
      %468 = vmatmul.mubr.bf16.gmra.mxu0 %v374
      %v469 = vpop.f32.mrf.mxu0
      %v470 = vadd.f32 0.0, %v469
      %v471 = vpop.f32.mrf.mxu0
      %v472 = vpop.f32.mrf.mxu0
      %v473 = vadd.f32 0.0, %v472
      %v474 = vpop.f32.mrf.mxu0
      %475 = vmatprep.mubr.bf16.mxu0 0
      %476 = vmatmul.mubr.bf16.gmra.mxu0 %v377
      %v477 = vpop.f32.mrf.mxu0
      %v478 = vadd.f32 0.0, %v477
      %v479 = vpop.f32.mrf.mxu0
      %v480 = vpop.f32.mrf.mxu0
      %v481 = vadd.f32 0.0, %v480
      %v482 = vpop.f32.mrf.mxu0
      %483 = vmatprep.mubr.bf16.mxu0 0
      %484 = vmatmul.mubr.bf16.gmra.mxu0 %v380
      %v485 = vpop.f32.mrf.mxu0
      %v486 = vadd.f32 0.0, %v485
      %v487 = vpop.f32.mrf.mxu0
      %v488 = vpop.f32.mrf.mxu0
      %v489 = vadd.f32 0.0, %v488
      %v490 = vpop.f32.mrf.mxu0
      %491 = vmatprep.mubr.bf16.mxu0 0
      %492 = vmatmul.mubr.bf16.gmra.mxu0 %v383
      %v493 = vpop.f32.mrf.mxu0
      %v494 = vadd.f32 0.0, %v493
      %v495 = vpop.f32.mrf.mxu0
      %v496 = vpop.f32.mrf.mxu0
      %v497 = vadd.f32 0.0, %v496
      %v498 = vpop.f32.mrf.mxu0
      %499 = vmatprep.mubr.bf16.mxu0 0
      %500 = vmatmul.mubr.bf16.gmra.mxu0 %v386
      %v501 = vpop.f32.mrf.mxu0
      %v502 = vadd.f32 0.0, %v501
      %v503 = vpop.f32.mrf.mxu0
      %v504 = vpop.f32.mrf.mxu0
      %v505 = vadd.f32 0.0, %v504
      %v506 = vpop.f32.mrf.mxu0
      %507 = vmatprep.mubr.bf16.mxu0 0
      %508 = vmatmul.mubr.bf16.gmra.mxu0 %v389
      %v509 = vpop.f32.mrf.mxu0
      %v510 = vadd.f32 0.0, %v509
      %v511 = vpop.f32.mrf.mxu0
      %v512 = vpop.f32.mrf.mxu0
      %v513 = vadd.f32 0.0, %v512
      %v514 = vpop.f32.mrf.mxu0
      %515 = vmatprep.mubr.bf16.mxu0 0
      %516 = vmatmul.mubr.bf16.gmra.mxu0 %v392
      %v517 = vpop.f32.mrf.mxu0
      %v518 = vadd.f32 0.0, %v517
      %v519 = vpop.f32.mrf.mxu0
      %v520 = vpop.f32.mrf.mxu0
      %v521 = vadd.f32 0.0, %v520
      %v522 = vpop.f32.mrf.mxu0
      %523 = vmatprep.mubr.bf16.mxu0 0
      %524 = vmatmul.mubr.bf16.gmra.mxu0 %v395
      %v525 = vpop.f32.mrf.mxu0
      %v526 = vadd.f32 0.0, %v525
      %v527 = vpop.f32.mrf.mxu0
      %v528 = vpop.f32.mrf.mxu0
      %v529 = vadd.f32 0.0, %v528
      %v530 = vpop.f32.mrf.mxu0
      %531 = vmatprep.mubr.bf16.mxu0 0
      %532 = vmatmul.mubr.bf16.gmra.mxu0 %v398
      %v533 = vpop.f32.mrf.mxu0
      %v534 = vadd.f32 0.0, %v533
      %v535 = vpop.f32.mrf.mxu0
      %v536 = vpop.f32.mrf.mxu0
      %v537 = vadd.f32 0.0, %v536
      %v538 = vpop.f32.mrf.mxu0
      %539 = vmatprep.mubr.bf16.mxu0 0
      %540 = vmatmul.mubr.bf16.gmra.mxu0 %v401
      %v541 = vpop.f32.mrf.mxu0
      %v542 = vadd.f32 0.0, %v541
      %v543 = vpop.f32.mrf.mxu0
      %v544 = vpop.f32.mrf.mxu0
      %v545 = vadd.f32 0.0, %v544
      %v546 = vpop.f32.mrf.mxu0
      %547 = vmatprep.mubr.bf16.mxu0 0
      %548 = vmatmul.mubr.bf16.gmra.mxu0 %v404
      %v549 = vpop.f32.mrf.mxu0
      %v550 = vadd.f32 0.0, %v549
      %v551 = vpop.f32.mrf.mxu0
      %v552 = vpop.f32.mrf.mxu0
      %v553 = vadd.f32 0.0, %v552
      %v554 = vpop.f32.mrf.mxu0
      %555 = vmatprep.mubr.bf16.mxu0 0
      %556 = vmatmul.mubr.bf16.gmra.mxu0 %v407
      %v557 = vpop.f32.mrf.mxu0
      %v558 = vadd.f32 0.0, %v557
      %v559 = vpop.f32.mrf.mxu0
      %v560 = vpop.f32.mrf.mxu0
      %v561 = vadd.f32 0.0, %v560
      %v562 = vpop.f32.mrf.mxu0
      %563 = vmatprep.mubr.bf16.mxu0 0
      %564 = vmatmul.mubr.bf16.gmra.mxu0 %v410
      %v565 = vpop.f32.mrf.mxu0
      %v566 = vadd.f32 0.0, %v565
      %v567 = vpop.f32.mrf.mxu0
      %v568 = vpop.f32.mrf.mxu0
      %v569 = vadd.f32 0.0, %v568
      %v570 = vpop.f32.mrf.mxu0
      %571 = vmatprep.mubr.bf16.mxu0 0
      %572 = vmatmul.mubr.bf16.gmra.mxu0 %v413
      %v573 = vpop.f32.mrf.mxu0
      %v574 = vadd.f32 0.0, %v573
      %v575 = vpop.f32.mrf.mxu0
      %v576 = vpop.f32.mrf.mxu0
      %v577 = vadd.f32 0.0, %v576
      %v578 = vpop.f32.mrf.mxu0
      %579 = vdwg.mxu0
      %v580 = vpack.c.bf16 %v457, %v454
      %v581 = vpack.c.bf16 %v465, %v462
      %v582 = vpack.c.bf16 %v473, %v470
      %v583 = vpack.c.bf16 %v481, %v478
      %v584 = vpack.c.bf16 %v489, %v486
      %v585 = vpack.c.bf16 %v497, %v494
      %v586 = vpack.c.bf16 %v505, %v502
      %v587 = vpack.c.bf16 %v513, %v510
      %v588 = vpack.c.bf16 %v521, %v518
      %v589 = vpack.c.bf16 %v529, %v526
      %v590 = vpack.c.bf16 %v537, %v534
      %v591 = vpack.c.bf16 %v545, %v542
      %v592 = vpack.c.bf16 %v553, %v550
      %v593 = vpack.c.bf16 %v561, %v558
      %v594 = vpack.c.bf16 %v569, %v566
      %v595 = vpack.c.bf16 %v577, %v574
      %v612 = vunpack.c.l.b16 %v580
      %v613 = vunpack.c.h.b16 %v580
      %v614 = vunpack.c.l.b16 %v581
      %v615 = vunpack.c.h.b16 %v581
      %v616 = vunpack.c.l.b16 %v582
      %v617 = vunpack.c.h.b16 %v582
      %v618 = vunpack.c.l.b16 %v583
      %v619 = vunpack.c.h.b16 %v583
      %v620 = vunpack.c.l.b16 %v584
      %v621 = vunpack.c.h.b16 %v584
      %v622 = vunpack.c.l.b16 %v585
      %v623 = vunpack.c.h.b16 %v585
      %v624 = vunpack.c.l.b16 %v586
      %v625 = vunpack.c.h.b16 %v586
      %v626 = vunpack.c.l.b16 %v587
      %v627 = vunpack.c.h.b16 %v587
      %v628 = vunpack.c.l.b16 %v588
      %v629 = vunpack.c.h.b16 %v588
      %v630 = vunpack.c.l.b16 %v589
      %v631 = vunpack.c.h.b16 %v589
      %v632 = vunpack.c.l.b16 %v590
      %v633 = vunpack.c.h.b16 %v590
      %v634 = vunpack.c.l.b16 %v591
      %v635 = vunpack.c.h.b16 %v591
      %v636 = vunpack.c.l.b16 %v592
      %v637 = vunpack.c.h.b16 %v592
      %v638 = vunpack.c.l.b16 %v593
      %v639 = vunpack.c.h.b16 %v593
      %v640 = vunpack.c.l.b16 %v594
      %v641 = vunpack.c.h.b16 %v594
      %v642 = vunpack.c.l.b16 %v595
      %v643 = vunpack.c.h.b16 %v595
      %v644 = vpack.c.b16 %v612, %v612
      %v645 = vpack.c.b16 %v613, %v613
      %v646 = vpack.c.b16 %v614, %v614
      %v647 = vpack.c.b16 %v615, %v615
      %v648 = vpack.c.b16 %v616, %v616
      %v649 = vpack.c.b16 %v617, %v617
      %v650 = vpack.c.b16 %v618, %v618
      %v651 = vpack.c.b16 %v619, %v619
      %v652 = vpack.c.b16 %v620, %v620
      %v653 = vpack.c.b16 %v621, %v621
      %v654 = vpack.c.b16 %v622, %v622
      %v655 = vpack.c.b16 %v623, %v623
      %v656 = vpack.c.b16 %v624, %v624
      %v657 = vpack.c.b16 %v625, %v625
      %v658 = vpack.c.b16 %v626, %v626
      %v659 = vpack.c.b16 %v627, %v627
      %v660 = vpack.c.b16 %v628, %v628
      %v661 = vpack.c.b16 %v629, %v629
      %v662 = vpack.c.b16 %v630, %v630
      %v663 = vpack.c.b16 %v631, %v631
      %v664 = vpack.c.b16 %v632, %v632
      %v665 = vpack.c.b16 %v633, %v633
      %v666 = vpack.c.b16 %v634, %v634
      %v667 = vpack.c.b16 %v635, %v635
      %v668 = vpack.c.b16 %v636, %v636
      %v669 = vpack.c.b16 %v637, %v637
      %v670 = vpack.c.b16 %v638, %v638
      %v671 = vpack.c.b16 %v639, %v639
      %v672 = vpack.c.b16 %v640, %v640
      %v673 = vpack.c.b16 %v641, %v641
      %v674 = vpack.c.b16 %v642, %v642
      %v675 = vpack.c.b16 %v643, %v643
      %708 = vst [vmem:[%s212] sm:$0xf] %v644
      %709 = vst [vmem:[%s212 + $0x4] sm:$0xf] %v645
      %710 = vst [vmem:[%s212 + $0x8] sm:$0xf] %v646
      %711 = vst [vmem:[%s212 + $0xc] sm:$0xf] %v647
      %712 = vst [vmem:[%s212 + $0x10] sm:$0xf] %v648
      %713 = vst [vmem:[%s212 + $0x14] sm:$0xf] %v649
      %714 = vst [vmem:[%s212 + $0x18] sm:$0xf] %v650
      %715 = vst [vmem:[%s212 + $0x1c] sm:$0xf] %v651
      %716 = vst [vmem:[%s212 + $0x20] sm:$0xf] %v652
      %717 = vst [vmem:[%s212 + $0x24] sm:$0xf] %v653
      %718 = vst [vmem:[%s212 + $0x28] sm:$0xf] %v654
      %719 = vst [vmem:[%s212 + $0x2c] sm:$0xf] %v655
      %720 = vst [vmem:[%s212 + $0x30] sm:$0xf] %v656
      %721 = vst [vmem:[%s212 + $0x34] sm:$0xf] %v657
      %722 = vst [vmem:[%s212 + $0x38] sm:$0xf] %v658
      %723 = vst [vmem:[%s212 + $0x3c] sm:$0xf] %v659
      %724 = vst [vmem:[%s212 + $0x40] sm:$0xf] %v660
      %725 = vst [vmem:[%s212 + $0x44] sm:$0xf] %v661
      %726 = vst [vmem:[%s212 + $0x48] sm:$0xf] %v662
      %727 = vst [vmem:[%s212 + $0x4c] sm:$0xf] %v663
      %728 = vst [vmem:[%s212 + $0x50] sm:$0xf] %v664
      %729 = vst [vmem:[%s212 + $0x54] sm:$0xf] %v665
      %730 = vst [vmem:[%s212 + $0x58] sm:$0xf] %v666
      %731 = vst [vmem:[%s212 + $0x5c] sm:$0xf] %v667
      %732 = vst [vmem:[%s212 + $0x60] sm:$0xf] %v668
      %733 = vst [vmem:[%s212 + $0x64] sm:$0xf] %v669
      %734 = vst [vmem:[%s212 + $0x68] sm:$0xf] %v670
      %735 = vst [vmem:[%s212 + $0x6c] sm:$0xf] %v671
      %736 = vst [vmem:[%s212 + $0x70] sm:$0xf] %v672
      %737 = vst [vmem:[%s212 + $0x74] sm:$0xf] %v673
      %738 = vst [vmem:[%s212 + $0x78] sm:$0xf] %v674
      %739 = vst [vmem:[%s212 + $0x7c] sm:$0xf] %v675
      %v740 = vadd.f32 %v454, %v457
      %v741 = vadd.f32 %v740, %v462
      %v742 = vadd.f32 %v741, %v465
      %v743 = vadd.f32 %v742, %v470
      %v744 = vadd.f32 %v743, %v473
      %v745 = vadd.f32 %v744, %v478
      %v746 = vadd.f32 %v745, %v481
      %v747 = vadd.f32 %v746, %v486
      %v748 = vadd.f32 %v747, %v489
      %v749 = vadd.f32 %v748, %v494
      %v750 = vadd.f32 %v749, %v497
      %v751 = vadd.f32 %v750, %v502
      %v752 = vadd.f32 %v751, %v505
      %v753 = vadd.f32 %v752, %v510
      %v754 = vadd.f32 %v753, %v513
      %v755 = vadd.f32 %v754, %v518
      %v756 = vadd.f32 %v755, %v521
      %v757 = vadd.f32 %v756, %v526
      %v758 = vadd.f32 %v757, %v529
      %v759 = vadd.f32 %v758, %v534
      %v760 = vadd.f32 %v759, %v537
      %v761 = vadd.f32 %v760, %v542
      %v762 = vadd.f32 %v761, %v545
      %v763 = vadd.f32 %v762, %v550
      %v764 = vadd.f32 %v763, %v553
      %v765 = vadd.f32 %v764, %v558
      %v766 = vadd.f32 %v765, %v561
      %v767 = vadd.f32 %v766, %v566
      %v768 = vadd.f32 %v767, %v569
      %v769 = vadd.f32 %v768, %v574
      %v770 = vadd.f32 %v769, %v577
      %v771 = vrot.slane %v770, 4
      %v772 = vadd.f32 %v770, %v771
      %v773 = vrot.slane %v772, 2
      %v774 = vadd.f32 %v772, %v773
      %v775 = vrot.slane %v774, 1
      %v776 = vadd.f32 %v774, %v775
      %v777 = vmul.f32 %v454, %v454
      %v778 = vmul.f32 %v457, %v457
      %v779 = vmul.f32 %v462, %v462
      %v780 = vmul.f32 %v465, %v465
      %v781 = vmul.f32 %v470, %v470
      %v782 = vmul.f32 %v473, %v473
      %v783 = vmul.f32 %v478, %v478
      %v784 = vmul.f32 %v481, %v481
      %v785 = vmul.f32 %v486, %v486
      %v786 = vmul.f32 %v489, %v489
      %v787 = vmul.f32 %v494, %v494
      %v788 = vmul.f32 %v497, %v497
      %v789 = vmul.f32 %v502, %v502
      %v790 = vmul.f32 %v505, %v505
      %v791 = vmul.f32 %v510, %v510
      %v792 = vmul.f32 %v513, %v513
      %v793 = vmul.f32 %v518, %v518
      %v794 = vmul.f32 %v521, %v521
      %v795 = vmul.f32 %v526, %v526
      %v796 = vmul.f32 %v529, %v529
      %v797 = vmul.f32 %v534, %v534
      %v798 = vmul.f32 %v537, %v537
      %v799 = vmul.f32 %v542, %v542
      %v800 = vmul.f32 %v545, %v545
      %v801 = vmul.f32 %v550, %v550
      %v802 = vmul.f32 %v553, %v553
      %v803 = vmul.f32 %v558, %v558
      %v804 = vmul.f32 %v561, %v561
      %v805 = vmul.f32 %v566, %v566
      %v806 = vmul.f32 %v569, %v569
      %v807 = vmul.f32 %v574, %v574
      %v808 = vmul.f32 %v577, %v577
      %v809 = vadd.f32 %v777, %v778
      %v810 = vadd.f32 %v809, %v779
      %v811 = vadd.f32 %v810, %v780
      %v812 = vadd.f32 %v811, %v781
      %v813 = vadd.f32 %v812, %v782
      %v814 = vadd.f32 %v813, %v783
      %v815 = vadd.f32 %v814, %v784
      %v816 = vadd.f32 %v815, %v785
      %v817 = vadd.f32 %v816, %v786
      %v818 = vadd.f32 %v817, %v787
      %v819 = vadd.f32 %v818, %v788
      %v820 = vadd.f32 %v819, %v789
      %v821 = vadd.f32 %v820, %v790
      %v822 = vadd.f32 %v821, %v791
      %v823 = vadd.f32 %v822, %v792
      %v824 = vadd.f32 %v823, %v793
      %v825 = vadd.f32 %v824, %v794
      %v826 = vadd.f32 %v825, %v795
      %v827 = vadd.f32 %v826, %v796
      %v828 = vadd.f32 %v827, %v797
      %v829 = vadd.f32 %v828, %v798
      %v830 = vadd.f32 %v829, %v799
      %v831 = vadd.f32 %v830, %v800
      %v832 = vadd.f32 %v831, %v801
      %v833 = vadd.f32 %v832, %v802
      %v834 = vadd.f32 %v833, %v803
      %v835 = vadd.f32 %v834, %v804
      %v836 = vadd.f32 %v835, %v805
      %v837 = vadd.f32 %v836, %v806
      %v838 = vadd.f32 %v837, %v807
      %v839 = vadd.f32 %v838, %v808
      %v840 = vrot.slane %v839, 4
      %v841 = vadd.f32 %v839, %v840
      %v842 = vrot.slane %v841, 2
      %v843 = vadd.f32 %v841, %v842
      %v844 = vrot.slane %v843, 1
      %v845 = vadd.f32 %v843, %v844
      %846 = vst [vmem:[%s217] sm:$0xff] %v776
      %847 = vst [vmem:[%s221] sm:$0xff] %v845
      %s848 = smul.u32 32, %s16
      %p849 = scmp.lt.s32.totalorder %s848, 63
      %s850 = scalar_select %p849, %s848, 63
      %s851 = smul.addr %s850, 4
      %s852 = scalar_lea.vmem %s2, %s851
      %p853 = scmp.lt.s32.totalorder %s16, 1
      %s854 = scalar_select %p853, %s16, 1
      %s855 = smul.addr %s854, 8
      %s856 = scalar_lea.vmem %s3, %s855
      %p857 = scmp.lt.s32.totalorder %s16, 1
      %s858 = scalar_select %p857, %s16, 1
      %s859 = smul.addr %s858, 8
      %s860 = scalar_lea.vmem %s4, %s859
      // Predicated region
      $region29: #{_lambda_.23} parent=27 // pred_check
        %p861 = pneg %p81
      $region30: #{_lambda_.23} parent=27 // pred_check_branch
        %863 = sbr.rel (%p861) target = $region32
      $region31: #{_lambda_.23} parent=27 // pred_region
        %s864 = smul.u32 32, %s16
      $region32: #{_lambda_.23} parent=27 // pred_fallthru
        _
      // Predicated region
      $region33: #{_lambda_.23} parent=27 // pred_check
        %p865 = pneg %p107
      $region34: #{_lambda_.23} parent=27 // pred_check_branch
        %867 = sbr.rel (%p865) target = $region36
      $region35: #{_lambda_.23} parent=27 // pred_region
        _
      $region36: #{_lambda_.23} parent=27 // pred_fallthru
        _
      // Predicated region
      $region37: #{_lambda_.23} parent=27 // pred_check
        %p868 = pneg %p133
      $region38: #{_lambda_.23} parent=27 // pred_check_branch
        %870 = sbr.rel (%p868) target = $region40
      $region39: #{_lambda_.23} parent=27 // pred_region
        _
      $region40: #{_lambda_.23} parent=27 // pred_fallthru
        _
    $region28: #{_lambda_.23} parent=5 // pred_fallthru
      _
    %p871 = scmp.le.s32.totalorder 2, %s11
    // Predicated region
    $region41: #{_lambda_.23} parent=5 // pred_check
      %p872 = pneg %p871
    $region42: #{_lambda_.23} parent=5 // pred_check_branch
      %874 = sbr.rel (%p872) target = $region44
    $region43: #{_lambda_.23} parent=5 // pred_region
      %s875 = ssub.s32 %s11, 2
      // Predicated region
      $region45: #{_lambda_.23} parent=43 // pred_check
        %p876 = pneg %p87
      $region46: #{_lambda_.23} parent=43 // pred_check_branch
        %878 = sbr.rel (%p876) target = $region48
      $region47: #{_lambda_.23} parent=43 // pred_region
        %s879 = smul.u32 32, %s17
        %p880 = scmp.lt.s32.totalorder %s879, 63
        %s881 = scalar_select %p880, %s879, 63
        %s882 = smul.addr %s881, 4
        %s883 = scalar_lea.vmem %s2, %s882
      $region48: #{_lambda_.23} parent=43 // pred_fallthru
        _
      // Predicated region
      $region49: #{_lambda_.23} parent=43 // pred_check
        %p884 = pneg %p113
      $region50: #{_lambda_.23} parent=43 // pred_check_branch
        %886 = sbr.rel (%p884) target = $region52
      $region51: #{_lambda_.23} parent=43 // pred_region
        %p887 = scmp.lt.s32.totalorder %s17, 1
        %s888 = scalar_select %p887, %s17, 1
        %s889 = smul.addr %s888, 8
        %s890 = scalar_lea.vmem %s3, %s889
      $region52: #{_lambda_.23} parent=43 // pred_fallthru
        _
      // Predicated region
      $region53: #{_lambda_.23} parent=43 // pred_check
        %p891 = pneg %p139
      $region54: #{_lambda_.23} parent=43 // pred_check_branch
        %893 = sbr.rel (%p891) target = $region56
      $region55: #{_lambda_.23} parent=43 // pred_region
        %p894 = scmp.lt.s32.totalorder %s17, 1
        %s895 = scalar_select %p894, %s17, 1
        %s896 = smul.addr %s895, 8
        %s897 = scalar_lea.vmem %s4, %s896
      $region56: #{_lambda_.23} parent=43 // pred_fallthru
        _
    $region44: #{_lambda_.23} parent=5 // pred_fallthru
      _
  $region6: #{_lambda_.23} parent=0 // loop_footer
    %s15 = sadd.s32 1, %s11
  $region7: #{_lambda_.23} parent=0 // loop_footer_branch
    %10 = sbr.rel target = $region3
  $region8: #{_lambda_.23} parent=0 // loop_exit
    _

// kernel: _lambda_.25
$region0: #{_lambda_.25}
  #allocation0 [shape = 'u32[]', space=smem, size = 0x4, offset = 0x4, fixed_abs, tag = 'smem constant byte address 0x4 - core index']
  #allocation1 [shape = 'u32[144,128]{1,0:T(1,128)}', space=vmem, size = 0x12000, scoped, tag = 'internal scratch']
  %s0 = inlined_call_operand.vmem [shape: bf16[64,72], index: 0, kind: input, shape index: {}]
  %s1 = inlined_call_operand.vmem [shape: bf16[72,128], index: 1, kind: input, shape index: {}]
  %s2 = inlined_call_operand.vmem [shape: f32[1,128], index: 2, kind: input, shape index: {}]
  %s3 = inlined_call_operand.vmem [shape: f32[1,128], index: 3, kind: input, shape index: {}]
  %s4 = inlined_call_operand.vmem [shape: bf16[64,128], index: 4, kind: output, shape index: {}]
  %s5 = sld [smem:[#allocation0]]
  $region26: #{_lambda_.25} parent=0
    _
  %s7 = ssub.s32 1, %s5
  %s8 = scalar_select 0, %s7, %s5
  // Predicated region
  $region2: #{_lambda_.25} parent=0 // pred_check
    _
  $region3: #{_lambda_.25} parent=0 // pred_check_branch
    %10 = sbr.rel (0) target = $region5
  $region4: #{_lambda_.25} parent=0 // pred_region
    _
  $region5: #{_lambda_.25} parent=0 // pred_fallthru
    _
  // Predicated region
  $region6: #{_lambda_.25} parent=0 // pred_check
    _
  $region7: #{_lambda_.25} parent=0 // pred_check_branch
    %12 = sbr.rel (0) target = $region9
  $region8: #{_lambda_.25} parent=0 // pred_region
    _
  $region9: #{_lambda_.25} parent=0 // pred_fallthru
    _
  // Predicated region
  $region10: #{_lambda_.25} parent=0 // pred_check
    _
  $region11: #{_lambda_.25} parent=0 // pred_check_branch
    %14 = sbr.rel (0) target = $region13
  $region12: #{_lambda_.25} parent=0 // pred_region
    _
  $region13: #{_lambda_.25} parent=0 // pred_fallthru
    _
  // Predicated region
  $region14: #{_lambda_.25} parent=0 // pred_check
    _
  $region15: #{_lambda_.25} parent=0 // pred_check_branch
    %16 = sbr.rel (0) target = $region17
  $region16: #{_lambda_.25} parent=0 // pred_region
    _
  $region17: #{_lambda_.25} parent=0 // pred_fallthru
    _
  %v18 = vld [vmem:[%s0] sm:$0xf]
  %v19 = vld [vmem:[%s0 + $0x4] sm:$0xf]
  %v20 = vld [vmem:[%s0 + $0x8] sm:$0xf]
  %v21 = vld [vmem:[%s0 + $0xc] sm:$0xf]
  %v22 = vld [vmem:[%s0 + $0x10] sm:$0xf]
  %v23 = vld [vmem:[%s0 + $0x14] sm:$0xf]
  %v24 = vld [vmem:[%s0 + $0x18] sm:$0xf]
  %v25 = vld [vmem:[%s0 + $0x1c] sm:$0xf]
  %v26 = vld [vmem:[%s1] sm:$0xf]
  %v27 = vld [vmem:[%s1 + $0x4] sm:$0xf]
  %v28 = vld [vmem:[%s1 + $0x8] sm:$0xf]
  %v29 = vld [vmem:[%s1 + $0xc] sm:$0xf]
  %v30 = vld [vmem:[%s1 + $0x10] sm:$0xf]
  %v31 = vld [vmem:[%s1 + $0x14] sm:$0xf]
  %v32 = vld [vmem:[%s1 + $0x18] sm:$0xf]
  %v33 = vld [vmem:[%s1 + $0x1c] sm:$0xf]
  %v34 = vld [vmem:[%s1 + $0x20] sm:$0xf]
  %v43 = vunpack.c.l.b16 %v18
  %v44 = vunpack.c.l.b16 %v19
  %v45 = vunpack.c.l.b16 %v20
  %v46 = vunpack.c.l.b16 %v21
  %v47 = vunpack.c.l.b16 %v22
  %v48 = vunpack.c.l.b16 %v23
  %v49 = vunpack.c.l.b16 %v24
  %v50 = vunpack.c.l.b16 %v25
  %v51 = vpack.c.b16 %v44, %v43
  %v52 = vpack.c.b16 %v46, %v45
  %v53 = vpack.c.b16 %v48, %v47
  %v54 = vpack.c.b16 %v50, %v49
  %v64 = vunpack.c.l.b16 %v26
  %v65 = vunpack.c.l.b16 %v27
  %v66 = vunpack.c.l.b16 %v28
  %v67 = vunpack.c.l.b16 %v29
  %v68 = vunpack.c.l.b16 %v30
  %v69 = vunpack.c.l.b16 %v31
  %v70 = vunpack.c.l.b16 %v32
  %v71 = vunpack.c.l.b16 %v33
  %v72 = vunpack.c.l.b16 %v34
  %v73 = vpack.c.b16 %v65, %v64
  %v74 = vpack.c.b16 %v67, %v66
  %v75 = vpack.c.b16 %v69, %v68
  %v76 = vpack.c.b16 %v71, %v70
  %v77 = vpack.c.b16 %v72, %v72
  %vm82 = vcmask 588800
  %v84 = vsel %vm82, %v51, 0
  %v87 = vsel %vm82, %v52, 0
  %v90 = vsel %vm82, %v53, 0
  %v93 = vsel %vm82, %v54, 0
  %vm95 = vcmask 1043456
  %v97 = vsel %vm95, %v77, 0
  %99 = vmatprep.subr.bf16.mxu0 0
  %100 = vmatpush1.bf16.msra.mxu0 0
  %101 = vmatprep.subr.bf16.mxu0 0
  %102 = vmatpush1.bf16.msra.mxu0 0
  %103 = vmatprep.subr.bf16.mxu0 0
  %104 = vmatpush1.bf16.msra.mxu0 0
  %105 = vmatprep.subr.bf16.mxu0 0
  %106 = vmatpush1.bf16.msra.mxu0 %v97
  %107 = vmatprep.subr.bf16.mxu0 0
  %108 = vmatpush1.bf16.msra.mxu0 %v76
  %109 = vmatprep.subr.bf16.mxu0 0
  %110 = vmatpush1.bf16.msra.mxu0 %v75
  %111 = vmatprep.subr.bf16.mxu0 0
  %112 = vmatpush1.bf16.msra.mxu0 %v74
  %113 = vmatprep.subr.bf16.mxu0 0
  %114 = vmatpush1.bf16.msra.mxu0 %v73
  %115 = vmatprep.subr.bf16.mxu0 0
  %116 = vmatpush2.bf16.msra.mxu0 0
  %117 = vmatprep.subr.bf16.mxu0 0
  %118 = vmatpush2.bf16.msra.mxu0 0
  %119 = vmatprep.subr.bf16.mxu0 0
  %120 = vmatpush2.bf16.msra.mxu0 0
  %121 = vmatprep.subr.bf16.mxu0 0
  %122 = vmatpush2.bf16.msra.mxu0 0
  %123 = vmatprep.subr.bf16.mxu0 0
  %124 = vmatpush2.bf16.msra.mxu0 0
  %125 = vmatprep.subr.bf16.mxu0 0
  %126 = vmatpush2.bf16.msra.mxu0 0
  %127 = vmatprep.subr.bf16.mxu0 0
  %128 = vmatpush2.bf16.msra.mxu0 0
  %129 = vmatprep.subr.bf16.mxu0 0
  %130 = vmatpush2.bf16.msra.mxu0 0
  %131 = vmatprep.mubr.bf16.mxu0 0
  %132 = vmatmul.mubr.bf16.gmra.mxu0 %v84
  %v133 = vpop.f32.mrf.mxu0
  %v134 = vadd.f32 0.0, %v133
  %v135 = vpop.f32.mrf.mxu0
  %v136 = vpop.f32.mrf.mxu0
  %v137 = vadd.f32 0.0, %v136
  %v138 = vpop.f32.mrf.mxu0
  %139 = vmatprep.mubr.bf16.mxu0 0
  %140 = vmatmul.mubr.bf16.gmra.mxu0 %v87
  %v141 = vpop.f32.mrf.mxu0
  %v142 = vadd.f32 0.0, %v141
  %v143 = vpop.f32.mrf.mxu0
  %v144 = vpop.f32.mrf.mxu0
  %v145 = vadd.f32 0.0, %v144
  %v146 = vpop.f32.mrf.mxu0
  %147 = vmatprep.mubr.bf16.mxu0 0
  %148 = vmatmul.mubr.bf16.gmra.mxu0 %v90
  %v149 = vpop.f32.mrf.mxu0
  %v150 = vadd.f32 0.0, %v149
  %v151 = vpop.f32.mrf.mxu0
  %v152 = vpop.f32.mrf.mxu0
  %v153 = vadd.f32 0.0, %v152
  %v154 = vpop.f32.mrf.mxu0
  %155 = vmatprep.mubr.bf16.mxu0 0
  %156 = vmatmul.mubr.bf16.gmra.mxu0 %v93
  %v157 = vpop.f32.mrf.mxu0
  %v158 = vadd.f32 0.0, %v157
  %v159 = vpop.f32.mrf.mxu0
  %v160 = vpop.f32.mrf.mxu0
  %v161 = vadd.f32 0.0, %v160
  %v162 = vpop.f32.mrf.mxu0
  %163 = vdwg.mxu0
  %v164 = vadd.f32 %v134, %v137
  %v165 = vadd.f32 %v164, %v142
  %v166 = vadd.f32 %v165, %v145
  %v167 = vadd.f32 %v166, %v150
  %v168 = vadd.f32 %v167, %v153
  %v169 = vadd.f32 %v168, %v158
  %v170 = vadd.f32 %v169, %v161
  %v171 = vrot.slane %v170, 4
  %v172 = vadd.f32 %v170, %v171
  %v173 = vrot.slane %v172, 2
  %v174 = vadd.f32 %v172, %v173
  %v175 = vrot.slane %v174, 1
  %v176 = vadd.f32 %v174, %v175
  %v177 = vmul.f32 %v176, 0.015625
  %v178 = vmul.f32 %v134, %v134
  %v179 = vmul.f32 %v137, %v137
  %v180 = vmul.f32 %v142, %v142
  %v181 = vmul.f32 %v145, %v145
  %v182 = vmul.f32 %v150, %v150
  %v183 = vmul.f32 %v153, %v153
  %v184 = vmul.f32 %v158, %v158
  %v185 = vmul.f32 %v161, %v161
  %v186 = vadd.f32 %v178, %v179
  %v187 = vadd.f32 %v186, %v180
  %v188 = vadd.f32 %v187, %v181
  %v189 = vadd.f32 %v188, %v182
  %v190 = vadd.f32 %v189, %v183
  %v191 = vadd.f32 %v190, %v184
  %v192 = vadd.f32 %v191, %v185
  %v193 = vrot.slane %v192, 4
  %v194 = vadd.f32 %v192, %v193
  %v195 = vrot.slane %v194, 2
  %v196 = vadd.f32 %v194, %v195
  %v197 = vrot.slane %v196, 1
  %v198 = vadd.f32 %v196, %v197
  %v199 = vmul.f32 %v198, 0.015625
  %v200 = vmul.f32 %v177, %v177
  %v201 = vsub.f32 %v199, %v200
  %v202 = vmax.f32 %v201, 0.0
  %v203 = vadd.f32 %v202, 1e-05
  %v204 = vrsqrt.pop %v203
  %v205 = vsub.f32 %v134, %v177
  %v206 = vsub.f32 %v137, %v177
  %v207 = vsub.f32 %v142, %v177
  %v208 = vsub.f32 %v145, %v177
  %v209 = vsub.f32 %v150, %v177
  %v210 = vsub.f32 %v153, %v177
  %v211 = vsub.f32 %v158, %v177
  %v212 = vsub.f32 %v161, %v177
  %v213 = vld [vmem:[%s2] sm:$0x1]
  %v214 = vmul.f32 %v204, %v213
  %v215 = vlaneseq
  %v216 = vshrl.u32 %v215, 7
  %v217 = vsub.s32 0, %v216
  %v218 = vrot.slane %v214, %v217
  %v219 = vmul.f32 %v205, %v218
  %v220 = vmul.f32 %v206, %v218
  %v221 = vmul.f32 %v207, %v218
  %v222 = vmul.f32 %v208, %v218
  %v223 = vmul.f32 %v209, %v218
  %v224 = vmul.f32 %v210, %v218
  %v225 = vmul.f32 %v211, %v218
  %v226 = vmul.f32 %v212, %v218
  %v227 = vld [vmem:[%s3] sm:$0x1]
  %v229 = vlaneseq
  %v230 = vshrl.u32 %v229, 7
  %v231 = vsub.s32 0, %v230
  %v232 = vrot.slane %v227, %v231
  %v234 = vadd.f32 %v219, %v232
  %v235 = vadd.f32 %v220, %v232
  %v236 = vadd.f32 %v221, %v232
  %v237 = vadd.f32 %v222, %v232
  %v238 = vadd.f32 %v223, %v232
  %v239 = vadd.f32 %v224, %v232
  %v240 = vadd.f32 %v225, %v232
  %v241 = vadd.f32 %v226, %v232
  %v242 = vmax.f32 %v234, 0.0
  %v243 = vmax.f32 %v235, 0.0
  %v244 = vmax.f32 %v236, 0.0
  %v245 = vmax.f32 %v237, 0.0
  %v246 = vmax.f32 %v238, 0.0
  %v247 = vmax.f32 %v239, 0.0
  %v248 = vmax.f32 %v240, 0.0
  %v249 = vmax.f32 %v241, 0.0
  %v250 = vpack.c.bf16 %v243, %v242
  %v251 = vpack.c.bf16 %v245, %v244
  %v252 = vpack.c.bf16 %v247, %v246
  %v253 = vpack.c.bf16 %v249, %v248
  %v258 = vunpack.c.l.b16 %v250
  %v259 = vunpack.c.h.b16 %v250
  %v260 = vunpack.c.l.b16 %v251
  %v261 = vunpack.c.h.b16 %v251
  %v262 = vunpack.c.l.b16 %v252
  %v263 = vunpack.c.h.b16 %v252
  %v264 = vunpack.c.l.b16 %v253
  %v265 = vunpack.c.h.b16 %v253
  %v266 = vpack.c.b16 %v258, %v258
  %v267 = vpack.c.b16 %v259, %v259
  %v268 = vpack.c.b16 %v260, %v260
  %v269 = vpack.c.b16 %v261, %v261
  %v270 = vpack.c.b16 %v262, %v262
  %v271 = vpack.c.b16 %v263, %v263
  %v272 = vpack.c.b16 %v264, %v264
  %v273 = vpack.c.b16 %v265, %v265
  %282 = vst [vmem:[%s4] sm:$0xf] %v266
  %283 = vst [vmem:[%s4 + $0x4] sm:$0xf] %v267
  %284 = vst [vmem:[%s4 + $0x8] sm:$0xf] %v268
  %285 = vst [vmem:[%s4 + $0xc] sm:$0xf] %v269
  %286 = vst [vmem:[%s4 + $0x10] sm:$0xf] %v270
  %287 = vst [vmem:[%s4 + $0x14] sm:$0xf] %v271
  %288 = vst [vmem:[%s4 + $0x18] sm:$0xf] %v272
  %289 = vst [vmem:[%s4 + $0x1c] sm:$0xf] %v273
  // Predicated region
  $region18: #{_lambda_.25} parent=0 // pred_check
    _
  $region19: #{_lambda_.25} parent=0 // pred_check_branch
    %291 = sbr.rel (0) target = $region21
  $region20: #{_lambda_.25} parent=0 // pred_region
    _
  $region21: #{_lambda_.25} parent=0 // pred_fallthru
    _
  // Predicated region
  $region22: #{_lambda_.25} parent=0 // pred_check
    _
  $region23: #{_lambda_.25} parent=0 // pred_check_branch
    %293 = sbr.rel (0) target = $region25
  $region24: #{_lambda_.25} parent=0 // pred_region
    _
  $region25: #{_lambda_.25} parent=0 // pred_fallthru
    _

// kernel: _lambda_.26
$region0: #{_lambda_.26}
  #allocation0 [shape = 'u32[]', space=smem, size = 0x4, offset = 0x4, fixed_abs, tag = 'smem constant byte address 0x4 - core index']
  #allocation1 [shape = 'u32[144,128]{1,0:T(1,128)}', space=vmem, size = 0x12000, scoped, tag = 'internal scratch']
  %s0 = inlined_call_operand.vmem [shape: bf16[64,54], index: 0, kind: input, shape index: {}]
  %s1 = inlined_call_operand.vmem [shape: bf16[54,128], index: 1, kind: input, shape index: {}]
  %s2 = inlined_call_operand.vmem [shape: f32[1,128], index: 2, kind: input, shape index: {}]
  %s3 = inlined_call_operand.vmem [shape: f32[1,128], index: 3, kind: input, shape index: {}]
  %s4 = inlined_call_operand.vmem [shape: bf16[64,128], index: 4, kind: output, shape index: {}]
  %s5 = sld [smem:[#allocation0]]
  $region26: #{_lambda_.26} parent=0
    _
  %s7 = ssub.s32 1, %s5
  %s8 = scalar_select 0, %s7, %s5
  // Predicated region
  $region2: #{_lambda_.26} parent=0 // pred_check
    _
  $region3: #{_lambda_.26} parent=0 // pred_check_branch
    %10 = sbr.rel (0) target = $region5
  $region4: #{_lambda_.26} parent=0 // pred_region
    _
  $region5: #{_lambda_.26} parent=0 // pred_fallthru
    _
  // Predicated region
  $region6: #{_lambda_.26} parent=0 // pred_check
    _
  $region7: #{_lambda_.26} parent=0 // pred_check_branch
    %12 = sbr.rel (0) target = $region9
  $region8: #{_lambda_.26} parent=0 // pred_region
    _
  $region9: #{_lambda_.26} parent=0 // pred_fallthru
    _
  // Predicated region
  $region10: #{_lambda_.26} parent=0 // pred_check
    _
  $region11: #{_lambda_.26} parent=0 // pred_check_branch
    %14 = sbr.rel (0) target = $region13
  $region12: #{_lambda_.26} parent=0 // pred_region
    _
  $region13: #{_lambda_.26} parent=0 // pred_fallthru
    _
  // Predicated region
  $region14: #{_lambda_.26} parent=0 // pred_check
    _
  $region15: #{_lambda_.26} parent=0 // pred_check_branch
    %16 = sbr.rel (0) target = $region17
  $region16: #{_lambda_.26} parent=0 // pred_region
    _
  $region17: #{_lambda_.26} parent=0 // pred_fallthru
    _
  %v18 = vld [vmem:[%s0] sm:$0xf]
  %v19 = vld [vmem:[%s0 + $0x4] sm:$0xf]
  %v20 = vld [vmem:[%s0 + $0x8] sm:$0xf]
  %v21 = vld [vmem:[%s0 + $0xc] sm:$0xf]
  %v22 = vld [vmem:[%s0 + $0x10] sm:$0xf]
  %v23 = vld [vmem:[%s0 + $0x14] sm:$0xf]
  %v24 = vld [vmem:[%s0 + $0x18] sm:$0xf]
  %v25 = vld [vmem:[%s0 + $0x1c] sm:$0xf]
  %v26 = vld [vmem:[%s1] sm:$0xf]
  %v27 = vld [vmem:[%s1 + $0x4] sm:$0xf]
  %v28 = vld [vmem:[%s1 + $0x8] sm:$0xf]
  %v29 = vld [vmem:[%s1 + $0xc] sm:$0xf]
  %v30 = vld [vmem:[%s1 + $0x10] sm:$0xf]
  %v31 = vld [vmem:[%s1 + $0x14] sm:$0xf]
  %v32 = vld [vmem:[%s1 + $0x18] sm:$0x7]
  %v41 = vunpack.c.l.b16 %v18
  %v42 = vunpack.c.l.b16 %v19
  %v43 = vunpack.c.l.b16 %v20
  %v44 = vunpack.c.l.b16 %v21
  %v45 = vunpack.c.l.b16 %v22
  %v46 = vunpack.c.l.b16 %v23
  %v47 = vunpack.c.l.b16 %v24
  %v48 = vunpack.c.l.b16 %v25
  %v49 = vpack.c.b16 %v42, %v41
  %v50 = vpack.c.b16 %v44, %v43
  %v51 = vpack.c.b16 %v46, %v45
  %v52 = vpack.c.b16 %v48, %v47
  %v60 = vunpack.c.l.b16 %v26
  %v61 = vunpack.c.l.b16 %v27
  %v62 = vunpack.c.l.b16 %v28
  %v63 = vunpack.c.l.b16 %v29
  %v64 = vunpack.c.l.b16 %v30
  %v65 = vunpack.c.l.b16 %v31
  %v66 = vunpack.c.l.b16 %v32
  %v67 = vpack.c.b16 %v61, %v60
  %v68 = vpack.c.b16 %v63, %v62
  %v69 = vpack.c.b16 %v65, %v64
  %v70 = vpack.c.b16 %v66, %v66
  %vm74 = vcmask 441344
  %v76 = vsel %vm74, %v49, 0
  %v79 = vsel %vm74, %v50, 0
  %v82 = vsel %vm74, %v51, 0
  %v85 = vsel %vm74, %v52, 0
  %vm87 = vcmask 1042432
  %v89 = vsel %vm87, %v70, 0
  %91 = vmatprep.subr.bf16.mxu0 0
  %92 = vmatpush1.bf16.msra.mxu0 0
  %93 = vmatprep.subr.bf16.mxu0 0
  %94 = vmatpush1.bf16.msra.mxu0 0
  %95 = vmatprep.subr.bf16.mxu0 0
  %96 = vmatpush1.bf16.msra.mxu0 0
  %97 = vmatprep.subr.bf16.mxu0 0
  %98 = vmatpush1.bf16.msra.mxu0 0
  %99 = vmatprep.subr.bf16.mxu0 0
  %100 = vmatpush1.bf16.msra.mxu0 %v89
  %101 = vmatprep.subr.bf16.mxu0 0
  %102 = vmatpush1.bf16.msra.mxu0 %v69
  %103 = vmatprep.subr.bf16.mxu0 0
  %104 = vmatpush1.bf16.msra.mxu0 %v68
  %105 = vmatprep.subr.bf16.mxu0 0
  %106 = vmatpush1.bf16.msra.mxu0 %v67
  %107 = vmatprep.subr.bf16.mxu0 0
  %108 = vmatpush2.bf16.msra.mxu0 0
  %109 = vmatprep.subr.bf16.mxu0 0
  %110 = vmatpush2.bf16.msra.mxu0 0
  %111 = vmatprep.subr.bf16.mxu0 0
  %112 = vmatpush2.bf16.msra.mxu0 0
  %113 = vmatprep.subr.bf16.mxu0 0
  %114 = vmatpush2.bf16.msra.mxu0 0
  %115 = vmatprep.subr.bf16.mxu0 0
  %116 = vmatpush2.bf16.msra.mxu0 0
  %117 = vmatprep.subr.bf16.mxu0 0
  %118 = vmatpush2.bf16.msra.mxu0 0
  %119 = vmatprep.subr.bf16.mxu0 0
  %120 = vmatpush2.bf16.msra.mxu0 0
  %121 = vmatprep.subr.bf16.mxu0 0
  %122 = vmatpush2.bf16.msra.mxu0 0
  %123 = vmatprep.mubr.bf16.mxu0 0
  %124 = vmatmul.mubr.bf16.gmra.mxu0 %v76
  %v125 = vpop.f32.mrf.mxu0
  %v126 = vadd.f32 0.0, %v125
  %v127 = vpop.f32.mrf.mxu0
  %v128 = vpop.f32.mrf.mxu0
  %v129 = vadd.f32 0.0, %v128
  %v130 = vpop.f32.mrf.mxu0
  %131 = vmatprep.mubr.bf16.mxu0 0
  %132 = vmatmul.mubr.bf16.gmra.mxu0 %v79
  %v133 = vpop.f32.mrf.mxu0
  %v134 = vadd.f32 0.0, %v133
  %v135 = vpop.f32.mrf.mxu0
  %v136 = vpop.f32.mrf.mxu0
  %v137 = vadd.f32 0.0, %v136
  %v138 = vpop.f32.mrf.mxu0
  %139 = vmatprep.mubr.bf16.mxu0 0
  %140 = vmatmul.mubr.bf16.gmra.mxu0 %v82
  %v141 = vpop.f32.mrf.mxu0
  %v142 = vadd.f32 0.0, %v141
  %v143 = vpop.f32.mrf.mxu0
  %v144 = vpop.f32.mrf.mxu0
  %v145 = vadd.f32 0.0, %v144
  %v146 = vpop.f32.mrf.mxu0
  %147 = vmatprep.mubr.bf16.mxu0 0
  %148 = vmatmul.mubr.bf16.gmra.mxu0 %v85
  %v149 = vpop.f32.mrf.mxu0
  %v150 = vadd.f32 0.0, %v149
  %v151 = vpop.f32.mrf.mxu0
  %v152 = vpop.f32.mrf.mxu0
  %v153 = vadd.f32 0.0, %v152
  %v154 = vpop.f32.mrf.mxu0
  %155 = vdwg.mxu0
  %v156 = vadd.f32 %v126, %v129
  %v157 = vadd.f32 %v156, %v134
  %v158 = vadd.f32 %v157, %v137
  %v159 = vadd.f32 %v158, %v142
  %v160 = vadd.f32 %v159, %v145
  %v161 = vadd.f32 %v160, %v150
  %v162 = vadd.f32 %v161, %v153
  %v163 = vrot.slane %v162, 4
  %v164 = vadd.f32 %v162, %v163
  %v165 = vrot.slane %v164, 2
  %v166 = vadd.f32 %v164, %v165
  %v167 = vrot.slane %v166, 1
  %v168 = vadd.f32 %v166, %v167
  %v169 = vmul.f32 %v168, 0.015625
  %v170 = vmul.f32 %v126, %v126
  %v171 = vmul.f32 %v129, %v129
  %v172 = vmul.f32 %v134, %v134
  %v173 = vmul.f32 %v137, %v137
  %v174 = vmul.f32 %v142, %v142
  %v175 = vmul.f32 %v145, %v145
  %v176 = vmul.f32 %v150, %v150
  %v177 = vmul.f32 %v153, %v153
  %v178 = vadd.f32 %v170, %v171
  %v179 = vadd.f32 %v178, %v172
  %v180 = vadd.f32 %v179, %v173
  %v181 = vadd.f32 %v180, %v174
  %v182 = vadd.f32 %v181, %v175
  %v183 = vadd.f32 %v182, %v176
  %v184 = vadd.f32 %v183, %v177
  %v185 = vrot.slane %v184, 4
  %v186 = vadd.f32 %v184, %v185
  %v187 = vrot.slane %v186, 2
  %v188 = vadd.f32 %v186, %v187
  %v189 = vrot.slane %v188, 1
  %v190 = vadd.f32 %v188, %v189
  %v191 = vmul.f32 %v190, 0.015625
  %v192 = vmul.f32 %v169, %v169
  %v193 = vsub.f32 %v191, %v192
  %v194 = vmax.f32 %v193, 0.0
  %v195 = vadd.f32 %v194, 1e-05
  %v196 = vrsqrt.pop %v195
  %v197 = vsub.f32 %v126, %v169
  %v198 = vsub.f32 %v129, %v169
  %v199 = vsub.f32 %v134, %v169
  %v200 = vsub.f32 %v137, %v169
  %v201 = vsub.f32 %v142, %v169
  %v202 = vsub.f32 %v145, %v169
  %v203 = vsub.f32 %v150, %v169
  %v204 = vsub.f32 %v153, %v169
  %v205 = vld [vmem:[%s2] sm:$0x1]
  %v206 = vmul.f32 %v196, %v205
  %v207 = vlaneseq
  %v208 = vshrl.u32 %v207, 7
  %v209 = vsub.s32 0, %v208
  %v210 = vrot.slane %v206, %v209
  %v211 = vmul.f32 %v197, %v210
  %v212 = vmul.f32 %v198, %v210
  %v213 = vmul.f32 %v199, %v210
  %v214 = vmul.f32 %v200, %v210
  %v215 = vmul.f32 %v201, %v210
  %v216 = vmul.f32 %v202, %v210
  %v217 = vmul.f32 %v203, %v210
  %v218 = vmul.f32 %v204, %v210
  %v219 = vld [vmem:[%s3] sm:$0x1]
  %v221 = vlaneseq
  %v222 = vshrl.u32 %v221, 7
  %v223 = vsub.s32 0, %v222
  %v224 = vrot.slane %v219, %v223
  %v226 = vadd.f32 %v211, %v224
  %v227 = vadd.f32 %v212, %v224
  %v228 = vadd.f32 %v213, %v224
  %v229 = vadd.f32 %v214, %v224
  %v230 = vadd.f32 %v215, %v224
  %v231 = vadd.f32 %v216, %v224
  %v232 = vadd.f32 %v217, %v224
  %v233 = vadd.f32 %v218, %v224
  %v234 = vmax.f32 %v226, 0.0
  %v235 = vmax.f32 %v227, 0.0
  %v236 = vmax.f32 %v228, 0.0
  %v237 = vmax.f32 %v229, 0.0
  %v238 = vmax.f32 %v230, 0.0
  %v239 = vmax.f32 %v231, 0.0
  %v240 = vmax.f32 %v232, 0.0
  %v241 = vmax.f32 %v233, 0.0
  %v242 = vpack.c.bf16 %v235, %v234
  %v243 = vpack.c.bf16 %v237, %v236
  %v244 = vpack.c.bf16 %v239, %v238
  %v245 = vpack.c.bf16 %v241, %v240
  %v250 = vunpack.c.l.b16 %v242
  %v251 = vunpack.c.h.b16 %v242
  %v252 = vunpack.c.l.b16 %v243
  %v253 = vunpack.c.h.b16 %v243
  %v254 = vunpack.c.l.b16 %v244
  %v255 = vunpack.c.h.b16 %v244
  %v256 = vunpack.c.l.b16 %v245
  %v257 = vunpack.c.h.b16 %v245
  %v258 = vpack.c.b16 %v250, %v250
  %v259 = vpack.c.b16 %v251, %v251
  %v260 = vpack.c.b16 %v252, %v252
  %v261 = vpack.c.b16 %v253, %v253
  %v262 = vpack.c.b16 %v254, %v254
  %v263 = vpack.c.b16 %v255, %v255
  %v264 = vpack.c.b16 %v256, %v256
  %v265 = vpack.c.b16 %v257, %v257
  %274 = vst [vmem:[%s4] sm:$0xf] %v258
  %275 = vst [vmem:[%s4 + $0x4] sm:$0xf] %v259
  %276 = vst [vmem:[%s4 + $0x8] sm:$0xf] %v260
  %277 = vst [vmem:[%s4 + $0xc] sm:$0xf] %v261
  %278 = vst [vmem:[%s4 + $0x10] sm:$0xf] %v262
  %279 = vst [vmem:[%s4 + $0x14] sm:$0xf] %v263
  %280 = vst [vmem:[%s4 + $0x18] sm:$0xf] %v264
  %281 = vst [vmem:[%s4 + $0x1c] sm:$0xf] %v265
  // Predicated region
  $region18: #{_lambda_.26} parent=0 // pred_check
    _
  $region19: #{_lambda_.26} parent=0 // pred_check_branch
    %283 = sbr.rel (0) target = $region21
  $region20: #{_lambda_.26} parent=0 // pred_region
    _
  $region21: #{_lambda_.26} parent=0 // pred_fallthru
    _
  // Predicated region
  $region22: #{_lambda_.26} parent=0 // pred_check
    _
  $region23: #{_lambda_.26} parent=0 // pred_check_branch
    %285 = sbr.rel (0) target = $region25
  $region24: #{_lambda_.26} parent=0 // pred_region
    _
  $region25: #{_lambda_.26} parent=0 // pred_fallthru
    _

// kernel: _lambda_.28
$region0: #{_lambda_.28}
  #allocation0 [shape = 'u32[]', space=smem, size = 0x4, offset = 0x4, fixed_abs, tag = 'smem constant byte address 0x4 - core index']
  #allocation1 [shape = 'u32[144,128]{1,0:T(1,128)}', space=vmem, size = 0x12000, scoped, tag = 'internal scratch']
  %s0 = inlined_call_operand.vmem [shape: bf16[64,54], index: 0, kind: input, shape index: {}]
  %s1 = inlined_call_operand.vmem [shape: bf16[54,128], index: 1, kind: input, shape index: {}]
  %s2 = inlined_call_operand.vmem [shape: f32[1,128], index: 2, kind: input, shape index: {}]
  %s3 = inlined_call_operand.vmem [shape: f32[1,128], index: 3, kind: input, shape index: {}]
  %s4 = inlined_call_operand.vmem [shape: bf16[64,128], index: 4, kind: input, shape index: {}]
  %s5 = inlined_call_operand.vmem [shape: bf16[64,128], index: 5, kind: output, shape index: {}]
  %s6 = sld [smem:[#allocation0]]
  $region30: #{_lambda_.28} parent=0
    _
  %s8 = ssub.s32 1, %s6
  %s9 = scalar_select 0, %s8, %s6
  // Predicated region
  $region2: #{_lambda_.28} parent=0 // pred_check
    _
  $region3: #{_lambda_.28} parent=0 // pred_check_branch
    %11 = sbr.rel (0) target = $region5
  $region4: #{_lambda_.28} parent=0 // pred_region
    _
  $region5: #{_lambda_.28} parent=0 // pred_fallthru
    _
  // Predicated region
  $region6: #{_lambda_.28} parent=0 // pred_check
    _
  $region7: #{_lambda_.28} parent=0 // pred_check_branch
    %13 = sbr.rel (0) target = $region9
  $region8: #{_lambda_.28} parent=0 // pred_region
    _
  $region9: #{_lambda_.28} parent=0 // pred_fallthru
    _
  // Predicated region
  $region10: #{_lambda_.28} parent=0 // pred_check
    _
  $region11: #{_lambda_.28} parent=0 // pred_check_branch
    %15 = sbr.rel (0) target = $region13
  $region12: #{_lambda_.28} parent=0 // pred_region
    _
  $region13: #{_lambda_.28} parent=0 // pred_fallthru
    _
  // Predicated region
  $region14: #{_lambda_.28} parent=0 // pred_check
    _
  $region15: #{_lambda_.28} parent=0 // pred_check_branch
    %17 = sbr.rel (0) target = $region17
  $region16: #{_lambda_.28} parent=0 // pred_region
    _
  $region17: #{_lambda_.28} parent=0 // pred_fallthru
    _
  // Predicated region
  $region18: #{_lambda_.28} parent=0 // pred_check
    _
  $region19: #{_lambda_.28} parent=0 // pred_check_branch
    %19 = sbr.rel (0) target = $region21
  $region20: #{_lambda_.28} parent=0 // pred_region
    _
  $region21: #{_lambda_.28} parent=0 // pred_fallthru
    _
  %v21 = vld [vmem:[%s0] sm:$0xf]
  %v22 = vld [vmem:[%s0 + $0x4] sm:$0xf]
  %v23 = vld [vmem:[%s0 + $0x8] sm:$0xf]
  %v24 = vld [vmem:[%s0 + $0xc] sm:$0xf]
  %v25 = vld [vmem:[%s0 + $0x10] sm:$0xf]
  %v26 = vld [vmem:[%s0 + $0x14] sm:$0xf]
  %v27 = vld [vmem:[%s0 + $0x18] sm:$0xf]
  %v28 = vld [vmem:[%s0 + $0x1c] sm:$0xf]
  %v29 = vld [vmem:[%s1] sm:$0xf]
  %v30 = vld [vmem:[%s1 + $0x4] sm:$0xf]
  %v31 = vld [vmem:[%s1 + $0x8] sm:$0xf]
  %v32 = vld [vmem:[%s1 + $0xc] sm:$0xf]
  %v33 = vld [vmem:[%s1 + $0x10] sm:$0xf]
  %v34 = vld [vmem:[%s1 + $0x14] sm:$0xf]
  %v35 = vld [vmem:[%s1 + $0x18] sm:$0x7]
  %v44 = vunpack.c.l.b16 %v21
  %v45 = vunpack.c.l.b16 %v22
  %v46 = vunpack.c.l.b16 %v23
  %v47 = vunpack.c.l.b16 %v24
  %v48 = vunpack.c.l.b16 %v25
  %v49 = vunpack.c.l.b16 %v26
  %v50 = vunpack.c.l.b16 %v27
  %v51 = vunpack.c.l.b16 %v28
  %v52 = vpack.c.b16 %v45, %v44
  %v53 = vpack.c.b16 %v47, %v46
  %v54 = vpack.c.b16 %v49, %v48
  %v55 = vpack.c.b16 %v51, %v50
  %v63 = vunpack.c.l.b16 %v29
  %v64 = vunpack.c.l.b16 %v30
  %v65 = vunpack.c.l.b16 %v31
  %v66 = vunpack.c.l.b16 %v32
  %v67 = vunpack.c.l.b16 %v33
  %v68 = vunpack.c.l.b16 %v34
  %v69 = vunpack.c.l.b16 %v35
  %v70 = vpack.c.b16 %v64, %v63
  %v71 = vpack.c.b16 %v66, %v65
  %v72 = vpack.c.b16 %v68, %v67
  %v73 = vpack.c.b16 %v69, %v69
  %vm77 = vcmask 441344
  %v79 = vsel %vm77, %v52, 0
  %v82 = vsel %vm77, %v53, 0
  %v85 = vsel %vm77, %v54, 0
  %v88 = vsel %vm77, %v55, 0
  %vm90 = vcmask 1042432
  %v92 = vsel %vm90, %v73, 0
  %94 = vmatprep.subr.bf16.mxu0 0
  %95 = vmatpush1.bf16.msra.mxu0 0
  %96 = vmatprep.subr.bf16.mxu0 0
  %97 = vmatpush1.bf16.msra.mxu0 0
  %98 = vmatprep.subr.bf16.mxu0 0
  %99 = vmatpush1.bf16.msra.mxu0 0
  %100 = vmatprep.subr.bf16.mxu0 0
  %101 = vmatpush1.bf16.msra.mxu0 0
  %102 = vmatprep.subr.bf16.mxu0 0
  %103 = vmatpush1.bf16.msra.mxu0 %v92
  %104 = vmatprep.subr.bf16.mxu0 0
  %105 = vmatpush1.bf16.msra.mxu0 %v72
  %106 = vmatprep.subr.bf16.mxu0 0
  %107 = vmatpush1.bf16.msra.mxu0 %v71
  %108 = vmatprep.subr.bf16.mxu0 0
  %109 = vmatpush1.bf16.msra.mxu0 %v70
  %110 = vmatprep.subr.bf16.mxu0 0
  %111 = vmatpush2.bf16.msra.mxu0 0
  %112 = vmatprep.subr.bf16.mxu0 0
  %113 = vmatpush2.bf16.msra.mxu0 0
  %114 = vmatprep.subr.bf16.mxu0 0
  %115 = vmatpush2.bf16.msra.mxu0 0
  %116 = vmatprep.subr.bf16.mxu0 0
  %117 = vmatpush2.bf16.msra.mxu0 0
  %118 = vmatprep.subr.bf16.mxu0 0
  %119 = vmatpush2.bf16.msra.mxu0 0
  %120 = vmatprep.subr.bf16.mxu0 0
  %121 = vmatpush2.bf16.msra.mxu0 0
  %122 = vmatprep.subr.bf16.mxu0 0
  %123 = vmatpush2.bf16.msra.mxu0 0
  %124 = vmatprep.subr.bf16.mxu0 0
  %125 = vmatpush2.bf16.msra.mxu0 0
  %126 = vmatprep.mubr.bf16.mxu0 0
  %127 = vmatmul.mubr.bf16.gmra.mxu0 %v79
  %v128 = vpop.f32.mrf.mxu0
  %v129 = vadd.f32 0.0, %v128
  %v130 = vpop.f32.mrf.mxu0
  %v131 = vpop.f32.mrf.mxu0
  %v132 = vadd.f32 0.0, %v131
  %v133 = vpop.f32.mrf.mxu0
  %134 = vmatprep.mubr.bf16.mxu0 0
  %135 = vmatmul.mubr.bf16.gmra.mxu0 %v82
  %v136 = vpop.f32.mrf.mxu0
  %v137 = vadd.f32 0.0, %v136
  %v138 = vpop.f32.mrf.mxu0
  %v139 = vpop.f32.mrf.mxu0
  %v140 = vadd.f32 0.0, %v139
  %v141 = vpop.f32.mrf.mxu0
  %142 = vmatprep.mubr.bf16.mxu0 0
  %143 = vmatmul.mubr.bf16.gmra.mxu0 %v85
  %v144 = vpop.f32.mrf.mxu0
  %v145 = vadd.f32 0.0, %v144
  %v146 = vpop.f32.mrf.mxu0
  %v147 = vpop.f32.mrf.mxu0
  %v148 = vadd.f32 0.0, %v147
  %v149 = vpop.f32.mrf.mxu0
  %150 = vmatprep.mubr.bf16.mxu0 0
  %151 = vmatmul.mubr.bf16.gmra.mxu0 %v88
  %v152 = vpop.f32.mrf.mxu0
  %v153 = vadd.f32 0.0, %v152
  %v154 = vpop.f32.mrf.mxu0
  %v155 = vpop.f32.mrf.mxu0
  %v156 = vadd.f32 0.0, %v155
  %v157 = vpop.f32.mrf.mxu0
  %158 = vdwg.mxu0
  %v159 = vadd.f32 %v129, %v132
  %v160 = vadd.f32 %v159, %v137
  %v161 = vadd.f32 %v160, %v140
  %v162 = vadd.f32 %v161, %v145
  %v163 = vadd.f32 %v162, %v148
  %v164 = vadd.f32 %v163, %v153
  %v165 = vadd.f32 %v164, %v156
  %v166 = vrot.slane %v165, 4
  %v167 = vadd.f32 %v165, %v166
  %v168 = vrot.slane %v167, 2
  %v169 = vadd.f32 %v167, %v168
  %v170 = vrot.slane %v169, 1
  %v171 = vadd.f32 %v169, %v170
  %v172 = vmul.f32 %v171, 0.015625
  %v173 = vmul.f32 %v129, %v129
  %v174 = vmul.f32 %v132, %v132
  %v175 = vmul.f32 %v137, %v137
  %v176 = vmul.f32 %v140, %v140
  %v177 = vmul.f32 %v145, %v145
  %v178 = vmul.f32 %v148, %v148
  %v179 = vmul.f32 %v153, %v153
  %v180 = vmul.f32 %v156, %v156
  %v181 = vadd.f32 %v173, %v174
  %v182 = vadd.f32 %v181, %v175
  %v183 = vadd.f32 %v182, %v176
  %v184 = vadd.f32 %v183, %v177
  %v185 = vadd.f32 %v184, %v178
  %v186 = vadd.f32 %v185, %v179
  %v187 = vadd.f32 %v186, %v180
  %v188 = vrot.slane %v187, 4
  %v189 = vadd.f32 %v187, %v188
  %v190 = vrot.slane %v189, 2
  %v191 = vadd.f32 %v189, %v190
  %v192 = vrot.slane %v191, 1
  %v193 = vadd.f32 %v191, %v192
  %v194 = vmul.f32 %v193, 0.015625
  %v195 = vmul.f32 %v172, %v172
  %v196 = vsub.f32 %v194, %v195
  %v197 = vmax.f32 %v196, 0.0
  %v198 = vadd.f32 %v197, 1e-05
  %v199 = vrsqrt.pop %v198
  %v200 = vsub.f32 %v129, %v172
  %v201 = vsub.f32 %v132, %v172
  %v202 = vsub.f32 %v137, %v172
  %v203 = vsub.f32 %v140, %v172
  %v204 = vsub.f32 %v145, %v172
  %v205 = vsub.f32 %v148, %v172
  %v206 = vsub.f32 %v153, %v172
  %v207 = vsub.f32 %v156, %v172
  %v208 = vld [vmem:[%s2] sm:$0x1]
  %v209 = vmul.f32 %v199, %v208
  %v210 = vlaneseq
  %v211 = vshrl.u32 %v210, 7
  %v212 = vsub.s32 0, %v211
  %v213 = vrot.slane %v209, %v212
  %v214 = vmul.f32 %v200, %v213
  %v215 = vmul.f32 %v201, %v213
  %v216 = vmul.f32 %v202, %v213
  %v217 = vmul.f32 %v203, %v213
  %v218 = vmul.f32 %v204, %v213
  %v219 = vmul.f32 %v205, %v213
  %v220 = vmul.f32 %v206, %v213
  %v221 = vmul.f32 %v207, %v213
  %v222 = vld [vmem:[%s3] sm:$0x1]
  %v224 = vlaneseq
  %v225 = vshrl.u32 %v224, 7
  %v226 = vsub.s32 0, %v225
  %v227 = vrot.slane %v222, %v226
  %v229 = vadd.f32 %v214, %v227
  %v230 = vadd.f32 %v215, %v227
  %v231 = vadd.f32 %v216, %v227
  %v232 = vadd.f32 %v217, %v227
  %v233 = vadd.f32 %v218, %v227
  %v234 = vadd.f32 %v219, %v227
  %v235 = vadd.f32 %v220, %v227
  %v236 = vadd.f32 %v221, %v227
  %v237 = vld [vmem:[%s4] sm:$0xf]
  %v238 = vld [vmem:[%s4 + $0x4] sm:$0xf]
  %v239 = vld [vmem:[%s4 + $0x8] sm:$0xf]
  %v240 = vld [vmem:[%s4 + $0xc] sm:$0xf]
  %v241 = vld [vmem:[%s4 + $0x10] sm:$0xf]
  %v242 = vld [vmem:[%s4 + $0x14] sm:$0xf]
  %v243 = vld [vmem:[%s4 + $0x18] sm:$0xf]
  %v244 = vld [vmem:[%s4 + $0x1c] sm:$0xf]
  %v245 = vunpack.c.l.bf16 %v237
  %v246 = vunpack.c.l.bf16 %v238
  %v247 = vunpack.c.l.bf16 %v239
  %v248 = vunpack.c.l.bf16 %v240
  %v249 = vunpack.c.l.bf16 %v241
  %v250 = vunpack.c.l.bf16 %v242
  %v251 = vunpack.c.l.bf16 %v243
  %v252 = vunpack.c.l.bf16 %v244
  %v253 = vadd.f32 %v229, %v245
  %v254 = vadd.f32 %v230, %v246
  %v255 = vadd.f32 %v231, %v247
  %v256 = vadd.f32 %v232, %v248
  %v257 = vadd.f32 %v233, %v249
  %v258 = vadd.f32 %v234, %v250
  %v259 = vadd.f32 %v235, %v251
  %v260 = vadd.f32 %v236, %v252
  %v261 = vmax.f32 %v253, 0.0
  %v262 = vmax.f32 %v254, 0.0
  %v263 = vmax.f32 %v255, 0.0
  %v264 = vmax.f32 %v256, 0.0
  %v265 = vmax.f32 %v257, 0.0
  %v266 = vmax.f32 %v258, 0.0
  %v267 = vmax.f32 %v259, 0.0
  %v268 = vmax.f32 %v260, 0.0
  %v269 = vpack.c.bf16 %v262, %v261
  %v270 = vpack.c.bf16 %v264, %v263
  %v271 = vpack.c.bf16 %v266, %v265
  %v272 = vpack.c.bf16 %v268, %v267
  %v277 = vunpack.c.l.b16 %v269
  %v278 = vunpack.c.h.b16 %v269
  %v279 = vunpack.c.l.b16 %v270
  %v280 = vunpack.c.h.b16 %v270
  %v281 = vunpack.c.l.b16 %v271
  %v282 = vunpack.c.h.b16 %v271
  %v283 = vunpack.c.l.b16 %v272
  %v284 = vunpack.c.h.b16 %v272
  %v285 = vpack.c.b16 %v277, %v277
  %v286 = vpack.c.b16 %v278, %v278
  %v287 = vpack.c.b16 %v279, %v279
  %v288 = vpack.c.b16 %v280, %v280
  %v289 = vpack.c.b16 %v281, %v281
  %v290 = vpack.c.b16 %v282, %v282
  %v291 = vpack.c.b16 %v283, %v283
  %v292 = vpack.c.b16 %v284, %v284
  %301 = vst [vmem:[%s5] sm:$0xf] %v285
  %302 = vst [vmem:[%s5 + $0x4] sm:$0xf] %v286
  %303 = vst [vmem:[%s5 + $0x8] sm:$0xf] %v287
  %304 = vst [vmem:[%s5 + $0xc] sm:$0xf] %v288
  %305 = vst [vmem:[%s5 + $0x10] sm:$0xf] %v289
  %306 = vst [vmem:[%s5 + $0x14] sm:$0xf] %v290
  %307 = vst [vmem:[%s5 + $0x18] sm:$0xf] %v291
  %308 = vst [vmem:[%s5 + $0x1c] sm:$0xf] %v292
  // Predicated region
  $region22: #{_lambda_.28} parent=0 // pred_check
    _
  $region23: #{_lambda_.28} parent=0 // pred_check_branch
    %310 = sbr.rel (0) target = $region25
  $region24: #{_lambda_.28} parent=0 // pred_region
    _
  $region25: #{_lambda_.28} parent=0 // pred_fallthru
    _
  // Predicated region
  $region26: #{_lambda_.28} parent=0 // pred_check
    _
  $region27: #{_lambda_.28} parent=0 // pred_check_branch
    %312 = sbr.rel (0) target = $region29
  $region28: #{_lambda_.28} parent=0 // pred_region
    _
  $region29: #{_lambda_.28} parent=0 // pred_fallthru
    _

// kernel: _lambda_.29
$region0: #{_lambda_.29}
  #allocation0 [shape = 'u32[]', space=smem, size = 0x4, offset = 0x4, fixed_abs, tag = 'smem constant byte address 0x4 - core index']
  #allocation1 [shape = 'u32[144,128]{1,0:T(1,128)}', space=vmem, size = 0x12000, scoped, tag = 'internal scratch']
  %s0 = inlined_call_operand.vmem [shape: bf16[16,72], index: 0, kind: input, shape index: {}]
  %s1 = inlined_call_operand.vmem [shape: bf16[72,128], index: 1, kind: input, shape index: {}]
  %s2 = inlined_call_operand.vmem [shape: f32[1,128], index: 2, kind: input, shape index: {}]
  %s3 = inlined_call_operand.vmem [shape: f32[1,128], index: 3, kind: input, shape index: {}]
  %s4 = inlined_call_operand.vmem [shape: bf16[16,128], index: 4, kind: output, shape index: {}]
  %s5 = sld [smem:[#allocation0]]
  $region26: #{_lambda_.29} parent=0
    _
  %s7 = ssub.s32 1, %s5
  %s8 = scalar_select 0, %s7, %s5
  // Predicated region
  $region2: #{_lambda_.29} parent=0 // pred_check
    _
  $region3: #{_lambda_.29} parent=0 // pred_check_branch
    %10 = sbr.rel (0) target = $region5
  $region4: #{_lambda_.29} parent=0 // pred_region
    _
  $region5: #{_lambda_.29} parent=0 // pred_fallthru
    _
  // Predicated region
  $region6: #{_lambda_.29} parent=0 // pred_check
    _
  $region7: #{_lambda_.29} parent=0 // pred_check_branch
    %12 = sbr.rel (0) target = $region9
  $region8: #{_lambda_.29} parent=0 // pred_region
    _
  $region9: #{_lambda_.29} parent=0 // pred_fallthru
    _
  // Predicated region
  $region10: #{_lambda_.29} parent=0 // pred_check
    _
  $region11: #{_lambda_.29} parent=0 // pred_check_branch
    %14 = sbr.rel (0) target = $region13
  $region12: #{_lambda_.29} parent=0 // pred_region
    _
  $region13: #{_lambda_.29} parent=0 // pred_fallthru
    _
  // Predicated region
  $region14: #{_lambda_.29} parent=0 // pred_check
    _
  $region15: #{_lambda_.29} parent=0 // pred_check_branch
    %16 = sbr.rel (0) target = $region17
  $region16: #{_lambda_.29} parent=0 // pred_region
    _
  $region17: #{_lambda_.29} parent=0 // pred_fallthru
    _
  %v18 = vld [vmem:[%s0] sm:$0xf]
  %v19 = vld [vmem:[%s0 + $0x4] sm:$0xf]
  %v20 = vld [vmem:[%s1] sm:$0xf]
  %v21 = vld [vmem:[%s1 + $0x4] sm:$0xf]
  %v22 = vld [vmem:[%s1 + $0x8] sm:$0xf]
  %v23 = vld [vmem:[%s1 + $0xc] sm:$0xf]
  %v24 = vld [vmem:[%s1 + $0x10] sm:$0xf]
  %v25 = vld [vmem:[%s1 + $0x14] sm:$0xf]
  %v26 = vld [vmem:[%s1 + $0x18] sm:$0xf]
  %v27 = vld [vmem:[%s1 + $0x1c] sm:$0xf]
  %v28 = vld [vmem:[%s1 + $0x20] sm:$0xf]
  %v31 = vunpack.c.l.b16 %v18
  %v32 = vunpack.c.l.b16 %v19
  %v33 = vpack.c.b16 %v32, %v31
  %v43 = vunpack.c.l.b16 %v20
  %v44 = vunpack.c.l.b16 %v21
  %v45 = vunpack.c.l.b16 %v22
  %v46 = vunpack.c.l.b16 %v23
  %v47 = vunpack.c.l.b16 %v24
  %v48 = vunpack.c.l.b16 %v25
  %v49 = vunpack.c.l.b16 %v26
  %v50 = vunpack.c.l.b16 %v27
  %v51 = vunpack.c.l.b16 %v28
  %v52 = vpack.c.b16 %v44, %v43
  %v53 = vpack.c.b16 %v46, %v45
  %v54 = vpack.c.b16 %v48, %v47
  %v55 = vpack.c.b16 %v50, %v49
  %v56 = vpack.c.b16 %v51, %v51
  %vm61 = vcmask 588800
  %v63 = vsel %vm61, %v33, 0
  %vm65 = vcmask 1043456
  %v67 = vsel %vm65, %v56, 0
  %69 = vmatprep.subr.bf16.mxu0 0
  %70 = vmatpush1.bf16.msra.mxu0 0
  %71 = vmatprep.subr.bf16.mxu0 0
  %72 = vmatpush1.bf16.msra.mxu0 0
  %73 = vmatprep.subr.bf16.mxu0 0
  %74 = vmatpush1.bf16.msra.mxu0 0
  %75 = vmatprep.subr.bf16.mxu0 0
  %76 = vmatpush1.bf16.msra.mxu0 %v67
  %77 = vmatprep.subr.bf16.mxu0 0
  %78 = vmatpush1.bf16.msra.mxu0 %v55
  %79 = vmatprep.subr.bf16.mxu0 0
  %80 = vmatpush1.bf16.msra.mxu0 %v54
  %81 = vmatprep.subr.bf16.mxu0 0
  %82 = vmatpush1.bf16.msra.mxu0 %v53
  %83 = vmatprep.subr.bf16.mxu0 0
  %84 = vmatpush1.bf16.msra.mxu0 %v52
  %85 = vmatprep.subr.bf16.mxu0 0
  %86 = vmatpush2.bf16.msra.mxu0 0
  %87 = vmatprep.subr.bf16.mxu0 0
  %88 = vmatpush2.bf16.msra.mxu0 0
  %89 = vmatprep.subr.bf16.mxu0 0
  %90 = vmatpush2.bf16.msra.mxu0 0
  %91 = vmatprep.subr.bf16.mxu0 0
  %92 = vmatpush2.bf16.msra.mxu0 0
  %93 = vmatprep.subr.bf16.mxu0 0
  %94 = vmatpush2.bf16.msra.mxu0 0
  %95 = vmatprep.subr.bf16.mxu0 0
  %96 = vmatpush2.bf16.msra.mxu0 0
  %97 = vmatprep.subr.bf16.mxu0 0
  %98 = vmatpush2.bf16.msra.mxu0 0
  %99 = vmatprep.subr.bf16.mxu0 0
  %100 = vmatpush2.bf16.msra.mxu0 0
  %101 = vmatprep.mubr.bf16.mxu0 0
  %102 = vmatmul.mubr.bf16.gmra.mxu0 %v63
  %v103 = vpop.f32.mrf.mxu0
  %v104 = vadd.f32 0.0, %v103
  %v105 = vpop.f32.mrf.mxu0
  %v106 = vpop.f32.mrf.mxu0
  %v107 = vadd.f32 0.0, %v106
  %v108 = vpop.f32.mrf.mxu0
  %109 = vdwg.mxu0
  %v110 = vadd.f32 %v104, %v107
  %v111 = vrot.slane %v110, 4
  %v112 = vadd.f32 %v110, %v111
  %v113 = vrot.slane %v112, 2
  %v114 = vadd.f32 %v112, %v113
  %v115 = vrot.slane %v114, 1
  %v116 = vadd.f32 %v114, %v115
  %v117 = vmul.f32 %v116, 0.0625
  %v118 = vmul.f32 %v104, %v104
  %v119 = vmul.f32 %v107, %v107
  %v120 = vadd.f32 %v118, %v119
  %v121 = vrot.slane %v120, 4
  %v122 = vadd.f32 %v120, %v121
  %v123 = vrot.slane %v122, 2
  %v124 = vadd.f32 %v122, %v123
  %v125 = vrot.slane %v124, 1
  %v126 = vadd.f32 %v124, %v125
  %v127 = vmul.f32 %v126, 0.0625
  %v128 = vmul.f32 %v117, %v117
  %v129 = vsub.f32 %v127, %v128
  %v130 = vmax.f32 %v129, 0.0
  %v131 = vadd.f32 %v130, 1e-05
  %v132 = vrsqrt.pop %v131
  %v133 = vsub.f32 %v104, %v117
  %v134 = vsub.f32 %v107, %v117
  %v135 = vld [vmem:[%s2] sm:$0x1]
  %v136 = vmul.f32 %v132, %v135
  %v137 = vlaneseq
  %v138 = vshrl.u32 %v137, 7
  %v139 = vsub.s32 0, %v138
  %v140 = vrot.slane %v136, %v139
  %v141 = vmul.f32 %v133, %v140
  %v142 = vmul.f32 %v134, %v140
  %v143 = vld [vmem:[%s3] sm:$0x1]
  %v145 = vlaneseq
  %v146 = vshrl.u32 %v145, 7
  %v147 = vsub.s32 0, %v146
  %v148 = vrot.slane %v143, %v147
  %v150 = vadd.f32 %v141, %v148
  %v151 = vadd.f32 %v142, %v148
  %v152 = vmax.f32 %v150, 0.0
  %v153 = vmax.f32 %v151, 0.0
  %v154 = vpack.c.bf16 %v153, %v152
  %v156 = vunpack.c.l.b16 %v154
  %v157 = vunpack.c.h.b16 %v154
  %v158 = vpack.c.b16 %v156, %v156
  %v159 = vpack.c.b16 %v157, %v157
  %162 = vst [vmem:[%s4] sm:$0xf] %v158
  %163 = vst [vmem:[%s4 + $0x4] sm:$0xf] %v159
  // Predicated region
  $region18: #{_lambda_.29} parent=0 // pred_check
    _
  $region19: #{_lambda_.29} parent=0 // pred_check_branch
    %165 = sbr.rel (0) target = $region21
  $region20: #{_lambda_.29} parent=0 // pred_region
    _
  $region21: #{_lambda_.29} parent=0 // pred_fallthru
    _
  // Predicated region
  $region22: #{_lambda_.29} parent=0 // pred_check
    _
  $region23: #{_lambda_.29} parent=0 // pred_check_branch
    %167 = sbr.rel (0) target = $region25
  $region24: #{_lambda_.29} parent=0 // pred_region
    _
  $region25: #{_lambda_.29} parent=0 // pred_fallthru
    _

// kernel: _lambda_.30
$region0: #{_lambda_.30}
  #allocation0 [shape = 'u32[]', space=smem, size = 0x4, offset = 0x4, fixed_abs, tag = 'smem constant byte address 0x4 - core index']
  #allocation1 [shape = 'u32[144,128]{1,0:T(1,128)}', space=vmem, size = 0x12000, scoped, tag = 'internal scratch']
  %s0 = inlined_call_operand.vmem [shape: bf16[16,84], index: 0, kind: input, shape index: {}]
  %s1 = inlined_call_operand.vmem [shape: bf16[84,128], index: 1, kind: input, shape index: {}]
  %s2 = inlined_call_operand.vmem [shape: f32[1,128], index: 2, kind: input, shape index: {}]
  %s3 = inlined_call_operand.vmem [shape: f32[1,128], index: 3, kind: input, shape index: {}]
  %s4 = inlined_call_operand.vmem [shape: bf16[16,128], index: 4, kind: output, shape index: {}]
  %s5 = sld [smem:[#allocation0]]
  $region26: #{_lambda_.30} parent=0
    _
  %s7 = ssub.s32 1, %s5
  %s8 = scalar_select 0, %s7, %s5
  // Predicated region
  $region2: #{_lambda_.30} parent=0 // pred_check
    _
  $region3: #{_lambda_.30} parent=0 // pred_check_branch
    %10 = sbr.rel (0) target = $region5
  $region4: #{_lambda_.30} parent=0 // pred_region
    _
  $region5: #{_lambda_.30} parent=0 // pred_fallthru
    _
  // Predicated region
  $region6: #{_lambda_.30} parent=0 // pred_check
    _
  $region7: #{_lambda_.30} parent=0 // pred_check_branch
    %12 = sbr.rel (0) target = $region9
  $region8: #{_lambda_.30} parent=0 // pred_region
    _
  $region9: #{_lambda_.30} parent=0 // pred_fallthru
    _
  // Predicated region
  $region10: #{_lambda_.30} parent=0 // pred_check
    _
  $region11: #{_lambda_.30} parent=0 // pred_check_branch
    %14 = sbr.rel (0) target = $region13
  $region12: #{_lambda_.30} parent=0 // pred_region
    _
  $region13: #{_lambda_.30} parent=0 // pred_fallthru
    _
  // Predicated region
  $region14: #{_lambda_.30} parent=0 // pred_check
    _
  $region15: #{_lambda_.30} parent=0 // pred_check_branch
    %16 = sbr.rel (0) target = $region17
  $region16: #{_lambda_.30} parent=0 // pred_region
    _
  $region17: #{_lambda_.30} parent=0 // pred_fallthru
    _
  %v18 = vld [vmem:[%s0] sm:$0xf]
  %v19 = vld [vmem:[%s0 + $0x4] sm:$0xf]
  %v20 = vld [vmem:[%s1] sm:$0xf]
  %v21 = vld [vmem:[%s1 + $0x4] sm:$0xf]
  %v22 = vld [vmem:[%s1 + $0x8] sm:$0xf]
  %v23 = vld [vmem:[%s1 + $0xc] sm:$0xf]
  %v24 = vld [vmem:[%s1 + $0x10] sm:$0xf]
  %v25 = vld [vmem:[%s1 + $0x14] sm:$0xf]
  %v26 = vld [vmem:[%s1 + $0x18] sm:$0xf]
  %v27 = vld [vmem:[%s1 + $0x1c] sm:$0xf]
  %v28 = vld [vmem:[%s1 + $0x20] sm:$0xf]
  %v29 = vld [vmem:[%s1 + $0x24] sm:$0xf]
  %v30 = vld [vmem:[%s1 + $0x28] sm:$0x3]
  %v33 = vunpack.c.l.b16 %v18
  %v34 = vunpack.c.l.b16 %v19
  %v35 = vpack.c.b16 %v34, %v33
  %v47 = vunpack.c.l.b16 %v20
  %v48 = vunpack.c.l.b16 %v21
  %v49 = vunpack.c.l.b16 %v22
  %v50 = vunpack.c.l.b16 %v23
  %v51 = vunpack.c.l.b16 %v24
  %v52 = vunpack.c.l.b16 %v25
  %v53 = vunpack.c.l.b16 %v26
  %v54 = vunpack.c.l.b16 %v27
  %v55 = vunpack.c.l.b16 %v28
  %v56 = vunpack.c.l.b16 %v29
  %v57 = vunpack.c.l.b16 %v30
  %v58 = vpack.c.b16 %v48, %v47
  %v59 = vpack.c.b16 %v50, %v49
  %v60 = vpack.c.b16 %v52, %v51
  %v61 = vpack.c.b16 %v54, %v53
  %v62 = vpack.c.b16 %v56, %v55
  %v63 = vpack.c.b16 %v57, %v57
  %vm69 = vcmask 687104
  %v71 = vsel %vm69, %v35, 0
  %vm73 = vcmask 1041408
  %v75 = vsel %vm73, %v63, 0
  %77 = vmatprep.subr.bf16.mxu0 0
  %78 = vmatpush1.bf16.msra.mxu0 0
  %79 = vmatprep.subr.bf16.mxu0 0
  %80 = vmatpush1.bf16.msra.mxu0 0
  %81 = vmatprep.subr.bf16.mxu0 0
  %82 = vmatpush1.bf16.msra.mxu0 %v75
  %83 = vmatprep.subr.bf16.mxu0 0
  %84 = vmatpush1.bf16.msra.mxu0 %v62
  %85 = vmatprep.subr.bf16.mxu0 0
  %86 = vmatpush1.bf16.msra.mxu0 %v61
  %87 = vmatprep.subr.bf16.mxu0 0
  %88 = vmatpush1.bf16.msra.mxu0 %v60
  %89 = vmatprep.subr.bf16.mxu0 0
  %90 = vmatpush1.bf16.msra.mxu0 %v59
  %91 = vmatprep.subr.bf16.mxu0 0
  %92 = vmatpush1.bf16.msra.mxu0 %v58
  %93 = vmatprep.subr.bf16.mxu0 0
  %94 = vmatpush2.bf16.msra.mxu0 0
  %95 = vmatprep.subr.bf16.mxu0 0
  %96 = vmatpush2.bf16.msra.mxu0 0
  %97 = vmatprep.subr.bf16.mxu0 0
  %98 = vmatpush2.bf16.msra.mxu0 0
  %99 = vmatprep.subr.bf16.mxu0 0
  %100 = vmatpush2.bf16.msra.mxu0 0
  %101 = vmatprep.subr.bf16.mxu0 0
  %102 = vmatpush2.bf16.msra.mxu0 0
  %103 = vmatprep.subr.bf16.mxu0 0
  %104 = vmatpush2.bf16.msra.mxu0 0
  %105 = vmatprep.subr.bf16.mxu0 0
  %106 = vmatpush2.bf16.msra.mxu0 0
  %107 = vmatprep.subr.bf16.mxu0 0
  %108 = vmatpush2.bf16.msra.mxu0 0
  %109 = vmatprep.mubr.bf16.mxu0 0
  %110 = vmatmul.mubr.bf16.gmra.mxu0 %v71
  %v111 = vpop.f32.mrf.mxu0
  %v112 = vadd.f32 0.0, %v111
  %v113 = vpop.f32.mrf.mxu0
  %v114 = vpop.f32.mrf.mxu0
  %v115 = vadd.f32 0.0, %v114
  %v116 = vpop.f32.mrf.mxu0
  %117 = vdwg.mxu0
  %v118 = vadd.f32 %v112, %v115
  %v119 = vrot.slane %v118, 4
  %v120 = vadd.f32 %v118, %v119
  %v121 = vrot.slane %v120, 2
  %v122 = vadd.f32 %v120, %v121
  %v123 = vrot.slane %v122, 1
  %v124 = vadd.f32 %v122, %v123
  %v125 = vmul.f32 %v124, 0.125
  %v126 = vmul.f32 %v112, %v112
  %v127 = vmul.f32 %v115, %v115
  %v128 = vadd.f32 %v126, %v127
  %v129 = vrot.slane %v128, 4
  %v130 = vadd.f32 %v128, %v129
  %v131 = vrot.slane %v130, 2
  %v132 = vadd.f32 %v130, %v131
  %v133 = vrot.slane %v132, 1
  %v134 = vadd.f32 %v132, %v133
  %v135 = vmul.f32 %v134, 0.125
  %v136 = vmul.f32 %v125, %v125
  %v137 = vsub.f32 %v135, %v136
  %v138 = vmax.f32 %v137, 0.0
  %v139 = vadd.f32 %v138, 1e-05
  %v140 = vrsqrt.pop %v139
  %v141 = vsub.f32 %v112, %v125
  %v142 = vsub.f32 %v115, %v125
  %v143 = vld [vmem:[%s2] sm:$0x1]
  %v144 = vmul.f32 %v140, %v143
  %v145 = vlaneseq
  %v146 = vshrl.u32 %v145, 7
  %v147 = vsub.s32 0, %v146
  %v148 = vrot.slane %v144, %v147
  %v149 = vmul.f32 %v141, %v148
  %v150 = vmul.f32 %v142, %v148
  %v151 = vld [vmem:[%s3] sm:$0x1]
  %v153 = vlaneseq
  %v154 = vshrl.u32 %v153, 7
  %v155 = vsub.s32 0, %v154
  %v156 = vrot.slane %v151, %v155
  %v158 = vadd.f32 %v149, %v156
  %v159 = vadd.f32 %v150, %v156
  %v160 = vmax.f32 %v158, 0.0
  %v161 = vmax.f32 %v159, 0.0
  %v162 = vpack.c.bf16 %v161, %v160
  %v164 = vunpack.c.l.b16 %v162
  %v165 = vunpack.c.h.b16 %v162
  %v166 = vpack.c.b16 %v164, %v164
  %v167 = vpack.c.b16 %v165, %v165
  %170 = vst [vmem:[%s4] sm:$0xf] %v166
  %171 = vst [vmem:[%s4 + $0x4] sm:$0xf] %v167
  // Predicated region
  $region18: #{_lambda_.30} parent=0 // pred_check
    _
  $region19: #{_lambda_.30} parent=0 // pred_check_branch
    %173 = sbr.rel (0) target = $region21
  $region20: #{_lambda_.30} parent=0 // pred_region
    _
  $region21: #{_lambda_.30} parent=0 // pred_fallthru
    _
  // Predicated region
  $region22: #{_lambda_.30} parent=0 // pred_check
    _
  $region23: #{_lambda_.30} parent=0 // pred_check_branch
    %175 = sbr.rel (0) target = $region25
  $region24: #{_lambda_.30} parent=0 // pred_region
    _
  $region25: #{_lambda_.30} parent=0 // pred_fallthru
    _

// kernel: _lambda_.31
$region0: #{_lambda_.31}
  #allocation0 [shape = 'u32[]', space=smem, size = 0x4, offset = 0x4, fixed_abs, tag = 'smem constant byte address 0x4 - core index']
  #allocation1 [shape = 'u32[144,128]{1,0:T(1,128)}', space=vmem, size = 0x12000, scoped, tag = 'internal scratch']
  %s0 = inlined_call_operand.vmem [shape: bf16[16,144], index: 0, kind: input, shape index: {}]
  %s1 = inlined_call_operand.vmem [shape: bf16[144,128], index: 1, kind: input, shape index: {}]
  %s2 = inlined_call_operand.vmem [shape: f32[1,128], index: 2, kind: input, shape index: {}]
  %s3 = inlined_call_operand.vmem [shape: f32[1,128], index: 3, kind: input, shape index: {}]
  %s4 = inlined_call_operand.vmem [shape: bf16[16,128], index: 4, kind: output, shape index: {}]
  %s5 = sld [smem:[#allocation0]]
  $region26: #{_lambda_.31} parent=0
    _
  %s7 = ssub.s32 1, %s5
  %s8 = scalar_select 0, %s7, %s5
  // Predicated region
  $region2: #{_lambda_.31} parent=0 // pred_check
    _
  $region3: #{_lambda_.31} parent=0 // pred_check_branch
    %10 = sbr.rel (0) target = $region5
  $region4: #{_lambda_.31} parent=0 // pred_region
    _
  $region5: #{_lambda_.31} parent=0 // pred_fallthru
    _
  // Predicated region
  $region6: #{_lambda_.31} parent=0 // pred_check
    _
  $region7: #{_lambda_.31} parent=0 // pred_check_branch
    %12 = sbr.rel (0) target = $region9
  $region8: #{_lambda_.31} parent=0 // pred_region
    _
  $region9: #{_lambda_.31} parent=0 // pred_fallthru
    _
  // Predicated region
  $region10: #{_lambda_.31} parent=0 // pred_check
    _
  $region11: #{_lambda_.31} parent=0 // pred_check_branch
    %14 = sbr.rel (0) target = $region13
  $region12: #{_lambda_.31} parent=0 // pred_region
    _
  $region13: #{_lambda_.31} parent=0 // pred_fallthru
    _
  // Predicated region
  $region14: #{_lambda_.31} parent=0 // pred_check
    _
  $region15: #{_lambda_.31} parent=0 // pred_check_branch
    %16 = sbr.rel (0) target = $region17
  $region16: #{_lambda_.31} parent=0 // pred_region
    _
  $region17: #{_lambda_.31} parent=0 // pred_fallthru
    _
  %v18 = vld [vmem:[%s0] sm:$0xff]
  %v19 = vld [vmem:[%s0 + $0x8] sm:$0xff]
  %v20 = vld [vmem:[%s1] sm:$0xf]
  %v21 = vld [vmem:[%s1 + $0x4] sm:$0xf]
  %v22 = vld [vmem:[%s1 + $0x8] sm:$0xf]
  %v23 = vld [vmem:[%s1 + $0xc] sm:$0xf]
  %v24 = vld [vmem:[%s1 + $0x10] sm:$0xf]
  %v25 = vld [vmem:[%s1 + $0x14] sm:$0xf]
  %v26 = vld [vmem:[%s1 + $0x18] sm:$0xf]
  %v27 = vld [vmem:[%s1 + $0x1c] sm:$0xf]
  %v28 = vld [vmem:[%s1 + $0x20] sm:$0xf]
  %v29 = vld [vmem:[%s1 + $0x24] sm:$0xf]
  %v30 = vld [vmem:[%s1 + $0x28] sm:$0xf]
  %v31 = vld [vmem:[%s1 + $0x2c] sm:$0xf]
  %v32 = vld [vmem:[%s1 + $0x30] sm:$0xf]
  %v33 = vld [vmem:[%s1 + $0x34] sm:$0xf]
  %v34 = vld [vmem:[%s1 + $0x38] sm:$0xf]
  %v35 = vld [vmem:[%s1 + $0x3c] sm:$0xf]
  %v36 = vld [vmem:[%s1 + $0x40] sm:$0xf]
  %v37 = vld [vmem:[%s1 + $0x44] sm:$0xf]
  %v40 = vunpack.c.l.b16 %v18
  %v41 = vunpack.c.h.b16 %v18
  %v42 = vunpack.c.l.b16 %v19
  %v43 = vunpack.c.h.b16 %v19
  %v44 = vpack.c.b16 %v42, %v40
  %v45 = vpack.c.b16 %v43, %v41
  %v65 = vunpack.c.l.b16 %v20
  %v66 = vunpack.c.l.b16 %v21
  %v67 = vunpack.c.l.b16 %v22
  %v68 = vunpack.c.l.b16 %v23
  %v69 = vunpack.c.l.b16 %v24
  %v70 = vunpack.c.l.b16 %v25
  %v71 = vunpack.c.l.b16 %v26
  %v72 = vunpack.c.l.b16 %v27
  %v73 = vunpack.c.l.b16 %v28
  %v74 = vunpack.c.l.b16 %v29
  %v75 = vunpack.c.l.b16 %v30
  %v76 = vunpack.c.l.b16 %v31
  %v77 = vunpack.c.l.b16 %v32
  %v78 = vunpack.c.l.b16 %v33
  %v79 = vunpack.c.l.b16 %v34
  %v80 = vunpack.c.l.b16 %v35
  %v81 = vunpack.c.l.b16 %v36
  %v82 = vunpack.c.l.b16 %v37
  %v83 = vpack.c.b16 %v66, %v65
  %v84 = vpack.c.b16 %v68, %v67
  %v85 = vpack.c.b16 %v70, %v69
  %v86 = vpack.c.b16 %v72, %v71
  %v87 = vpack.c.b16 %v74, %v73
  %v88 = vpack.c.b16 %v76, %v75
  %v89 = vpack.c.b16 %v78, %v77
  %v90 = vpack.c.b16 %v80, %v79
  %v91 = vpack.c.b16 %v82, %v81
  %vm101 = vcmask 130048
  %v103 = vsel %vm101, %v45, 0
  %105 = vmatprep.subr.bf16.mxu0 0
  %106 = vmatpush1.bf16.msra.mxu0 %v90
  %107 = vmatprep.subr.bf16.mxu0 0
  %108 = vmatpush1.bf16.msra.mxu0 %v89
  %109 = vmatprep.subr.bf16.mxu0 0
  %110 = vmatpush1.bf16.msra.mxu0 %v88
  %111 = vmatprep.subr.bf16.mxu0 0
  %112 = vmatpush1.bf16.msra.mxu0 %v87
  %113 = vmatprep.subr.bf16.mxu0 0
  %114 = vmatpush1.bf16.msra.mxu0 %v86
  %115 = vmatprep.subr.bf16.mxu0 0
  %116 = vmatpush1.bf16.msra.mxu0 %v85
  %117 = vmatprep.subr.bf16.mxu0 0
  %118 = vmatpush1.bf16.msra.mxu0 %v84
  %119 = vmatprep.subr.bf16.mxu0 0
  %120 = vmatpush1.bf16.msra.mxu0 %v83
  %121 = vmatprep.subr.bf16.mxu0 0
  %122 = vmatpush2.bf16.msra.mxu0 0
  %123 = vmatprep.subr.bf16.mxu0 0
  %124 = vmatpush2.bf16.msra.mxu0 0
  %125 = vmatprep.subr.bf16.mxu0 0
  %126 = vmatpush2.bf16.msra.mxu0 0
  %127 = vmatprep.subr.bf16.mxu0 0
  %128 = vmatpush2.bf16.msra.mxu0 0
  %129 = vmatprep.subr.bf16.mxu0 0
  %130 = vmatpush2.bf16.msra.mxu0 0
  %131 = vmatprep.subr.bf16.mxu0 0
  %132 = vmatpush2.bf16.msra.mxu0 0
  %133 = vmatprep.subr.bf16.mxu0 0
  %134 = vmatpush2.bf16.msra.mxu0 0
  %135 = vmatprep.subr.bf16.mxu0 0
  %136 = vmatpush2.bf16.msra.mxu0 %v91
  %137 = vmatprep.mubr.bf16.mxu0 %v103
  %138 = vmatmul.mubr.bf16.gmra.mxu0 %v44
  %v139 = vpop.f32.mrf.mxu0
  %v140 = vadd.f32 0.0, %v139
  %v141 = vpop.f32.mrf.mxu0
  %v142 = vpop.f32.mrf.mxu0
  %v143 = vadd.f32 0.0, %v142
  %v144 = vpop.f32.mrf.mxu0
  %145 = vdwg.mxu0
  %v146 = vadd.f32 %v140, %v143
  %v147 = vrot.slane %v146, 4
  %v148 = vadd.f32 %v146, %v147
  %v149 = vrot.slane %v148, 2
  %v150 = vadd.f32 %v148, %v149
  %v151 = vrot.slane %v150, 1
  %v152 = vadd.f32 %v150, %v151
  %v153 = vmul.f32 %v152, 0.125
  %v154 = vmul.f32 %v140, %v140
  %v155 = vmul.f32 %v143, %v143
  %v156 = vadd.f32 %v154, %v155
  %v157 = vrot.slane %v156, 4
  %v158 = vadd.f32 %v156, %v157
  %v159 = vrot.slane %v158, 2
  %v160 = vadd.f32 %v158, %v159
  %v161 = vrot.slane %v160, 1
  %v162 = vadd.f32 %v160, %v161
  %v163 = vmul.f32 %v162, 0.125
  %v164 = vmul.f32 %v153, %v153
  %v165 = vsub.f32 %v163, %v164
  %v166 = vmax.f32 %v165, 0.0
  %v167 = vadd.f32 %v166, 1e-05
  %v168 = vrsqrt.pop %v167
  %v169 = vsub.f32 %v140, %v153
  %v170 = vsub.f32 %v143, %v153
  %v171 = vld [vmem:[%s2] sm:$0x1]
  %v172 = vmul.f32 %v168, %v171
  %v173 = vlaneseq
  %v174 = vshrl.u32 %v173, 7
  %v175 = vsub.s32 0, %v174
  %v176 = vrot.slane %v172, %v175
  %v177 = vmul.f32 %v169, %v176
  %v178 = vmul.f32 %v170, %v176
  %v179 = vld [vmem:[%s3] sm:$0x1]
  %v181 = vlaneseq
  %v182 = vshrl.u32 %v181, 7
  %v183 = vsub.s32 0, %v182
  %v184 = vrot.slane %v179, %v183
  %v186 = vadd.f32 %v177, %v184
  %v187 = vadd.f32 %v178, %v184
  %v188 = vmax.f32 %v186, 0.0
  %v189 = vmax.f32 %v187, 0.0
  %v190 = vpack.c.bf16 %v189, %v188
  %v192 = vunpack.c.l.b16 %v190
  %v193 = vunpack.c.h.b16 %v190
  %v194 = vpack.c.b16 %v192, %v192
  %v195 = vpack.c.b16 %v193, %v193
  %198 = vst [vmem:[%s4] sm:$0xf] %v194
  %199 = vst [vmem:[%s4 + $0x4] sm:$0xf] %v195
  // Predicated region
  $region18: #{_lambda_.31} parent=0 // pred_check
    _
  $region19: #{_lambda_.31} parent=0 // pred_check_branch
    %201 = sbr.rel (0) target = $region21
  $region20: #{_lambda_.31} parent=0 // pred_region
    _
  $region21: #{_lambda_.31} parent=0 // pred_fallthru
    _
  // Predicated region
  $region22: #{_lambda_.31} parent=0 // pred_check
    _
  $region23: #{_lambda_.31} parent=0 // pred_check_branch
    %203 = sbr.rel (0) target = $region25
  $region24: #{_lambda_.31} parent=0 // pred_region
    _
  $region25: #{_lambda_.31} parent=0 // pred_fallthru
    _

// kernel: _lambda_.32
$region0: #{_lambda_.32}
  #allocation0 [shape = 'u32[]', space=smem, size = 0x4, offset = 0x4, fixed_abs, tag = 'smem constant byte address 0x4 - core index']
  #allocation1 [shape = 'u32[144,128]{1,0:T(1,128)}', space=vmem, size = 0x12000, scoped, tag = 'internal scratch']
  %s0 = inlined_call_operand.vmem [shape: bf16[16,108], index: 0, kind: input, shape index: {}]
  %s1 = inlined_call_operand.vmem [shape: bf16[108,128], index: 1, kind: input, shape index: {}]
  %s2 = inlined_call_operand.vmem [shape: f32[1,128], index: 2, kind: input, shape index: {}]
  %s3 = inlined_call_operand.vmem [shape: f32[1,128], index: 3, kind: input, shape index: {}]
  %s4 = inlined_call_operand.vmem [shape: bf16[16,128], index: 4, kind: input, shape index: {}]
  %s5 = inlined_call_operand.vmem [shape: bf16[16,128], index: 5, kind: output, shape index: {}]
  %s6 = sld [smem:[#allocation0]]
  $region30: #{_lambda_.32} parent=0
    _
  %s8 = ssub.s32 1, %s6
  %s9 = scalar_select 0, %s8, %s6
  // Predicated region
  $region2: #{_lambda_.32} parent=0 // pred_check
    _
  $region3: #{_lambda_.32} parent=0 // pred_check_branch
    %11 = sbr.rel (0) target = $region5
  $region4: #{_lambda_.32} parent=0 // pred_region
    _
  $region5: #{_lambda_.32} parent=0 // pred_fallthru
    _
  // Predicated region
  $region6: #{_lambda_.32} parent=0 // pred_check
    _
  $region7: #{_lambda_.32} parent=0 // pred_check_branch
    %13 = sbr.rel (0) target = $region9
  $region8: #{_lambda_.32} parent=0 // pred_region
    _
  $region9: #{_lambda_.32} parent=0 // pred_fallthru
    _
  // Predicated region
  $region10: #{_lambda_.32} parent=0 // pred_check
    _
  $region11: #{_lambda_.32} parent=0 // pred_check_branch
    %15 = sbr.rel (0) target = $region13
  $region12: #{_lambda_.32} parent=0 // pred_region
    _
  $region13: #{_lambda_.32} parent=0 // pred_fallthru
    _
  // Predicated region
  $region14: #{_lambda_.32} parent=0 // pred_check
    _
  $region15: #{_lambda_.32} parent=0 // pred_check_branch
    %17 = sbr.rel (0) target = $region17
  $region16: #{_lambda_.32} parent=0 // pred_region
    _
  $region17: #{_lambda_.32} parent=0 // pred_fallthru
    _
  // Predicated region
  $region18: #{_lambda_.32} parent=0 // pred_check
    _
  $region19: #{_lambda_.32} parent=0 // pred_check_branch
    %19 = sbr.rel (0) target = $region21
  $region20: #{_lambda_.32} parent=0 // pred_region
    _
  $region21: #{_lambda_.32} parent=0 // pred_fallthru
    _
  %v21 = vld [vmem:[%s0] sm:$0xf]
  %v22 = vld [vmem:[%s0 + $0x4] sm:$0xf]
  %v23 = vld [vmem:[%s1] sm:$0xf]
  %v24 = vld [vmem:[%s1 + $0x4] sm:$0xf]
  %v25 = vld [vmem:[%s1 + $0x8] sm:$0xf]
  %v26 = vld [vmem:[%s1 + $0xc] sm:$0xf]
  %v27 = vld [vmem:[%s1 + $0x10] sm:$0xf]
  %v28 = vld [vmem:[%s1 + $0x14] sm:$0xf]
  %v29 = vld [vmem:[%s1 + $0x18] sm:$0xf]
  %v30 = vld [vmem:[%s1 + $0x1c] sm:$0xf]
  %v31 = vld [vmem:[%s1 + $0x20] sm:$0xf]
  %v32 = vld [vmem:[%s1 + $0x24] sm:$0xf]
  %v33 = vld [vmem:[%s1 + $0x28] sm:$0xf]
  %v34 = vld [vmem:[%s1 + $0x2c] sm:$0xf]
  %v35 = vld [vmem:[%s1 + $0x30] sm:$0xf]
  %v36 = vld [vmem:[%s1 + $0x34] sm:$0x3]
  %v39 = vunpack.c.l.b16 %v21
  %v40 = vunpack.c.l.b16 %v22
  %v41 = vpack.c.b16 %v40, %v39
  %v56 = vunpack.c.l.b16 %v23
  %v57 = vunpack.c.l.b16 %v24
  %v58 = vunpack.c.l.b16 %v25
  %v59 = vunpack.c.l.b16 %v26
  %v60 = vunpack.c.l.b16 %v27
  %v61 = vunpack.c.l.b16 %v28
  %v62 = vunpack.c.l.b16 %v29
  %v63 = vunpack.c.l.b16 %v30
  %v64 = vunpack.c.l.b16 %v31
  %v65 = vunpack.c.l.b16 %v32
  %v66 = vunpack.c.l.b16 %v33
  %v67 = vunpack.c.l.b16 %v34
  %v68 = vunpack.c.l.b16 %v35
  %v69 = vunpack.c.l.b16 %v36
  %v70 = vpack.c.b16 %v57, %v56
  %v71 = vpack.c.b16 %v59, %v58
  %v72 = vpack.c.b16 %v61, %v60
  %v73 = vpack.c.b16 %v63, %v62
  %v74 = vpack.c.b16 %v65, %v64
  %v75 = vpack.c.b16 %v67, %v66
  %v76 = vpack.c.b16 %v69, %v68
  %vm83 = vcmask 883712
  %v85 = vsel %vm83, %v41, 0
  %vm87 = vcmask 1045504
  %v89 = vsel %vm87, %v76, 0
  %91 = vmatprep.subr.bf16.mxu0 0
  %92 = vmatpush1.bf16.msra.mxu0 0
  %93 = vmatprep.subr.bf16.mxu0 0
  %94 = vmatpush1.bf16.msra.mxu0 %v89
  %95 = vmatprep.subr.bf16.mxu0 0
  %96 = vmatpush1.bf16.msra.mxu0 %v75
  %97 = vmatprep.subr.bf16.mxu0 0
  %98 = vmatpush1.bf16.msra.mxu0 %v74
  %99 = vmatprep.subr.bf16.mxu0 0
  %100 = vmatpush1.bf16.msra.mxu0 %v73
  %101 = vmatprep.subr.bf16.mxu0 0
  %102 = vmatpush1.bf16.msra.mxu0 %v72
  %103 = vmatprep.subr.bf16.mxu0 0
  %104 = vmatpush1.bf16.msra.mxu0 %v71
  %105 = vmatprep.subr.bf16.mxu0 0
  %106 = vmatpush1.bf16.msra.mxu0 %v70
  %107 = vmatprep.subr.bf16.mxu0 0
  %108 = vmatpush2.bf16.msra.mxu0 0
  %109 = vmatprep.subr.bf16.mxu0 0
  %110 = vmatpush2.bf16.msra.mxu0 0
  %111 = vmatprep.subr.bf16.mxu0 0
  %112 = vmatpush2.bf16.msra.mxu0 0
  %113 = vmatprep.subr.bf16.mxu0 0
  %114 = vmatpush2.bf16.msra.mxu0 0
  %115 = vmatprep.subr.bf16.mxu0 0
  %116 = vmatpush2.bf16.msra.mxu0 0
  %117 = vmatprep.subr.bf16.mxu0 0
  %118 = vmatpush2.bf16.msra.mxu0 0
  %119 = vmatprep.subr.bf16.mxu0 0
  %120 = vmatpush2.bf16.msra.mxu0 0
  %121 = vmatprep.subr.bf16.mxu0 0
  %122 = vmatpush2.bf16.msra.mxu0 0
  %123 = vmatprep.mubr.bf16.mxu0 0
  %124 = vmatmul.mubr.bf16.gmra.mxu0 %v85
  %v125 = vpop.f32.mrf.mxu0
  %v126 = vadd.f32 0.0, %v125
  %v127 = vpop.f32.mrf.mxu0
  %v128 = vpop.f32.mrf.mxu0
  %v129 = vadd.f32 0.0, %v128
  %v130 = vpop.f32.mrf.mxu0
  %131 = vdwg.mxu0
  %v132 = vadd.f32 %v126, %v129
  %v133 = vrot.slane %v132, 4
  %v134 = vadd.f32 %v132, %v133
  %v135 = vrot.slane %v134, 2
  %v136 = vadd.f32 %v134, %v135
  %v137 = vrot.slane %v136, 1
  %v138 = vadd.f32 %v136, %v137
  %v139 = vmul.f32 %v138, 0.125
  %v140 = vmul.f32 %v126, %v126
  %v141 = vmul.f32 %v129, %v129
  %v142 = vadd.f32 %v140, %v141
  %v143 = vrot.slane %v142, 4
  %v144 = vadd.f32 %v142, %v143
  %v145 = vrot.slane %v144, 2
  %v146 = vadd.f32 %v144, %v145
  %v147 = vrot.slane %v146, 1
  %v148 = vadd.f32 %v146, %v147
  %v149 = vmul.f32 %v148, 0.125
  %v150 = vmul.f32 %v139, %v139
  %v151 = vsub.f32 %v149, %v150
  %v152 = vmax.f32 %v151, 0.0
  %v153 = vadd.f32 %v152, 1e-05
  %v154 = vrsqrt.pop %v153
  %v155 = vsub.f32 %v126, %v139
  %v156 = vsub.f32 %v129, %v139
  %v157 = vld [vmem:[%s2] sm:$0x1]
  %v158 = vmul.f32 %v154, %v157
  %v159 = vlaneseq
  %v160 = vshrl.u32 %v159, 7
  %v161 = vsub.s32 0, %v160
  %v162 = vrot.slane %v158, %v161
  %v163 = vmul.f32 %v155, %v162
  %v164 = vmul.f32 %v156, %v162
  %v165 = vld [vmem:[%s3] sm:$0x1]
  %v167 = vlaneseq
  %v168 = vshrl.u32 %v167, 7
  %v169 = vsub.s32 0, %v168
  %v170 = vrot.slane %v165, %v169
  %v172 = vadd.f32 %v163, %v170
  %v173 = vadd.f32 %v164, %v170
  %v174 = vld [vmem:[%s4] sm:$0xf]
  %v175 = vld [vmem:[%s4 + $0x4] sm:$0xf]
  %v176 = vunpack.c.l.bf16 %v174
  %v177 = vunpack.c.l.bf16 %v175
  %v178 = vadd.f32 %v172, %v176
  %v179 = vadd.f32 %v173, %v177
  %v180 = vmax.f32 %v178, 0.0
  %v181 = vmax.f32 %v179, 0.0
  %v182 = vpack.c.bf16 %v181, %v180
  %v184 = vunpack.c.l.b16 %v182
  %v185 = vunpack.c.h.b16 %v182
  %v186 = vpack.c.b16 %v184, %v184
  %v187 = vpack.c.b16 %v185, %v185
  %190 = vst [vmem:[%s5] sm:$0xf] %v186
  %191 = vst [vmem:[%s5 + $0x4] sm:$0xf] %v187
  // Predicated region
  $region22: #{_lambda_.32} parent=0 // pred_check
    _
  $region23: #{_lambda_.32} parent=0 // pred_check_branch
    %193 = sbr.rel (0) target = $region25
  $region24: #{_lambda_.32} parent=0 // pred_region
    _
  $region25: #{_lambda_.32} parent=0 // pred_fallthru
    _
  // Predicated region
  $region26: #{_lambda_.32} parent=0 // pred_check
    _
  $region27: #{_lambda_.32} parent=0 // pred_check_branch
    %195 = sbr.rel (0) target = $region29
  $region28: #{_lambda_.32} parent=0 // pred_region
    _
  $region29: #{_lambda_.32} parent=0 // pred_fallthru
    _

// kernel: _lambda_.33
$region0: #{_lambda_.33}
  #allocation0 [shape = 'u32[]', space=smem, size = 0x4, offset = 0x4, fixed_abs, tag = 'smem constant byte address 0x4 - core index']
  #allocation1 [shape = 'u32[144,128]{1,0:T(1,128)}', space=vmem, size = 0x12000, scoped, tag = 'internal scratch']
  %s0 = inlined_call_operand.vmem [shape: bf16[16,144], index: 0, kind: input, shape index: {}]
  %s1 = inlined_call_operand.vmem [shape: bf16[144,128], index: 1, kind: input, shape index: {}]
  %s2 = inlined_call_operand.vmem [shape: f32[1,128], index: 2, kind: input, shape index: {}]
  %s3 = inlined_call_operand.vmem [shape: f32[1,128], index: 3, kind: input, shape index: {}]
  %s4 = inlined_call_operand.vmem [shape: bf16[16,128], index: 4, kind: output, shape index: {}]
  %s5 = sld [smem:[#allocation0]]
  $region26: #{_lambda_.33} parent=0
    _
  %s7 = ssub.s32 1, %s5
  %s8 = scalar_select 0, %s7, %s5
  // Predicated region
  $region2: #{_lambda_.33} parent=0 // pred_check
    _
  $region3: #{_lambda_.33} parent=0 // pred_check_branch
    %10 = sbr.rel (0) target = $region5
  $region4: #{_lambda_.33} parent=0 // pred_region
    _
  $region5: #{_lambda_.33} parent=0 // pred_fallthru
    _
  // Predicated region
  $region6: #{_lambda_.33} parent=0 // pred_check
    _
  $region7: #{_lambda_.33} parent=0 // pred_check_branch
    %12 = sbr.rel (0) target = $region9
  $region8: #{_lambda_.33} parent=0 // pred_region
    _
  $region9: #{_lambda_.33} parent=0 // pred_fallthru
    _
  // Predicated region
  $region10: #{_lambda_.33} parent=0 // pred_check
    _
  $region11: #{_lambda_.33} parent=0 // pred_check_branch
    %14 = sbr.rel (0) target = $region13
  $region12: #{_lambda_.33} parent=0 // pred_region
    _
  $region13: #{_lambda_.33} parent=0 // pred_fallthru
    _
  // Predicated region
  $region14: #{_lambda_.33} parent=0 // pred_check
    _
  $region15: #{_lambda_.33} parent=0 // pred_check_branch
    %16 = sbr.rel (0) target = $region17
  $region16: #{_lambda_.33} parent=0 // pred_region
    _
  $region17: #{_lambda_.33} parent=0 // pred_fallthru
    _
  %v18 = vld [vmem:[%s0] sm:$0xff]
  %v19 = vld [vmem:[%s0 + $0x8] sm:$0xff]
  %v20 = vld [vmem:[%s1] sm:$0xf]
  %v21 = vld [vmem:[%s1 + $0x4] sm:$0xf]
  %v22 = vld [vmem:[%s1 + $0x8] sm:$0xf]
  %v23 = vld [vmem:[%s1 + $0xc] sm:$0xf]
  %v24 = vld [vmem:[%s1 + $0x10] sm:$0xf]
  %v25 = vld [vmem:[%s1 + $0x14] sm:$0xf]
  %v26 = vld [vmem:[%s1 + $0x18] sm:$0xf]
  %v27 = vld [vmem:[%s1 + $0x1c] sm:$0xf]
  %v28 = vld [vmem:[%s1 + $0x20] sm:$0xf]
  %v29 = vld [vmem:[%s1 + $0x24] sm:$0xf]
  %v30 = vld [vmem:[%s1 + $0x28] sm:$0xf]
  %v31 = vld [vmem:[%s1 + $0x2c] sm:$0xf]
  %v32 = vld [vmem:[%s1 + $0x30] sm:$0xf]
  %v33 = vld [vmem:[%s1 + $0x34] sm:$0xf]
  %v34 = vld [vmem:[%s1 + $0x38] sm:$0xf]
  %v35 = vld [vmem:[%s1 + $0x3c] sm:$0xf]
  %v36 = vld [vmem:[%s1 + $0x40] sm:$0xf]
  %v37 = vld [vmem:[%s1 + $0x44] sm:$0xf]
  %v40 = vunpack.c.l.b16 %v18
  %v41 = vunpack.c.h.b16 %v18
  %v42 = vunpack.c.l.b16 %v19
  %v43 = vunpack.c.h.b16 %v19
  %v44 = vpack.c.b16 %v42, %v40
  %v45 = vpack.c.b16 %v43, %v41
  %v65 = vunpack.c.l.b16 %v20
  %v66 = vunpack.c.l.b16 %v21
  %v67 = vunpack.c.l.b16 %v22
  %v68 = vunpack.c.l.b16 %v23
  %v69 = vunpack.c.l.b16 %v24
  %v70 = vunpack.c.l.b16 %v25
  %v71 = vunpack.c.l.b16 %v26
  %v72 = vunpack.c.l.b16 %v27
  %v73 = vunpack.c.l.b16 %v28
  %v74 = vunpack.c.l.b16 %v29
  %v75 = vunpack.c.l.b16 %v30
  %v76 = vunpack.c.l.b16 %v31
  %v77 = vunpack.c.l.b16 %v32
  %v78 = vunpack.c.l.b16 %v33
  %v79 = vunpack.c.l.b16 %v34
  %v80 = vunpack.c.l.b16 %v35
  %v81 = vunpack.c.l.b16 %v36
  %v82 = vunpack.c.l.b16 %v37
  %v83 = vpack.c.b16 %v66, %v65
  %v84 = vpack.c.b16 %v68, %v67
  %v85 = vpack.c.b16 %v70, %v69
  %v86 = vpack.c.b16 %v72, %v71
  %v87 = vpack.c.b16 %v74, %v73
  %v88 = vpack.c.b16 %v76, %v75
  %v89 = vpack.c.b16 %v78, %v77
  %v90 = vpack.c.b16 %v80, %v79
  %v91 = vpack.c.b16 %v82, %v81
  %vm101 = vcmask 130048
  %v103 = vsel %vm101, %v45, 0
  %105 = vmatprep.subr.bf16.mxu0 0
  %106 = vmatpush1.bf16.msra.mxu0 %v90
  %107 = vmatprep.subr.bf16.mxu0 0
  %108 = vmatpush1.bf16.msra.mxu0 %v89
  %109 = vmatprep.subr.bf16.mxu0 0
  %110 = vmatpush1.bf16.msra.mxu0 %v88
  %111 = vmatprep.subr.bf16.mxu0 0
  %112 = vmatpush1.bf16.msra.mxu0 %v87
  %113 = vmatprep.subr.bf16.mxu0 0
  %114 = vmatpush1.bf16.msra.mxu0 %v86
  %115 = vmatprep.subr.bf16.mxu0 0
  %116 = vmatpush1.bf16.msra.mxu0 %v85
  %117 = vmatprep.subr.bf16.mxu0 0
  %118 = vmatpush1.bf16.msra.mxu0 %v84
  %119 = vmatprep.subr.bf16.mxu0 0
  %120 = vmatpush1.bf16.msra.mxu0 %v83
  %121 = vmatprep.subr.bf16.mxu0 0
  %122 = vmatpush2.bf16.msra.mxu0 0
  %123 = vmatprep.subr.bf16.mxu0 0
  %124 = vmatpush2.bf16.msra.mxu0 0
  %125 = vmatprep.subr.bf16.mxu0 0
  %126 = vmatpush2.bf16.msra.mxu0 0
  %127 = vmatprep.subr.bf16.mxu0 0
  %128 = vmatpush2.bf16.msra.mxu0 0
  %129 = vmatprep.subr.bf16.mxu0 0
  %130 = vmatpush2.bf16.msra.mxu0 0
  %131 = vmatprep.subr.bf16.mxu0 0
  %132 = vmatpush2.bf16.msra.mxu0 0
  %133 = vmatprep.subr.bf16.mxu0 0
  %134 = vmatpush2.bf16.msra.mxu0 0
  %135 = vmatprep.subr.bf16.mxu0 0
  %136 = vmatpush2.bf16.msra.mxu0 %v91
  %137 = vmatprep.mubr.bf16.mxu0 %v103
  %138 = vmatmul.mubr.bf16.gmra.mxu0 %v44
  %v139 = vpop.f32.mrf.mxu0
  %v140 = vadd.f32 0.0, %v139
  %v141 = vpop.f32.mrf.mxu0
  %v142 = vpop.f32.mrf.mxu0
  %v143 = vadd.f32 0.0, %v142
  %v144 = vpop.f32.mrf.mxu0
  %145 = vdwg.mxu0
  %v146 = vadd.f32 %v140, %v143
  %v147 = vrot.slane %v146, 4
  %v148 = vadd.f32 %v146, %v147
  %v149 = vrot.slane %v148, 2
  %v150 = vadd.f32 %v148, %v149
  %v151 = vrot.slane %v150, 1
  %v152 = vadd.f32 %v150, %v151
  %v153 = vmul.f32 %v152, 0.5
  %v154 = vmul.f32 %v140, %v140
  %v155 = vmul.f32 %v143, %v143
  %v156 = vadd.f32 %v154, %v155
  %v157 = vrot.slane %v156, 4
  %v158 = vadd.f32 %v156, %v157
  %v159 = vrot.slane %v158, 2
  %v160 = vadd.f32 %v158, %v159
  %v161 = vrot.slane %v160, 1
  %v162 = vadd.f32 %v160, %v161
  %v163 = vmul.f32 %v162, 0.5
  %v164 = vmul.f32 %v153, %v153
  %v165 = vsub.f32 %v163, %v164
  %v166 = vmax.f32 %v165, 0.0
  %v167 = vadd.f32 %v166, 1e-05
  %v168 = vrsqrt.pop %v167
  %v169 = vsub.f32 %v140, %v153
  %v170 = vsub.f32 %v143, %v153
  %v171 = vld [vmem:[%s2] sm:$0x1]
  %v172 = vmul.f32 %v168, %v171
  %v173 = vlaneseq
  %v174 = vshrl.u32 %v173, 7
  %v175 = vsub.s32 0, %v174
  %v176 = vrot.slane %v172, %v175
  %v177 = vmul.f32 %v169, %v176
  %v178 = vmul.f32 %v170, %v176
  %v179 = vld [vmem:[%s3] sm:$0x1]
  %v181 = vlaneseq
  %v182 = vshrl.u32 %v181, 7
  %v183 = vsub.s32 0, %v182
  %v184 = vrot.slane %v179, %v183
  %v186 = vadd.f32 %v177, %v184
  %v187 = vadd.f32 %v178, %v184
  %v188 = vmax.f32 %v186, 0.0
  %v189 = vmax.f32 %v187, 0.0
  %v190 = vpack.c.bf16 %v189, %v188
  %v192 = vunpack.c.l.b16 %v190
  %v193 = vunpack.c.h.b16 %v190
  %v194 = vpack.c.b16 %v192, %v192
  %v195 = vpack.c.b16 %v193, %v193
  %198 = vst [vmem:[%s4] sm:$0xf] %v194
  %199 = vst [vmem:[%s4 + $0x4] sm:$0xf] %v195
  // Predicated region
  $region18: #{_lambda_.33} parent=0 // pred_check
    _
  $region19: #{_lambda_.33} parent=0 // pred_check_branch
    %201 = sbr.rel (0) target = $region21
  $region20: #{_lambda_.33} parent=0 // pred_region
    _
  $region21: #{_lambda_.33} parent=0 // pred_fallthru
    _
  // Predicated region
  $region22: #{_lambda_.33} parent=0 // pred_check
    _
  $region23: #{_lambda_.33} parent=0 // pred_check_branch
    %203 = sbr.rel (0) target = $region25
  $region24: #{_lambda_.33} parent=0 // pred_region
    _
  $region25: #{_lambda_.33} parent=0 // pred_fallthru
    _

// kernel: _lambda_.34
$region0: #{_lambda_.34}
  #allocation0 [shape = 'u32[]', space=smem, size = 0x4, offset = 0x4, fixed_abs, tag = 'smem constant byte address 0x4 - core index']
  #allocation1 [shape = 'u32[144,128]{1,0:T(1,128)}', space=vmem, size = 0x12000, scoped, tag = 'internal scratch']
  %s0 = inlined_call_operand.vmem [shape: bf16[16,171], index: 0, kind: input, shape index: {}]
  %s1 = inlined_call_operand.vmem [shape: bf16[171,128], index: 1, kind: input, shape index: {}]
  %s2 = inlined_call_operand.vmem [shape: f32[1,128], index: 2, kind: input, shape index: {}]
  %s3 = inlined_call_operand.vmem [shape: f32[1,128], index: 3, kind: input, shape index: {}]
  %s4 = inlined_call_operand.vmem [shape: bf16[16,128], index: 4, kind: output, shape index: {}]
  %s5 = sld [smem:[#allocation0]]
  $region26: #{_lambda_.34} parent=0
    _
  %s7 = ssub.s32 1, %s5
  %s8 = scalar_select 0, %s7, %s5
  // Predicated region
  $region2: #{_lambda_.34} parent=0 // pred_check
    _
  $region3: #{_lambda_.34} parent=0 // pred_check_branch
    %10 = sbr.rel (0) target = $region5
  $region4: #{_lambda_.34} parent=0 // pred_region
    _
  $region5: #{_lambda_.34} parent=0 // pred_fallthru
    _
  // Predicated region
  $region6: #{_lambda_.34} parent=0 // pred_check
    _
  $region7: #{_lambda_.34} parent=0 // pred_check_branch
    %12 = sbr.rel (0) target = $region9
  $region8: #{_lambda_.34} parent=0 // pred_region
    _
  $region9: #{_lambda_.34} parent=0 // pred_fallthru
    _
  // Predicated region
  $region10: #{_lambda_.34} parent=0 // pred_check
    _
  $region11: #{_lambda_.34} parent=0 // pred_check_branch
    %14 = sbr.rel (0) target = $region13
  $region12: #{_lambda_.34} parent=0 // pred_region
    _
  $region13: #{_lambda_.34} parent=0 // pred_fallthru
    _
  // Predicated region
  $region14: #{_lambda_.34} parent=0 // pred_check
    _
  $region15: #{_lambda_.34} parent=0 // pred_check_branch
    %16 = sbr.rel (0) target = $region17
  $region16: #{_lambda_.34} parent=0 // pred_region
    _
  $region17: #{_lambda_.34} parent=0 // pred_fallthru
    _
  %v18 = vld [vmem:[%s0] sm:$0xff]
  %v19 = vld [vmem:[%s0 + $0x8] sm:$0xff]
  %v20 = vld [vmem:[%s1] sm:$0xf]
  %v21 = vld [vmem:[%s1 + $0x4] sm:$0xf]
  %v22 = vld [vmem:[%s1 + $0x8] sm:$0xf]
  %v23 = vld [vmem:[%s1 + $0xc] sm:$0xf]
  %v24 = vld [vmem:[%s1 + $0x10] sm:$0xf]
  %v25 = vld [vmem:[%s1 + $0x14] sm:$0xf]
  %v26 = vld [vmem:[%s1 + $0x18] sm:$0xf]
  %v27 = vld [vmem:[%s1 + $0x1c] sm:$0xf]
  %v28 = vld [vmem:[%s1 + $0x20] sm:$0xf]
  %v29 = vld [vmem:[%s1 + $0x24] sm:$0xf]
  %v30 = vld [vmem:[%s1 + $0x28] sm:$0xf]
  %v31 = vld [vmem:[%s1 + $0x2c] sm:$0xf]
  %v32 = vld [vmem:[%s1 + $0x30] sm:$0xf]
  %v33 = vld [vmem:[%s1 + $0x34] sm:$0xf]
  %v34 = vld [vmem:[%s1 + $0x38] sm:$0xf]
  %v35 = vld [vmem:[%s1 + $0x3c] sm:$0xf]
  %v36 = vld [vmem:[%s1 + $0x40] sm:$0xf]
  %v37 = vld [vmem:[%s1 + $0x44] sm:$0xf]
  %v38 = vld [vmem:[%s1 + $0x48] sm:$0xf]
  %v39 = vld [vmem:[%s1 + $0x4c] sm:$0xf]
  %v40 = vld [vmem:[%s1 + $0x50] sm:$0xf]
  %v41 = vld [vmem:[%s1 + $0x54] sm:$0x3]
  %v44 = vunpack.c.l.b16 %v18
  %v45 = vunpack.c.h.b16 %v18
  %v46 = vunpack.c.l.b16 %v19
  %v47 = vunpack.c.h.b16 %v19
  %v48 = vpack.c.b16 %v46, %v44
  %v49 = vpack.c.b16 %v47, %v45
  %v73 = vunpack.c.l.b16 %v20
  %v74 = vunpack.c.l.b16 %v21
  %v75 = vunpack.c.l.b16 %v22
  %v76 = vunpack.c.l.b16 %v23
  %v77 = vunpack.c.l.b16 %v24
  %v78 = vunpack.c.l.b16 %v25
  %v79 = vunpack.c.l.b16 %v26
  %v80 = vunpack.c.l.b16 %v27
  %v81 = vunpack.c.l.b16 %v28
  %v82 = vunpack.c.l.b16 %v29
  %v83 = vunpack.c.l.b16 %v30
  %v84 = vunpack.c.l.b16 %v31
  %v85 = vunpack.c.l.b16 %v32
  %v86 = vunpack.c.l.b16 %v33
  %v87 = vunpack.c.l.b16 %v34
  %v88 = vunpack.c.l.b16 %v35
  %v89 = vunpack.c.l.b16 %v36
  %v90 = vunpack.c.l.b16 %v37
  %v91 = vunpack.c.l.b16 %v38
  %v92 = vunpack.c.l.b16 %v39
  %v93 = vunpack.c.l.b16 %v40
  %v94 = vunpack.c.l.b16 %v41
  %v95 = vpack.c.b16 %v74, %v73
  %v96 = vpack.c.b16 %v76, %v75
  %v97 = vpack.c.b16 %v78, %v77
  %v98 = vpack.c.b16 %v80, %v79
  %v99 = vpack.c.b16 %v82, %v81
  %v100 = vpack.c.b16 %v84, %v83
  %v101 = vpack.c.b16 %v86, %v85
  %v102 = vpack.c.b16 %v88, %v87
  %v103 = vpack.c.b16 %v90, %v89
  %v104 = vpack.c.b16 %v92, %v91
  %v105 = vpack.c.b16 %v94, %v93
  %vm116 = vcmask 351232
  %v118 = vsel %vm116, %v49, 0
  %vm120 = vcmask 1044480
  %vm121 = vcmask 1045504
  %v122 = vsel %vm120, 4294967295, 65535
  %v123 = vsel %vm121, %v122, 0
  %v125 = vand.u32 %v105, %v123
  %127 = vmatprep.subr.bf16.mxu0 0
  %128 = vmatpush1.bf16.msra.mxu0 %v102
  %129 = vmatprep.subr.bf16.mxu0 0
  %130 = vmatpush1.bf16.msra.mxu0 %v101
  %131 = vmatprep.subr.bf16.mxu0 0
  %132 = vmatpush1.bf16.msra.mxu0 %v100
  %133 = vmatprep.subr.bf16.mxu0 0
  %134 = vmatpush1.bf16.msra.mxu0 %v99
  %135 = vmatprep.subr.bf16.mxu0 0
  %136 = vmatpush1.bf16.msra.mxu0 %v98
  %137 = vmatprep.subr.bf16.mxu0 0
  %138 = vmatpush1.bf16.msra.mxu0 %v97
  %139 = vmatprep.subr.bf16.mxu0 0
  %140 = vmatpush1.bf16.msra.mxu0 %v96
  %141 = vmatprep.subr.bf16.mxu0 0
  %142 = vmatpush1.bf16.msra.mxu0 %v95
  %143 = vmatprep.subr.bf16.mxu0 0
  %144 = vmatpush2.bf16.msra.mxu0 0
  %145 = vmatprep.subr.bf16.mxu0 0
  %146 = vmatpush2.bf16.msra.mxu0 0
  %147 = vmatprep.subr.bf16.mxu0 0
  %148 = vmatpush2.bf16.msra.mxu0 0
  %149 = vmatprep.subr.bf16.mxu0 0
  %150 = vmatpush2.bf16.msra.mxu0 0
  %151 = vmatprep.subr.bf16.mxu0 0
  %152 = vmatpush2.bf16.msra.mxu0 0
  %153 = vmatprep.subr.bf16.mxu0 0
  %154 = vmatpush2.bf16.msra.mxu0 %v125
  %155 = vmatprep.subr.bf16.mxu0 0
  %156 = vmatpush2.bf16.msra.mxu0 %v104
  %157 = vmatprep.subr.bf16.mxu0 0
  %158 = vmatpush2.bf16.msra.mxu0 %v103
  %159 = vmatprep.mubr.bf16.mxu0 %v118
  %160 = vmatmul.mubr.bf16.gmra.mxu0 %v48
  %v161 = vpop.f32.mrf.mxu0
  %v162 = vadd.f32 0.0, %v161
  %v163 = vpop.f32.mrf.mxu0
  %v164 = vpop.f32.mrf.mxu0
  %v165 = vadd.f32 0.0, %v164
  %v166 = vpop.f32.mrf.mxu0
  %167 = vdwg.mxu0
  %v168 = vadd.f32 %v162, %v165
  %v169 = vrot.slane %v168, 4
  %v170 = vadd.f32 %v168, %v169
  %v171 = vrot.slane %v170, 2
  %v172 = vadd.f32 %v170, %v171
  %v173 = vrot.slane %v172, 1
  %v174 = vadd.f32 %v172, %v173
  %v175 = vmul.f32 %v174, 0.5
  %v176 = vmul.f32 %v162, %v162
  %v177 = vmul.f32 %v165, %v165
  %v178 = vadd.f32 %v176, %v177
  %v179 = vrot.slane %v178, 4
  %v180 = vadd.f32 %v178, %v179
  %v181 = vrot.slane %v180, 2
  %v182 = vadd.f32 %v180, %v181
  %v183 = vrot.slane %v182, 1
  %v184 = vadd.f32 %v182, %v183
  %v185 = vmul.f32 %v184, 0.5
  %v186 = vmul.f32 %v175, %v175
  %v187 = vsub.f32 %v185, %v186
  %v188 = vmax.f32 %v187, 0.0
  %v189 = vadd.f32 %v188, 1e-05
  %v190 = vrsqrt.pop %v189
  %v191 = vsub.f32 %v162, %v175
  %v192 = vsub.f32 %v165, %v175
  %v193 = vld [vmem:[%s2] sm:$0x1]
  %v194 = vmul.f32 %v190, %v193
  %v195 = vlaneseq
  %v196 = vshrl.u32 %v195, 7
  %v197 = vsub.s32 0, %v196
  %v198 = vrot.slane %v194, %v197
  %v199 = vmul.f32 %v191, %v198
  %v200 = vmul.f32 %v192, %v198
  %v201 = vld [vmem:[%s3] sm:$0x1]
  %v203 = vlaneseq
  %v204 = vshrl.u32 %v203, 7
  %v205 = vsub.s32 0, %v204
  %v206 = vrot.slane %v201, %v205
  %v208 = vadd.f32 %v199, %v206
  %v209 = vadd.f32 %v200, %v206
  %v210 = vmax.f32 %v208, 0.0
  %v211 = vmax.f32 %v209, 0.0
  %v212 = vpack.c.bf16 %v211, %v210
  %v214 = vunpack.c.l.b16 %v212
  %v215 = vunpack.c.h.b16 %v212
  %v216 = vpack.c.b16 %v214, %v214
  %v217 = vpack.c.b16 %v215, %v215
  %220 = vst [vmem:[%s4] sm:$0xf] %v216
  %221 = vst [vmem:[%s4 + $0x4] sm:$0xf] %v217
  // Predicated region
  $region18: #{_lambda_.34} parent=0 // pred_check
    _
  $region19: #{_lambda_.34} parent=0 // pred_check_branch
    %223 = sbr.rel (0) target = $region21
  $region20: #{_lambda_.34} parent=0 // pred_region
    _
  $region21: #{_lambda_.34} parent=0 // pred_fallthru
    _
  // Predicated region
  $region22: #{_lambda_.34} parent=0 // pred_check
    _
  $region23: #{_lambda_.34} parent=0 // pred_check_branch
    %225 = sbr.rel (0) target = $region25
  $region24: #{_lambda_.34} parent=0 // pred_region
    _
  $region25: #{_lambda_.34} parent=0 // pred_fallthru
    _

// kernel: _lambda_.35
$region0: #{_lambda_.35}
  #allocation0 [shape = 'u32[]', space=smem, size = 0x4, offset = 0x4, fixed_abs, tag = 'smem constant byte address 0x4 - core index']
  #allocation1 [shape = 'u32[144,128]{1,0:T(1,128)}', space=vmem, size = 0x12000, scoped, tag = 'internal scratch']
  %s0 = inlined_call_operand.vmem [shape: bf16[16,288], index: 0, kind: input, shape index: {}]
  %s1 = inlined_call_operand.vmem [shape: bf16[288,128], index: 1, kind: input, shape index: {}]
  %s2 = inlined_call_operand.vmem [shape: f32[1,128], index: 2, kind: input, shape index: {}]
  %s3 = inlined_call_operand.vmem [shape: f32[1,128], index: 3, kind: input, shape index: {}]
  %s4 = inlined_call_operand.vmem [shape: bf16[16,128], index: 4, kind: output, shape index: {}]
  %s5 = sld [smem:[#allocation0]]
  $region26: #{_lambda_.35} parent=0
    _
  %s7 = ssub.s32 1, %s5
  %s8 = scalar_select 0, %s7, %s5
  // Predicated region
  $region2: #{_lambda_.35} parent=0 // pred_check
    _
  $region3: #{_lambda_.35} parent=0 // pred_check_branch
    %10 = sbr.rel (0) target = $region5
  $region4: #{_lambda_.35} parent=0 // pred_region
    _
  $region5: #{_lambda_.35} parent=0 // pred_fallthru
    _
  // Predicated region
  $region6: #{_lambda_.35} parent=0 // pred_check
    _
  $region7: #{_lambda_.35} parent=0 // pred_check_branch
    %12 = sbr.rel (0) target = $region9
  $region8: #{_lambda_.35} parent=0 // pred_region
    _
  $region9: #{_lambda_.35} parent=0 // pred_fallthru
    _
  // Predicated region
  $region10: #{_lambda_.35} parent=0 // pred_check
    _
  $region11: #{_lambda_.35} parent=0 // pred_check_branch
    %14 = sbr.rel (0) target = $region13
  $region12: #{_lambda_.35} parent=0 // pred_region
    _
  $region13: #{_lambda_.35} parent=0 // pred_fallthru
    _
  // Predicated region
  $region14: #{_lambda_.35} parent=0 // pred_check
    _
  $region15: #{_lambda_.35} parent=0 // pred_check_branch
    %16 = sbr.rel (0) target = $region17
  $region16: #{_lambda_.35} parent=0 // pred_region
    _
  $region17: #{_lambda_.35} parent=0 // pred_fallthru
    _
  %v18 = vld [vmem:[%s0] sm:$0xff]
  %v19 = vld [vmem:[%s0 + $0x8] sm:$0xf]
  %v20 = vld [vmem:[%s0 + $0xc] sm:$0xff]
  %v21 = vld [vmem:[%s0 + $0x14] sm:$0xf]
  %v22 = vld [vmem:[%s1] sm:$0xf]
  %v23 = vld [vmem:[%s1 + $0x4] sm:$0xf]
  %v24 = vld [vmem:[%s1 + $0x8] sm:$0xf]
  %v25 = vld [vmem:[%s1 + $0xc] sm:$0xf]
  %v26 = vld [vmem:[%s1 + $0x10] sm:$0xf]
  %v27 = vld [vmem:[%s1 + $0x14] sm:$0xf]
  %v28 = vld [vmem:[%s1 + $0x18] sm:$0xf]
  %v29 = vld [vmem:[%s1 + $0x1c] sm:$0xf]
  %v30 = vld [vmem:[%s1 + $0x20] sm:$0xf]
  %v31 = vld [vmem:[%s1 + $0x24] sm:$0xf]
  %v32 = vld [vmem:[%s1 + $0x28] sm:$0xf]
  %v33 = vld [vmem:[%s1 + $0x2c] sm:$0xf]
  %v34 = vld [vmem:[%s1 + $0x30] sm:$0xf]
  %v35 = vld [vmem:[%s1 + $0x34] sm:$0xf]
  %v36 = vld [vmem:[%s1 + $0x38] sm:$0xf]
  %v37 = vld [vmem:[%s1 + $0x3c] sm:$0xf]
  %v38 = vld [vmem:[%s1 + $0x40] sm:$0xf]
  %v39 = vld [vmem:[%s1 + $0x44] sm:$0xf]
  %v40 = vld [vmem:[%s1 + $0x48] sm:$0xf]
  %v41 = vld [vmem:[%s1 + $0x4c] sm:$0xf]
  %v42 = vld [vmem:[%s1 + $0x50] sm:$0xf]
  %v43 = vld [vmem:[%s1 + $0x54] sm:$0xf]
  %v44 = vld [vmem:[%s1 + $0x58] sm:$0xf]
  %v45 = vld [vmem:[%s1 + $0x5c] sm:$0xf]
  %v46 = vld [vmem:[%s1 + $0x60] sm:$0xf]
  %v47 = vld [vmem:[%s1 + $0x64] sm:$0xf]
  %v48 = vld [vmem:[%s1 + $0x68] sm:$0xf]
  %v49 = vld [vmem:[%s1 + $0x6c] sm:$0xf]
  %v50 = vld [vmem:[%s1 + $0x70] sm:$0xf]
  %v51 = vld [vmem:[%s1 + $0x74] sm:$0xf]
  %v52 = vld [vmem:[%s1 + $0x78] sm:$0xf]
  %v53 = vld [vmem:[%s1 + $0x7c] sm:$0xf]
  %v54 = vld [vmem:[%s1 + $0x80] sm:$0xf]
  %v55 = vld [vmem:[%s1 + $0x84] sm:$0xf]
  %v56 = vld [vmem:[%s1 + $0x88] sm:$0xf]
  %v57 = vld [vmem:[%s1 + $0x8c] sm:$0xf]
  %v62 = vunpack.c.l.b16 %v18
  %v63 = vunpack.c.h.b16 %v18
  %v64 = vunpack.c.l.b16 %v19
  %v65 = vunpack.c.l.b16 %v20
  %v66 = vunpack.c.h.b16 %v20
  %v67 = vunpack.c.l.b16 %v21
  %v68 = vpack.c.b16 %v65, %v62
  %v69 = vpack.c.b16 %v66, %v63
  %v70 = vpack.c.b16 %v67, %v64
  %v109 = vunpack.c.l.b16 %v22
  %v110 = vunpack.c.l.b16 %v23
  %v111 = vunpack.c.l.b16 %v24
  %v112 = vunpack.c.l.b16 %v25
  %v113 = vunpack.c.l.b16 %v26
  %v114 = vunpack.c.l.b16 %v27
  %v115 = vunpack.c.l.b16 %v28
  %v116 = vunpack.c.l.b16 %v29
  %v117 = vunpack.c.l.b16 %v30
  %v118 = vunpack.c.l.b16 %v31
  %v119 = vunpack.c.l.b16 %v32
  %v120 = vunpack.c.l.b16 %v33
  %v121 = vunpack.c.l.b16 %v34
  %v122 = vunpack.c.l.b16 %v35
  %v123 = vunpack.c.l.b16 %v36
  %v124 = vunpack.c.l.b16 %v37
  %v125 = vunpack.c.l.b16 %v38
  %v126 = vunpack.c.l.b16 %v39
  %v127 = vunpack.c.l.b16 %v40
  %v128 = vunpack.c.l.b16 %v41
  %v129 = vunpack.c.l.b16 %v42
  %v130 = vunpack.c.l.b16 %v43
  %v131 = vunpack.c.l.b16 %v44
  %v132 = vunpack.c.l.b16 %v45
  %v133 = vunpack.c.l.b16 %v46
  %v134 = vunpack.c.l.b16 %v47
  %v135 = vunpack.c.l.b16 %v48
  %v136 = vunpack.c.l.b16 %v49
  %v137 = vunpack.c.l.b16 %v50
  %v138 = vunpack.c.l.b16 %v51
  %v139 = vunpack.c.l.b16 %v52
  %v140 = vunpack.c.l.b16 %v53
  %v141 = vunpack.c.l.b16 %v54
  %v142 = vunpack.c.l.b16 %v55
  %v143 = vunpack.c.l.b16 %v56
  %v144 = vunpack.c.l.b16 %v57
  %v145 = vpack.c.b16 %v110, %v109
  %v146 = vpack.c.b16 %v112, %v111
  %v147 = vpack.c.b16 %v114, %v113
  %v148 = vpack.c.b16 %v116, %v115
  %v149 = vpack.c.b16 %v118, %v117
  %v150 = vpack.c.b16 %v120, %v119
  %v151 = vpack.c.b16 %v122, %v121
  %v152 = vpack.c.b16 %v124, %v123
  %v153 = vpack.c.b16 %v126, %v125
  %v154 = vpack.c.b16 %v128, %v127
  %v155 = vpack.c.b16 %v130, %v129
  %v156 = vpack.c.b16 %v132, %v131
  %v157 = vpack.c.b16 %v134, %v133
  %v158 = vpack.c.b16 %v136, %v135
  %v159 = vpack.c.b16 %v138, %v137
  %v160 = vpack.c.b16 %v140, %v139
  %v161 = vpack.c.b16 %v142, %v141
  %v162 = vpack.c.b16 %v144, %v143
  %vm181 = vcmask 261120
  %v183 = vsel %vm181, %v70, 0
  %185 = vmatprep.subr.bf16.mxu0 0
  %186 = vmatpush1.bf16.msra.mxu0 %v152
  %187 = vmatprep.subr.bf16.mxu0 0
  %188 = vmatpush1.bf16.msra.mxu0 %v151
  %189 = vmatprep.subr.bf16.mxu0 0
  %190 = vmatpush1.bf16.msra.mxu0 %v150
  %191 = vmatprep.subr.bf16.mxu0 0
  %192 = vmatpush1.bf16.msra.mxu0 %v149
  %193 = vmatprep.subr.bf16.mxu0 0
  %194 = vmatpush1.bf16.msra.mxu0 %v148
  %195 = vmatprep.subr.bf16.mxu0 0
  %196 = vmatpush1.bf16.msra.mxu0 %v147
  %197 = vmatprep.subr.bf16.mxu0 0
  %198 = vmatpush1.bf16.msra.mxu0 %v146
  %199 = vmatprep.subr.bf16.mxu0 0
  %200 = vmatpush1.bf16.msra.mxu0 %v145
  %201 = vmatprep.subr.bf16.mxu0 0
  %202 = vmatpush2.bf16.msra.mxu0 %v160
  %203 = vmatprep.subr.bf16.mxu0 0
  %204 = vmatpush2.bf16.msra.mxu0 %v159
  %205 = vmatprep.subr.bf16.mxu0 0
  %206 = vmatpush2.bf16.msra.mxu0 %v158
  %207 = vmatprep.subr.bf16.mxu0 0
  %208 = vmatpush2.bf16.msra.mxu0 %v157
  %209 = vmatprep.subr.bf16.mxu0 0
  %210 = vmatpush2.bf16.msra.mxu0 %v156
  %211 = vmatprep.subr.bf16.mxu0 0
  %212 = vmatpush2.bf16.msra.mxu0 %v155
  %213 = vmatprep.subr.bf16.mxu0 0
  %214 = vmatpush2.bf16.msra.mxu0 %v154
  %215 = vmatprep.subr.bf16.mxu0 0
  %216 = vmatpush2.bf16.msra.mxu0 %v153
  %217 = vmatprep.mubr.bf16.mxu0 %v69
  %218 = vmatmul.mubr.bf16.gmra.mxu0 %v68
  %v219 = vpop.f32.mrf.mxu0
  %v220 = vadd.f32 0.0, %v219
  %v221 = vpop.f32.mrf.mxu0
  %v222 = vpop.f32.mrf.mxu0
  %v223 = vadd.f32 0.0, %v222
  %v224 = vpop.f32.mrf.mxu0
  %225 = vdwg.mxu0
  %226 = vmatprep.subr.bf16.mxu0 0
  %227 = vmatpush1.bf16.msra.mxu0 0
  %228 = vmatprep.subr.bf16.mxu0 0
  %229 = vmatpush1.bf16.msra.mxu0 0
  %230 = vmatprep.subr.bf16.mxu0 0
  %231 = vmatpush1.bf16.msra.mxu0 0
  %232 = vmatprep.subr.bf16.mxu0 0
  %233 = vmatpush1.bf16.msra.mxu0 0
  %234 = vmatprep.subr.bf16.mxu0 0
  %235 = vmatpush1.bf16.msra.mxu0 0
  %236 = vmatprep.subr.bf16.mxu0 0
  %237 = vmatpush1.bf16.msra.mxu0 0
  %238 = vmatprep.subr.bf16.mxu0 0
  %239 = vmatpush1.bf16.msra.mxu0 %v162
  %240 = vmatprep.subr.bf16.mxu0 0
  %241 = vmatpush1.bf16.msra.mxu0 %v161
  %242 = vmatprep.subr.bf16.mxu0 0
  %243 = vmatpush2.bf16.msra.mxu0 0
  %244 = vmatprep.subr.bf16.mxu0 0
  %245 = vmatpush2.bf16.msra.mxu0 0
  %246 = vmatprep.subr.bf16.mxu0 0
  %247 = vmatpush2.bf16.msra.mxu0 0
  %248 = vmatprep.subr.bf16.mxu0 0
  %249 = vmatpush2.bf16.msra.mxu0 0
  %250 = vmatprep.subr.bf16.mxu0 0
  %251 = vmatpush2.bf16.msra.mxu0 0
  %252 = vmatprep.subr.bf16.mxu0 0
  %253 = vmatpush2.bf16.msra.mxu0 0
  %254 = vmatprep.subr.bf16.mxu0 0
  %255 = vmatpush2.bf16.msra.mxu0 0
  %256 = vmatprep.subr.bf16.mxu0 0
  %257 = vmatpush2.bf16.msra.mxu0 0
  %258 = vmatprep.mubr.bf16.mxu0 0
  %259 = vmatmul.mubr.bf16.gmra.mxu0 %v183
  %v260 = vpop.f32.mrf.mxu0
  %v261 = vadd.f32 %v220, %v260
  %v262 = vpop.f32.mrf.mxu0
  %v263 = vpop.f32.mrf.mxu0
  %v264 = vadd.f32 %v223, %v263
  %v265 = vpop.f32.mrf.mxu0
  %266 = vdwg.mxu0
  %v267 = vadd.f32 %v261, %v264
  %v268 = vrot.slane %v267, 4
  %v269 = vadd.f32 %v267, %v268
  %v270 = vrot.slane %v269, 2
  %v271 = vadd.f32 %v269, %v270
  %v272 = vrot.slane %v271, 1
  %v273 = vadd.f32 %v271, %v272
  %v274 = vmul.f32 %v273, 0.5
  %v275 = vmul.f32 %v261, %v261
  %v276 = vmul.f32 %v264, %v264
  %v277 = vadd.f32 %v275, %v276
  %v278 = vrot.slane %v277, 4
  %v279 = vadd.f32 %v277, %v278
  %v280 = vrot.slane %v279, 2
  %v281 = vadd.f32 %v279, %v280
  %v282 = vrot.slane %v281, 1
  %v283 = vadd.f32 %v281, %v282
  %v284 = vmul.f32 %v283, 0.5
  %v285 = vmul.f32 %v274, %v274
  %v286 = vsub.f32 %v284, %v285
  %v287 = vmax.f32 %v286, 0.0
  %v288 = vadd.f32 %v287, 1e-05
  %v289 = vrsqrt.pop %v288
  %v290 = vsub.f32 %v261, %v274
  %v291 = vsub.f32 %v264, %v274
  %v292 = vld [vmem:[%s2] sm:$0x1]
  %v293 = vmul.f32 %v289, %v292
  %v294 = vlaneseq
  %v295 = vshrl.u32 %v294, 7
  %v296 = vsub.s32 0, %v295
  %v297 = vrot.slane %v293, %v296
  %v298 = vmul.f32 %v290, %v297
  %v299 = vmul.f32 %v291, %v297
  %v300 = vld [vmem:[%s3] sm:$0x1]
  %v302 = vlaneseq
  %v303 = vshrl.u32 %v302, 7
  %v304 = vsub.s32 0, %v303
  %v305 = vrot.slane %v300, %v304
  %v307 = vadd.f32 %v298, %v305
  %v308 = vadd.f32 %v299, %v305
  %v309 = vmax.f32 %v307, 0.0
  %v310 = vmax.f32 %v308, 0.0
  %v311 = vpack.c.bf16 %v310, %v309
  %v313 = vunpack.c.l.b16 %v311
  %v314 = vunpack.c.h.b16 %v311
  %v315 = vpack.c.b16 %v313, %v313
  %v316 = vpack.c.b16 %v314, %v314
  %319 = vst [vmem:[%s4] sm:$0xf] %v315
  %320 = vst [vmem:[%s4 + $0x4] sm:$0xf] %v316
  // Predicated region
  $region18: #{_lambda_.35} parent=0 // pred_check
    _
  $region19: #{_lambda_.35} parent=0 // pred_check_branch
    %322 = sbr.rel (0) target = $region21
  $region20: #{_lambda_.35} parent=0 // pred_region
    _
  $region21: #{_lambda_.35} parent=0 // pred_fallthru
    _
  // Predicated region
  $region22: #{_lambda_.35} parent=0 // pred_check
    _
  $region23: #{_lambda_.35} parent=0 // pred_check_branch
    %324 = sbr.rel (0) target = $region25
  $region24: #{_lambda_.35} parent=0 // pred_region
    _
  $region25: #{_lambda_.35} parent=0 // pred_fallthru
    _

// kernel: _lambda_.36
$region0: #{_lambda_.36}
  #allocation0 [shape = 'u32[]', space=smem, size = 0x4, offset = 0x4, fixed_abs, tag = 'smem constant byte address 0x4 - core index']
  #allocation1 [shape = 'u32[144,128]{1,0:T(1,128)}', space=vmem, size = 0x12000, scoped, tag = 'internal scratch']
  %s0 = inlined_call_operand.vmem [shape: bf16[16,216], index: 0, kind: input, shape index: {}]
  %s1 = inlined_call_operand.vmem [shape: bf16[216,128], index: 1, kind: input, shape index: {}]
  %s2 = inlined_call_operand.vmem [shape: f32[1,128], index: 2, kind: input, shape index: {}]
  %s3 = inlined_call_operand.vmem [shape: f32[1,128], index: 3, kind: input, shape index: {}]
  %s4 = inlined_call_operand.vmem [shape: bf16[16,128], index: 4, kind: input, shape index: {}]
  %s5 = inlined_call_operand.vmem [shape: bf16[16,128], index: 5, kind: output, shape index: {}]
  %s6 = sld [smem:[#allocation0]]
  $region30: #{_lambda_.36} parent=0
    _
  %s8 = ssub.s32 1, %s6
  %s9 = scalar_select 0, %s8, %s6
  // Predicated region
  $region2: #{_lambda_.36} parent=0 // pred_check
    _
  $region3: #{_lambda_.36} parent=0 // pred_check_branch
    %11 = sbr.rel (0) target = $region5
  $region4: #{_lambda_.36} parent=0 // pred_region
    _
  $region5: #{_lambda_.36} parent=0 // pred_fallthru
    _
  // Predicated region
  $region6: #{_lambda_.36} parent=0 // pred_check
    _
  $region7: #{_lambda_.36} parent=0 // pred_check_branch
    %13 = sbr.rel (0) target = $region9
  $region8: #{_lambda_.36} parent=0 // pred_region
    _
  $region9: #{_lambda_.36} parent=0 // pred_fallthru
    _
  // Predicated region
  $region10: #{_lambda_.36} parent=0 // pred_check
    _
  $region11: #{_lambda_.36} parent=0 // pred_check_branch
    %15 = sbr.rel (0) target = $region13
  $region12: #{_lambda_.36} parent=0 // pred_region
    _
  $region13: #{_lambda_.36} parent=0 // pred_fallthru
    _
  // Predicated region
  $region14: #{_lambda_.36} parent=0 // pred_check
    _
  $region15: #{_lambda_.36} parent=0 // pred_check_branch
    %17 = sbr.rel (0) target = $region17
  $region16: #{_lambda_.36} parent=0 // pred_region
    _
  $region17: #{_lambda_.36} parent=0 // pred_fallthru
    _
  // Predicated region
  $region18: #{_lambda_.36} parent=0 // pred_check
    _
  $region19: #{_lambda_.36} parent=0 // pred_check_branch
    %19 = sbr.rel (0) target = $region21
  $region20: #{_lambda_.36} parent=0 // pred_region
    _
  $region21: #{_lambda_.36} parent=0 // pred_fallthru
    _
  %v21 = vld [vmem:[%s0] sm:$0xff]
  %v22 = vld [vmem:[%s0 + $0x8] sm:$0xff]
  %v23 = vld [vmem:[%s1] sm:$0xf]
  %v24 = vld [vmem:[%s1 + $0x4] sm:$0xf]
  %v25 = vld [vmem:[%s1 + $0x8] sm:$0xf]
  %v26 = vld [vmem:[%s1 + $0xc] sm:$0xf]
  %v27 = vld [vmem:[%s1 + $0x10] sm:$0xf]
  %v28 = vld [vmem:[%s1 + $0x14] sm:$0xf]
  %v29 = vld [vmem:[%s1 + $0x18] sm:$0xf]
  %v30 = vld [vmem:[%s1 + $0x1c] sm:$0xf]
  %v31 = vld [vmem:[%s1 + $0x20] sm:$0xf]
  %v32 = vld [vmem:[%s1 + $0x24] sm:$0xf]
  %v33 = vld [vmem:[%s1 + $0x28] sm:$0xf]
  %v34 = vld [vmem:[%s1 + $0x2c] sm:$0xf]
  %v35 = vld [vmem:[%s1 + $0x30] sm:$0xf]
  %v36 = vld [vmem:[%s1 + $0x34] sm:$0xf]
  %v37 = vld [vmem:[%s1 + $0x38] sm:$0xf]
  %v38 = vld [vmem:[%s1 + $0x3c] sm:$0xf]
  %v39 = vld [vmem:[%s1 + $0x40] sm:$0xf]
  %v40 = vld [vmem:[%s1 + $0x44] sm:$0xf]
  %v41 = vld [vmem:[%s1 + $0x48] sm:$0xf]
  %v42 = vld [vmem:[%s1 + $0x4c] sm:$0xf]
  %v43 = vld [vmem:[%s1 + $0x50] sm:$0xf]
  %v44 = vld [vmem:[%s1 + $0x54] sm:$0xf]
  %v45 = vld [vmem:[%s1 + $0x58] sm:$0xf]
  %v46 = vld [vmem:[%s1 + $0x5c] sm:$0xf]
  %v47 = vld [vmem:[%s1 + $0x60] sm:$0xf]
  %v48 = vld [vmem:[%s1 + $0x64] sm:$0xf]
  %v49 = vld [vmem:[%s1 + $0x68] sm:$0xf]
  %v52 = vunpack.c.l.b16 %v21
  %v53 = vunpack.c.h.b16 %v21
  %v54 = vunpack.c.l.b16 %v22
  %v55 = vunpack.c.h.b16 %v22
  %v56 = vpack.c.b16 %v54, %v52
  %v57 = vpack.c.b16 %v55, %v53
  %v86 = vunpack.c.l.b16 %v23
  %v87 = vunpack.c.l.b16 %v24
  %v88 = vunpack.c.l.b16 %v25
  %v89 = vunpack.c.l.b16 %v26
  %v90 = vunpack.c.l.b16 %v27
  %v91 = vunpack.c.l.b16 %v28
  %v92 = vunpack.c.l.b16 %v29
  %v93 = vunpack.c.l.b16 %v30
  %v94 = vunpack.c.l.b16 %v31
  %v95 = vunpack.c.l.b16 %v32
  %v96 = vunpack.c.l.b16 %v33
  %v97 = vunpack.c.l.b16 %v34
  %v98 = vunpack.c.l.b16 %v35
  %v99 = vunpack.c.l.b16 %v36
  %v100 = vunpack.c.l.b16 %v37
  %v101 = vunpack.c.l.b16 %v38
  %v102 = vunpack.c.l.b16 %v39
  %v103 = vunpack.c.l.b16 %v40
  %v104 = vunpack.c.l.b16 %v41
  %v105 = vunpack.c.l.b16 %v42
  %v106 = vunpack.c.l.b16 %v43
  %v107 = vunpack.c.l.b16 %v44
  %v108 = vunpack.c.l.b16 %v45
  %v109 = vunpack.c.l.b16 %v46
  %v110 = vunpack.c.l.b16 %v47
  %v111 = vunpack.c.l.b16 %v48
  %v112 = vunpack.c.l.b16 %v49
  %v113 = vpack.c.b16 %v87, %v86
  %v114 = vpack.c.b16 %v89, %v88
  %v115 = vpack.c.b16 %v91, %v90
  %v116 = vpack.c.b16 %v93, %v92
  %v117 = vpack.c.b16 %v95, %v94
  %v118 = vpack.c.b16 %v97, %v96
  %v119 = vpack.c.b16 %v99, %v98
  %v120 = vpack.c.b16 %v101, %v100
  %v121 = vpack.c.b16 %v103, %v102
  %v122 = vpack.c.b16 %v105, %v104
  %v123 = vpack.c.b16 %v107, %v106
  %v124 = vpack.c.b16 %v109, %v108
  %v125 = vpack.c.b16 %v111, %v110
  %v126 = vpack.c.b16 %v112, %v112
  %vm140 = vcmask 719872
  %v142 = vsel %vm140, %v57, 0
  %vm144 = vcmask 1043456
  %v146 = vsel %vm144, %v126, 0
  %148 = vmatprep.subr.bf16.mxu0 0
  %149 = vmatpush1.bf16.msra.mxu0 %v120
  %150 = vmatprep.subr.bf16.mxu0 0
  %151 = vmatpush1.bf16.msra.mxu0 %v119
  %152 = vmatprep.subr.bf16.mxu0 0
  %153 = vmatpush1.bf16.msra.mxu0 %v118
  %154 = vmatprep.subr.bf16.mxu0 0
  %155 = vmatpush1.bf16.msra.mxu0 %v117
  %156 = vmatprep.subr.bf16.mxu0 0
  %157 = vmatpush1.bf16.msra.mxu0 %v116
  %158 = vmatprep.subr.bf16.mxu0 0
  %159 = vmatpush1.bf16.msra.mxu0 %v115
  %160 = vmatprep.subr.bf16.mxu0 0
  %161 = vmatpush1.bf16.msra.mxu0 %v114
  %162 = vmatprep.subr.bf16.mxu0 0
  %163 = vmatpush1.bf16.msra.mxu0 %v113
  %164 = vmatprep.subr.bf16.mxu0 0
  %165 = vmatpush2.bf16.msra.mxu0 0
  %166 = vmatprep.subr.bf16.mxu0 0
  %167 = vmatpush2.bf16.msra.mxu0 0
  %168 = vmatprep.subr.bf16.mxu0 0
  %169 = vmatpush2.bf16.msra.mxu0 %v146
  %170 = vmatprep.subr.bf16.mxu0 0
  %171 = vmatpush2.bf16.msra.mxu0 %v125
  %172 = vmatprep.subr.bf16.mxu0 0
  %173 = vmatpush2.bf16.msra.mxu0 %v124
  %174 = vmatprep.subr.bf16.mxu0 0
  %175 = vmatpush2.bf16.msra.mxu0 %v123
  %176 = vmatprep.subr.bf16.mxu0 0
  %177 = vmatpush2.bf16.msra.mxu0 %v122
  %178 = vmatprep.subr.bf16.mxu0 0
  %179 = vmatpush2.bf16.msra.mxu0 %v121
  %180 = vmatprep.mubr.bf16.mxu0 %v142
  %181 = vmatmul.mubr.bf16.gmra.mxu0 %v56
  %v182 = vpop.f32.mrf.mxu0
  %v183 = vadd.f32 0.0, %v182
  %v184 = vpop.f32.mrf.mxu0
  %v185 = vpop.f32.mrf.mxu0
  %v186 = vadd.f32 0.0, %v185
  %v187 = vpop.f32.mrf.mxu0
  %188 = vdwg.mxu0
  %v189 = vadd.f32 %v183, %v186
  %v190 = vrot.slane %v189, 4
  %v191 = vadd.f32 %v189, %v190
  %v192 = vrot.slane %v191, 2
  %v193 = vadd.f32 %v191, %v192
  %v194 = vrot.slane %v193, 1
  %v195 = vadd.f32 %v193, %v194
  %v196 = vmul.f32 %v195, 0.5
  %v197 = vmul.f32 %v183, %v183
  %v198 = vmul.f32 %v186, %v186
  %v199 = vadd.f32 %v197, %v198
  %v200 = vrot.slane %v199, 4
  %v201 = vadd.f32 %v199, %v200
  %v202 = vrot.slane %v201, 2
  %v203 = vadd.f32 %v201, %v202
  %v204 = vrot.slane %v203, 1
  %v205 = vadd.f32 %v203, %v204
  %v206 = vmul.f32 %v205, 0.5
  %v207 = vmul.f32 %v196, %v196
  %v208 = vsub.f32 %v206, %v207
  %v209 = vmax.f32 %v208, 0.0
  %v210 = vadd.f32 %v209, 1e-05
  %v211 = vrsqrt.pop %v210
  %v212 = vsub.f32 %v183, %v196
  %v213 = vsub.f32 %v186, %v196
  %v214 = vld [vmem:[%s2] sm:$0x1]
  %v215 = vmul.f32 %v211, %v214
  %v216 = vlaneseq
  %v217 = vshrl.u32 %v216, 7
  %v218 = vsub.s32 0, %v217
  %v219 = vrot.slane %v215, %v218
  %v220 = vmul.f32 %v212, %v219
  %v221 = vmul.f32 %v213, %v219
  %v222 = vld [vmem:[%s3] sm:$0x1]
  %v224 = vlaneseq
  %v225 = vshrl.u32 %v224, 7
  %v226 = vsub.s32 0, %v225
  %v227 = vrot.slane %v222, %v226
  %v229 = vadd.f32 %v220, %v227
  %v230 = vadd.f32 %v221, %v227
  %v231 = vld [vmem:[%s4] sm:$0xf]
  %v232 = vld [vmem:[%s4 + $0x4] sm:$0xf]
  %v233 = vunpack.c.l.bf16 %v231
  %v234 = vunpack.c.l.bf16 %v232
  %v235 = vadd.f32 %v229, %v233
  %v236 = vadd.f32 %v230, %v234
  %v237 = vmax.f32 %v235, 0.0
  %v238 = vmax.f32 %v236, 0.0
  %v239 = vpack.c.bf16 %v238, %v237
  %v241 = vunpack.c.l.b16 %v239
  %v242 = vunpack.c.h.b16 %v239
  %v243 = vpack.c.b16 %v241, %v241
  %v244 = vpack.c.b16 %v242, %v242
  %247 = vst [vmem:[%s5] sm:$0xf] %v243
  %248 = vst [vmem:[%s5 + $0x4] sm:$0xf] %v244
  // Predicated region
  $region22: #{_lambda_.36} parent=0 // pred_check
    _
  $region23: #{_lambda_.36} parent=0 // pred_check_branch
    %250 = sbr.rel (0) target = $region25
  $region24: #{_lambda_.36} parent=0 // pred_region
    _
  $region25: #{_lambda_.36} parent=0 // pred_fallthru
    _
  // Predicated region
  $region26: #{_lambda_.36} parent=0 // pred_check
    _
  $region27: #{_lambda_.36} parent=0 // pred_check_branch
    %252 = sbr.rel (0) target = $region29
  $region28: #{_lambda_.36} parent=0 // pred_region
    _
  $region29: #{_lambda_.36} parent=0 // pred_fallthru
    _

// kernel: _lambda_.37
$region0: #{_lambda_.37}
  #allocation0 [shape = 'u32[]', space=smem, size = 0x4, offset = 0x4, fixed_abs, tag = 'smem constant byte address 0x4 - core index']
  #allocation1 [shape = 'u32[144,128]{1,0:T(1,128)}', space=vmem, size = 0x12000, scoped, tag = 'internal scratch']
  %s0 = inlined_call_operand.vmem [shape: bf16[16,288], index: 0, kind: input, shape index: {}]
  %s1 = inlined_call_operand.vmem [shape: bf16[288,128], index: 1, kind: input, shape index: {}]
  %s2 = inlined_call_operand.hbm [shape: f32[1,128], index: 2, kind: input, shape index: {}]
  %s3 = inlined_call_operand.hbm [shape: f32[1,128], index: 3, kind: input, shape index: {}]
  %s4 = inlined_call_operand.vmem [shape: bf16[16,128], index: 4, kind: output, shape index: {}]
  %s5 = sld [smem:[#allocation0]]
  $region34: #{_lambda_.37} parent=0
    _
  %s7 = ssub.s32 1, %s5
  %s8 = scalar_select 0, %s7, %s5
  $region1: #{_lambda_.37} parent=0
    #allocation2 [shape = 'u8[512]{0}', space=vmem, size = 0x400, scoped, tag = 'input window, operand 2, single buffered']
    #allocation3 [shape = 's32[1]{0}', space=sflag, size = 0x4, scoped, tag = 'scoped memory for _lambda_.37']
    #allocation4 [shape = 'u8[512]{0}', space=vmem, size = 0x400, scoped, tag = 'input window, operand 3, single buffered']
    #allocation5 [shape = 's32[1]{0}', space=sflag, size = 0x4, scoped, tag = 'scoped memory for _lambda_.37']
    %9 = vsyncpa [#allocation3], 0
    %10 = vsyncpa [#allocation5], 0
    // Predicated region
    $region2: #{_lambda_.37} parent=1 // pred_check
      _
    $region3: #{_lambda_.37} parent=1 // pred_check_branch
      %12 = sbr.rel (0) target = $region5
    $region4: #{_lambda_.37} parent=1 // pred_region
      _
    $region5: #{_lambda_.37} parent=1 // pred_fallthru
      _
    // Predicated region
    $region6: #{_lambda_.37} parent=1 // pred_check
      _
    $region7: #{_lambda_.37} parent=1 // pred_check_branch
      %14 = sbr.rel (0) target = $region9
    $region8: #{_lambda_.37} parent=1 // pred_region
      _
    $region9: #{_lambda_.37} parent=1 // pred_fallthru
      _
    // Predicated region
    $region10: #{_lambda_.37} parent=1 // pred_check
      _
    $region11: #{_lambda_.37} parent=1 // pred_check_branch
      %16 = sbr.rel (0) target = $region13
    $region12: #{_lambda_.37} parent=1 // pred_region
      %s18 = ssub.s32 16, 16
      %19 = vsyncadd [#allocation3], %s18
      %s21 = sshll.u32 [#allocation2], 4
      %s22 = int_to_ptr.vmem [resolvable:$true] %s21
      %24 = dma.hbm_to_vmem [thread:$0]  %s2, 16, %s22, [#allocation3]
    $region13: #{_lambda_.37} parent=1 // pred_fallthru
      _
    // Predicated region
    $region14: #{_lambda_.37} parent=1 // pred_check
      _
    $region15: #{_lambda_.37} parent=1 // pred_check_branch
      %26 = sbr.rel (0) target = $region17
    $region16: #{_lambda_.37} parent=1 // pred_region
      %s28 = ssub.s32 16, 16
      %29 = vsyncadd [#allocation5], %s28
      %s31 = sshll.u32 [#allocation4], 4
      %s32 = int_to_ptr.vmem [resolvable:$true] %s31
      %34 = dma.hbm_to_vmem [thread:$0]  %s3, 16, %s32, [#allocation5]
    $region17: #{_lambda_.37} parent=1 // pred_fallthru
      _
    // Predicated region
    $region18: #{_lambda_.37} parent=1 // pred_check
      _
    $region19: #{_lambda_.37} parent=1 // pred_check_branch
      %36 = sbr.rel (0) target = $region21
    $region20: #{_lambda_.37} parent=1 // pred_region
      %37 = dma.done [#allocation3], 16
    $region21: #{_lambda_.37} parent=1 // pred_fallthru
      _
    // Predicated region
    $region22: #{_lambda_.37} parent=1 // pred_check
      _
    $region23: #{_lambda_.37} parent=1 // pred_check_branch
      %39 = sbr.rel (0) target = $region25
    $region24: #{_lambda_.37} parent=1 // pred_region
      %40 = dma.done [#allocation5], 16
    $region25: #{_lambda_.37} parent=1 // pred_fallthru
      _
    %v42 = vld [vmem:[%s0] sm:$0xff]
    %v43 = vld [vmem:[%s0 + $0x8] sm:$0xf]
    %v44 = vld [vmem:[%s0 + $0xc] sm:$0xff]
    %v45 = vld [vmem:[%s0 + $0x14] sm:$0xf]
    %v46 = vld [vmem:[%s1] sm:$0xf]
    %v47 = vld [vmem:[%s1 + $0x4] sm:$0xf]
    %v48 = vld [vmem:[%s1 + $0x8] sm:$0xf]
    %v49 = vld [vmem:[%s1 + $0xc] sm:$0xf]
    %v50 = vld [vmem:[%s1 + $0x10] sm:$0xf]
    %v51 = vld [vmem:[%s1 + $0x14] sm:$0xf]
    %v52 = vld [vmem:[%s1 + $0x18] sm:$0xf]
    %v53 = vld [vmem:[%s1 + $0x1c] sm:$0xf]
    %v54 = vld [vmem:[%s1 + $0x20] sm:$0xf]
    %v55 = vld [vmem:[%s1 + $0x24] sm:$0xf]
    %v56 = vld [vmem:[%s1 + $0x28] sm:$0xf]
    %v57 = vld [vmem:[%s1 + $0x2c] sm:$0xf]
    %v58 = vld [vmem:[%s1 + $0x30] sm:$0xf]
    %v59 = vld [vmem:[%s1 + $0x34] sm:$0xf]
    %v60 = vld [vmem:[%s1 + $0x38] sm:$0xf]
    %v61 = vld [vmem:[%s1 + $0x3c] sm:$0xf]
    %v62 = vld [vmem:[%s1 + $0x40] sm:$0xf]
    %v63 = vld [vmem:[%s1 + $0x44] sm:$0xf]
    %v64 = vld [vmem:[%s1 + $0x48] sm:$0xf]
    %v65 = vld [vmem:[%s1 + $0x4c] sm:$0xf]
    %v66 = vld [vmem:[%s1 + $0x50] sm:$0xf]
    %v67 = vld [vmem:[%s1 + $0x54] sm:$0xf]
    %v68 = vld [vmem:[%s1 + $0x58] sm:$0xf]
    %v69 = vld [vmem:[%s1 + $0x5c] sm:$0xf]
    %v70 = vld [vmem:[%s1 + $0x60] sm:$0xf]
    %v71 = vld [vmem:[%s1 + $0x64] sm:$0xf]
    %v72 = vld [vmem:[%s1 + $0x68] sm:$0xf]
    %v73 = vld [vmem:[%s1 + $0x6c] sm:$0xf]
    %v74 = vld [vmem:[%s1 + $0x70] sm:$0xf]
    %v75 = vld [vmem:[%s1 + $0x74] sm:$0xf]
    %v76 = vld [vmem:[%s1 + $0x78] sm:$0xf]
    %v77 = vld [vmem:[%s1 + $0x7c] sm:$0xf]
    %v78 = vld [vmem:[%s1 + $0x80] sm:$0xf]
    %v79 = vld [vmem:[%s1 + $0x84] sm:$0xf]
    %v80 = vld [vmem:[%s1 + $0x88] sm:$0xf]
    %v81 = vld [vmem:[%s1 + $0x8c] sm:$0xf]
    %v86 = vunpack.c.l.b16 %v42
    %v87 = vunpack.c.h.b16 %v42
    %v88 = vunpack.c.l.b16 %v43
    %v89 = vunpack.c.l.b16 %v44
    %v90 = vunpack.c.h.b16 %v44
    %v91 = vunpack.c.l.b16 %v45
    %v92 = vpack.c.b16 %v89, %v86
    %v93 = vpack.c.b16 %v90, %v87
    %v94 = vpack.c.b16 %v91, %v88
    %v133 = vunpack.c.l.b16 %v46
    %v134 = vunpack.c.l.b16 %v47
    %v135 = vunpack.c.l.b16 %v48
    %v136 = vunpack.c.l.b16 %v49
    %v137 = vunpack.c.l.b16 %v50
    %v138 = vunpack.c.l.b16 %v51
    %v139 = vunpack.c.l.b16 %v52
    %v140 = vunpack.c.l.b16 %v53
    %v141 = vunpack.c.l.b16 %v54
    %v142 = vunpack.c.l.b16 %v55
    %v143 = vunpack.c.l.b16 %v56
    %v144 = vunpack.c.l.b16 %v57
    %v145 = vunpack.c.l.b16 %v58
    %v146 = vunpack.c.l.b16 %v59
    %v147 = vunpack.c.l.b16 %v60
    %v148 = vunpack.c.l.b16 %v61
    %v149 = vunpack.c.l.b16 %v62
    %v150 = vunpack.c.l.b16 %v63
    %v151 = vunpack.c.l.b16 %v64
    %v152 = vunpack.c.l.b16 %v65
    %v153 = vunpack.c.l.b16 %v66
    %v154 = vunpack.c.l.b16 %v67
    %v155 = vunpack.c.l.b16 %v68
    %v156 = vunpack.c.l.b16 %v69
    %v157 = vunpack.c.l.b16 %v70
    %v158 = vunpack.c.l.b16 %v71
    %v159 = vunpack.c.l.b16 %v72
    %v160 = vunpack.c.l.b16 %v73
    %v161 = vunpack.c.l.b16 %v74
    %v162 = vunpack.c.l.b16 %v75
    %v163 = vunpack.c.l.b16 %v76
    %v164 = vunpack.c.l.b16 %v77
    %v165 = vunpack.c.l.b16 %v78
    %v166 = vunpack.c.l.b16 %v79
    %v167 = vunpack.c.l.b16 %v80
    %v168 = vunpack.c.l.b16 %v81
    %v169 = vpack.c.b16 %v134, %v133
    %v170 = vpack.c.b16 %v136, %v135
    %v171 = vpack.c.b16 %v138, %v137
    %v172 = vpack.c.b16 %v140, %v139
    %v173 = vpack.c.b16 %v142, %v141
    %v174 = vpack.c.b16 %v144, %v143
    %v175 = vpack.c.b16 %v146, %v145
    %v176 = vpack.c.b16 %v148, %v147
    %v177 = vpack.c.b16 %v150, %v149
    %v178 = vpack.c.b16 %v152, %v151
    %v179 = vpack.c.b16 %v154, %v153
    %v180 = vpack.c.b16 %v156, %v155
    %v181 = vpack.c.b16 %v158, %v157
    %v182 = vpack.c.b16 %v160, %v159
    %v183 = vpack.c.b16 %v162, %v161
    %v184 = vpack.c.b16 %v164, %v163
    %v185 = vpack.c.b16 %v166, %v165
    %v186 = vpack.c.b16 %v168, %v167
    %vm205 = vcmask 261120
    %v207 = vsel %vm205, %v94, 0
    %209 = vmatprep.subr.bf16.mxu0 0
    %210 = vmatpush1.bf16.msra.mxu0 %v176
    %211 = vmatprep.subr.bf16.mxu0 0
    %212 = vmatpush1.bf16.msra.mxu0 %v175
    %213 = vmatprep.subr.bf16.mxu0 0
    %214 = vmatpush1.bf16.msra.mxu0 %v174
    %215 = vmatprep.subr.bf16.mxu0 0
    %216 = vmatpush1.bf16.msra.mxu0 %v173
    %217 = vmatprep.subr.bf16.mxu0 0
    %218 = vmatpush1.bf16.msra.mxu0 %v172
    %219 = vmatprep.subr.bf16.mxu0 0
    %220 = vmatpush1.bf16.msra.mxu0 %v171
    %221 = vmatprep.subr.bf16.mxu0 0
    %222 = vmatpush1.bf16.msra.mxu0 %v170
    %223 = vmatprep.subr.bf16.mxu0 0
    %224 = vmatpush1.bf16.msra.mxu0 %v169
    %225 = vmatprep.subr.bf16.mxu0 0
    %226 = vmatpush2.bf16.msra.mxu0 %v184
    %227 = vmatprep.subr.bf16.mxu0 0
    %228 = vmatpush2.bf16.msra.mxu0 %v183
    %229 = vmatprep.subr.bf16.mxu0 0
    %230 = vmatpush2.bf16.msra.mxu0 %v182
    %231 = vmatprep.subr.bf16.mxu0 0
    %232 = vmatpush2.bf16.msra.mxu0 %v181
    %233 = vmatprep.subr.bf16.mxu0 0
    %234 = vmatpush2.bf16.msra.mxu0 %v180
    %235 = vmatprep.subr.bf16.mxu0 0
    %236 = vmatpush2.bf16.msra.mxu0 %v179
    %237 = vmatprep.subr.bf16.mxu0 0
    %238 = vmatpush2.bf16.msra.mxu0 %v178
    %239 = vmatprep.subr.bf16.mxu0 0
    %240 = vmatpush2.bf16.msra.mxu0 %v177
    %241 = vmatprep.mubr.bf16.mxu0 %v93
    %242 = vmatmul.mubr.bf16.gmra.mxu0 %v92
    %v243 = vpop.f32.mrf.mxu0
    %v244 = vadd.f32 0.0, %v243
    %v245 = vpop.f32.mrf.mxu0
    %v246 = vpop.f32.mrf.mxu0
    %v247 = vadd.f32 0.0, %v246
    %v248 = vpop.f32.mrf.mxu0
    %249 = vdwg.mxu0
    %250 = vmatprep.subr.bf16.mxu0 0
    %251 = vmatpush1.bf16.msra.mxu0 0
    %252 = vmatprep.subr.bf16.mxu0 0
    %253 = vmatpush1.bf16.msra.mxu0 0
    %254 = vmatprep.subr.bf16.mxu0 0
    %255 = vmatpush1.bf16.msra.mxu0 0
    %256 = vmatprep.subr.bf16.mxu0 0
    %257 = vmatpush1.bf16.msra.mxu0 0
    %258 = vmatprep.subr.bf16.mxu0 0
    %259 = vmatpush1.bf16.msra.mxu0 0
    %260 = vmatprep.subr.bf16.mxu0 0
    %261 = vmatpush1.bf16.msra.mxu0 0
    %262 = vmatprep.subr.bf16.mxu0 0
    %263 = vmatpush1.bf16.msra.mxu0 %v186
    %264 = vmatprep.subr.bf16.mxu0 0
    %265 = vmatpush1.bf16.msra.mxu0 %v185
    %266 = vmatprep.subr.bf16.mxu0 0
    %267 = vmatpush2.bf16.msra.mxu0 0
    %268 = vmatprep.subr.bf16.mxu0 0
    %269 = vmatpush2.bf16.msra.mxu0 0
    %270 = vmatprep.subr.bf16.mxu0 0
    %271 = vmatpush2.bf16.msra.mxu0 0
    %272 = vmatprep.subr.bf16.mxu0 0
    %273 = vmatpush2.bf16.msra.mxu0 0
    %274 = vmatprep.subr.bf16.mxu0 0
    %275 = vmatpush2.bf16.msra.mxu0 0
    %276 = vmatprep.subr.bf16.mxu0 0
    %277 = vmatpush2.bf16.msra.mxu0 0
    %278 = vmatprep.subr.bf16.mxu0 0
    %279 = vmatpush2.bf16.msra.mxu0 0
    %280 = vmatprep.subr.bf16.mxu0 0
    %281 = vmatpush2.bf16.msra.mxu0 0
    %282 = vmatprep.mubr.bf16.mxu0 0
    %283 = vmatmul.mubr.bf16.gmra.mxu0 %v207
    %v284 = vpop.f32.mrf.mxu0
    %v285 = vadd.f32 %v244, %v284
    %v286 = vpop.f32.mrf.mxu0
    %v287 = vpop.f32.mrf.mxu0
    %v288 = vadd.f32 %v247, %v287
    %v289 = vpop.f32.mrf.mxu0
    %290 = vdwg.mxu0
    %v291 = vadd.f32 %v285, %v288
    %v292 = vrot.slane %v291, 4
    %v293 = vadd.f32 %v291, %v292
    %v294 = vrot.slane %v293, 2
    %v295 = vadd.f32 %v293, %v294
    %v296 = vrot.slane %v295, 1
    %v297 = vadd.f32 %v295, %v296
    %v298 = vmul.f32 %v297, 0.5
    %v299 = vmul.f32 %v285, %v285
    %v300 = vmul.f32 %v288, %v288
    %v301 = vadd.f32 %v299, %v300
    %v302 = vrot.slane %v301, 4
    %v303 = vadd.f32 %v301, %v302
    %v304 = vrot.slane %v303, 2
    %v305 = vadd.f32 %v303, %v304
    %v306 = vrot.slane %v305, 1
    %v307 = vadd.f32 %v305, %v306
    %v308 = vmul.f32 %v307, 0.5
    %v309 = vmul.f32 %v298, %v298
    %v310 = vsub.f32 %v308, %v309
    %v311 = vmax.f32 %v310, 0.0
    %v312 = vadd.f32 %v311, 1e-05
    %v313 = vrsqrt.pop %v312
    %v314 = vsub.f32 %v285, %v298
    %v315 = vsub.f32 %v288, %v298
    %v316 = vld [vmem:[#allocation2] sm:$0x1]
    %v317 = vmul.f32 %v313, %v316
    %v318 = vlaneseq
    %v319 = vshrl.u32 %v318, 7
    %v320 = vsub.s32 0, %v319
    %v321 = vrot.slane %v317, %v320
    %v322 = vmul.f32 %v314, %v321
    %v323 = vmul.f32 %v315, %v321
    %v324 = vld [vmem:[#allocation4] sm:$0x1]
    %v326 = vlaneseq
    %v327 = vshrl.u32 %v326, 7
    %v328 = vsub.s32 0, %v327
    %v329 = vrot.slane %v324, %v328
    %v331 = vadd.f32 %v322, %v329
    %v332 = vadd.f32 %v323, %v329
    %v333 = vmax.f32 %v331, 0.0
    %v334 = vmax.f32 %v332, 0.0
    %v335 = vpack.c.bf16 %v334, %v333
    %v337 = vunpack.c.l.b16 %v335
    %v338 = vunpack.c.h.b16 %v335
    %v339 = vpack.c.b16 %v337, %v337
    %v340 = vpack.c.b16 %v338, %v338
    %343 = vst [vmem:[%s4] sm:$0xf] %v339
    %344 = vst [vmem:[%s4 + $0x4] sm:$0xf] %v340
    // Predicated region
    $region26: #{_lambda_.37} parent=1 // pred_check
      _
    $region27: #{_lambda_.37} parent=1 // pred_check_branch
      %346 = sbr.rel (0) target = $region29
    $region28: #{_lambda_.37} parent=1 // pred_region
      _
    $region29: #{_lambda_.37} parent=1 // pred_fallthru
      _
    // Predicated region
    $region30: #{_lambda_.37} parent=1 // pred_check
      _
    $region31: #{_lambda_.37} parent=1 // pred_check_branch
      %348 = sbr.rel (0) target = $region33
    $region32: #{_lambda_.37} parent=1 // pred_region
      _
    $region33: #{_lambda_.37} parent=1 // pred_fallthru
      _
    %349 = vsyncpa [#allocation3], 1
    %350 = vsyncpa [#allocation5], 1

// kernel: _lambda_.38
$region0: #{_lambda_.38}
  #allocation0 [shape = 'u32[]', space=smem, size = 0x4, offset = 0x4, fixed_abs, tag = 'smem constant byte address 0x4 - core index']
  #allocation1 [shape = 'u32[144,128]{1,0:T(1,128)}', space=vmem, size = 0x12000, scoped, tag = 'internal scratch']
  %s0 = inlined_call_operand.vmem [shape: bf16[16,345], index: 0, kind: input, shape index: {}]
  %s1 = inlined_call_operand.vmem [shape: bf16[345,128], index: 1, kind: input, shape index: {}]
  %s2 = inlined_call_operand.hbm [shape: f32[1,128], index: 2, kind: input, shape index: {}]
  %s3 = inlined_call_operand.hbm [shape: f32[1,128], index: 3, kind: input, shape index: {}]
  %s4 = inlined_call_operand.vmem [shape: bf16[16,128], index: 4, kind: output, shape index: {}]
  %s5 = sld [smem:[#allocation0]]
  $region34: #{_lambda_.38} parent=0
    _
  %s7 = ssub.s32 1, %s5
  %s8 = scalar_select 0, %s7, %s5
  $region1: #{_lambda_.38} parent=0
    #allocation2 [shape = 'u8[512]{0}', space=vmem, size = 0x400, scoped, tag = 'input window, operand 2, single buffered']
    #allocation3 [shape = 's32[1]{0}', space=sflag, size = 0x4, scoped, tag = 'scoped memory for _lambda_.38']
    #allocation4 [shape = 'u8[512]{0}', space=vmem, size = 0x400, scoped, tag = 'input window, operand 3, single buffered']
    #allocation5 [shape = 's32[1]{0}', space=sflag, size = 0x4, scoped, tag = 'scoped memory for _lambda_.38']
    %9 = vsyncpa [#allocation3], 0
    %10 = vsyncpa [#allocation5], 0
    // Predicated region
    $region2: #{_lambda_.38} parent=1 // pred_check
      _
    $region3: #{_lambda_.38} parent=1 // pred_check_branch
      %12 = sbr.rel (0) target = $region5
    $region4: #{_lambda_.38} parent=1 // pred_region
      _
    $region5: #{_lambda_.38} parent=1 // pred_fallthru
      _
    // Predicated region
    $region6: #{_lambda_.38} parent=1 // pred_check
      _
    $region7: #{_lambda_.38} parent=1 // pred_check_branch
      %14 = sbr.rel (0) target = $region9
    $region8: #{_lambda_.38} parent=1 // pred_region
      _
    $region9: #{_lambda_.38} parent=1 // pred_fallthru
      _
    // Predicated region
    $region10: #{_lambda_.38} parent=1 // pred_check
      _
    $region11: #{_lambda_.38} parent=1 // pred_check_branch
      %16 = sbr.rel (0) target = $region13
    $region12: #{_lambda_.38} parent=1 // pred_region
      %s18 = ssub.s32 16, 16
      %19 = vsyncadd [#allocation3], %s18
      %s21 = sshll.u32 [#allocation2], 4
      %s22 = int_to_ptr.vmem [resolvable:$true] %s21
      %24 = dma.hbm_to_vmem [thread:$0]  %s2, 16, %s22, [#allocation3]
    $region13: #{_lambda_.38} parent=1 // pred_fallthru
      _
    // Predicated region
    $region14: #{_lambda_.38} parent=1 // pred_check
      _
    $region15: #{_lambda_.38} parent=1 // pred_check_branch
      %26 = sbr.rel (0) target = $region17
    $region16: #{_lambda_.38} parent=1 // pred_region
      %s28 = ssub.s32 16, 16
      %29 = vsyncadd [#allocation5], %s28
      %s31 = sshll.u32 [#allocation4], 4
      %s32 = int_to_ptr.vmem [resolvable:$true] %s31
      %34 = dma.hbm_to_vmem [thread:$0]  %s3, 16, %s32, [#allocation5]
    $region17: #{_lambda_.38} parent=1 // pred_fallthru
      _
    // Predicated region
    $region18: #{_lambda_.38} parent=1 // pred_check
      _
    $region19: #{_lambda_.38} parent=1 // pred_check_branch
      %36 = sbr.rel (0) target = $region21
    $region20: #{_lambda_.38} parent=1 // pred_region
      %37 = dma.done [#allocation3], 16
    $region21: #{_lambda_.38} parent=1 // pred_fallthru
      _
    // Predicated region
    $region22: #{_lambda_.38} parent=1 // pred_check
      _
    $region23: #{_lambda_.38} parent=1 // pred_check_branch
      %39 = sbr.rel (0) target = $region25
    $region24: #{_lambda_.38} parent=1 // pred_region
      %40 = dma.done [#allocation5], 16
    $region25: #{_lambda_.38} parent=1 // pred_fallthru
      _
    %v42 = vld [vmem:[%s0] sm:$0xff]
    %v43 = vld [vmem:[%s0 + $0x8] sm:$0xf]
    %v44 = vld [vmem:[%s0 + $0xc] sm:$0xff]
    %v45 = vld [vmem:[%s0 + $0x14] sm:$0xf]
    %v46 = vld [vmem:[%s1] sm:$0xf]
    %v47 = vld [vmem:[%s1 + $0x4] sm:$0xf]
    %v48 = vld [vmem:[%s1 + $0x8] sm:$0xf]
    %v49 = vld [vmem:[%s1 + $0xc] sm:$0xf]
    %v50 = vld [vmem:[%s1 + $0x10] sm:$0xf]
    %v51 = vld [vmem:[%s1 + $0x14] sm:$0xf]
    %v52 = vld [vmem:[%s1 + $0x18] sm:$0xf]
    %v53 = vld [vmem:[%s1 + $0x1c] sm:$0xf]
    %v54 = vld [vmem:[%s1 + $0x20] sm:$0xf]
    %v55 = vld [vmem:[%s1 + $0x24] sm:$0xf]
    %v56 = vld [vmem:[%s1 + $0x28] sm:$0xf]
    %v57 = vld [vmem:[%s1 + $0x2c] sm:$0xf]
    %v58 = vld [vmem:[%s1 + $0x30] sm:$0xf]
    %v59 = vld [vmem:[%s1 + $0x34] sm:$0xf]
    %v60 = vld [vmem:[%s1 + $0x38] sm:$0xf]
    %v61 = vld [vmem:[%s1 + $0x3c] sm:$0xf]
    %v62 = vld [vmem:[%s1 + $0x40] sm:$0xf]
    %v63 = vld [vmem:[%s1 + $0x44] sm:$0xf]
    %v64 = vld [vmem:[%s1 + $0x48] sm:$0xf]
    %v65 = vld [vmem:[%s1 + $0x4c] sm:$0xf]
    %v66 = vld [vmem:[%s1 + $0x50] sm:$0xf]
    %v67 = vld [vmem:[%s1 + $0x54] sm:$0xf]
    %v68 = vld [vmem:[%s1 + $0x58] sm:$0xf]
    %v69 = vld [vmem:[%s1 + $0x5c] sm:$0xf]
    %v70 = vld [vmem:[%s1 + $0x60] sm:$0xf]
    %v71 = vld [vmem:[%s1 + $0x64] sm:$0xf]
    %v72 = vld [vmem:[%s1 + $0x68] sm:$0xf]
    %v73 = vld [vmem:[%s1 + $0x6c] sm:$0xf]
    %v74 = vld [vmem:[%s1 + $0x70] sm:$0xf]
    %v75 = vld [vmem:[%s1 + $0x74] sm:$0xf]
    %v76 = vld [vmem:[%s1 + $0x78] sm:$0xf]
    %v77 = vld [vmem:[%s1 + $0x7c] sm:$0xf]
    %v78 = vld [vmem:[%s1 + $0x80] sm:$0xf]
    %v79 = vld [vmem:[%s1 + $0x84] sm:$0xf]
    %v80 = vld [vmem:[%s1 + $0x88] sm:$0xf]
    %v81 = vld [vmem:[%s1 + $0x8c] sm:$0xf]
    %v82 = vld [vmem:[%s1 + $0x90] sm:$0xf]
    %v83 = vld [vmem:[%s1 + $0x94] sm:$0xf]
    %v84 = vld [vmem:[%s1 + $0x98] sm:$0xf]
    %v85 = vld [vmem:[%s1 + $0x9c] sm:$0xf]
    %v86 = vld [vmem:[%s1 + $0xa0] sm:$0xf]
    %v87 = vld [vmem:[%s1 + $0xa4] sm:$0xf]
    %v88 = vld [vmem:[%s1 + $0xa8] sm:$0xf]
    %v89 = vld [vmem:[%s1 + $0xac] sm:$0x1]
    %v94 = vunpack.c.l.b16 %v42
    %v95 = vunpack.c.h.b16 %v42
    %v96 = vunpack.c.l.b16 %v43
    %v97 = vunpack.c.l.b16 %v44
    %v98 = vunpack.c.h.b16 %v44
    %v99 = vunpack.c.l.b16 %v45
    %v100 = vpack.c.b16 %v97, %v94
    %v101 = vpack.c.b16 %v98, %v95
    %v102 = vpack.c.b16 %v99, %v96
    %v149 = vunpack.c.l.b16 %v46
    %v150 = vunpack.c.l.b16 %v47
    %v151 = vunpack.c.l.b16 %v48
    %v152 = vunpack.c.l.b16 %v49
    %v153 = vunpack.c.l.b16 %v50
    %v154 = vunpack.c.l.b16 %v51
    %v155 = vunpack.c.l.b16 %v52
    %v156 = vunpack.c.l.b16 %v53
    %v157 = vunpack.c.l.b16 %v54
    %v158 = vunpack.c.l.b16 %v55
    %v159 = vunpack.c.l.b16 %v56
    %v160 = vunpack.c.l.b16 %v57
    %v161 = vunpack.c.l.b16 %v58
    %v162 = vunpack.c.l.b16 %v59
    %v163 = vunpack.c.l.b16 %v60
    %v164 = vunpack.c.l.b16 %v61
    %v165 = vunpack.c.l.b16 %v62
    %v166 = vunpack.c.l.b16 %v63
    %v167 = vunpack.c.l.b16 %v64
    %v168 = vunpack.c.l.b16 %v65
    %v169 = vunpack.c.l.b16 %v66
    %v170 = vunpack.c.l.b16 %v67
    %v171 = vunpack.c.l.b16 %v68
    %v172 = vunpack.c.l.b16 %v69
    %v173 = vunpack.c.l.b16 %v70
    %v174 = vunpack.c.l.b16 %v71
    %v175 = vunpack.c.l.b16 %v72
    %v176 = vunpack.c.l.b16 %v73
    %v177 = vunpack.c.l.b16 %v74
    %v178 = vunpack.c.l.b16 %v75
    %v179 = vunpack.c.l.b16 %v76
    %v180 = vunpack.c.l.b16 %v77
    %v181 = vunpack.c.l.b16 %v78
    %v182 = vunpack.c.l.b16 %v79
    %v183 = vunpack.c.l.b16 %v80
    %v184 = vunpack.c.l.b16 %v81
    %v185 = vunpack.c.l.b16 %v82
    %v186 = vunpack.c.l.b16 %v83
    %v187 = vunpack.c.l.b16 %v84
    %v188 = vunpack.c.l.b16 %v85
    %v189 = vunpack.c.l.b16 %v86
    %v190 = vunpack.c.l.b16 %v87
    %v191 = vunpack.c.l.b16 %v88
    %v192 = vunpack.c.l.b16 %v89
    %v193 = vpack.c.b16 %v150, %v149
    %v194 = vpack.c.b16 %v152, %v151
    %v195 = vpack.c.b16 %v154, %v153
    %v196 = vpack.c.b16 %v156, %v155
    %v197 = vpack.c.b16 %v158, %v157
    %v198 = vpack.c.b16 %v160, %v159
    %v199 = vpack.c.b16 %v162, %v161
    %v200 = vpack.c.b16 %v164, %v163
    %v201 = vpack.c.b16 %v166, %v165
    %v202 = vpack.c.b16 %v168, %v167
    %v203 = vpack.c.b16 %v170, %v169
    %v204 = vpack.c.b16 %v172, %v171
    %v205 = vpack.c.b16 %v174, %v173
    %v206 = vpack.c.b16 %v176, %v175
    %v207 = vpack.c.b16 %v178, %v177
    %v208 = vpack.c.b16 %v180, %v179
    %v209 = vpack.c.b16 %v182, %v181
    %v210 = vpack.c.b16 %v184, %v183
    %v211 = vpack.c.b16 %v186, %v185
    %v212 = vpack.c.b16 %v188, %v187
    %v213 = vpack.c.b16 %v190, %v189
    %v214 = vpack.c.b16 %v192, %v191
    %vm236 = vcmask 728064
    %v238 = vsel %vm236, %v102, 0
    %vm240 = vcmask 1043456
    %vm241 = vcmask 1044480
    %v242 = vsel %vm240, 4294967295, 65535
    %v243 = vsel %vm241, %v242, 0
    %v245 = vand.u32 %v214, %v243
    %247 = vmatprep.subr.bf16.mxu0 0
    %248 = vmatpush1.bf16.msra.mxu0 %v200
    %249 = vmatprep.subr.bf16.mxu0 0
    %250 = vmatpush1.bf16.msra.mxu0 %v199
    %251 = vmatprep.subr.bf16.mxu0 0
    %252 = vmatpush1.bf16.msra.mxu0 %v198
    %253 = vmatprep.subr.bf16.mxu0 0
    %254 = vmatpush1.bf16.msra.mxu0 %v197
    %255 = vmatprep.subr.bf16.mxu0 0
    %256 = vmatpush1.bf16.msra.mxu0 %v196
    %257 = vmatprep.subr.bf16.mxu0 0
    %258 = vmatpush1.bf16.msra.mxu0 %v195
    %259 = vmatprep.subr.bf16.mxu0 0
    %260 = vmatpush1.bf16.msra.mxu0 %v194
    %261 = vmatprep.subr.bf16.mxu0 0
    %262 = vmatpush1.bf16.msra.mxu0 %v193
    %263 = vmatprep.subr.bf16.mxu0 0
    %264 = vmatpush2.bf16.msra.mxu0 %v208
    %265 = vmatprep.subr.bf16.mxu0 0
    %266 = vmatpush2.bf16.msra.mxu0 %v207
    %267 = vmatprep.subr.bf16.mxu0 0
    %268 = vmatpush2.bf16.msra.mxu0 %v206
    %269 = vmatprep.subr.bf16.mxu0 0
    %270 = vmatpush2.bf16.msra.mxu0 %v205
    %271 = vmatprep.subr.bf16.mxu0 0
    %272 = vmatpush2.bf16.msra.mxu0 %v204
    %273 = vmatprep.subr.bf16.mxu0 0
    %274 = vmatpush2.bf16.msra.mxu0 %v203
    %275 = vmatprep.subr.bf16.mxu0 0
    %276 = vmatpush2.bf16.msra.mxu0 %v202
    %277 = vmatprep.subr.bf16.mxu0 0
    %278 = vmatpush2.bf16.msra.mxu0 %v201
    %279 = vmatprep.mubr.bf16.mxu0 %v101
    %280 = vmatmul.mubr.bf16.gmra.mxu0 %v100
    %v281 = vpop.f32.mrf.mxu0
    %v282 = vadd.f32 0.0, %v281
    %v283 = vpop.f32.mrf.mxu0
    %v284 = vpop.f32.mrf.mxu0
    %v285 = vadd.f32 0.0, %v284
    %v286 = vpop.f32.mrf.mxu0
    %287 = vdwg.mxu0
    %288 = vmatprep.subr.bf16.mxu0 0
    %289 = vmatpush1.bf16.msra.mxu0 0
    %290 = vmatprep.subr.bf16.mxu0 0
    %291 = vmatpush1.bf16.msra.mxu0 0
    %292 = vmatprep.subr.bf16.mxu0 0
    %293 = vmatpush1.bf16.msra.mxu0 %v245
    %294 = vmatprep.subr.bf16.mxu0 0
    %295 = vmatpush1.bf16.msra.mxu0 %v213
    %296 = vmatprep.subr.bf16.mxu0 0
    %297 = vmatpush1.bf16.msra.mxu0 %v212
    %298 = vmatprep.subr.bf16.mxu0 0
    %299 = vmatpush1.bf16.msra.mxu0 %v211
    %300 = vmatprep.subr.bf16.mxu0 0
    %301 = vmatpush1.bf16.msra.mxu0 %v210
    %302 = vmatprep.subr.bf16.mxu0 0
    %303 = vmatpush1.bf16.msra.mxu0 %v209
    %304 = vmatprep.subr.bf16.mxu0 0
    %305 = vmatpush2.bf16.msra.mxu0 0
    %306 = vmatprep.subr.bf16.mxu0 0
    %307 = vmatpush2.bf16.msra.mxu0 0
    %308 = vmatprep.subr.bf16.mxu0 0
    %309 = vmatpush2.bf16.msra.mxu0 0
    %310 = vmatprep.subr.bf16.mxu0 0
    %311 = vmatpush2.bf16.msra.mxu0 0
    %312 = vmatprep.subr.bf16.mxu0 0
    %313 = vmatpush2.bf16.msra.mxu0 0
    %314 = vmatprep.subr.bf16.mxu0 0
    %315 = vmatpush2.bf16.msra.mxu0 0
    %316 = vmatprep.subr.bf16.mxu0 0
    %317 = vmatpush2.bf16.msra.mxu0 0
    %318 = vmatprep.subr.bf16.mxu0 0
    %319 = vmatpush2.bf16.msra.mxu0 0
    %320 = vmatprep.mubr.bf16.mxu0 0
    %321 = vmatmul.mubr.bf16.gmra.mxu0 %v238
    %v322 = vpop.f32.mrf.mxu0
    %v323 = vadd.f32 %v282, %v322
    %v324 = vpop.f32.mrf.mxu0
    %v325 = vpop.f32.mrf.mxu0
    %v326 = vadd.f32 %v285, %v325
    %v327 = vpop.f32.mrf.mxu0
    %328 = vdwg.mxu0
    %v329 = vadd.f32 %v323, %v326
    %v330 = vrot.slane %v329, 4
    %v331 = vadd.f32 %v329, %v330
    %v332 = vrot.slane %v331, 2
    %v333 = vadd.f32 %v331, %v332
    %v334 = vrot.slane %v333, 1
    %v335 = vadd.f32 %v333, %v334
    %v336 = vmul.f32 %v335, 0.5
    %v337 = vmul.f32 %v323, %v323
    %v338 = vmul.f32 %v326, %v326
    %v339 = vadd.f32 %v337, %v338
    %v340 = vrot.slane %v339, 4
    %v341 = vadd.f32 %v339, %v340
    %v342 = vrot.slane %v341, 2
    %v343 = vadd.f32 %v341, %v342
    %v344 = vrot.slane %v343, 1
    %v345 = vadd.f32 %v343, %v344
    %v346 = vmul.f32 %v345, 0.5
    %v347 = vmul.f32 %v336, %v336
    %v348 = vsub.f32 %v346, %v347
    %v349 = vmax.f32 %v348, 0.0
    %v350 = vadd.f32 %v349, 1e-05
    %v351 = vrsqrt.pop %v350
    %v352 = vsub.f32 %v323, %v336
    %v353 = vsub.f32 %v326, %v336
    %v354 = vld [vmem:[#allocation2] sm:$0x1]
    %v355 = vmul.f32 %v351, %v354
    %v356 = vlaneseq
    %v357 = vshrl.u32 %v356, 7
    %v358 = vsub.s32 0, %v357
    %v359 = vrot.slane %v355, %v358
    %v360 = vmul.f32 %v352, %v359
    %v361 = vmul.f32 %v353, %v359
    %v362 = vld [vmem:[#allocation4] sm:$0x1]
    %v364 = vlaneseq
    %v365 = vshrl.u32 %v364, 7
    %v366 = vsub.s32 0, %v365
    %v367 = vrot.slane %v362, %v366
    %v369 = vadd.f32 %v360, %v367
    %v370 = vadd.f32 %v361, %v367
    %v371 = vmax.f32 %v369, 0.0
    %v372 = vmax.f32 %v370, 0.0
    %v373 = vpack.c.bf16 %v372, %v371
    %v375 = vunpack.c.l.b16 %v373
    %v376 = vunpack.c.h.b16 %v373
    %v377 = vpack.c.b16 %v375, %v375
    %v378 = vpack.c.b16 %v376, %v376
    %381 = vst [vmem:[%s4] sm:$0xf] %v377
    %382 = vst [vmem:[%s4 + $0x4] sm:$0xf] %v378
    // Predicated region
    $region26: #{_lambda_.38} parent=1 // pred_check
      _
    $region27: #{_lambda_.38} parent=1 // pred_check_branch
      %384 = sbr.rel (0) target = $region29
    $region28: #{_lambda_.38} parent=1 // pred_region
      _
    $region29: #{_lambda_.38} parent=1 // pred_fallthru
      _
    // Predicated region
    $region30: #{_lambda_.38} parent=1 // pred_check
      _
    $region31: #{_lambda_.38} parent=1 // pred_check_branch
      %386 = sbr.rel (0) target = $region33
    $region32: #{_lambda_.38} parent=1 // pred_region
      _
    $region33: #{_lambda_.38} parent=1 // pred_fallthru
      _
    %387 = vsyncpa [#allocation3], 1
    %388 = vsyncpa [#allocation5], 1

// kernel: _lambda_.39
$region0: #{_lambda_.39}
  #allocation0 [shape = 'u32[]', space=smem, size = 0x4, offset = 0x4, fixed_abs, tag = 'smem constant byte address 0x4 - core index']
  #allocation1 [shape = 'u32[144,128]{1,0:T(1,128)}', space=vmem, size = 0x12000, scoped, tag = 'internal scratch']
  %s0 = inlined_call_operand.vmem [shape: bf16[16,576], index: 0, kind: input, shape index: {}]
  %s1 = inlined_call_operand.vmem [shape: bf16[576,256], index: 1, kind: input, shape index: {}]
  %s2 = inlined_call_operand.vmem [shape: f32[1,256], index: 2, kind: input, shape index: {}]
  %s3 = inlined_call_operand.vmem [shape: f32[1,256], index: 3, kind: input, shape index: {}]
  %s4 = inlined_call_operand.vmem [shape: bf16[16,256], index: 4, kind: output, shape index: {}]
  %s5 = sld [smem:[#allocation0]]
  $region26: #{_lambda_.39} parent=0
    _
  %s7 = ssub.s32 1, %s5
  %s8 = scalar_select 0, %s7, %s5
  // Predicated region
  $region2: #{_lambda_.39} parent=0 // pred_check
    _
  $region3: #{_lambda_.39} parent=0 // pred_check_branch
    %10 = sbr.rel (0) target = $region5
  $region4: #{_lambda_.39} parent=0 // pred_region
    _
  $region5: #{_lambda_.39} parent=0 // pred_fallthru
    _
  // Predicated region
  $region6: #{_lambda_.39} parent=0 // pred_check
    _
  $region7: #{_lambda_.39} parent=0 // pred_check_branch
    %12 = sbr.rel (0) target = $region9
  $region8: #{_lambda_.39} parent=0 // pred_region
    _
  $region9: #{_lambda_.39} parent=0 // pred_fallthru
    _
  // Predicated region
  $region10: #{_lambda_.39} parent=0 // pred_check
    _
  $region11: #{_lambda_.39} parent=0 // pred_check_branch
    %14 = sbr.rel (0) target = $region13
  $region12: #{_lambda_.39} parent=0 // pred_region
    _
  $region13: #{_lambda_.39} parent=0 // pred_fallthru
    _
  // Predicated region
  $region14: #{_lambda_.39} parent=0 // pred_check
    _
  $region15: #{_lambda_.39} parent=0 // pred_check_branch
    %16 = sbr.rel (0) target = $region17
  $region16: #{_lambda_.39} parent=0 // pred_region
    _
  $region17: #{_lambda_.39} parent=0 // pred_fallthru
    _
  %v18 = vld [vmem:[%s0] sm:$0xff]
  %v19 = vld [vmem:[%s0 + $0x8] sm:$0xff]
  %v20 = vld [vmem:[%s0 + $0x10] sm:$0xf]
  %v21 = vld [vmem:[%s0 + $0x14] sm:$0xff]
  %v22 = vld [vmem:[%s0 + $0x1c] sm:$0xff]
  %v23 = vld [vmem:[%s0 + $0x24] sm:$0xf]
  %v24 = vld [vmem:[%s1] sm:$0xff]
  %v25 = vld [vmem:[%s1 + $0x8] sm:$0xff]
  %v26 = vld [vmem:[%s1 + $0x10] sm:$0xff]
  %v27 = vld [vmem:[%s1 + $0x18] sm:$0xff]
  %v28 = vld [vmem:[%s1 + $0x20] sm:$0xff]
  %v29 = vld [vmem:[%s1 + $0x28] sm:$0xff]
  %v30 = vld [vmem:[%s1 + $0x30] sm:$0xff]
  %v31 = vld [vmem:[%s1 + $0x38] sm:$0xff]
  %v32 = vld [vmem:[%s1 + $0x40] sm:$0xff]
  %v33 = vld [vmem:[%s1 + $0x48] sm:$0xff]
  %v34 = vld [vmem:[%s1 + $0x50] sm:$0xff]
  %v35 = vld [vmem:[%s1 + $0x58] sm:$0xff]
  %v36 = vld [vmem:[%s1 + $0x60] sm:$0xff]
  %v37 = vld [vmem:[%s1 + $0x68] sm:$0xff]
  %v38 = vld [vmem:[%s1 + $0x70] sm:$0xff]
  %v39 = vld [vmem:[%s1 + $0x78] sm:$0xff]
  %v40 = vld [vmem:[%s1 + $0x80] sm:$0xff]
  %v41 = vld [vmem:[%s1 + $0x88] sm:$0xff]
  %v42 = vld [vmem:[%s1 + $0x90] sm:$0xff]
  %v43 = vld [vmem:[%s1 + $0x98] sm:$0xff]
  %v44 = vld [vmem:[%s1 + $0xa0] sm:$0xff]
  %v45 = vld [vmem:[%s1 + $0xa8] sm:$0xff]
  %v46 = vld [vmem:[%s1 + $0xb0] sm:$0xff]
  %v47 = vld [vmem:[%s1 + $0xb8] sm:$0xff]
  %v48 = vld [vmem:[%s1 + $0xc0] sm:$0xff]
  %v49 = vld [vmem:[%s1 + $0xc8] sm:$0xff]
  %v50 = vld [vmem:[%s1 + $0xd0] sm:$0xff]
  %v51 = vld [vmem:[%s1 + $0xd8] sm:$0xff]
  %v52 = vld [vmem:[%s1 + $0xe0] sm:$0xff]
  %v53 = vld [vmem:[%s1 + $0xe8] sm:$0xff]
  %v54 = vld [vmem:[%s1 + $0xf0] sm:$0xff]
  %v55 = vld [vmem:[%s1 + $0xf8] sm:$0xff]
  %v56 = vld [vmem:[%s1 + $0x100] sm:$0xff]
  %v57 = vld [vmem:[%s1 + $0x108] sm:$0xff]
  %v58 = vld [vmem:[%s1 + $0x110] sm:$0xff]
  %v59 = vld [vmem:[%s1 + $0x118] sm:$0xff]
  %v60 = vld [vmem:[%s1 + $0x120] sm:$0xff]
  %v61 = vld [vmem:[%s1 + $0x128] sm:$0xff]
  %v62 = vld [vmem:[%s1 + $0x130] sm:$0xff]
  %v63 = vld [vmem:[%s1 + $0x138] sm:$0xff]
  %v64 = vld [vmem:[%s1 + $0x140] sm:$0xff]
  %v65 = vld [vmem:[%s1 + $0x148] sm:$0xff]
  %v66 = vld [vmem:[%s1 + $0x150] sm:$0xff]
  %v67 = vld [vmem:[%s1 + $0x158] sm:$0xff]
  %v68 = vld [vmem:[%s1 + $0x160] sm:$0xff]
  %v69 = vld [vmem:[%s1 + $0x168] sm:$0xff]
  %v70 = vld [vmem:[%s1 + $0x170] sm:$0xff]
  %v71 = vld [vmem:[%s1 + $0x178] sm:$0xff]
  %v72 = vld [vmem:[%s1 + $0x180] sm:$0xff]
  %v73 = vld [vmem:[%s1 + $0x188] sm:$0xff]
  %v74 = vld [vmem:[%s1 + $0x190] sm:$0xff]
  %v75 = vld [vmem:[%s1 + $0x198] sm:$0xff]
  %v76 = vld [vmem:[%s1 + $0x1a0] sm:$0xff]
  %v77 = vld [vmem:[%s1 + $0x1a8] sm:$0xff]
  %v78 = vld [vmem:[%s1 + $0x1b0] sm:$0xff]
  %v79 = vld [vmem:[%s1 + $0x1b8] sm:$0xff]
  %v80 = vld [vmem:[%s1 + $0x1c0] sm:$0xff]
  %v81 = vld [vmem:[%s1 + $0x1c8] sm:$0xff]
  %v82 = vld [vmem:[%s1 + $0x1d0] sm:$0xff]
  %v83 = vld [vmem:[%s1 + $0x1d8] sm:$0xff]
  %v84 = vld [vmem:[%s1 + $0x1e0] sm:$0xff]
  %v85 = vld [vmem:[%s1 + $0x1e8] sm:$0xff]
  %v86 = vld [vmem:[%s1 + $0x1f0] sm:$0xff]
  %v87 = vld [vmem:[%s1 + $0x1f8] sm:$0xff]
  %v88 = vld [vmem:[%s1 + $0x200] sm:$0xff]
  %v89 = vld [vmem:[%s1 + $0x208] sm:$0xff]
  %v90 = vld [vmem:[%s1 + $0x210] sm:$0xff]
  %v91 = vld [vmem:[%s1 + $0x218] sm:$0xff]
  %v92 = vld [vmem:[%s1 + $0x220] sm:$0xff]
  %v93 = vld [vmem:[%s1 + $0x228] sm:$0xff]
  %v94 = vld [vmem:[%s1 + $0x230] sm:$0xff]
  %v95 = vld [vmem:[%s1 + $0x238] sm:$0xff]
  %v102 = vunpack.c.l.b16 %v18
  %v103 = vunpack.c.h.b16 %v18
  %v104 = vunpack.c.l.b16 %v19
  %v105 = vunpack.c.h.b16 %v19
  %v106 = vunpack.c.l.b16 %v20
  %v107 = vunpack.c.l.b16 %v21
  %v108 = vunpack.c.h.b16 %v21
  %v109 = vunpack.c.l.b16 %v22
  %v110 = vunpack.c.h.b16 %v22
  %v111 = vunpack.c.l.b16 %v23
  %v112 = vpack.c.b16 %v107, %v102
  %v113 = vpack.c.b16 %v108, %v103
  %v114 = vpack.c.b16 %v109, %v104
  %v115 = vpack.c.b16 %v110, %v105
  %v116 = vpack.c.b16 %v111, %v106
  %v193 = vunpack.c.l.b16 %v24
  %v194 = vunpack.c.h.b16 %v24
  %v195 = vunpack.c.l.b16 %v25
  %v196 = vunpack.c.h.b16 %v25
  %v197 = vunpack.c.l.b16 %v26
  %v198 = vunpack.c.h.b16 %v26
  %v199 = vunpack.c.l.b16 %v27
  %v200 = vunpack.c.h.b16 %v27
  %v201 = vunpack.c.l.b16 %v28
  %v202 = vunpack.c.h.b16 %v28
  %v203 = vunpack.c.l.b16 %v29
  %v204 = vunpack.c.h.b16 %v29
  %v205 = vunpack.c.l.b16 %v30
  %v206 = vunpack.c.h.b16 %v30
  %v207 = vunpack.c.l.b16 %v31
  %v208 = vunpack.c.h.b16 %v31
  %v209 = vunpack.c.l.b16 %v32
  %v210 = vunpack.c.h.b16 %v32
  %v211 = vunpack.c.l.b16 %v33
  %v212 = vunpack.c.h.b16 %v33
  %v213 = vunpack.c.l.b16 %v34
  %v214 = vunpack.c.h.b16 %v34
  %v215 = vunpack.c.l.b16 %v35
  %v216 = vunpack.c.h.b16 %v35
  %v217 = vunpack.c.l.b16 %v36
  %v218 = vunpack.c.h.b16 %v36
  %v219 = vunpack.c.l.b16 %v37
  %v220 = vunpack.c.h.b16 %v37
  %v221 = vunpack.c.l.b16 %v38
  %v222 = vunpack.c.h.b16 %v38
  %v223 = vunpack.c.l.b16 %v39
  %v224 = vunpack.c.h.b16 %v39
  %v225 = vunpack.c.l.b16 %v40
  %v226 = vunpack.c.h.b16 %v40
  %v227 = vunpack.c.l.b16 %v41
  %v228 = vunpack.c.h.b16 %v41
  %v229 = vunpack.c.l.b16 %v42
  %v230 = vunpack.c.h.b16 %v42
  %v231 = vunpack.c.l.b16 %v43
  %v232 = vunpack.c.h.b16 %v43
  %v233 = vunpack.c.l.b16 %v44
  %v234 = vunpack.c.h.b16 %v44
  %v235 = vunpack.c.l.b16 %v45
  %v236 = vunpack.c.h.b16 %v45
  %v237 = vunpack.c.l.b16 %v46
  %v238 = vunpack.c.h.b16 %v46
  %v239 = vunpack.c.l.b16 %v47
  %v240 = vunpack.c.h.b16 %v47
  %v241 = vunpack.c.l.b16 %v48
  %v242 = vunpack.c.h.b16 %v48
  %v243 = vunpack.c.l.b16 %v49
  %v244 = vunpack.c.h.b16 %v49
  %v245 = vunpack.c.l.b16 %v50
  %v246 = vunpack.c.h.b16 %v50
  %v247 = vunpack.c.l.b16 %v51
  %v248 = vunpack.c.h.b16 %v51
  %v249 = vunpack.c.l.b16 %v52
  %v250 = vunpack.c.h.b16 %v52
  %v251 = vunpack.c.l.b16 %v53
  %v252 = vunpack.c.h.b16 %v53
  %v253 = vunpack.c.l.b16 %v54
  %v254 = vunpack.c.h.b16 %v54
  %v255 = vunpack.c.l.b16 %v55
  %v256 = vunpack.c.h.b16 %v55
  %v257 = vunpack.c.l.b16 %v56
  %v258 = vunpack.c.h.b16 %v56
  %v259 = vunpack.c.l.b16 %v57
  %v260 = vunpack.c.h.b16 %v57
  %v261 = vunpack.c.l.b16 %v58
  %v262 = vunpack.c.h.b16 %v58
  %v263 = vunpack.c.l.b16 %v59
  %v264 = vunpack.c.h.b16 %v59
  %v265 = vunpack.c.l.b16 %v60
  %v266 = vunpack.c.h.b16 %v60
  %v267 = vunpack.c.l.b16 %v61
  %v268 = vunpack.c.h.b16 %v61
  %v269 = vunpack.c.l.b16 %v62
  %v270 = vunpack.c.h.b16 %v62
  %v271 = vunpack.c.l.b16 %v63
  %v272 = vunpack.c.h.b16 %v63
  %v273 = vunpack.c.l.b16 %v64
  %v274 = vunpack.c.h.b16 %v64
  %v275 = vunpack.c.l.b16 %v65
  %v276 = vunpack.c.h.b16 %v65
  %v277 = vunpack.c.l.b16 %v66
  %v278 = vunpack.c.h.b16 %v66
  %v279 = vunpack.c.l.b16 %v67
  %v280 = vunpack.c.h.b16 %v67
  %v281 = vunpack.c.l.b16 %v68
  %v282 = vunpack.c.h.b16 %v68
  %v283 = vunpack.c.l.b16 %v69
  %v284 = vunpack.c.h.b16 %v69
  %v285 = vunpack.c.l.b16 %v70
  %v286 = vunpack.c.h.b16 %v70
  %v287 = vunpack.c.l.b16 %v71
  %v288 = vunpack.c.h.b16 %v71
  %v289 = vunpack.c.l.b16 %v72
  %v290 = vunpack.c.h.b16 %v72
  %v291 = vunpack.c.l.b16 %v73
  %v292 = vunpack.c.h.b16 %v73
  %v293 = vunpack.c.l.b16 %v74
  %v294 = vunpack.c.h.b16 %v74
  %v295 = vunpack.c.l.b16 %v75
  %v296 = vunpack.c.h.b16 %v75
  %v297 = vunpack.c.l.b16 %v76
  %v298 = vunpack.c.h.b16 %v76
  %v299 = vunpack.c.l.b16 %v77
  %v300 = vunpack.c.h.b16 %v77
  %v301 = vunpack.c.l.b16 %v78
  %v302 = vunpack.c.h.b16 %v78
  %v303 = vunpack.c.l.b16 %v79
  %v304 = vunpack.c.h.b16 %v79
  %v305 = vunpack.c.l.b16 %v80
  %v306 = vunpack.c.h.b16 %v80
  %v307 = vunpack.c.l.b16 %v81
  %v308 = vunpack.c.h.b16 %v81
  %v309 = vunpack.c.l.b16 %v82
  %v310 = vunpack.c.h.b16 %v82
  %v311 = vunpack.c.l.b16 %v83
  %v312 = vunpack.c.h.b16 %v83
  %v313 = vunpack.c.l.b16 %v84
  %v314 = vunpack.c.h.b16 %v84
  %v315 = vunpack.c.l.b16 %v85
  %v316 = vunpack.c.h.b16 %v85
  %v317 = vunpack.c.l.b16 %v86
  %v318 = vunpack.c.h.b16 %v86
  %v319 = vunpack.c.l.b16 %v87
  %v320 = vunpack.c.h.b16 %v87
  %v321 = vunpack.c.l.b16 %v88
  %v322 = vunpack.c.h.b16 %v88
  %v323 = vunpack.c.l.b16 %v89
  %v324 = vunpack.c.h.b16 %v89
  %v325 = vunpack.c.l.b16 %v90
  %v326 = vunpack.c.h.b16 %v90
  %v327 = vunpack.c.l.b16 %v91
  %v328 = vunpack.c.h.b16 %v91
  %v329 = vunpack.c.l.b16 %v92
  %v330 = vunpack.c.h.b16 %v92
  %v331 = vunpack.c.l.b16 %v93
  %v332 = vunpack.c.h.b16 %v93
  %v333 = vunpack.c.l.b16 %v94
  %v334 = vunpack.c.h.b16 %v94
  %v335 = vunpack.c.l.b16 %v95
  %v336 = vunpack.c.h.b16 %v95
  %v337 = vpack.c.b16 %v195, %v193
  %v338 = vpack.c.b16 %v196, %v194
  %v339 = vpack.c.b16 %v199, %v197
  %v340 = vpack.c.b16 %v200, %v198
  %v341 = vpack.c.b16 %v203, %v201
  %v342 = vpack.c.b16 %v204, %v202
  %v343 = vpack.c.b16 %v207, %v205
  %v344 = vpack.c.b16 %v208, %v206
  %v345 = vpack.c.b16 %v211, %v209
  %v346 = vpack.c.b16 %v212, %v210
  %v347 = vpack.c.b16 %v215, %v213
  %v348 = vpack.c.b16 %v216, %v214
  %v349 = vpack.c.b16 %v219, %v217
  %v350 = vpack.c.b16 %v220, %v218
  %v351 = vpack.c.b16 %v223, %v221
  %v352 = vpack.c.b16 %v224, %v222
  %v353 = vpack.c.b16 %v227, %v225
  %v354 = vpack.c.b16 %v228, %v226
  %v355 = vpack.c.b16 %v231, %v229
  %v356 = vpack.c.b16 %v232, %v230
  %v357 = vpack.c.b16 %v235, %v233
  %v358 = vpack.c.b16 %v236, %v234
  %v359 = vpack.c.b16 %v239, %v237
  %v360 = vpack.c.b16 %v240, %v238
  %v361 = vpack.c.b16 %v243, %v241
  %v362 = vpack.c.b16 %v244, %v242
  %v363 = vpack.c.b16 %v247, %v245
  %v364 = vpack.c.b16 %v248, %v246
  %v365 = vpack.c.b16 %v251, %v249
  %v366 = vpack.c.b16 %v252, %v250
  %v367 = vpack.c.b16 %v255, %v253
  %v368 = vpack.c.b16 %v256, %v254
  %v369 = vpack.c.b16 %v259, %v257
  %v370 = vpack.c.b16 %v260, %v258
  %v371 = vpack.c.b16 %v263, %v261
  %v372 = vpack.c.b16 %v264, %v262
  %v373 = vpack.c.b16 %v267, %v265
  %v374 = vpack.c.b16 %v268, %v266
  %v375 = vpack.c.b16 %v271, %v269
  %v376 = vpack.c.b16 %v272, %v270
  %v377 = vpack.c.b16 %v275, %v273
  %v378 = vpack.c.b16 %v276, %v274
  %v379 = vpack.c.b16 %v279, %v277
  %v380 = vpack.c.b16 %v280, %v278
  %v381 = vpack.c.b16 %v283, %v281
  %v382 = vpack.c.b16 %v284, %v282
  %v383 = vpack.c.b16 %v287, %v285
  %v384 = vpack.c.b16 %v288, %v286
  %v385 = vpack.c.b16 %v291, %v289
  %v386 = vpack.c.b16 %v292, %v290
  %v387 = vpack.c.b16 %v295, %v293
  %v388 = vpack.c.b16 %v296, %v294
  %v389 = vpack.c.b16 %v299, %v297
  %v390 = vpack.c.b16 %v300, %v298
  %v391 = vpack.c.b16 %v303, %v301
  %v392 = vpack.c.b16 %v304, %v302
  %v393 = vpack.c.b16 %v307, %v305
  %v394 = vpack.c.b16 %v308, %v306
  %v395 = vpack.c.b16 %v311, %v309
  %v396 = vpack.c.b16 %v312, %v310
  %v397 = vpack.c.b16 %v315, %v313
  %v398 = vpack.c.b16 %v316, %v314
  %v399 = vpack.c.b16 %v319, %v317
  %v400 = vpack.c.b16 %v320, %v318
  %v401 = vpack.c.b16 %v323, %v321
  %v402 = vpack.c.b16 %v324, %v322
  %v403 = vpack.c.b16 %v327, %v325
  %v404 = vpack.c.b16 %v328, %v326
  %v405 = vpack.c.b16 %v331, %v329
  %v406 = vpack.c.b16 %v332, %v330
  %v407 = vpack.c.b16 %v335, %v333
  %v408 = vpack.c.b16 %v336, %v334
  %vm481 = vcmask 523264
  %v483 = vsel %vm481, %v116, 0
  %485 = vmatprep.subr.bf16.mxu0 %v352
  %486 = vmatpush1.bf16.msra.mxu0 %v351
  %487 = vmatprep.subr.bf16.mxu0 %v350
  %488 = vmatpush1.bf16.msra.mxu0 %v349
  %489 = vmatprep.subr.bf16.mxu0 %v348
  %490 = vmatpush1.bf16.msra.mxu0 %v347
  %491 = vmatprep.subr.bf16.mxu0 %v346
  %492 = vmatpush1.bf16.msra.mxu0 %v345
  %493 = vmatprep.subr.bf16.mxu0 %v344
  %494 = vmatpush1.bf16.msra.mxu0 %v343
  %495 = vmatprep.subr.bf16.mxu0 %v342
  %496 = vmatpush1.bf16.msra.mxu0 %v341
  %497 = vmatprep.subr.bf16.mxu0 %v340
  %498 = vmatpush1.bf16.msra.mxu0 %v339
  %499 = vmatprep.subr.bf16.mxu0 %v338
  %500 = vmatpush1.bf16.msra.mxu0 %v337
  %501 = vmatprep.subr.bf16.mxu0 %v368
  %502 = vmatpush2.bf16.msra.mxu0 %v367
  %503 = vmatprep.subr.bf16.mxu0 %v366
  %504 = vmatpush2.bf16.msra.mxu0 %v365
  %505 = vmatprep.subr.bf16.mxu0 %v364
  %506 = vmatpush2.bf16.msra.mxu0 %v363
  %507 = vmatprep.subr.bf16.mxu0 %v362
  %508 = vmatpush2.bf16.msra.mxu0 %v361
  %509 = vmatprep.subr.bf16.mxu0 %v360
  %510 = vmatpush2.bf16.msra.mxu0 %v359
  %511 = vmatprep.subr.bf16.mxu0 %v358
  %512 = vmatpush2.bf16.msra.mxu0 %v357
  %513 = vmatprep.subr.bf16.mxu0 %v356
  %514 = vmatpush2.bf16.msra.mxu0 %v355
  %515 = vmatprep.subr.bf16.mxu0 %v354
  %516 = vmatpush2.bf16.msra.mxu0 %v353
  %517 = vmatprep.mubr.bf16.mxu0 %v113
  %518 = vmatmul.mubr.bf16.gmra.mxu0 %v112
  %v519 = vpop.f32.mrf.mxu0
  %v520 = vadd.f32 0.0, %v519
  %v521 = vpop.f32.mrf.mxu0
  %v522 = vadd.f32 0.0, %v521
  %v523 = vpop.f32.mrf.mxu0
  %v524 = vadd.f32 0.0, %v523
  %v525 = vpop.f32.mrf.mxu0
  %v526 = vadd.f32 0.0, %v525
  %527 = vdwg.mxu0
  %528 = vmatprep.subr.bf16.mxu0 %v384
  %529 = vmatpush1.bf16.msra.mxu0 %v383
  %530 = vmatprep.subr.bf16.mxu0 %v382
  %531 = vmatpush1.bf16.msra.mxu0 %v381
  %532 = vmatprep.subr.bf16.mxu0 %v380
  %533 = vmatpush1.bf16.msra.mxu0 %v379
  %534 = vmatprep.subr.bf16.mxu0 %v378
  %535 = vmatpush1.bf16.msra.mxu0 %v377
  %536 = vmatprep.subr.bf16.mxu0 %v376
  %537 = vmatpush1.bf16.msra.mxu0 %v375
  %538 = vmatprep.subr.bf16.mxu0 %v374
  %539 = vmatpush1.bf16.msra.mxu0 %v373
  %540 = vmatprep.subr.bf16.mxu0 %v372
  %541 = vmatpush1.bf16.msra.mxu0 %v371
  %542 = vmatprep.subr.bf16.mxu0 %v370
  %543 = vmatpush1.bf16.msra.mxu0 %v369
  %544 = vmatprep.subr.bf16.mxu0 %v400
  %545 = vmatpush2.bf16.msra.mxu0 %v399
  %546 = vmatprep.subr.bf16.mxu0 %v398
  %547 = vmatpush2.bf16.msra.mxu0 %v397
  %548 = vmatprep.subr.bf16.mxu0 %v396
  %549 = vmatpush2.bf16.msra.mxu0 %v395
  %550 = vmatprep.subr.bf16.mxu0 %v394
  %551 = vmatpush2.bf16.msra.mxu0 %v393
  %552 = vmatprep.subr.bf16.mxu0 %v392
  %553 = vmatpush2.bf16.msra.mxu0 %v391
  %554 = vmatprep.subr.bf16.mxu0 %v390
  %555 = vmatpush2.bf16.msra.mxu0 %v389
  %556 = vmatprep.subr.bf16.mxu0 %v388
  %557 = vmatpush2.bf16.msra.mxu0 %v387
  %558 = vmatprep.subr.bf16.mxu0 %v386
  %559 = vmatpush2.bf16.msra.mxu0 %v385
  %560 = vmatprep.mubr.bf16.mxu0 %v115
  %561 = vmatmul.mubr.bf16.gmra.mxu0 %v114
  %v562 = vpop.f32.mrf.mxu0
  %v563 = vadd.f32 %v520, %v562
  %v564 = vpop.f32.mrf.mxu0
  %v565 = vadd.f32 %v522, %v564
  %v566 = vpop.f32.mrf.mxu0
  %v567 = vadd.f32 %v524, %v566
  %v568 = vpop.f32.mrf.mxu0
  %v569 = vadd.f32 %v526, %v568
  %570 = vdwg.mxu0
  %571 = vmatprep.subr.bf16.mxu0 0
  %572 = vmatpush1.bf16.msra.mxu0 0
  %573 = vmatprep.subr.bf16.mxu0 0
  %574 = vmatpush1.bf16.msra.mxu0 0
  %575 = vmatprep.subr.bf16.mxu0 0
  %576 = vmatpush1.bf16.msra.mxu0 0
  %577 = vmatprep.subr.bf16.mxu0 0
  %578 = vmatpush1.bf16.msra.mxu0 0
  %579 = vmatprep.subr.bf16.mxu0 %v408
  %580 = vmatpush1.bf16.msra.mxu0 %v407
  %581 = vmatprep.subr.bf16.mxu0 %v406
  %582 = vmatpush1.bf16.msra.mxu0 %v405
  %583 = vmatprep.subr.bf16.mxu0 %v404
  %584 = vmatpush1.bf16.msra.mxu0 %v403
  %585 = vmatprep.subr.bf16.mxu0 %v402
  %586 = vmatpush1.bf16.msra.mxu0 %v401
  %587 = vmatprep.subr.bf16.mxu0 0
  %588 = vmatpush2.bf16.msra.mxu0 0
  %589 = vmatprep.subr.bf16.mxu0 0
  %590 = vmatpush2.bf16.msra.mxu0 0
  %591 = vmatprep.subr.bf16.mxu0 0
  %592 = vmatpush2.bf16.msra.mxu0 0
  %593 = vmatprep.subr.bf16.mxu0 0
  %594 = vmatpush2.bf16.msra.mxu0 0
  %595 = vmatprep.subr.bf16.mxu0 0
  %596 = vmatpush2.bf16.msra.mxu0 0
  %597 = vmatprep.subr.bf16.mxu0 0
  %598 = vmatpush2.bf16.msra.mxu0 0
  %599 = vmatprep.subr.bf16.mxu0 0
  %600 = vmatpush2.bf16.msra.mxu0 0
  %601 = vmatprep.subr.bf16.mxu0 0
  %602 = vmatpush2.bf16.msra.mxu0 0
  %603 = vmatprep.mubr.bf16.mxu0 0
  %604 = vmatmul.mubr.bf16.gmra.mxu0 %v483
  %v605 = vpop.f32.mrf.mxu0
  %v606 = vadd.f32 %v563, %v605
  %v607 = vpop.f32.mrf.mxu0
  %v608 = vadd.f32 %v565, %v607
  %v609 = vpop.f32.mrf.mxu0
  %v610 = vadd.f32 %v567, %v609
  %v611 = vpop.f32.mrf.mxu0
  %v612 = vadd.f32 %v569, %v611
  %613 = vdwg.mxu0
  %v614 = vadd.f32 %v606, %v610
  %v615 = vrot.slane %v614, 4
  %v616 = vadd.f32 %v614, %v615
  %v617 = vrot.slane %v616, 2
  %v618 = vadd.f32 %v616, %v617
  %v619 = vrot.slane %v618, 1
  %v620 = vadd.f32 %v618, %v619
  %v621 = vadd.f32 %v608, %v612
  %v622 = vrot.slane %v621, 4
  %v623 = vadd.f32 %v621, %v622
  %v624 = vrot.slane %v623, 2
  %v625 = vadd.f32 %v623, %v624
  %v626 = vrot.slane %v625, 1
  %v627 = vadd.f32 %v625, %v626
  %v628 = vmul.f32 %v620, 0.5
  %v629 = vmul.f32 %v627, 0.5
  %v630 = vmul.f32 %v606, %v606
  %v631 = vmul.f32 %v608, %v608
  %v632 = vmul.f32 %v610, %v610
  %v633 = vmul.f32 %v612, %v612
  %v634 = vadd.f32 %v630, %v632
  %v635 = vrot.slane %v634, 4
  %v636 = vadd.f32 %v634, %v635
  %v637 = vrot.slane %v636, 2
  %v638 = vadd.f32 %v636, %v637
  %v639 = vrot.slane %v638, 1
  %v640 = vadd.f32 %v638, %v639
  %v641 = vadd.f32 %v631, %v633
  %v642 = vrot.slane %v641, 4
  %v643 = vadd.f32 %v641, %v642
  %v644 = vrot.slane %v643, 2
  %v645 = vadd.f32 %v643, %v644
  %v646 = vrot.slane %v645, 1
  %v647 = vadd.f32 %v645, %v646
  %v648 = vmul.f32 %v640, 0.5
  %v649 = vmul.f32 %v647, 0.5
  %v650 = vmul.f32 %v628, %v628
  %v651 = vmul.f32 %v629, %v629
  %v652 = vsub.f32 %v648, %v650
  %v653 = vsub.f32 %v649, %v651
  %v654 = vmax.f32 %v652, 0.0
  %v655 = vmax.f32 %v653, 0.0
  %v656 = vadd.f32 %v654, 1e-05
  %v657 = vadd.f32 %v655, 1e-05
  %v658 = vrsqrt.pop %v656
  %v659 = vrsqrt.pop %v657
  %v660 = vsub.f32 %v606, %v628
  %v661 = vsub.f32 %v608, %v629
  %v662 = vsub.f32 %v610, %v628
  %v663 = vsub.f32 %v612, %v629
  %v664 = vld [vmem:[%s2] sm:$0x3]
  %v666 = vlaneseq
  %v667 = vshrl.u32 %v666, 7
  %v668 = vsub.s32 0, %v667
  %v669 = vrot.slane %v664, %v668
  %v670 = vlaneseq
  %v671 = vshrl.u32 %v670, 7
  %v672 = vsub.s32 1, %v671
  %v673 = vrot.slane %v664, %v672
  %v676 = vmul.f32 %v658, %v669
  %v677 = vmul.f32 %v659, %v673
  %v678 = vlaneseq
  %v679 = vshrl.u32 %v678, 7
  %v680 = vsub.s32 0, %v679
  %v681 = vrot.slane %v676, %v680
  %v682 = vlaneseq
  %v683 = vshrl.u32 %v682, 7
  %v684 = vsub.s32 0, %v683
  %v685 = vrot.slane %v677, %v684
  %v686 = vmul.f32 %v660, %v681
  %v687 = vmul.f32 %v661, %v685
  %v688 = vmul.f32 %v662, %v681
  %v689 = vmul.f32 %v663, %v685
  %v690 = vld [vmem:[%s3] sm:$0x3]
  %v692 = vlaneseq
  %v693 = vshrl.u32 %v692, 7
  %v694 = vsub.s32 0, %v693
  %v695 = vrot.slane %v690, %v694
  %v696 = vlaneseq
  %v697 = vshrl.u32 %v696, 7
  %v698 = vsub.s32 1, %v697
  %v699 = vrot.slane %v690, %v698
  %v702 = vadd.f32 %v686, %v695
  %v703 = vadd.f32 %v687, %v699
  %v704 = vadd.f32 %v688, %v695
  %v705 = vadd.f32 %v689, %v699
  %v706 = vmax.f32 %v702, 0.0
  %v707 = vmax.f32 %v703, 0.0
  %v708 = vmax.f32 %v704, 0.0
  %v709 = vmax.f32 %v705, 0.0
  %v710 = vpack.c.bf16 %v708, %v706
  %v711 = vpack.c.bf16 %v709, %v707
  %v714 = vunpack.c.l.b16 %v710
  %v715 = vunpack.c.l.b16 %v711
  %v716 = vunpack.c.h.b16 %v710
  %v717 = vunpack.c.h.b16 %v711
  %v718 = vpack.c.b16 %v715, %v714
  %v719 = vpack.c.b16 %v717, %v716
  %722 = vst [vmem:[%s4] sm:$0xff] %v718
  %723 = vst [vmem:[%s4 + $0x8] sm:$0xff] %v719
  // Predicated region
  $region18: #{_lambda_.39} parent=0 // pred_check
    _
  $region19: #{_lambda_.39} parent=0 // pred_check_branch
    %725 = sbr.rel (0) target = $region21
  $region20: #{_lambda_.39} parent=0 // pred_region
    _
  $region21: #{_lambda_.39} parent=0 // pred_fallthru
    _
  // Predicated region
  $region22: #{_lambda_.39} parent=0 // pred_check
    _
  $region23: #{_lambda_.39} parent=0 // pred_check_branch
    %727 = sbr.rel (0) target = $region25
  $region24: #{_lambda_.39} parent=0 // pred_region
    _
  $region25: #{_lambda_.39} parent=0 // pred_fallthru
    _

// kernel: _lambda_.41
$region0: #{_lambda_.41}
  #allocation0 [shape = 'u32[]', space=smem, size = 0x4, offset = 0x4, fixed_abs, tag = 'smem constant byte address 0x4 - core index']
  #allocation1 [shape = 'u32[144,128]{1,0:T(1,128)}', space=vmem, size = 0x12000, scoped, tag = 'internal scratch']
  %s0 = inlined_call_operand.vmem [shape: bf16[2,1,64], index: 0, kind: input, shape index: {}]
  %s1 = inlined_call_operand.vmem [shape: f32[64,5], index: 1, kind: input, shape index: {}]
  %s2 = inlined_call_operand.vmem [shape: f32[1,5], index: 2, kind: input, shape index: {}]
  %s3 = inlined_call_operand.hbm [shape: f32[2,5], index: 3, kind: output, shape index: {}]
  %s4 = sld [smem:[#allocation0]]
  $region22: #{_lambda_.41} parent=0
    _
  %s6 = ssub.s32 1, %s4
  %s7 = scalar_select 0, %s6, %s4
  $region1: #{_lambda_.41} parent=0
    #allocation2 [shape = 'u8[1024]{0}', space=vmem, size = 0x400, scoped, tag = 'output window, operand 0, single buffered']
    #allocation3 [shape = 's32[1]{0}', space=sflag, size = 0x4, scoped, tag = 'scoped memory for _lambda_.41']
    %8 = vsyncpa [#allocation3], 0
    // Predicated region
    $region2: #{_lambda_.41} parent=1 // pred_check
      _
    $region3: #{_lambda_.41} parent=1 // pred_check_branch
      %10 = sbr.rel (0) target = $region5
    $region4: #{_lambda_.41} parent=1 // pred_region
      _
    $region5: #{_lambda_.41} parent=1 // pred_fallthru
      _
    // Predicated region
    $region6: #{_lambda_.41} parent=1 // pred_check
      _
    $region7: #{_lambda_.41} parent=1 // pred_check_branch
      %12 = sbr.rel (0) target = $region9
    $region8: #{_lambda_.41} parent=1 // pred_region
      _
    $region9: #{_lambda_.41} parent=1 // pred_fallthru
      _
    // Predicated region
    $region10: #{_lambda_.41} parent=1 // pred_check
      _
    $region11: #{_lambda_.41} parent=1 // pred_check_branch
      %14 = sbr.rel (0) target = $region13
    $region12: #{_lambda_.41} parent=1 // pred_region
      _
    $region13: #{_lambda_.41} parent=1 // pred_fallthru
      _
    %v15 = vld [vmem:[%s0] sm:$0x1]
    %v16 = vld [vmem:[%s0 + $0x1] sm:$0x1]
    %v17 = vunpack.c.l.bf16 %v15
    %v18 = vunpack.c.l.bf16 %v16
    %v19 = vadd.f32 %v17, 0.0
    %v20 = vadd.f32 %v18, 0.0
    %v21 = vld [vmem:[%s1] sm:$0xff]
    %v22 = vld [vmem:[%s1 + $0x8] sm:$0xff]
    %v23 = vld [vmem:[%s1 + $0x10] sm:$0xff]
    %v24 = vld [vmem:[%s1 + $0x18] sm:$0xff]
    %v25 = vld [vmem:[%s1 + $0x20] sm:$0xff]
    %v26 = vld [vmem:[%s1 + $0x28] sm:$0xff]
    %v27 = vld [vmem:[%s1 + $0x30] sm:$0xff]
    %v28 = vld [vmem:[%s1 + $0x38] sm:$0xff]
    %v29 = vld [vmem:[%s2] sm:$0x1]
    %v31 = vlaneseq
    %v32 = vshrl.u32 %v31, 7
    %v33 = vsub.s32 0, %v32
    %v34 = vrot.slane %v29, %v33
    %v38 = vlaneseq
    %v39 = vshrl.u32 %v38, 7
    %v40 = vsub.s32 0, %v39
    %v41 = vrot.slane %v19, %v40
    %v42 = vlaneseq
    %v43 = vshrl.u32 %v42, 7
    %v44 = vsub.s32 0, %v43
    %v45 = vrot.slane %v20, %v44
    %vm46 = vcmask 1041409
    %v47 = vsel %vm46, %v45, %v41
    %vm48 = vcmask 523264
    %v49 = vsel %vm48, %v47, 0
    %51 = vmatprep.subr.mxu0 0.0
    %52 = vmatpush1.msra.mxu0 0.0
    %53 = vmatprep.subr.mxu0 0.0
    %54 = vmatpush1.msra.mxu0 0.0
    %55 = vmatprep.subr.mxu0 0.0
    %56 = vmatpush1.msra.mxu0 0.0
    %57 = vmatprep.subr.mxu0 0.0
    %58 = vmatpush1.msra.mxu0 0.0
    %59 = vmatprep.subr.mxu0 0.0
    %60 = vmatpush1.msra.mxu0 0.0
    %61 = vmatprep.subr.mxu0 0.0
    %62 = vmatpush1.msra.mxu0 0.0
    %63 = vmatprep.subr.mxu0 0.0
    %64 = vmatpush1.msra.mxu0 0.0
    %65 = vmatprep.subr.mxu0 0.0
    %66 = vmatpush1.msra.mxu0 0.0
    %67 = vmatprep.subr.mxu0 0.0
    %68 = vmatpush1.msra.mxu0 %v28
    %69 = vmatprep.subr.mxu0 0.0
    %70 = vmatpush1.msra.mxu0 %v27
    %71 = vmatprep.subr.mxu0 0.0
    %72 = vmatpush1.msra.mxu0 %v26
    %73 = vmatprep.subr.mxu0 0.0
    %74 = vmatpush1.msra.mxu0 %v25
    %75 = vmatprep.subr.mxu0 0.0
    %76 = vmatpush1.msra.mxu0 %v24
    %77 = vmatprep.subr.mxu0 0.0
    %78 = vmatpush1.msra.mxu0 %v23
    %79 = vmatprep.subr.mxu0 0.0
    %80 = vmatpush1.msra.mxu0 %v22
    %81 = vmatprep.subr.mxu0 0.0
    %82 = vmatpush1.msra.mxu0 %v21
    %83 = vmatprep.subr.mxu0 0.0
    %84 = vmatpush2.msra.mxu0 0.0
    %85 = vmatprep.subr.mxu0 0.0
    %86 = vmatpush2.msra.mxu0 0.0
    %87 = vmatprep.subr.mxu0 0.0
    %88 = vmatpush2.msra.mxu0 0.0
    %89 = vmatprep.subr.mxu0 0.0
    %90 = vmatpush2.msra.mxu0 0.0
    %91 = vmatprep.subr.mxu0 0.0
    %92 = vmatpush2.msra.mxu0 0.0
    %93 = vmatprep.subr.mxu0 0.0
    %94 = vmatpush2.msra.mxu0 0.0
    %95 = vmatprep.subr.mxu0 0.0
    %96 = vmatpush2.msra.mxu0 0.0
    %97 = vmatprep.subr.mxu0 0.0
    %98 = vmatpush2.msra.mxu0 0.0
    %99 = vmatprep.subr.mxu0 0.0
    %100 = vmatpush2.msra.mxu0 0.0
    %101 = vmatprep.subr.mxu0 0.0
    %102 = vmatpush2.msra.mxu0 0.0
    %103 = vmatprep.subr.mxu0 0.0
    %104 = vmatpush2.msra.mxu0 0.0
    %105 = vmatprep.subr.mxu0 0.0
    %106 = vmatpush2.msra.mxu0 0.0
    %107 = vmatprep.subr.mxu0 0.0
    %108 = vmatpush2.msra.mxu0 0.0
    %109 = vmatprep.subr.mxu0 0.0
    %110 = vmatpush2.msra.mxu0 0.0
    %111 = vmatprep.subr.mxu0 0.0
    %112 = vmatpush2.msra.mxu0 0.0
    %113 = vmatprep.subr.mxu0 0.0
    %114 = vmatpush2.msra.mxu0 0.0
    %115 = vmatprep.mubr.f32.mxu0 0.0
    %116 = vmatmul.mubr.f32.gmra.mxu0 %v49
    %v117 = vpop.f32.mrf.mxu0
    %v118 = vadd.f32 %v34, %v117
    %v119 = vpop.f32.mrf.mxu0
    %120 = vdwg.mxu0
    %vm121 = vcmask 33792
    %122 = vst.msk [vmem:[#allocation2] sm:$0x3] %vm121, %v118
    // Predicated region
    $region14: #{_lambda_.41} parent=1 // pred_check
      _
    $region15: #{_lambda_.41} parent=1 // pred_check_branch
      %124 = sbr.rel (0) target = $region17
    $region16: #{_lambda_.41} parent=1 // pred_region
      %s126 = ssub.s32 32, 32
      %127 = vsyncadd [#allocation3], %s126
      %s129 = sshll.u32 [#allocation2], 4
      %s130 = int_to_ptr.vmem [resolvable:$true] %s129
      %132 = dma.vmem_to_hbm [thread:$0]  %s130, 32, %s3, [#allocation3]
    $region17: #{_lambda_.41} parent=1 // pred_fallthru
      _
    // Predicated region
    $region18: #{_lambda_.41} parent=1 // pred_check
      _
    $region19: #{_lambda_.41} parent=1 // pred_check_branch
      %134 = sbr.rel (0) target = $region21
    $region20: #{_lambda_.41} parent=1 // pred_region
      %135 = dma.done [#allocation3], 32
    $region21: #{_lambda_.41} parent=1 // pred_fallthru
      _
    %136 = vsyncpa [#allocation3], 1

// kernel: _lambda_.40
$region0: #{_lambda_.40}
  #allocation0 [shape = 'u32[]', space=smem, size = 0x4, offset = 0x4, fixed_abs, tag = 'smem constant byte address 0x4 - core index']
  #allocation1 [shape = 'u32[144,128]{1,0:T(1,128)}', space=vmem, size = 0x12000, scoped, tag = 'internal scratch']
  %s0 = inlined_call_operand.vmem [shape: bf16[16,432], index: 0, kind: input, shape index: {}]
  %s1 = inlined_call_operand.vmem [shape: bf16[432,128], index: 1, kind: input, shape index: {}]
  %s2 = inlined_call_operand.vmem [shape: f32[1,128], index: 2, kind: input, shape index: {}]
  %s3 = inlined_call_operand.vmem [shape: f32[1,128], index: 3, kind: input, shape index: {}]
  %s4 = inlined_call_operand.vmem [shape: bf16[16,128], index: 4, kind: input, shape index: {}]
  %s5 = inlined_call_operand.vmem [shape: bf16[16,128], index: 5, kind: output, shape index: {}]
  %s6 = sld [smem:[#allocation0]]
  $region30: #{_lambda_.40} parent=0
    _
  %s8 = ssub.s32 1, %s6
  %s9 = scalar_select 0, %s8, %s6
  // Predicated region
  $region2: #{_lambda_.40} parent=0 // pred_check
    _
  $region3: #{_lambda_.40} parent=0 // pred_check_branch
    %11 = sbr.rel (0) target = $region5
  $region4: #{_lambda_.40} parent=0 // pred_region
    _
  $region5: #{_lambda_.40} parent=0 // pred_fallthru
    _
  // Predicated region
  $region6: #{_lambda_.40} parent=0 // pred_check
    _
  $region7: #{_lambda_.40} parent=0 // pred_check_branch
    %13 = sbr.rel (0) target = $region9
  $region8: #{_lambda_.40} parent=0 // pred_region
    _
  $region9: #{_lambda_.40} parent=0 // pred_fallthru
    _
  // Predicated region
  $region10: #{_lambda_.40} parent=0 // pred_check
    _
  $region11: #{_lambda_.40} parent=0 // pred_check_branch
    %15 = sbr.rel (0) target = $region13
  $region12: #{_lambda_.40} parent=0 // pred_region
    _
  $region13: #{_lambda_.40} parent=0 // pred_fallthru
    _
  // Predicated region
  $region14: #{_lambda_.40} parent=0 // pred_check
    _
  $region15: #{_lambda_.40} parent=0 // pred_check_branch
    %17 = sbr.rel (0) target = $region17
  $region16: #{_lambda_.40} parent=0 // pred_region
    _
  $region17: #{_lambda_.40} parent=0 // pred_fallthru
    _
  // Predicated region
  $region18: #{_lambda_.40} parent=0 // pred_check
    _
  $region19: #{_lambda_.40} parent=0 // pred_check_branch
    %19 = sbr.rel (0) target = $region21
  $region20: #{_lambda_.40} parent=0 // pred_region
    _
  $region21: #{_lambda_.40} parent=0 // pred_fallthru
    _
  %v21 = vld [vmem:[%s0] sm:$0xff]
  %v22 = vld [vmem:[%s0 + $0x8] sm:$0xff]
  %v23 = vld [vmem:[%s0 + $0x10] sm:$0xff]
  %v24 = vld [vmem:[%s0 + $0x18] sm:$0xff]
  %v25 = vld [vmem:[%s1] sm:$0xf]
  %v26 = vld [vmem:[%s1 + $0x4] sm:$0xf]
  %v27 = vld [vmem:[%s1 + $0x8] sm:$0xf]
  %v28 = vld [vmem:[%s1 + $0xc] sm:$0xf]
  %v29 = vld [vmem:[%s1 + $0x10] sm:$0xf]
  %v30 = vld [vmem:[%s1 + $0x14] sm:$0xf]
  %v31 = vld [vmem:[%s1 + $0x18] sm:$0xf]
  %v32 = vld [vmem:[%s1 + $0x1c] sm:$0xf]
  %v33 = vld [vmem:[%s1 + $0x20] sm:$0xf]
  %v34 = vld [vmem:[%s1 + $0x24] sm:$0xf]
  %v35 = vld [vmem:[%s1 + $0x28] sm:$0xf]
  %v36 = vld [vmem:[%s1 + $0x2c] sm:$0xf]
  %v37 = vld [vmem:[%s1 + $0x30] sm:$0xf]
  %v38 = vld [vmem:[%s1 + $0x34] sm:$0xf]
  %v39 = vld [vmem:[%s1 + $0x38] sm:$0xf]
  %v40 = vld [vmem:[%s1 + $0x3c] sm:$0xf]
  %v41 = vld [vmem:[%s1 + $0x40] sm:$0xf]
  %v42 = vld [vmem:[%s1 + $0x44] sm:$0xf]
  %v43 = vld [vmem:[%s1 + $0x48] sm:$0xf]
  %v44 = vld [vmem:[%s1 + $0x4c] sm:$0xf]
  %v45 = vld [vmem:[%s1 + $0x50] sm:$0xf]
  %v46 = vld [vmem:[%s1 + $0x54] sm:$0xf]
  %v47 = vld [vmem:[%s1 + $0x58] sm:$0xf]
  %v48 = vld [vmem:[%s1 + $0x5c] sm:$0xf]
  %v49 = vld [vmem:[%s1 + $0x60] sm:$0xf]
  %v50 = vld [vmem:[%s1 + $0x64] sm:$0xf]
  %v51 = vld [vmem:[%s1 + $0x68] sm:$0xf]
  %v52 = vld [vmem:[%s1 + $0x6c] sm:$0xf]
  %v53 = vld [vmem:[%s1 + $0x70] sm:$0xf]
  %v54 = vld [vmem:[%s1 + $0x74] sm:$0xf]
  %v55 = vld [vmem:[%s1 + $0x78] sm:$0xf]
  %v56 = vld [vmem:[%s1 + $0x7c] sm:$0xf]
  %v57 = vld [vmem:[%s1 + $0x80] sm:$0xf]
  %v58 = vld [vmem:[%s1 + $0x84] sm:$0xf]
  %v59 = vld [vmem:[%s1 + $0x88] sm:$0xf]
  %v60 = vld [vmem:[%s1 + $0x8c] sm:$0xf]
  %v61 = vld [vmem:[%s1 + $0x90] sm:$0xf]
  %v62 = vld [vmem:[%s1 + $0x94] sm:$0xf]
  %v63 = vld [vmem:[%s1 + $0x98] sm:$0xf]
  %v64 = vld [vmem:[%s1 + $0x9c] sm:$0xf]
  %v65 = vld [vmem:[%s1 + $0xa0] sm:$0xf]
  %v66 = vld [vmem:[%s1 + $0xa4] sm:$0xf]
  %v67 = vld [vmem:[%s1 + $0xa8] sm:$0xf]
  %v68 = vld [vmem:[%s1 + $0xac] sm:$0xf]
  %v69 = vld [vmem:[%s1 + $0xb0] sm:$0xf]
  %v70 = vld [vmem:[%s1 + $0xb4] sm:$0xf]
  %v71 = vld [vmem:[%s1 + $0xb8] sm:$0xf]
  %v72 = vld [vmem:[%s1 + $0xbc] sm:$0xf]
  %v73 = vld [vmem:[%s1 + $0xc0] sm:$0xf]
  %v74 = vld [vmem:[%s1 + $0xc4] sm:$0xf]
  %v75 = vld [vmem:[%s1 + $0xc8] sm:$0xf]
  %v76 = vld [vmem:[%s1 + $0xcc] sm:$0xf]
  %v77 = vld [vmem:[%s1 + $0xd0] sm:$0xf]
  %v78 = vld [vmem:[%s1 + $0xd4] sm:$0xf]
  %v83 = vunpack.c.l.b16 %v21
  %v84 = vunpack.c.h.b16 %v21
  %v85 = vunpack.c.l.b16 %v22
  %v86 = vunpack.c.h.b16 %v22
  %v87 = vunpack.c.l.b16 %v23
  %v88 = vunpack.c.h.b16 %v23
  %v89 = vunpack.c.l.b16 %v24
  %v90 = vunpack.c.h.b16 %v24
  %v91 = vpack.c.b16 %v87, %v83
  %v92 = vpack.c.b16 %v88, %v84
  %v93 = vpack.c.b16 %v89, %v85
  %v94 = vpack.c.b16 %v90, %v86
  %v152 = vunpack.c.l.b16 %v25
  %v153 = vunpack.c.l.b16 %v26
  %v154 = vunpack.c.l.b16 %v27
  %v155 = vunpack.c.l.b16 %v28
  %v156 = vunpack.c.l.b16 %v29
  %v157 = vunpack.c.l.b16 %v30
  %v158 = vunpack.c.l.b16 %v31
  %v159 = vunpack.c.l.b16 %v32
  %v160 = vunpack.c.l.b16 %v33
  %v161 = vunpack.c.l.b16 %v34
  %v162 = vunpack.c.l.b16 %v35
  %v163 = vunpack.c.l.b16 %v36
  %v164 = vunpack.c.l.b16 %v37
  %v165 = vunpack.c.l.b16 %v38
  %v166 = vunpack.c.l.b16 %v39
  %v167 = vunpack.c.l.b16 %v40
  %v168 = vunpack.c.l.b16 %v41
  %v169 = vunpack.c.l.b16 %v42
  %v170 = vunpack.c.l.b16 %v43
  %v171 = vunpack.c.l.b16 %v44
  %v172 = vunpack.c.l.b16 %v45
  %v173 = vunpack.c.l.b16 %v46
  %v174 = vunpack.c.l.b16 %v47
  %v175 = vunpack.c.l.b16 %v48
  %v176 = vunpack.c.l.b16 %v49
  %v177 = vunpack.c.l.b16 %v50
  %v178 = vunpack.c.l.b16 %v51
  %v179 = vunpack.c.l.b16 %v52
  %v180 = vunpack.c.l.b16 %v53
  %v181 = vunpack.c.l.b16 %v54
  %v182 = vunpack.c.l.b16 %v55
  %v183 = vunpack.c.l.b16 %v56
  %v184 = vunpack.c.l.b16 %v57
  %v185 = vunpack.c.l.b16 %v58
  %v186 = vunpack.c.l.b16 %v59
  %v187 = vunpack.c.l.b16 %v60
  %v188 = vunpack.c.l.b16 %v61
  %v189 = vunpack.c.l.b16 %v62
  %v190 = vunpack.c.l.b16 %v63
  %v191 = vunpack.c.l.b16 %v64
  %v192 = vunpack.c.l.b16 %v65
  %v193 = vunpack.c.l.b16 %v66
  %v194 = vunpack.c.l.b16 %v67
  %v195 = vunpack.c.l.b16 %v68
  %v196 = vunpack.c.l.b16 %v69
  %v197 = vunpack.c.l.b16 %v70
  %v198 = vunpack.c.l.b16 %v71
  %v199 = vunpack.c.l.b16 %v72
  %v200 = vunpack.c.l.b16 %v73
  %v201 = vunpack.c.l.b16 %v74
  %v202 = vunpack.c.l.b16 %v75
  %v203 = vunpack.c.l.b16 %v76
  %v204 = vunpack.c.l.b16 %v77
  %v205 = vunpack.c.l.b16 %v78
  %v206 = vpack.c.b16 %v153, %v152
  %v207 = vpack.c.b16 %v155, %v154
  %v208 = vpack.c.b16 %v157, %v156
  %v209 = vpack.c.b16 %v159, %v158
  %v210 = vpack.c.b16 %v161, %v160
  %v211 = vpack.c.b16 %v163, %v162
  %v212 = vpack.c.b16 %v165, %v164
  %v213 = vpack.c.b16 %v167, %v166
  %v214 = vpack.c.b16 %v169, %v168
  %v215 = vpack.c.b16 %v171, %v170
  %v216 = vpack.c.b16 %v173, %v172
  %v217 = vpack.c.b16 %v175, %v174
  %v218 = vpack.c.b16 %v177, %v176
  %v219 = vpack.c.b16 %v179, %v178
  %v220 = vpack.c.b16 %v181, %v180
  %v221 = vpack.c.b16 %v183, %v182
  %v222 = vpack.c.b16 %v185, %v184
  %v223 = vpack.c.b16 %v187, %v186
  %v224 = vpack.c.b16 %v189, %v188
  %v225 = vpack.c.b16 %v191, %v190
  %v226 = vpack.c.b16 %v193, %v192
  %v227 = vpack.c.b16 %v195, %v194
  %v228 = vpack.c.b16 %v197, %v196
  %v229 = vpack.c.b16 %v199, %v198
  %v230 = vpack.c.b16 %v201, %v200
  %v231 = vpack.c.b16 %v203, %v202
  %v232 = vpack.c.b16 %v205, %v204
  %vm260 = vcmask 392192
  %v262 = vsel %vm260, %v94, 0
  %264 = vmatprep.subr.bf16.mxu0 0
  %265 = vmatpush1.bf16.msra.mxu0 %v213
  %266 = vmatprep.subr.bf16.mxu0 0
  %267 = vmatpush1.bf16.msra.mxu0 %v212
  %268 = vmatprep.subr.bf16.mxu0 0
  %269 = vmatpush1.bf16.msra.mxu0 %v211
  %270 = vmatprep.subr.bf16.mxu0 0
  %271 = vmatpush1.bf16.msra.mxu0 %v210
  %272 = vmatprep.subr.bf16.mxu0 0
  %273 = vmatpush1.bf16.msra.mxu0 %v209
  %274 = vmatprep.subr.bf16.mxu0 0
  %275 = vmatpush1.bf16.msra.mxu0 %v208
  %276 = vmatprep.subr.bf16.mxu0 0
  %277 = vmatpush1.bf16.msra.mxu0 %v207
  %278 = vmatprep.subr.bf16.mxu0 0
  %279 = vmatpush1.bf16.msra.mxu0 %v206
  %280 = vmatprep.subr.bf16.mxu0 0
  %281 = vmatpush2.bf16.msra.mxu0 %v221
  %282 = vmatprep.subr.bf16.mxu0 0
  %283 = vmatpush2.bf16.msra.mxu0 %v220
  %284 = vmatprep.subr.bf16.mxu0 0
  %285 = vmatpush2.bf16.msra.mxu0 %v219
  %286 = vmatprep.subr.bf16.mxu0 0
  %287 = vmatpush2.bf16.msra.mxu0 %v218
  %288 = vmatprep.subr.bf16.mxu0 0
  %289 = vmatpush2.bf16.msra.mxu0 %v217
  %290 = vmatprep.subr.bf16.mxu0 0
  %291 = vmatpush2.bf16.msra.mxu0 %v216
  %292 = vmatprep.subr.bf16.mxu0 0
  %293 = vmatpush2.bf16.msra.mxu0 %v215
  %294 = vmatprep.subr.bf16.mxu0 0
  %295 = vmatpush2.bf16.msra.mxu0 %v214
  %296 = vmatprep.mubr.bf16.mxu0 %v92
  %297 = vmatmul.mubr.bf16.gmra.mxu0 %v91
  %v298 = vpop.f32.mrf.mxu0
  %v299 = vadd.f32 0.0, %v298
  %v300 = vpop.f32.mrf.mxu0
  %v301 = vpop.f32.mrf.mxu0
  %v302 = vadd.f32 0.0, %v301
  %v303 = vpop.f32.mrf.mxu0
  %304 = vdwg.mxu0
  %305 = vmatprep.subr.bf16.mxu0 0
  %306 = vmatpush1.bf16.msra.mxu0 %v229
  %307 = vmatprep.subr.bf16.mxu0 0
  %308 = vmatpush1.bf16.msra.mxu0 %v228
  %309 = vmatprep.subr.bf16.mxu0 0
  %310 = vmatpush1.bf16.msra.mxu0 %v227
  %311 = vmatprep.subr.bf16.mxu0 0
  %312 = vmatpush1.bf16.msra.mxu0 %v226
  %313 = vmatprep.subr.bf16.mxu0 0
  %314 = vmatpush1.bf16.msra.mxu0 %v225
  %315 = vmatprep.subr.bf16.mxu0 0
  %316 = vmatpush1.bf16.msra.mxu0 %v224
  %317 = vmatprep.subr.bf16.mxu0 0
  %318 = vmatpush1.bf16.msra.mxu0 %v223
  %319 = vmatprep.subr.bf16.mxu0 0
  %320 = vmatpush1.bf16.msra.mxu0 %v222
  %321 = vmatprep.subr.bf16.mxu0 0
  %322 = vmatpush2.bf16.msra.mxu0 0
  %323 = vmatprep.subr.bf16.mxu0 0
  %324 = vmatpush2.bf16.msra.mxu0 0
  %325 = vmatprep.subr.bf16.mxu0 0
  %326 = vmatpush2.bf16.msra.mxu0 0
  %327 = vmatprep.subr.bf16.mxu0 0
  %328 = vmatpush2.bf16.msra.mxu0 0
  %329 = vmatprep.subr.bf16.mxu0 0
  %330 = vmatpush2.bf16.msra.mxu0 0
  %331 = vmatprep.subr.bf16.mxu0 0
  %332 = vmatpush2.bf16.msra.mxu0 %v232
  %333 = vmatprep.subr.bf16.mxu0 0
  %334 = vmatpush2.bf16.msra.mxu0 %v231
  %335 = vmatprep.subr.bf16.mxu0 0
  %336 = vmatpush2.bf16.msra.mxu0 %v230
  %337 = vmatprep.mubr.bf16.mxu0 %v262
  %338 = vmatmul.mubr.bf16.gmra.mxu0 %v93
  %v339 = vpop.f32.mrf.mxu0
  %v340 = vadd.f32 %v299, %v339
  %v341 = vpop.f32.mrf.mxu0
  %v342 = vpop.f32.mrf.mxu0
  %v343 = vadd.f32 %v302, %v342
  %v344 = vpop.f32.mrf.mxu0
  %345 = vdwg.mxu0
  %v346 = vadd.f32 %v340, %v343
  %v347 = vrot.slane %v346, 4
  %v348 = vadd.f32 %v346, %v347
  %v349 = vrot.slane %v348, 2
  %v350 = vadd.f32 %v348, %v349
  %v351 = vrot.slane %v350, 1
  %v352 = vadd.f32 %v350, %v351
  %v353 = vmul.f32 %v352, 0.5
  %v354 = vmul.f32 %v340, %v340
  %v355 = vmul.f32 %v343, %v343
  %v356 = vadd.f32 %v354, %v355
  %v357 = vrot.slane %v356, 4
  %v358 = vadd.f32 %v356, %v357
  %v359 = vrot.slane %v358, 2
  %v360 = vadd.f32 %v358, %v359
  %v361 = vrot.slane %v360, 1
  %v362 = vadd.f32 %v360, %v361
  %v363 = vmul.f32 %v362, 0.5
  %v364 = vmul.f32 %v353, %v353
  %v365 = vsub.f32 %v363, %v364
  %v366 = vmax.f32 %v365, 0.0
  %v367 = vadd.f32 %v366, 1e-05
  %v368 = vrsqrt.pop %v367
  %v369 = vsub.f32 %v340, %v353
  %v370 = vsub.f32 %v343, %v353
  %v371 = vld [vmem:[%s2] sm:$0x1]
  %v372 = vmul.f32 %v368, %v371
  %v373 = vlaneseq
  %v374 = vshrl.u32 %v373, 7
  %v375 = vsub.s32 0, %v374
  %v376 = vrot.slane %v372, %v375
  %v377 = vmul.f32 %v369, %v376
  %v378 = vmul.f32 %v370, %v376
  %v379 = vld [vmem:[%s3] sm:$0x1]
  %v381 = vlaneseq
  %v382 = vshrl.u32 %v381, 7
  %v383 = vsub.s32 0, %v382
  %v384 = vrot.slane %v379, %v383
  %v386 = vadd.f32 %v377, %v384
  %v387 = vadd.f32 %v378, %v384
  %v388 = vld [vmem:[%s4] sm:$0xf]
  %v389 = vld [vmem:[%s4 + $0x4] sm:$0xf]
  %v390 = vunpack.c.l.bf16 %v388
  %v391 = vunpack.c.l.bf16 %v389
  %v392 = vadd.f32 %v386, %v390
  %v393 = vadd.f32 %v387, %v391
  %v394 = vmax.f32 %v392, 0.0
  %v395 = vmax.f32 %v393, 0.0
  %v396 = vpack.c.bf16 %v395, %v394
  %v398 = vunpack.c.l.b16 %v396
  %v399 = vunpack.c.h.b16 %v396
  %v400 = vpack.c.b16 %v398, %v398
  %v401 = vpack.c.b16 %v399, %v399
  %404 = vst [vmem:[%s5] sm:$0xf] %v400
  %405 = vst [vmem:[%s5 + $0x4] sm:$0xf] %v401
  // Predicated region
  $region22: #{_lambda_.40} parent=0 // pred_check
    _
  $region23: #{_lambda_.40} parent=0 // pred_check_branch
    %407 = sbr.rel (0) target = $region25
  $region24: #{_lambda_.40} parent=0 // pred_region
    _
  $region25: #{_lambda_.40} parent=0 // pred_fallthru
    _
  // Predicated region
  $region26: #{_lambda_.40} parent=0 // pred_check
    _
  $region27: #{_lambda_.40} parent=0 // pred_check_branch
    %409 = sbr.rel (0) target = $region29
  $region28: #{_lambda_.40} parent=0 // pred_region
    _
  $region29: #{_lambda_.40} parent=0 // pred_fallthru
    _

</llo_original>
